<compile_context>
chip_gen: v6e
topology: v6e:2x2x1
jax: 0.10.0
libtpu: 0.0.40
codegen_flags: <defaults>
</compile_context>

<pallas_src>
import functools

import jax
import jax.numpy as jnp
from jax.experimental import pallas as pl
from jax.experimental.pallas import tpu as pltpu

K = 5          # LeNet-5 conv kernel size
IMG_H = 32     # LeNet-5 needs 32x32 inputs so conv3 output is 1x1 (Flatten->120)
IMG_W = 32


# ----------------------------------------------------------------------------
# Host-side, one-time weight packing (pure JAX, outside the hot path)
# ----------------------------------------------------------------------------

def _conv_band_mats(w_hwio, w_in):
    """Pack HWIO conv weights into banded matrices for the shifted-matmul conv.

    w_hwio: (K, K, Cin, Cout).  Returns (K, w_in*Cin, Wo*Cout) with
      mats[i, w*Cin+ci, wo*Cout+co] = w_hwio[i, w-wo, ci, co]  if 0 <= w-wo < K.
    Then  conv(x)[ho, wo, co] = sum_i (row (ho+i) of A) @ mats[i].
    """
    k, _, cin, cout = w_hwio.shape
    wo_n = w_in - k + 1
    j = jnp.arange(w_in)[:, None] - jnp.arange(wo_n)[None, :]      # (W, Wo)
    valid = (j >= 0) & (j < k)
    jc = jnp.clip(j, 0, k - 1)
    m = w_hwio[:, jc]                                              # (K, W, Wo, Cin, Cout)
    m = m * valid[None, :, :, None, None].astype(w_hwio.dtype)
    m = m.transpose(0, 1, 3, 2, 4)                                 # (K, W, Cin, Wo, Cout)
    return m.reshape(k, w_in * cin, wo_n * cout)


def _pool_col_mat(w, c):
    """0.5-valued column-pair pooling matrix on the (rows, w*C) layout: A @ Pw."""
    return 0.5 * jnp.kron(
        jnp.repeat(jnp.eye(w // 2, dtype=jnp.float32), 2, axis=0),
        jnp.eye(c, dtype=jnp.float32))                             # (w*C, w/2*C)


def _tile_bias(b, wo_n):
    return jnp.tile(b.reshape(-1), wo_n).reshape(1, -1)            # (1, Wo*Cout)


def prepare_kernel_params(p):
    """Convert plain HWIO / (in,out) params into the packed kernel layout."""
    h, w = IMG_H, IMG_W
    kp = {}
    kp["w1m"] = _conv_band_mats(p["w1"], w)            # (5, 32*Cin, 28*6)
    kp["b1"] = _tile_bias(p["b1"], w - K + 1)
    kp["pw1"] = _pool_col_mat(w - K + 1, 6)            # (168, 84)
    w2 = (w - K + 1) // 2                              # 14
    kp["w2m"] = _conv_band_mats(p["w2"], w2)           # (5, 84, 160)
    kp["b2"] = _tile_bias(p["b2"], w2 - K + 1)
    kp["pw2"] = _pool_col_mat(w2 - K + 1, 16)          # (160, 80)
    w3 = (w2 - K + 1) // 2                             # 5
    kp["w3m"] = _conv_band_mats(p["w3"], w3)           # (5, 80, 120)
    kp["b3"] = _tile_bias(p["b3"], w3 - K + 1)
    kp["wf1"], kp["bf1"] = p["wf1"], p["bf1"]
    kp["wf2"], kp["bf2"] = p["wf2"], p["bf2"]
    return kp


# ----------------------------------------------------------------------------
# The fused Pallas kernel (one grid step == one tile of B_TILE images)
# ----------------------------------------------------------------------------

def _lenet5_kernel(x_ref, w1_ref, b1_ref, pw1_ref,
                   w2_ref, b2_ref, pw2_ref,
                   w3_ref, b3_ref, wf1_ref, bf1_ref, wf2_ref, bf2_ref,
                   o_ref):
    f32 = jnp.float32

    def conv_tanh(a, wm_ref, b_ref, d):
        # out[r, :] = tanh(sum_i a[r + d*i, :] @ wm[i] + b);  len = len(a) - d*(K-1)
        lo = a.shape[0] - d * (K - 1)
        acc = jnp.zeros((lo, wm_ref.shape[2]), f32)
        for i in range(K):                      # K row-shifted MXU matmuls, M ~ B_TILE*32
            acc = acc + jnp.dot(a[d * i:d * i + lo, :], wm_ref[i],
                                preferred_element_type=f32)
        return jnp.tanh(acc + b_ref[...])

    def avgpool(a, pw_ref, d):
        # Column pairs via one matmul (M = B_TILE*rows); row pairs (stride d in
        # the slab) via a pairwise add of two shifted slices (VPU, no MXU).
        c = jnp.dot(a, pw_ref[...], preferred_element_type=f32)
        lo = c.shape[0] - d
        return 0.5 * (c[0:lo, :] + c[d:d + lo, :])

    # Row slab: image b occupies slab rows b*32 .. b*32+31.
    a = x_ref[...].astype(f32)                  # (B_TILE*32, 32*Cin)
    a = conv_tanh(a, w1_ref, b1_ref, 1)         # valid rows b*32 + h,   h < 28
    a = avgpool(a, pw1_ref, 1)                  # valid rows b*32 + 2*r, r < 14
    a = conv_tanh(a, w2_ref, b2_ref, 2)         # valid rows b*32 + 2*h, h < 10
    a = avgpool(a, pw2_ref, 2)                  # valid rows b*32 + 4*r, r < 5
    a = conv_tanh(a, w3_ref, b3_ref, 4)         # valid rows b*32       (Flatten -> 120)
    a = jnp.tanh(jnp.dot(a, wf1_ref[...],
                         preferred_element_type=f32) + bf1_ref[...])
    logits = jnp.dot(a, wf2_ref[...],
                     preferred_element_type=f32) + bf2_ref[...]

    nv = logits.shape[0]                        # = B_TILE*32 - 31
    o_ref[0:nv, :] = logits.astype(o_ref.dtype)
    o_ref[nv:o_ref.shape[0], :] = jnp.zeros(
        (o_ref.shape[0] - nv, o_ref.shape[1]), o_ref.dtype)


def _round_up(x, m):
    return (x + m - 1) // m * m


def lenet5_forward(x_nchw, kp, block_b=64):
    """Full LeNet-5 forward; x_nchw: (B, Cin, 32, 32), kp: prepared params."""
    b, cin, h, w = x_nchw.shape
    assert (h, w) == (IMG_H, IMG_W), "LeNet-5 requires 32x32 inputs"
    nc = kp["bf2"].shape[-1]

    bt = min(block_b, _round_up(b, 8))          # images per grid step
    bpad = _round_up(b, bt)

    # Host-side glue only: NCHW -> channel-minor row slab (bpad*32, 32*Cin).
    x2d = jnp.transpose(x_nchw, (0, 2, 3, 1)).reshape(b, h, w * cin)
    x2d = x2d.astype(jnp.float32)
    if bpad > b:
        x2d = jnp.concatenate(
            [x2d, jnp.zeros((bpad - b, h, w * cin), jnp.float32)], axis=0)
    x2d = x2d.reshape(bpad * h, w * cin)

    weight_names = ("w1m", "b1", "pw1", "w2m", "b2", "pw2",
                    "w3m", "b3", "wf1", "bf1", "wf2", "bf2")
    weights = [kp[name] for name in weight_names]

    def full_spec(arr):
        n = arr.ndim

        def imap(i):
            return (0,) * n

        return pl.BlockSpec(arr.shape, imap)

    flops = 2 * bpad * (28 * 28 * 6 * 25 * cin + 10 * 10 * 16 * 25 * 6
                        + 120 * 25 * 16 + 120 * 84 + 84 * nc)
    transc = bpad * (28 * 28 * 6 + 10 * 10 * 16 + 120 + 84)
    bytes_acc = 4 * (bpad * (h * w * cin + h * nc)
                     + sum(int(a.size) for a in weights))

    out = pl.pallas_call(
        _lenet5_kernel,
        out_shape=jax.ShapeDtypeStruct((bpad * h, nc), jnp.float32),
        grid=(bpad // bt,),
        in_specs=[pl.BlockSpec((bt * h, w * cin), lambda i: (i, 0))]
                 + [full_spec(a) for a in weights],
        out_specs=pl.BlockSpec((bt * h, nc), lambda i: (i, 0)),
        compiler_params=pltpu.CompilerParams(
            dimension_semantics=("parallel",),
            vmem_limit_bytes=32 * 1024 * 1024),
        cost_estimate=pl.CostEstimate(flops=flops, transcendentals=transc,
                                      bytes_accessed=bytes_acc),
    )(x2d, *weights)

    # Per-image logits live on slab row b*32.
    return out.reshape(bpad, h, nc)[:b, 0, :]


# ----------------------------------------------------------------------------
# Parameters (deterministic, synthetic) and a pure-JAX reference
# ----------------------------------------------------------------------------

def init_params(key, image_channels, num_classes):
    ks = jax.random.split(key, 10)

    def u(k, shape, fan_in):
        s = 1.0 / jnp.sqrt(jnp.float32(fan_in))
        return jax.random.uniform(k, shape, jnp.float32, -s, s)

    return {
        "w1": u(ks[0], (5, 5, image_channels, 6), 5 * 5 * image_channels),
        "b1": u(ks[1], (1, 6), 5 * 5 * image_channels),
        "w2": u(ks[2], (5, 5, 6, 16), 5 * 5 * 6),
        "b2": u(ks[3], (1, 16), 5 * 5 * 6),
        "w3": u(ks[4], (5, 5, 16, 120), 5 * 5 * 16),
        "b3": u(ks[5], (1, 120), 5 * 5 * 16),
        "wf1": u(ks[6], (120, 84), 120),
        "bf1": u(ks[7], (1, 84), 120),
        "wf2": u(ks[8], (84, num_classes), 84),
        "bf2": u(ks[9], (1, num_classes), 84),
    }


def reference_forward(x_nchw, p):
    """Pure-JAX reference (no Pallas) for the correctness check."""
    x = jnp.transpose(x_nchw, (0, 2, 3, 1)).astype(jnp.float32)
    dn = ("NHWC", "HWIO", "NHWC")

    def block(x, w, b):
        y = jax.lax.conv_general_dilated(x, w, (1, 1), "VALID",
                                         dimension_numbers=dn)
        return jnp.tanh(y + b.reshape(1, 1, 1, -1))

    def pool(x):
        bsz, hh, ww, cc = x.shape
        return x.reshape(bsz, hh // 2, 2, ww // 2, 2, cc).mean(axis=(2, 4))

    x = pool(block(x, p["w1"], p["b1"]))
    x = pool(block(x, p["w2"], p["b2"]))
    x = block(x, p["w3"], p["b3"])
    x = x.reshape(x.shape[0], -1)
    x = jnp.tanh(x @ p["wf1"] + p["bf1"])
    return x @ p["wf2"] + p["bf2"]


if __name__ == "__main__":
    B, image_channels, num_classes = 2, 1, 10
    key = jax.random.PRNGKey(0)
    k_x, k_p = jax.random.split(key)

    x = jax.random.normal(k_x, (B, image_channels, IMG_H, IMG_W), jnp.float32)
    params = init_params(k_p, image_channels, num_classes)
    kparams = prepare_kernel_params(params)      # one-time weight packing

    fwd = jax.jit(functools.partial(lenet5_forward, block_b=64))
    logits = jax.block_until_ready(fwd(x, kparams))
    assert logits.shape == (B, num_classes), logits.shape

    ref = jax.block_until_ready(reference_forward(x, params))
    assert jnp.allclose(logits, ref, atol=1e-2, rtol=1e-2), (
        "Pallas output does not match JAX reference")

    # Also exercise the multi-grid-step + batch-padding path.
    x2 = jax.random.normal(jax.random.PRNGKey(1),
                           (20, image_channels, IMG_H, IMG_W), jnp.float32)
    fwd2 = jax.jit(functools.partial(lenet5_forward, block_b=8))
    logits2 = jax.block_until_ready(fwd2(x2, kparams))
    ref2 = jax.block_until_ready(reference_forward(x2, params))
    assert jnp.allclose(logits2, ref2, atol=1e-2, rtol=1e-2), (
        "Pallas output (batched grid) does not match JAX reference")

    print("KERNEL_OK")
</pallas_src>

<mosaic_0001>
module attributes {stable_mosaic.version = 11 : i64} {
  func.func @_lenet5_kernel(%arg0: i32, %arg1: memref<256x32xf32, #tpu.memory_space<vmem>>, %arg2: memref<5x32x168xf32, #tpu.memory_space<vmem>>, %arg3: memref<1x168xf32, #tpu.memory_space<vmem>>, %arg4: memref<168x84xf32, #tpu.memory_space<vmem>>, %arg5: memref<5x84x160xf32, #tpu.memory_space<vmem>>, %arg6: memref<1x160xf32, #tpu.memory_space<vmem>>, %arg7: memref<160x80xf32, #tpu.memory_space<vmem>>, %arg8: memref<5x80x120xf32, #tpu.memory_space<vmem>>, %arg9: memref<1x120xf32, #tpu.memory_space<vmem>>, %arg10: memref<120x84xf32, #tpu.memory_space<vmem>>, %arg11: memref<1x84xf32, #tpu.memory_space<vmem>>, %arg12: memref<84x10xf32, #tpu.memory_space<vmem>>, %arg13: memref<1x10xf32, #tpu.memory_space<vmem>>, %arg14: memref<256x10xf32, #tpu.memory_space<vmem>>) attributes {dimension_semantics = [#tpu.dimension_semantics<parallel>], iteration_bounds = array<i64: 1>, scalar_prefetch = 0 : i64, scratch_operands = 0 : i64, tpu.core_type = #tpu.core_type<tc>, window_params = [{transform_indices = @transform_0, window_bounds = array<i64: 256, 32>}, {pipeline_mode = #tpu.pipeline_mode<synchronous>, transform_indices = @transform_1, window_bounds = array<i64: 5, 32, 168>}, {pipeline_mode = #tpu.pipeline_mode<synchronous>, transform_indices = @transform_2, window_bounds = array<i64: 1, 168>}, {pipeline_mode = #tpu.pipeline_mode<synchronous>, transform_indices = @transform_3, window_bounds = array<i64: 168, 84>}, {pipeline_mode = #tpu.pipeline_mode<synchronous>, transform_indices = @transform_4, window_bounds = array<i64: 5, 84, 160>}, {pipeline_mode = #tpu.pipeline_mode<synchronous>, transform_indices = @transform_5, window_bounds = array<i64: 1, 160>}, {pipeline_mode = #tpu.pipeline_mode<synchronous>, transform_indices = @transform_6, window_bounds = array<i64: 160, 80>}, {pipeline_mode = #tpu.pipeline_mode<synchronous>, transform_indices = @transform_7, window_bounds = array<i64: 5, 80, 120>}, {pipeline_mode = #tpu.pipeline_mode<synchronous>, transform_indices = @transform_8, window_bounds = array<i64: 1, 120>}, {pipeline_mode = #tpu.pipeline_mode<synchronous>, transform_indices = @transform_9, window_bounds = array<i64: 120, 84>}, {pipeline_mode = #tpu.pipeline_mode<synchronous>, transform_indices = @transform_10, window_bounds = array<i64: 1, 84>}, {pipeline_mode = #tpu.pipeline_mode<synchronous>, transform_indices = @transform_11, window_bounds = array<i64: 84, 10>}, {pipeline_mode = #tpu.pipeline_mode<synchronous>, transform_indices = @transform_12, window_bounds = array<i64: 1, 10>}, {transform_indices = @transform_13, window_bounds = array<i64: 256, 10>}]} {
    %c0 = arith.constant 0 : index
    %c0_0 = arith.constant 0 : index
    %0 = vector.load %arg1[%c0, %c0_0] : memref<256x32xf32, #tpu.memory_space<vmem>>, vector<256x32xf32>
    %cst = arith.constant 0.000000e+00 : f32
    %1 = vector.broadcast %cst : f32 to vector<252x168xf32>
    %2 = vector.extract_strided_slice %0 {offsets = [0, 0], sizes = [252, 32], strides = [1, 1]} : vector<256x32xf32> to vector<252x32xf32>
    %c0_1 = arith.constant 0 : index
    %c0_2 = arith.constant 0 : index
    %c0_3 = arith.constant 0 : index
    %3 = vector.load %arg2[%c0_1, %c0_2, %c0_3] : memref<5x32x168xf32, #tpu.memory_space<vmem>>, vector<1x32x168xf32>
    %4 = vector.shape_cast %3 : vector<1x32x168xf32> to vector<32x168xf32>
    %cst_4 = arith.constant dense<0.000000e+00> : vector<252x168xf32>
    %5 = tpu.matmul %2, %4, %cst_4 {dimension_numbers = #tpu.dot_dimension_numbers<[1], [0], [0], [1], [0, 0, 1, 1], [], []>} : vector<252x32xf32>, vector<32x168xf32>, vector<252x168xf32> -> vector<252x168xf32>
    %6 = arith.addf %1, %5 : vector<252x168xf32>
    %7 = vector.extract_strided_slice %0 {offsets = [1, 0], sizes = [252, 32], strides = [1, 1]} : vector<256x32xf32> to vector<252x32xf32>
    %c1 = arith.constant 1 : index
    %c0_5 = arith.constant 0 : index
    %c0_6 = arith.constant 0 : index
    %8 = vector.load %arg2[%c1, %c0_5, %c0_6] : memref<5x32x168xf32, #tpu.memory_space<vmem>>, vector<1x32x168xf32>
    %9 = vector.shape_cast %8 : vector<1x32x168xf32> to vector<32x168xf32>
    %cst_7 = arith.constant dense<0.000000e+00> : vector<252x168xf32>
    %10 = tpu.matmul %7, %9, %cst_7 {dimension_numbers = #tpu.dot_dimension_numbers<[1], [0], [0], [1], [0, 0, 1, 1], [], []>} : vector<252x32xf32>, vector<32x168xf32>, vector<252x168xf32> -> vector<252x168xf32>
    %11 = arith.addf %6, %10 : vector<252x168xf32>
    %12 = vector.extract_strided_slice %0 {offsets = [2, 0], sizes = [252, 32], strides = [1, 1]} : vector<256x32xf32> to vector<252x32xf32>
    %c2 = arith.constant 2 : index
    %c0_8 = arith.constant 0 : index
    %c0_9 = arith.constant 0 : index
    %13 = vector.load %arg2[%c2, %c0_8, %c0_9] : memref<5x32x168xf32, #tpu.memory_space<vmem>>, vector<1x32x168xf32>
    %14 = vector.shape_cast %13 : vector<1x32x168xf32> to vector<32x168xf32>
    %cst_10 = arith.constant dense<0.000000e+00> : vector<252x168xf32>
    %15 = tpu.matmul %12, %14, %cst_10 {dimension_numbers = #tpu.dot_dimension_numbers<[1], [0], [0], [1], [0, 0, 1, 1], [], []>} : vector<252x32xf32>, vector<32x168xf32>, vector<252x168xf32> -> vector<252x168xf32>
    %16 = arith.addf %11, %15 : vector<252x168xf32>
    %17 = vector.extract_strided_slice %0 {offsets = [3, 0], sizes = [252, 32], strides = [1, 1]} : vector<256x32xf32> to vector<252x32xf32>
    %c3 = arith.constant 3 : index
    %c0_11 = arith.constant 0 : index
    %c0_12 = arith.constant 0 : index
    %18 = vector.load %arg2[%c3, %c0_11, %c0_12] : memref<5x32x168xf32, #tpu.memory_space<vmem>>, vector<1x32x168xf32>
    %19 = vector.shape_cast %18 : vector<1x32x168xf32> to vector<32x168xf32>
    %cst_13 = arith.constant dense<0.000000e+00> : vector<252x168xf32>
    %20 = tpu.matmul %17, %19, %cst_13 {dimension_numbers = #tpu.dot_dimension_numbers<[1], [0], [0], [1], [0, 0, 1, 1], [], []>} : vector<252x32xf32>, vector<32x168xf32>, vector<252x168xf32> -> vector<252x168xf32>
    %21 = arith.addf %16, %20 : vector<252x168xf32>
    %22 = vector.extract_strided_slice %0 {offsets = [4, 0], sizes = [252, 32], strides = [1, 1]} : vector<256x32xf32> to vector<252x32xf32>
    %c4 = arith.constant 4 : index
    %c0_14 = arith.constant 0 : index
    %c0_15 = arith.constant 0 : index
    %23 = vector.load %arg2[%c4, %c0_14, %c0_15] : memref<5x32x168xf32, #tpu.memory_space<vmem>>, vector<1x32x168xf32>
    %24 = vector.shape_cast %23 : vector<1x32x168xf32> to vector<32x168xf32>
    %cst_16 = arith.constant dense<0.000000e+00> : vector<252x168xf32>
    %25 = tpu.matmul %22, %24, %cst_16 {dimension_numbers = #tpu.dot_dimension_numbers<[1], [0], [0], [1], [0, 0, 1, 1], [], []>} : vector<252x32xf32>, vector<32x168xf32>, vector<252x168xf32> -> vector<252x168xf32>
    %26 = arith.addf %21, %25 : vector<252x168xf32>
    %c0_17 = arith.constant 0 : index
    %c0_18 = arith.constant 0 : index
    %27 = vector.load %arg3[%c0_17, %c0_18] : memref<1x168xf32, #tpu.memory_space<vmem>>, vector<1x168xf32>
    %28 = vector.broadcast %27 : vector<1x168xf32> to vector<252x168xf32>
    %29 = arith.addf %26, %28 : vector<252x168xf32>
    %30 = math.tanh %29 : vector<252x168xf32>
    %c0_19 = arith.constant 0 : index
    %c0_20 = arith.constant 0 : index
    %31 = vector.load %arg4[%c0_19, %c0_20] : memref<168x84xf32, #tpu.memory_space<vmem>>, vector<168x84xf32>
    %cst_21 = arith.constant dense<0.000000e+00> : vector<252x84xf32>
    %32 = tpu.matmul %30, %31, %cst_21 {dimension_numbers = #tpu.dot_dimension_numbers<[1], [0], [0], [1], [0, 0, 1, 1], [], []>} : vector<252x168xf32>, vector<168x84xf32>, vector<252x84xf32> -> vector<252x84xf32>
    %33 = vector.extract_strided_slice %32 {offsets = [0, 0], sizes = [251, 84], strides = [1, 1]} : vector<252x84xf32> to vector<251x84xf32>
    %34 = vector.extract_strided_slice %32 {offsets = [1, 0], sizes = [251, 84], strides = [1, 1]} : vector<252x84xf32> to vector<251x84xf32>
    %35 = arith.addf %33, %34 : vector<251x84xf32>
    %cst_22 = arith.constant 5.000000e-01 : f32
    %36 = vector.broadcast %cst_22 : f32 to vector<251x84xf32>
    %37 = arith.mulf %36, %35 : vector<251x84xf32>
    %cst_23 = arith.constant 0.000000e+00 : f32
    %38 = vector.broadcast %cst_23 : f32 to vector<243x160xf32>
    %39 = vector.extract_strided_slice %37 {offsets = [0, 0], sizes = [243, 84], strides = [1, 1]} : vector<251x84xf32> to vector<243x84xf32>
    %c0_24 = arith.constant 0 : index
    %c0_25 = arith.constant 0 : index
    %c0_26 = arith.constant 0 : index
    %40 = vector.load %arg5[%c0_24, %c0_25, %c0_26] : memref<5x84x160xf32, #tpu.memory_space<vmem>>, vector<1x84x160xf32>
    %41 = vector.shape_cast %40 : vector<1x84x160xf32> to vector<84x160xf32>
    %cst_27 = arith.constant dense<0.000000e+00> : vector<243x160xf32>
    %42 = tpu.matmul %39, %41, %cst_27 {dimension_numbers = #tpu.dot_dimension_numbers<[1], [0], [0], [1], [0, 0, 1, 1], [], []>} : vector<243x84xf32>, vector<84x160xf32>, vector<243x160xf32> -> vector<243x160xf32>
    %43 = arith.addf %38, %42 : vector<243x160xf32>
    %44 = vector.extract_strided_slice %37 {offsets = [2, 0], sizes = [243, 84], strides = [1, 1]} : vector<251x84xf32> to vector<243x84xf32>
    %c1_28 = arith.constant 1 : index
    %c0_29 = arith.constant 0 : index
    %c0_30 = arith.constant 0 : index
    %45 = vector.load %arg5[%c1_28, %c0_29, %c0_30] : memref<5x84x160xf32, #tpu.memory_space<vmem>>, vector<1x84x160xf32>
    %46 = vector.shape_cast %45 : vector<1x84x160xf32> to vector<84x160xf32>
    %cst_31 = arith.constant dense<0.000000e+00> : vector<243x160xf32>
    %47 = tpu.matmul %44, %46, %cst_31 {dimension_numbers = #tpu.dot_dimension_numbers<[1], [0], [0], [1], [0, 0, 1, 1], [], []>} : vector<243x84xf32>, vector<84x160xf32>, vector<243x160xf32> -> vector<243x160xf32>
    %48 = arith.addf %43, %47 : vector<243x160xf32>
    %49 = vector.extract_strided_slice %37 {offsets = [4, 0], sizes = [243, 84], strides = [1, 1]} : vector<251x84xf32> to vector<243x84xf32>
    %c2_32 = arith.constant 2 : index
    %c0_33 = arith.constant 0 : index
    %c0_34 = arith.constant 0 : index
    %50 = vector.load %arg5[%c2_32, %c0_33, %c0_34] : memref<5x84x160xf32, #tpu.memory_space<vmem>>, vector<1x84x160xf32>
    %51 = vector.shape_cast %50 : vector<1x84x160xf32> to vector<84x160xf32>
    %cst_35 = arith.constant dense<0.000000e+00> : vector<243x160xf32>
    %52 = tpu.matmul %49, %51, %cst_35 {dimension_numbers = #tpu.dot_dimension_numbers<[1], [0], [0], [1], [0, 0, 1, 1], [], []>} : vector<243x84xf32>, vector<84x160xf32>, vector<243x160xf32> -> vector<243x160xf32>
    %53 = arith.addf %48, %52 : vector<243x160xf32>
    %54 = vector.extract_strided_slice %37 {offsets = [6, 0], sizes = [243, 84], strides = [1, 1]} : vector<251x84xf32> to vector<243x84xf32>
    %c3_36 = arith.constant 3 : index
    %c0_37 = arith.constant 0 : index
    %c0_38 = arith.constant 0 : index
    %55 = vector.load %arg5[%c3_36, %c0_37, %c0_38] : memref<5x84x160xf32, #tpu.memory_space<vmem>>, vector<1x84x160xf32>
    %56 = vector.shape_cast %55 : vector<1x84x160xf32> to vector<84x160xf32>
    %cst_39 = arith.constant dense<0.000000e+00> : vector<243x160xf32>
    %57 = tpu.matmul %54, %56, %cst_39 {dimension_numbers = #tpu.dot_dimension_numbers<[1], [0], [0], [1], [0, 0, 1, 1], [], []>} : vector<243x84xf32>, vector<84x160xf32>, vector<243x160xf32> -> vector<243x160xf32>
    %58 = arith.addf %53, %57 : vector<243x160xf32>
    %59 = vector.extract_strided_slice %37 {offsets = [8, 0], sizes = [243, 84], strides = [1, 1]} : vector<251x84xf32> to vector<243x84xf32>
    %c4_40 = arith.constant 4 : index
    %c0_41 = arith.constant 0 : index
    %c0_42 = arith.constant 0 : index
    %60 = vector.load %arg5[%c4_40, %c0_41, %c0_42] : memref<5x84x160xf32, #tpu.memory_space<vmem>>, vector<1x84x160xf32>
    %61 = vector.shape_cast %60 : vector<1x84x160xf32> to vector<84x160xf32>
    %cst_43 = arith.constant dense<0.000000e+00> : vector<243x160xf32>
    %62 = tpu.matmul %59, %61, %cst_43 {dimension_numbers = #tpu.dot_dimension_numbers<[1], [0], [0], [1], [0, 0, 1, 1], [], []>} : vector<243x84xf32>, vector<84x160xf32>, vector<243x160xf32> -> vector<243x160xf32>
    %63 = arith.addf %58, %62 : vector<243x160xf32>
    %c0_44 = arith.constant 0 : index
    %c0_45 = arith.constant 0 : index
    %64 = vector.load %arg6[%c0_44, %c0_45] : memref<1x160xf32, #tpu.memory_space<vmem>>, vector<1x160xf32>
    %65 = vector.broadcast %64 : vector<1x160xf32> to vector<243x160xf32>
    %66 = arith.addf %63, %65 : vector<243x160xf32>
    %67 = math.tanh %66 : vector<243x160xf32>
    %c0_46 = arith.constant 0 : index
    %c0_47 = arith.constant 0 : index
    %68 = vector.load %arg7[%c0_46, %c0_47] : memref<160x80xf32, #tpu.memory_space<vmem>>, vector<160x80xf32>
    %cst_48 = arith.constant dense<0.000000e+00> : vector<243x80xf32>
    %69 = tpu.matmul %67, %68, %cst_48 {dimension_numbers = #tpu.dot_dimension_numbers<[1], [0], [0], [1], [0, 0, 1, 1], [], []>} : vector<243x160xf32>, vector<160x80xf32>, vector<243x80xf32> -> vector<243x80xf32>
    %70 = vector.extract_strided_slice %69 {offsets = [0, 0], sizes = [241, 80], strides = [1, 1]} : vector<243x80xf32> to vector<241x80xf32>
    %71 = vector.extract_strided_slice %69 {offsets = [2, 0], sizes = [241, 80], strides = [1, 1]} : vector<243x80xf32> to vector<241x80xf32>
    %72 = arith.addf %70, %71 : vector<241x80xf32>
    %cst_49 = arith.constant 5.000000e-01 : f32
    %73 = vector.broadcast %cst_49 : f32 to vector<241x80xf32>
    %74 = arith.mulf %73, %72 : vector<241x80xf32>
    %cst_50 = arith.constant 0.000000e+00 : f32
    %75 = vector.broadcast %cst_50 : f32 to vector<225x120xf32>
    %76 = vector.extract_strided_slice %74 {offsets = [0, 0], sizes = [225, 80], strides = [1, 1]} : vector<241x80xf32> to vector<225x80xf32>
    %c0_51 = arith.constant 0 : index
    %c0_52 = arith.constant 0 : index
    %c0_53 = arith.constant 0 : index
    %77 = vector.load %arg8[%c0_51, %c0_52, %c0_53] : memref<5x80x120xf32, #tpu.memory_space<vmem>>, vector<1x80x120xf32>
    %78 = vector.shape_cast %77 : vector<1x80x120xf32> to vector<80x120xf32>
    %cst_54 = arith.constant dense<0.000000e+00> : vector<225x120xf32>
    %79 = tpu.matmul %76, %78, %cst_54 {dimension_numbers = #tpu.dot_dimension_numbers<[1], [0], [0], [1], [0, 0, 1, 1], [], []>} : vector<225x80xf32>, vector<80x120xf32>, vector<225x120xf32> -> vector<225x120xf32>
    %80 = arith.addf %75, %79 : vector<225x120xf32>
    %81 = vector.extract_strided_slice %74 {offsets = [4, 0], sizes = [225, 80], strides = [1, 1]} : vector<241x80xf32> to vector<225x80xf32>
    %c1_55 = arith.constant 1 : index
    %c0_56 = arith.constant 0 : index
    %c0_57 = arith.constant 0 : index
    %82 = vector.load %arg8[%c1_55, %c0_56, %c0_57] : memref<5x80x120xf32, #tpu.memory_space<vmem>>, vector<1x80x120xf32>
    %83 = vector.shape_cast %82 : vector<1x80x120xf32> to vector<80x120xf32>
    %cst_58 = arith.constant dense<0.000000e+00> : vector<225x120xf32>
    %84 = tpu.matmul %81, %83, %cst_58 {dimension_numbers = #tpu.dot_dimension_numbers<[1], [0], [0], [1], [0, 0, 1, 1], [], []>} : vector<225x80xf32>, vector<80x120xf32>, vector<225x120xf32> -> vector<225x120xf32>
    %85 = arith.addf %80, %84 : vector<225x120xf32>
    %86 = vector.extract_strided_slice %74 {offsets = [8, 0], sizes = [225, 80], strides = [1, 1]} : vector<241x80xf32> to vector<225x80xf32>
    %c2_59 = arith.constant 2 : index
    %c0_60 = arith.constant 0 : index
    %c0_61 = arith.constant 0 : index
    %87 = vector.load %arg8[%c2_59, %c0_60, %c0_61] : memref<5x80x120xf32, #tpu.memory_space<vmem>>, vector<1x80x120xf32>
    %88 = vector.shape_cast %87 : vector<1x80x120xf32> to vector<80x120xf32>
    %cst_62 = arith.constant dense<0.000000e+00> : vector<225x120xf32>
    %89 = tpu.matmul %86, %88, %cst_62 {dimension_numbers = #tpu.dot_dimension_numbers<[1], [0], [0], [1], [0, 0, 1, 1], [], []>} : vector<225x80xf32>, vector<80x120xf32>, vector<225x120xf32> -> vector<225x120xf32>
    %90 = arith.addf %85, %89 : vector<225x120xf32>
    %91 = vector.extract_strided_slice %74 {offsets = [12, 0], sizes = [225, 80], strides = [1, 1]} : vector<241x80xf32> to vector<225x80xf32>
    %c3_63 = arith.constant 3 : index
    %c0_64 = arith.constant 0 : index
    %c0_65 = arith.constant 0 : index
    %92 = vector.load %arg8[%c3_63, %c0_64, %c0_65] : memref<5x80x120xf32, #tpu.memory_space<vmem>>, vector<1x80x120xf32>
    %93 = vector.shape_cast %92 : vector<1x80x120xf32> to vector<80x120xf32>
    %cst_66 = arith.constant dense<0.000000e+00> : vector<225x120xf32>
    %94 = tpu.matmul %91, %93, %cst_66 {dimension_numbers = #tpu.dot_dimension_numbers<[1], [0], [0], [1], [0, 0, 1, 1], [], []>} : vector<225x80xf32>, vector<80x120xf32>, vector<225x120xf32> -> vector<225x120xf32>
    %95 = arith.addf %90, %94 : vector<225x120xf32>
    %96 = vector.extract_strided_slice %74 {offsets = [16, 0], sizes = [225, 80], strides = [1, 1]} : vector<241x80xf32> to vector<225x80xf32>
    %c4_67 = arith.constant 4 : index
    %c0_68 = arith.constant 0 : index
    %c0_69 = arith.constant 0 : index
    %97 = vector.load %arg8[%c4_67, %c0_68, %c0_69] : memref<5x80x120xf32, #tpu.memory_space<vmem>>, vector<1x80x120xf32>
    %98 = vector.shape_cast %97 : vector<1x80x120xf32> to vector<80x120xf32>
    %cst_70 = arith.constant dense<0.000000e+00> : vector<225x120xf32>
    %99 = tpu.matmul %96, %98, %cst_70 {dimension_numbers = #tpu.dot_dimension_numbers<[1], [0], [0], [1], [0, 0, 1, 1], [], []>} : vector<225x80xf32>, vector<80x120xf32>, vector<225x120xf32> -> vector<225x120xf32>
    %100 = arith.addf %95, %99 : vector<225x120xf32>
    %c0_71 = arith.constant 0 : index
    %c0_72 = arith.constant 0 : index
    %101 = vector.load %arg9[%c0_71, %c0_72] : memref<1x120xf32, #tpu.memory_space<vmem>>, vector<1x120xf32>
    %102 = vector.broadcast %101 : vector<1x120xf32> to vector<225x120xf32>
    %103 = arith.addf %100, %102 : vector<225x120xf32>
    %104 = math.tanh %103 : vector<225x120xf32>
    %c0_73 = arith.constant 0 : index
    %c0_74 = arith.constant 0 : index
    %105 = vector.load %arg10[%c0_73, %c0_74] : memref<120x84xf32, #tpu.memory_space<vmem>>, vector<120x84xf32>
    %cst_75 = arith.constant dense<0.000000e+00> : vector<225x84xf32>
    %106 = tpu.matmul %104, %105, %cst_75 {dimension_numbers = #tpu.dot_dimension_numbers<[1], [0], [0], [1], [0, 0, 1, 1], [], []>} : vector<225x120xf32>, vector<120x84xf32>, vector<225x84xf32> -> vector<225x84xf32>
    %c0_76 = arith.constant 0 : index
    %c0_77 = arith.constant 0 : index
    %107 = vector.load %arg11[%c0_76, %c0_77] : memref<1x84xf32, #tpu.memory_space<vmem>>, vector<1x84xf32>
    %108 = vector.broadcast %107 : vector<1x84xf32> to vector<225x84xf32>
    %109 = arith.addf %106, %108 : vector<225x84xf32>
    %110 = math.tanh %109 : vector<225x84xf32>
    %c0_78 = arith.constant 0 : index
    %c0_79 = arith.constant 0 : index
    %111 = vector.load %arg12[%c0_78, %c0_79] : memref<84x10xf32, #tpu.memory_space<vmem>>, vector<84x10xf32>
    %cst_80 = arith.constant dense<0.000000e+00> : vector<225x10xf32>
    %112 = tpu.matmul %110, %111, %cst_80 {dimension_numbers = #tpu.dot_dimension_numbers<[1], [0], [0], [1], [0, 0, 1, 1], [], []>} : vector<225x84xf32>, vector<84x10xf32>, vector<225x10xf32> -> vector<225x10xf32>
    %c0_81 = arith.constant 0 : index
    %c0_82 = arith.constant 0 : index
    %113 = vector.load %arg13[%c0_81, %c0_82] : memref<1x10xf32, #tpu.memory_space<vmem>>, vector<1x10xf32>
    %114 = vector.broadcast %113 : vector<1x10xf32> to vector<225x10xf32>
    %115 = arith.addf %112, %114 : vector<225x10xf32>
    %c0_83 = arith.constant 0 : index
    %c0_84 = arith.constant 0 : index
    %116 = vector.load %arg14[%c0_83, %c0_84] : memref<256x10xf32, #tpu.memory_space<vmem>>, vector<225x10xf32>
    tpu.vector_store %arg14[%c0_83, %c0_84], %115 {strides = array<i32>} : memref<256x10xf32, #tpu.memory_space<vmem>>, vector<225x10xf32>,
    %cst_85 = arith.constant 0.000000e+00 : f32
    %117 = vector.broadcast %cst_85 : f32 to vector<31x10xf32>
    %c225 = arith.constant 225 : index
    %c0_86 = arith.constant 0 : index
    %118 = vector.load %arg14[%c225, %c0_86] : memref<256x10xf32, #tpu.memory_space<vmem>>, vector<31x10xf32>
    tpu.vector_store %arg14[%c225, %c0_86], %117 {strides = array<i32>} : memref<256x10xf32, #tpu.memory_space<vmem>>, vector<31x10xf32>,
    return
  }
  func.func @transform_0(%arg0: i32) -> (i32, i32) {
    %c0_i32 = arith.constant 0 : i32
    %c0_i32_0 = arith.constant 0 : i32
    return %arg0, %c0_i32 : i32, i32
  }
  func.func @transform_1(%arg0: i32) -> (i32, i32, i32) {
    %c0_i32 = arith.constant 0 : i32
    %c0_i32_0 = arith.constant 0 : i32
    %c0_i32_1 = arith.constant 0 : i32
    %c0_i32_2 = arith.constant 0 : i32
    return %c0_i32, %c0_i32_0, %c0_i32_1 : i32, i32, i32
  }
  func.func @transform_2(%arg0: i32) -> (i32, i32) {
    %c0_i32 = arith.constant 0 : i32
    %c0_i32_0 = arith.constant 0 : i32
    %c0_i32_1 = arith.constant 0 : i32
    return %c0_i32, %c0_i32_0 : i32, i32
  }
  func.func @transform_3(%arg0: i32) -> (i32, i32) {
    %c0_i32 = arith.constant 0 : i32
    %c0_i32_0 = arith.constant 0 : i32
    %c0_i32_1 = arith.constant 0 : i32
    return %c0_i32, %c0_i32_0 : i32, i32
  }
  func.func @transform_4(%arg0: i32) -> (i32, i32, i32) {
    %c0_i32 = arith.constant 0 : i32
    %c0_i32_0 = arith.constant 0 : i32
    %c0_i32_1 = arith.constant 0 : i32
    %c0_i32_2 = arith.constant 0 : i32
    return %c0_i32, %c0_i32_0, %c0_i32_1 : i32, i32, i32
  }
  func.func @transform_5(%arg0: i32) -> (i32, i32) {
    %c0_i32 = arith.constant 0 : i32
    %c0_i32_0 = arith.constant 0 : i32
    %c0_i32_1 = arith.constant 0 : i32
    return %c0_i32, %c0_i32_0 : i32, i32
  }
  func.func @transform_6(%arg0: i32) -> (i32, i32) {
    %c0_i32 = arith.constant 0 : i32
    %c0_i32_0 = arith.constant 0 : i32
    %c0_i32_1 = arith.constant 0 : i32
    return %c0_i32, %c0_i32_0 : i32, i32
  }
  func.func @transform_7(%arg0: i32) -> (i32, i32, i32) {
    %c0_i32 = arith.constant 0 : i32
    %c0_i32_0 = arith.constant 0 : i32
    %c0_i32_1 = arith.constant 0 : i32
    %c0_i32_2 = arith.constant 0 : i32
    return %c0_i32, %c0_i32_0, %c0_i32_1 : i32, i32, i32
  }
  func.func @transform_8(%arg0: i32) -> (i32, i32) {
    %c0_i32 = arith.constant 0 : i32
    %c0_i32_0 = arith.constant 0 : i32
    %c0_i32_1 = arith.constant 0 : i32
    return %c0_i32, %c0_i32_0 : i32, i32
  }
  func.func @transform_9(%arg0: i32) -> (i32, i32) {
    %c0_i32 = arith.constant 0 : i32
    %c0_i32_0 = arith.constant 0 : i32
    %c0_i32_1 = arith.constant 0 : i32
    return %c0_i32, %c0_i32_0 : i32, i32
  }
  func.func @transform_10(%arg0: i32) -> (i32, i32) {
    %c0_i32 = arith.constant 0 : i32
    %c0_i32_0 = arith.constant 0 : i32
    %c0_i32_1 = arith.constant 0 : i32
    return %c0_i32, %c0_i32_0 : i32, i32
  }
  func.func @transform_11(%arg0: i32) -> (i32, i32) {
    %c0_i32 = arith.constant 0 : i32
    %c0_i32_0 = arith.constant 0 : i32
    %c0_i32_1 = arith.constant 0 : i32
    return %c0_i32, %c0_i32_0 : i32, i32
  }
  func.func @transform_12(%arg0: i32) -> (i32, i32) {
    %c0_i32 = arith.constant 0 : i32
    %c0_i32_0 = arith.constant 0 : i32
    %c0_i32_1 = arith.constant 0 : i32
    return %c0_i32, %c0_i32_0 : i32, i32
  }
  func.func @transform_13(%arg0: i32) -> (i32, i32) {
    %c0_i32 = arith.constant 0 : i32
    %c0_i32_0 = arith.constant 0 : i32
    return %arg0, %c0_i32 : i32, i32
  }
}

</mosaic_0001>

<llo_original>
// kernel: lenet5_forward.1
$region0: #{lenet5_forward.1}
  #allocation0 [shape = 'u32[]', space=smem, size = 0x4, offset = 0x4, fixed_abs, tag = 'smem constant byte address 0x4 - core index']
  #allocation1 [shape = 'u32[144,128]{1,0:T(1,128)}', space=vmem, size = 0x12000, scoped, tag = 'internal scratch']
  %s0 = inlined_call_operand.vmem [shape: f32[256,32], index: 0, kind: input, shape index: {}]
  %s1 = inlined_call_operand.vmem [shape: f32[5,32,168], index: 1, kind: input, shape index: {}]
  %s2 = inlined_call_operand.vmem [shape: f32[1,168], index: 2, kind: input, shape index: {}]
  %s3 = inlined_call_operand.vmem [shape: f32[168,84], index: 3, kind: input, shape index: {}]
  %s4 = inlined_call_operand.vmem [shape: f32[5,84,160], index: 4, kind: input, shape index: {}]
  %s5 = inlined_call_operand.vmem [shape: f32[1,160], index: 5, kind: input, shape index: {}]
  %s6 = inlined_call_operand.vmem [shape: f32[160,80], index: 6, kind: input, shape index: {}]
  %s7 = inlined_call_operand.vmem [shape: f32[5,80,120], index: 7, kind: input, shape index: {}]
  %s8 = inlined_call_operand.vmem [shape: f32[1,120], index: 8, kind: input, shape index: {}]
  %s9 = inlined_call_operand.vmem [shape: f32[120,84], index: 9, kind: input, shape index: {}]
  %s10 = inlined_call_operand.vmem [shape: f32[1,84], index: 10, kind: input, shape index: {}]
  %s11 = inlined_call_operand.vmem [shape: f32[84,10], index: 11, kind: input, shape index: {}]
  %s12 = inlined_call_operand.vmem [shape: f32[1,10], index: 12, kind: input, shape index: {}]
  %s13 = inlined_call_operand.vmem [shape: f32[256,10], index: 13, kind: output, shape index: {}]
  %s14 = sld [smem:[#allocation0]]
  $region62: #{lenet5_forward.1} parent=0
    _
  %s16 = ssub.s32 1, %s14
  %s17 = scalar_select 0, %s16, %s14
  // Predicated region
  $region2: #{lenet5_forward.1} parent=0 // pred_check
    _
  $region3: #{lenet5_forward.1} parent=0 // pred_check_branch
    %19 = sbr.rel (0) target = $region5
  $region4: #{lenet5_forward.1} parent=0 // pred_region
    _
  $region5: #{lenet5_forward.1} parent=0 // pred_fallthru
    _
  // Predicated region
  $region6: #{lenet5_forward.1} parent=0 // pred_check
    _
  $region7: #{lenet5_forward.1} parent=0 // pred_check_branch
    %21 = sbr.rel (0) target = $region9
  $region8: #{lenet5_forward.1} parent=0 // pred_region
    _
  $region9: #{lenet5_forward.1} parent=0 // pred_fallthru
    _
  // Predicated region
  $region10: #{lenet5_forward.1} parent=0 // pred_check
    _
  $region11: #{lenet5_forward.1} parent=0 // pred_check_branch
    %23 = sbr.rel (0) target = $region13
  $region12: #{lenet5_forward.1} parent=0 // pred_region
    _
  $region13: #{lenet5_forward.1} parent=0 // pred_fallthru
    _
  // Predicated region
  $region14: #{lenet5_forward.1} parent=0 // pred_check
    _
  $region15: #{lenet5_forward.1} parent=0 // pred_check_branch
    %25 = sbr.rel (0) target = $region17
  $region16: #{lenet5_forward.1} parent=0 // pred_region
    _
  $region17: #{lenet5_forward.1} parent=0 // pred_fallthru
    _
  // Predicated region
  $region18: #{lenet5_forward.1} parent=0 // pred_check
    _
  $region19: #{lenet5_forward.1} parent=0 // pred_check_branch
    %27 = sbr.rel (0) target = $region21
  $region20: #{lenet5_forward.1} parent=0 // pred_region
    _
  $region21: #{lenet5_forward.1} parent=0 // pred_fallthru
    _
  // Predicated region
  $region22: #{lenet5_forward.1} parent=0 // pred_check
    _
  $region23: #{lenet5_forward.1} parent=0 // pred_check_branch
    %29 = sbr.rel (0) target = $region25
  $region24: #{lenet5_forward.1} parent=0 // pred_region
    _
  $region25: #{lenet5_forward.1} parent=0 // pred_fallthru
    _
  // Predicated region
  $region26: #{lenet5_forward.1} parent=0 // pred_check
    _
  $region27: #{lenet5_forward.1} parent=0 // pred_check_branch
    %31 = sbr.rel (0) target = $region29
  $region28: #{lenet5_forward.1} parent=0 // pred_region
    _
  $region29: #{lenet5_forward.1} parent=0 // pred_fallthru
    _
  // Predicated region
  $region30: #{lenet5_forward.1} parent=0 // pred_check
    _
  $region31: #{lenet5_forward.1} parent=0 // pred_check_branch
    %33 = sbr.rel (0) target = $region33
  $region32: #{lenet5_forward.1} parent=0 // pred_region
    _
  $region33: #{lenet5_forward.1} parent=0 // pred_fallthru
    _
  // Predicated region
  $region34: #{lenet5_forward.1} parent=0 // pred_check
    _
  $region35: #{lenet5_forward.1} parent=0 // pred_check_branch
    %35 = sbr.rel (0) target = $region37
  $region36: #{lenet5_forward.1} parent=0 // pred_region
    _
  $region37: #{lenet5_forward.1} parent=0 // pred_fallthru
    _
  // Predicated region
  $region38: #{lenet5_forward.1} parent=0 // pred_check
    _
  $region39: #{lenet5_forward.1} parent=0 // pred_check_branch
    %37 = sbr.rel (0) target = $region41
  $region40: #{lenet5_forward.1} parent=0 // pred_region
    _
  $region41: #{lenet5_forward.1} parent=0 // pred_fallthru
    _
  // Predicated region
  $region42: #{lenet5_forward.1} parent=0 // pred_check
    _
  $region43: #{lenet5_forward.1} parent=0 // pred_check_branch
    %39 = sbr.rel (0) target = $region45
  $region44: #{lenet5_forward.1} parent=0 // pred_region
    _
  $region45: #{lenet5_forward.1} parent=0 // pred_fallthru
    _
  // Predicated region
  $region46: #{lenet5_forward.1} parent=0 // pred_check
    _
  $region47: #{lenet5_forward.1} parent=0 // pred_check_branch
    %41 = sbr.rel (0) target = $region49
  $region48: #{lenet5_forward.1} parent=0 // pred_region
    _
  $region49: #{lenet5_forward.1} parent=0 // pred_fallthru
    _
  // Predicated region
  $region50: #{lenet5_forward.1} parent=0 // pred_check
    _
  $region51: #{lenet5_forward.1} parent=0 // pred_check_branch
    %43 = sbr.rel (0) target = $region53
  $region52: #{lenet5_forward.1} parent=0 // pred_region
    _
  $region53: #{lenet5_forward.1} parent=0 // pred_fallthru
    _
  %v44 = vld [vmem:[%s0] sm:$0xff]
  %v45 = vld [vmem:[%s0 + $0x8] sm:$0xff]
  %v46 = vld [vmem:[%s0 + $0x10] sm:$0xff]
  %v47 = vld [vmem:[%s0 + $0x18] sm:$0xff]
  %v48 = vld [vmem:[%s0 + $0x20] sm:$0xff]
  %v49 = vld [vmem:[%s0 + $0x28] sm:$0xff]
  %v50 = vld [vmem:[%s0 + $0x30] sm:$0xff]
  %v51 = vld [vmem:[%s0 + $0x38] sm:$0xff]
  %v52 = vld [vmem:[%s0 + $0x40] sm:$0xff]
  %v53 = vld [vmem:[%s0 + $0x48] sm:$0xff]
  %v54 = vld [vmem:[%s0 + $0x50] sm:$0xff]
  %v55 = vld [vmem:[%s0 + $0x58] sm:$0xff]
  %v56 = vld [vmem:[%s0 + $0x60] sm:$0xff]
  %v57 = vld [vmem:[%s0 + $0x68] sm:$0xff]
  %v58 = vld [vmem:[%s0 + $0x70] sm:$0xff]
  %v59 = vld [vmem:[%s0 + $0x78] sm:$0xff]
  %v60 = vld [vmem:[%s0 + $0x80] sm:$0xff]
  %v61 = vld [vmem:[%s0 + $0x88] sm:$0xff]
  %v62 = vld [vmem:[%s0 + $0x90] sm:$0xff]
  %v63 = vld [vmem:[%s0 + $0x98] sm:$0xff]
  %v64 = vld [vmem:[%s0 + $0xa0] sm:$0xff]
  %v65 = vld [vmem:[%s0 + $0xa8] sm:$0xff]
  %v66 = vld [vmem:[%s0 + $0xb0] sm:$0xff]
  %v67 = vld [vmem:[%s0 + $0xb8] sm:$0xff]
  %v68 = vld [vmem:[%s0 + $0xc0] sm:$0xff]
  %v69 = vld [vmem:[%s0 + $0xc8] sm:$0xff]
  %v70 = vld [vmem:[%s0 + $0xd0] sm:$0xff]
  %v71 = vld [vmem:[%s0 + $0xd8] sm:$0xff]
  %v72 = vld [vmem:[%s0 + $0xe0] sm:$0xff]
  %v73 = vld [vmem:[%s0 + $0xe8] sm:$0xff]
  %v74 = vld [vmem:[%s0 + $0xf0] sm:$0xff]
  %v75 = vld [vmem:[%s0 + $0xf8] sm:$0xff]
  %v76 = vld [vmem:[%s1] sm:$0xff]
  %v77 = vld [vmem:[%s1 + $0x8] sm:$0xff]
  %v78 = vld [vmem:[%s1 + $0x10] sm:$0xff]
  %v79 = vld [vmem:[%s1 + $0x18] sm:$0xff]
  %v80 = vld [vmem:[%s1 + $0x20] sm:$0xff]
  %v81 = vld [vmem:[%s1 + $0x28] sm:$0xff]
  %v82 = vld [vmem:[%s1 + $0x30] sm:$0xff]
  %v83 = vld [vmem:[%s1 + $0x38] sm:$0xff]
  %s84 = scalar_lea.vmem %s1, 64
  %v85 = vld [vmem:[%s84] sm:$0xff]
  %v86 = vld [vmem:[%s84 + $0x8] sm:$0xff]
  %v87 = vld [vmem:[%s84 + $0x10] sm:$0xff]
  %v88 = vld [vmem:[%s84 + $0x18] sm:$0xff]
  %v89 = vld [vmem:[%s84 + $0x20] sm:$0xff]
  %v90 = vld [vmem:[%s84 + $0x28] sm:$0xff]
  %v91 = vld [vmem:[%s84 + $0x30] sm:$0xff]
  %v92 = vld [vmem:[%s84 + $0x38] sm:$0xff]
  %vm125 = vcmask 1046528
  %v126 = vrot.slane %v44, 1
  %v127 = vrot.slane %v45, 1
  %v128 = vsel %vm125, %v126, %v127
  %v129 = vrot.slane %v46, 1
  %v130 = vsel %vm125, %v127, %v129
  %v131 = vrot.slane %v47, 1
  %v132 = vsel %vm125, %v129, %v131
  %v133 = vrot.slane %v48, 1
  %v134 = vsel %vm125, %v131, %v133
  %v135 = vrot.slane %v49, 1
  %v136 = vsel %vm125, %v133, %v135
  %v137 = vrot.slane %v50, 1
  %v138 = vsel %vm125, %v135, %v137
  %v139 = vrot.slane %v51, 1
  %v140 = vsel %vm125, %v137, %v139
  %v141 = vrot.slane %v52, 1
  %v142 = vsel %vm125, %v139, %v141
  %v143 = vrot.slane %v53, 1
  %v144 = vsel %vm125, %v141, %v143
  %v145 = vrot.slane %v54, 1
  %v146 = vsel %vm125, %v143, %v145
  %v147 = vrot.slane %v55, 1
  %v148 = vsel %vm125, %v145, %v147
  %v149 = vrot.slane %v56, 1
  %v150 = vsel %vm125, %v147, %v149
  %v151 = vrot.slane %v57, 1
  %v152 = vsel %vm125, %v149, %v151
  %v153 = vrot.slane %v58, 1
  %v154 = vsel %vm125, %v151, %v153
  %v155 = vrot.slane %v59, 1
  %v156 = vsel %vm125, %v153, %v155
  %v157 = vrot.slane %v60, 1
  %v158 = vsel %vm125, %v155, %v157
  %v159 = vrot.slane %v61, 1
  %v160 = vsel %vm125, %v157, %v159
  %v161 = vrot.slane %v62, 1
  %v162 = vsel %vm125, %v159, %v161
  %v163 = vrot.slane %v63, 1
  %v164 = vsel %vm125, %v161, %v163
  %v165 = vrot.slane %v64, 1
  %v166 = vsel %vm125, %v163, %v165
  %v167 = vrot.slane %v65, 1
  %v168 = vsel %vm125, %v165, %v167
  %v169 = vrot.slane %v66, 1
  %v170 = vsel %vm125, %v167, %v169
  %v171 = vrot.slane %v67, 1
  %v172 = vsel %vm125, %v169, %v171
  %v173 = vrot.slane %v68, 1
  %v174 = vsel %vm125, %v171, %v173
  %v175 = vrot.slane %v69, 1
  %v176 = vsel %vm125, %v173, %v175
  %v177 = vrot.slane %v70, 1
  %v178 = vsel %vm125, %v175, %v177
  %v179 = vrot.slane %v71, 1
  %v180 = vsel %vm125, %v177, %v179
  %v181 = vrot.slane %v72, 1
  %v182 = vsel %vm125, %v179, %v181
  %v183 = vrot.slane %v73, 1
  %v184 = vsel %vm125, %v181, %v183
  %v185 = vrot.slane %v74, 1
  %v186 = vsel %vm125, %v183, %v185
  %v187 = vrot.slane %v75, 1
  %v188 = vsel %vm125, %v185, %v187
  %vm189 = vcmask 261120
  %v190 = vsel %vm189, %v128, 0
  %v192 = vsel %vm189, %v130, 0
  %v194 = vsel %vm189, %v132, 0
  %v196 = vsel %vm189, %v134, 0
  %v198 = vsel %vm189, %v136, 0
  %v200 = vsel %vm189, %v138, 0
  %v202 = vsel %vm189, %v140, 0
  %v204 = vsel %vm189, %v142, 0
  %v206 = vsel %vm189, %v144, 0
  %v208 = vsel %vm189, %v146, 0
  %v210 = vsel %vm189, %v148, 0
  %v212 = vsel %vm189, %v150, 0
  %v214 = vsel %vm189, %v152, 0
  %v216 = vsel %vm189, %v154, 0
  %v218 = vsel %vm189, %v156, 0
  %v220 = vsel %vm189, %v158, 0
  %v222 = vsel %vm189, %v160, 0
  %v224 = vsel %vm189, %v162, 0
  %v226 = vsel %vm189, %v164, 0
  %v228 = vsel %vm189, %v166, 0
  %v230 = vsel %vm189, %v168, 0
  %v232 = vsel %vm189, %v170, 0
  %v234 = vsel %vm189, %v172, 0
  %v236 = vsel %vm189, %v174, 0
  %v238 = vsel %vm189, %v176, 0
  %v240 = vsel %vm189, %v178, 0
  %v242 = vsel %vm189, %v180, 0
  %v244 = vsel %vm189, %v182, 0
  %v246 = vsel %vm189, %v184, 0
  %v248 = vsel %vm189, %v186, 0
  %v250 = vsel %vm189, %v188, 0
  %v252 = vsel %vm189, %v187, 0
  %254 = vmatprep.subr.mxu0 0.0
  %255 = vmatpush1.msra.mxu0 0.0
  %256 = vmatprep.subr.mxu0 0.0
  %257 = vmatpush1.msra.mxu0 0.0
  %258 = vmatprep.subr.mxu0 0.0
  %259 = vmatpush1.msra.mxu0 0.0
  %260 = vmatprep.subr.mxu0 0.0
  %261 = vmatpush1.msra.mxu0 0.0
  %262 = vmatprep.subr.mxu0 0.0
  %263 = vmatpush1.msra.mxu0 0.0
  %264 = vmatprep.subr.mxu0 0.0
  %265 = vmatpush1.msra.mxu0 0.0
  %266 = vmatprep.subr.mxu0 0.0
  %267 = vmatpush1.msra.mxu0 0.0
  %268 = vmatprep.subr.mxu0 0.0
  %269 = vmatpush1.msra.mxu0 0.0
  %270 = vmatprep.subr.mxu0 0.0
  %271 = vmatpush1.msra.mxu0 0.0
  %272 = vmatprep.subr.mxu0 0.0
  %273 = vmatpush1.msra.mxu0 0.0
  %274 = vmatprep.subr.mxu0 0.0
  %275 = vmatpush1.msra.mxu0 0.0
  %276 = vmatprep.subr.mxu0 0.0
  %277 = vmatpush1.msra.mxu0 0.0
  %278 = vmatprep.subr.mxu0 %v92
  %279 = vmatpush1.msra.mxu0 %v91
  %280 = vmatprep.subr.mxu0 %v90
  %281 = vmatpush1.msra.mxu0 %v89
  %282 = vmatprep.subr.mxu0 %v88
  %283 = vmatpush1.msra.mxu0 %v87
  %284 = vmatprep.subr.mxu0 %v86
  %285 = vmatpush1.msra.mxu0 %v85
  %286 = vmatprep.subr.mxu0 0.0
  %287 = vmatpush2.msra.mxu0 0.0
  %288 = vmatprep.subr.mxu0 0.0
  %289 = vmatpush2.msra.mxu0 0.0
  %290 = vmatprep.subr.mxu0 0.0
  %291 = vmatpush2.msra.mxu0 0.0
  %292 = vmatprep.subr.mxu0 0.0
  %293 = vmatpush2.msra.mxu0 0.0
  %294 = vmatprep.subr.mxu0 0.0
  %295 = vmatpush2.msra.mxu0 0.0
  %296 = vmatprep.subr.mxu0 0.0
  %297 = vmatpush2.msra.mxu0 0.0
  %298 = vmatprep.subr.mxu0 0.0
  %299 = vmatpush2.msra.mxu0 0.0
  %300 = vmatprep.subr.mxu0 0.0
  %301 = vmatpush2.msra.mxu0 0.0
  %302 = vmatprep.subr.mxu0 0.0
  %303 = vmatpush2.msra.mxu0 0.0
  %304 = vmatprep.subr.mxu0 0.0
  %305 = vmatpush2.msra.mxu0 0.0
  %306 = vmatprep.subr.mxu0 0.0
  %307 = vmatpush2.msra.mxu0 0.0
  %308 = vmatprep.subr.mxu0 0.0
  %309 = vmatpush2.msra.mxu0 0.0
  %310 = vmatprep.subr.mxu0 0.0
  %311 = vmatpush2.msra.mxu0 0.0
  %312 = vmatprep.subr.mxu0 0.0
  %313 = vmatpush2.msra.mxu0 0.0
  %314 = vmatprep.subr.mxu0 0.0
  %315 = vmatpush2.msra.mxu0 0.0
  %316 = vmatprep.subr.mxu0 0.0
  %317 = vmatpush2.msra.mxu0 0.0
  %318 = vmatprep.mubr.f32.mxu0 0.0
  %319 = vmatmul.mubr.f32.gmra.mxu0 %v190
  %v320 = vpop.f32.mrf.mxu0
  %v321 = vadd.f32 0.0, %v320
  %v322 = vpop.f32.mrf.mxu0
  %v323 = vadd.f32 0.0, %v322
  %324 = vmatprep.mubr.f32.mxu0 0.0
  %325 = vmatmul.mubr.f32.gmra.mxu0 %v192
  %v326 = vpop.f32.mrf.mxu0
  %v327 = vadd.f32 0.0, %v326
  %v328 = vpop.f32.mrf.mxu0
  %v329 = vadd.f32 0.0, %v328
  %330 = vmatprep.mubr.f32.mxu0 0.0
  %331 = vmatmul.mubr.f32.gmra.mxu0 %v194
  %v332 = vpop.f32.mrf.mxu0
  %v333 = vadd.f32 0.0, %v332
  %v334 = vpop.f32.mrf.mxu0
  %v335 = vadd.f32 0.0, %v334
  %336 = vmatprep.mubr.f32.mxu0 0.0
  %337 = vmatmul.mubr.f32.gmra.mxu0 %v196
  %v338 = vpop.f32.mrf.mxu0
  %v339 = vadd.f32 0.0, %v338
  %v340 = vpop.f32.mrf.mxu0
  %v341 = vadd.f32 0.0, %v340
  %342 = vmatprep.mubr.f32.mxu0 0.0
  %343 = vmatmul.mubr.f32.gmra.mxu0 %v198
  %v344 = vpop.f32.mrf.mxu0
  %v345 = vadd.f32 0.0, %v344
  %v346 = vpop.f32.mrf.mxu0
  %v347 = vadd.f32 0.0, %v346
  %348 = vmatprep.mubr.f32.mxu0 0.0
  %349 = vmatmul.mubr.f32.gmra.mxu0 %v200
  %v350 = vpop.f32.mrf.mxu0
  %v351 = vadd.f32 0.0, %v350
  %v352 = vpop.f32.mrf.mxu0
  %v353 = vadd.f32 0.0, %v352
  %354 = vmatprep.mubr.f32.mxu0 0.0
  %355 = vmatmul.mubr.f32.gmra.mxu0 %v202
  %v356 = vpop.f32.mrf.mxu0
  %v357 = vadd.f32 0.0, %v356
  %v358 = vpop.f32.mrf.mxu0
  %v359 = vadd.f32 0.0, %v358
  %360 = vmatprep.mubr.f32.mxu0 0.0
  %361 = vmatmul.mubr.f32.gmra.mxu0 %v204
  %v362 = vpop.f32.mrf.mxu0
  %v363 = vadd.f32 0.0, %v362
  %v364 = vpop.f32.mrf.mxu0
  %v365 = vadd.f32 0.0, %v364
  %366 = vmatprep.mubr.f32.mxu0 0.0
  %367 = vmatmul.mubr.f32.gmra.mxu0 %v206
  %v368 = vpop.f32.mrf.mxu0
  %v369 = vadd.f32 0.0, %v368
  %v370 = vpop.f32.mrf.mxu0
  %v371 = vadd.f32 0.0, %v370
  %372 = vmatprep.mubr.f32.mxu0 0.0
  %373 = vmatmul.mubr.f32.gmra.mxu0 %v208
  %v374 = vpop.f32.mrf.mxu0
  %v375 = vadd.f32 0.0, %v374
  %v376 = vpop.f32.mrf.mxu0
  %v377 = vadd.f32 0.0, %v376
  %378 = vmatprep.mubr.f32.mxu0 0.0
  %379 = vmatmul.mubr.f32.gmra.mxu0 %v210
  %v380 = vpop.f32.mrf.mxu0
  %v381 = vadd.f32 0.0, %v380
  %v382 = vpop.f32.mrf.mxu0
  %v383 = vadd.f32 0.0, %v382
  %384 = vmatprep.mubr.f32.mxu0 0.0
  %385 = vmatmul.mubr.f32.gmra.mxu0 %v212
  %v386 = vpop.f32.mrf.mxu0
  %v387 = vadd.f32 0.0, %v386
  %v388 = vpop.f32.mrf.mxu0
  %v389 = vadd.f32 0.0, %v388
  %390 = vmatprep.mubr.f32.mxu0 0.0
  %391 = vmatmul.mubr.f32.gmra.mxu0 %v214
  %v392 = vpop.f32.mrf.mxu0
  %v393 = vadd.f32 0.0, %v392
  %v394 = vpop.f32.mrf.mxu0
  %v395 = vadd.f32 0.0, %v394
  %396 = vmatprep.mubr.f32.mxu0 0.0
  %397 = vmatmul.mubr.f32.gmra.mxu0 %v216
  %v398 = vpop.f32.mrf.mxu0
  %v399 = vadd.f32 0.0, %v398
  %v400 = vpop.f32.mrf.mxu0
  %v401 = vadd.f32 0.0, %v400
  %402 = vmatprep.mubr.f32.mxu0 0.0
  %403 = vmatmul.mubr.f32.gmra.mxu0 %v218
  %v404 = vpop.f32.mrf.mxu0
  %v405 = vadd.f32 0.0, %v404
  %v406 = vpop.f32.mrf.mxu0
  %v407 = vadd.f32 0.0, %v406
  %408 = vmatprep.mubr.f32.mxu0 0.0
  %409 = vmatmul.mubr.f32.gmra.mxu0 %v220
  %v410 = vpop.f32.mrf.mxu0
  %v411 = vadd.f32 0.0, %v410
  %v412 = vpop.f32.mrf.mxu0
  %v413 = vadd.f32 0.0, %v412
  %414 = vmatprep.mubr.f32.mxu0 0.0
  %415 = vmatmul.mubr.f32.gmra.mxu0 %v222
  %v416 = vpop.f32.mrf.mxu0
  %v417 = vadd.f32 0.0, %v416
  %v418 = vpop.f32.mrf.mxu0
  %v419 = vadd.f32 0.0, %v418
  %420 = vmatprep.mubr.f32.mxu0 0.0
  %421 = vmatmul.mubr.f32.gmra.mxu0 %v224
  %v422 = vpop.f32.mrf.mxu0
  %v423 = vadd.f32 0.0, %v422
  %v424 = vpop.f32.mrf.mxu0
  %v425 = vadd.f32 0.0, %v424
  %426 = vmatprep.mubr.f32.mxu0 0.0
  %427 = vmatmul.mubr.f32.gmra.mxu0 %v226
  %v428 = vpop.f32.mrf.mxu0
  %v429 = vadd.f32 0.0, %v428
  %v430 = vpop.f32.mrf.mxu0
  %v431 = vadd.f32 0.0, %v430
  %432 = vmatprep.mubr.f32.mxu0 0.0
  %433 = vmatmul.mubr.f32.gmra.mxu0 %v228
  %v434 = vpop.f32.mrf.mxu0
  %v435 = vadd.f32 0.0, %v434
  %v436 = vpop.f32.mrf.mxu0
  %v437 = vadd.f32 0.0, %v436
  %438 = vmatprep.mubr.f32.mxu0 0.0
  %439 = vmatmul.mubr.f32.gmra.mxu0 %v230
  %v440 = vpop.f32.mrf.mxu0
  %v441 = vadd.f32 0.0, %v440
  %v442 = vpop.f32.mrf.mxu0
  %v443 = vadd.f32 0.0, %v442
  %444 = vmatprep.mubr.f32.mxu0 0.0
  %445 = vmatmul.mubr.f32.gmra.mxu0 %v232
  %v446 = vpop.f32.mrf.mxu0
  %v447 = vadd.f32 0.0, %v446
  %v448 = vpop.f32.mrf.mxu0
  %v449 = vadd.f32 0.0, %v448
  %450 = vmatprep.mubr.f32.mxu0 0.0
  %451 = vmatmul.mubr.f32.gmra.mxu0 %v234
  %v452 = vpop.f32.mrf.mxu0
  %v453 = vadd.f32 0.0, %v452
  %v454 = vpop.f32.mrf.mxu0
  %v455 = vadd.f32 0.0, %v454
  %456 = vmatprep.mubr.f32.mxu0 0.0
  %457 = vmatmul.mubr.f32.gmra.mxu0 %v236
  %v458 = vpop.f32.mrf.mxu0
  %v459 = vadd.f32 0.0, %v458
  %v460 = vpop.f32.mrf.mxu0
  %v461 = vadd.f32 0.0, %v460
  %462 = vmatprep.mubr.f32.mxu0 0.0
  %463 = vmatmul.mubr.f32.gmra.mxu0 %v238
  %v464 = vpop.f32.mrf.mxu0
  %v465 = vadd.f32 0.0, %v464
  %v466 = vpop.f32.mrf.mxu0
  %v467 = vadd.f32 0.0, %v466
  %468 = vmatprep.mubr.f32.mxu0 0.0
  %469 = vmatmul.mubr.f32.gmra.mxu0 %v240
  %v470 = vpop.f32.mrf.mxu0
  %v471 = vadd.f32 0.0, %v470
  %v472 = vpop.f32.mrf.mxu0
  %v473 = vadd.f32 0.0, %v472
  %474 = vmatprep.mubr.f32.mxu0 0.0
  %475 = vmatmul.mubr.f32.gmra.mxu0 %v242
  %v476 = vpop.f32.mrf.mxu0
  %v477 = vadd.f32 0.0, %v476
  %v478 = vpop.f32.mrf.mxu0
  %v479 = vadd.f32 0.0, %v478
  %480 = vmatprep.mubr.f32.mxu0 0.0
  %481 = vmatmul.mubr.f32.gmra.mxu0 %v244
  %v482 = vpop.f32.mrf.mxu0
  %v483 = vadd.f32 0.0, %v482
  %v484 = vpop.f32.mrf.mxu0
  %v485 = vadd.f32 0.0, %v484
  %486 = vmatprep.mubr.f32.mxu0 0.0
  %487 = vmatmul.mubr.f32.gmra.mxu0 %v246
  %v488 = vpop.f32.mrf.mxu0
  %v489 = vadd.f32 0.0, %v488
  %v490 = vpop.f32.mrf.mxu0
  %v491 = vadd.f32 0.0, %v490
  %492 = vmatprep.mubr.f32.mxu0 0.0
  %493 = vmatmul.mubr.f32.gmra.mxu0 %v248
  %v494 = vpop.f32.mrf.mxu0
  %v495 = vadd.f32 0.0, %v494
  %v496 = vpop.f32.mrf.mxu0
  %v497 = vadd.f32 0.0, %v496
  %498 = vmatprep.mubr.f32.mxu0 0.0
  %499 = vmatmul.mubr.f32.gmra.mxu0 %v250
  %v500 = vpop.f32.mrf.mxu0
  %v501 = vadd.f32 0.0, %v500
  %v502 = vpop.f32.mrf.mxu0
  %v503 = vadd.f32 0.0, %v502
  %504 = vmatprep.mubr.f32.mxu0 0.0
  %505 = vmatmul.mubr.f32.gmra.mxu0 %v252
  %v506 = vpop.f32.mrf.mxu0
  %v507 = vadd.f32 0.0, %v506
  %v508 = vpop.f32.mrf.mxu0
  %v509 = vadd.f32 0.0, %v508
  %510 = vdwg.mxu0
  %v511 = vsel %vm189, %v44, 0
  %v513 = vsel %vm189, %v45, 0
  %v515 = vsel %vm189, %v46, 0
  %v517 = vsel %vm189, %v47, 0
  %v519 = vsel %vm189, %v48, 0
  %v521 = vsel %vm189, %v49, 0
  %v523 = vsel %vm189, %v50, 0
  %v525 = vsel %vm189, %v51, 0
  %v527 = vsel %vm189, %v52, 0
  %v529 = vsel %vm189, %v53, 0
  %v531 = vsel %vm189, %v54, 0
  %v533 = vsel %vm189, %v55, 0
  %v535 = vsel %vm189, %v56, 0
  %v537 = vsel %vm189, %v57, 0
  %v539 = vsel %vm189, %v58, 0
  %v541 = vsel %vm189, %v59, 0
  %v543 = vsel %vm189, %v60, 0
  %v545 = vsel %vm189, %v61, 0
  %v547 = vsel %vm189, %v62, 0
  %v549 = vsel %vm189, %v63, 0
  %v551 = vsel %vm189, %v64, 0
  %v553 = vsel %vm189, %v65, 0
  %v555 = vsel %vm189, %v66, 0
  %v557 = vsel %vm189, %v67, 0
  %v559 = vsel %vm189, %v68, 0
  %v561 = vsel %vm189, %v69, 0
  %v563 = vsel %vm189, %v70, 0
  %v565 = vsel %vm189, %v71, 0
  %v567 = vsel %vm189, %v72, 0
  %v569 = vsel %vm189, %v73, 0
  %v571 = vsel %vm189, %v74, 0
  %v573 = vsel %vm189, %v75, 0
  %575 = vmatprep.subr.mxu0 0.0
  %576 = vmatpush1.msra.mxu0 0.0
  %577 = vmatprep.subr.mxu0 0.0
  %578 = vmatpush1.msra.mxu0 0.0
  %579 = vmatprep.subr.mxu0 0.0
  %580 = vmatpush1.msra.mxu0 0.0
  %581 = vmatprep.subr.mxu0 0.0
  %582 = vmatpush1.msra.mxu0 0.0
  %583 = vmatprep.subr.mxu0 0.0
  %584 = vmatpush1.msra.mxu0 0.0
  %585 = vmatprep.subr.mxu0 0.0
  %586 = vmatpush1.msra.mxu0 0.0
  %587 = vmatprep.subr.mxu0 0.0
  %588 = vmatpush1.msra.mxu0 0.0
  %589 = vmatprep.subr.mxu0 0.0
  %590 = vmatpush1.msra.mxu0 0.0
  %591 = vmatprep.subr.mxu0 0.0
  %592 = vmatpush1.msra.mxu0 0.0
  %593 = vmatprep.subr.mxu0 0.0
  %594 = vmatpush1.msra.mxu0 0.0
  %595 = vmatprep.subr.mxu0 0.0
  %596 = vmatpush1.msra.mxu0 0.0
  %597 = vmatprep.subr.mxu0 0.0
  %598 = vmatpush1.msra.mxu0 0.0
  %599 = vmatprep.subr.mxu0 %v83
  %600 = vmatpush1.msra.mxu0 %v82
  %601 = vmatprep.subr.mxu0 %v81
  %602 = vmatpush1.msra.mxu0 %v80
  %603 = vmatprep.subr.mxu0 %v79
  %604 = vmatpush1.msra.mxu0 %v78
  %605 = vmatprep.subr.mxu0 %v77
  %606 = vmatpush1.msra.mxu0 %v76
  %607 = vmatprep.subr.mxu0 0.0
  %608 = vmatpush2.msra.mxu0 0.0
  %609 = vmatprep.subr.mxu0 0.0
  %610 = vmatpush2.msra.mxu0 0.0
  %611 = vmatprep.subr.mxu0 0.0
  %612 = vmatpush2.msra.mxu0 0.0
  %613 = vmatprep.subr.mxu0 0.0
  %614 = vmatpush2.msra.mxu0 0.0
  %615 = vmatprep.subr.mxu0 0.0
  %616 = vmatpush2.msra.mxu0 0.0
  %617 = vmatprep.subr.mxu0 0.0
  %618 = vmatpush2.msra.mxu0 0.0
  %619 = vmatprep.subr.mxu0 0.0
  %620 = vmatpush2.msra.mxu0 0.0
  %621 = vmatprep.subr.mxu0 0.0
  %622 = vmatpush2.msra.mxu0 0.0
  %623 = vmatprep.subr.mxu0 0.0
  %624 = vmatpush2.msra.mxu0 0.0
  %625 = vmatprep.subr.mxu0 0.0
  %626 = vmatpush2.msra.mxu0 0.0
  %627 = vmatprep.subr.mxu0 0.0
  %628 = vmatpush2.msra.mxu0 0.0
  %629 = vmatprep.subr.mxu0 0.0
  %630 = vmatpush2.msra.mxu0 0.0
  %631 = vmatprep.subr.mxu0 0.0
  %632 = vmatpush2.msra.mxu0 0.0
  %633 = vmatprep.subr.mxu0 0.0
  %634 = vmatpush2.msra.mxu0 0.0
  %635 = vmatprep.subr.mxu0 0.0
  %636 = vmatpush2.msra.mxu0 0.0
  %637 = vmatprep.subr.mxu0 0.0
  %638 = vmatpush2.msra.mxu0 0.0
  %639 = vmatprep.mubr.f32.mxu0 0.0
  %640 = vmatmul.mubr.f32.gmra.mxu0 %v511
  %v641 = vpop.f32.mrf.mxu0
  %v642 = vadd.f32 %v321, %v641
  %v643 = vpop.f32.mrf.mxu0
  %v644 = vadd.f32 %v323, %v643
  %645 = vmatprep.mubr.f32.mxu0 0.0
  %646 = vmatmul.mubr.f32.gmra.mxu0 %v513
  %v647 = vpop.f32.mrf.mxu0
  %v648 = vadd.f32 %v327, %v647
  %v649 = vpop.f32.mrf.mxu0
  %v650 = vadd.f32 %v329, %v649
  %651 = vmatprep.mubr.f32.mxu0 0.0
  %652 = vmatmul.mubr.f32.gmra.mxu0 %v515
  %v653 = vpop.f32.mrf.mxu0
  %v654 = vadd.f32 %v333, %v653
  %v655 = vpop.f32.mrf.mxu0
  %v656 = vadd.f32 %v335, %v655
  %657 = vmatprep.mubr.f32.mxu0 0.0
  %658 = vmatmul.mubr.f32.gmra.mxu0 %v517
  %v659 = vpop.f32.mrf.mxu0
  %v660 = vadd.f32 %v339, %v659
  %v661 = vpop.f32.mrf.mxu0
  %v662 = vadd.f32 %v341, %v661
  %663 = vmatprep.mubr.f32.mxu0 0.0
  %664 = vmatmul.mubr.f32.gmra.mxu0 %v519
  %v665 = vpop.f32.mrf.mxu0
  %v666 = vadd.f32 %v345, %v665
  %v667 = vpop.f32.mrf.mxu0
  %v668 = vadd.f32 %v347, %v667
  %669 = vmatprep.mubr.f32.mxu0 0.0
  %670 = vmatmul.mubr.f32.gmra.mxu0 %v521
  %v671 = vpop.f32.mrf.mxu0
  %v672 = vadd.f32 %v351, %v671
  %v673 = vpop.f32.mrf.mxu0
  %v674 = vadd.f32 %v353, %v673
  %675 = vmatprep.mubr.f32.mxu0 0.0
  %676 = vmatmul.mubr.f32.gmra.mxu0 %v523
  %v677 = vpop.f32.mrf.mxu0
  %v678 = vadd.f32 %v357, %v677
  %v679 = vpop.f32.mrf.mxu0
  %v680 = vadd.f32 %v359, %v679
  %681 = vmatprep.mubr.f32.mxu0 0.0
  %682 = vmatmul.mubr.f32.gmra.mxu0 %v525
  %v683 = vpop.f32.mrf.mxu0
  %v684 = vadd.f32 %v363, %v683
  %v685 = vpop.f32.mrf.mxu0
  %v686 = vadd.f32 %v365, %v685
  %687 = vmatprep.mubr.f32.mxu0 0.0
  %688 = vmatmul.mubr.f32.gmra.mxu0 %v527
  %v689 = vpop.f32.mrf.mxu0
  %v690 = vadd.f32 %v369, %v689
  %v691 = vpop.f32.mrf.mxu0
  %v692 = vadd.f32 %v371, %v691
  %693 = vmatprep.mubr.f32.mxu0 0.0
  %694 = vmatmul.mubr.f32.gmra.mxu0 %v529
  %v695 = vpop.f32.mrf.mxu0
  %v696 = vadd.f32 %v375, %v695
  %v697 = vpop.f32.mrf.mxu0
  %v698 = vadd.f32 %v377, %v697
  %699 = vmatprep.mubr.f32.mxu0 0.0
  %700 = vmatmul.mubr.f32.gmra.mxu0 %v531
  %v701 = vpop.f32.mrf.mxu0
  %v702 = vadd.f32 %v381, %v701
  %v703 = vpop.f32.mrf.mxu0
  %v704 = vadd.f32 %v383, %v703
  %705 = vmatprep.mubr.f32.mxu0 0.0
  %706 = vmatmul.mubr.f32.gmra.mxu0 %v533
  %v707 = vpop.f32.mrf.mxu0
  %v708 = vadd.f32 %v387, %v707
  %v709 = vpop.f32.mrf.mxu0
  %v710 = vadd.f32 %v389, %v709
  %711 = vmatprep.mubr.f32.mxu0 0.0
  %712 = vmatmul.mubr.f32.gmra.mxu0 %v535
  %v713 = vpop.f32.mrf.mxu0
  %v714 = vadd.f32 %v393, %v713
  %v715 = vpop.f32.mrf.mxu0
  %v716 = vadd.f32 %v395, %v715
  %717 = vmatprep.mubr.f32.mxu0 0.0
  %718 = vmatmul.mubr.f32.gmra.mxu0 %v537
  %v719 = vpop.f32.mrf.mxu0
  %v720 = vadd.f32 %v399, %v719
  %v721 = vpop.f32.mrf.mxu0
  %v722 = vadd.f32 %v401, %v721
  %723 = vmatprep.mubr.f32.mxu0 0.0
  %724 = vmatmul.mubr.f32.gmra.mxu0 %v539
  %v725 = vpop.f32.mrf.mxu0
  %v726 = vadd.f32 %v405, %v725
  %v727 = vpop.f32.mrf.mxu0
  %v728 = vadd.f32 %v407, %v727
  %729 = vmatprep.mubr.f32.mxu0 0.0
  %730 = vmatmul.mubr.f32.gmra.mxu0 %v541
  %v731 = vpop.f32.mrf.mxu0
  %v732 = vadd.f32 %v411, %v731
  %v733 = vpop.f32.mrf.mxu0
  %v734 = vadd.f32 %v413, %v733
  %735 = vmatprep.mubr.f32.mxu0 0.0
  %736 = vmatmul.mubr.f32.gmra.mxu0 %v543
  %v737 = vpop.f32.mrf.mxu0
  %v738 = vadd.f32 %v417, %v737
  %v739 = vpop.f32.mrf.mxu0
  %v740 = vadd.f32 %v419, %v739
  %741 = vmatprep.mubr.f32.mxu0 0.0
  %742 = vmatmul.mubr.f32.gmra.mxu0 %v545
  %v743 = vpop.f32.mrf.mxu0
  %v744 = vadd.f32 %v423, %v743
  %v745 = vpop.f32.mrf.mxu0
  %v746 = vadd.f32 %v425, %v745
  %747 = vmatprep.mubr.f32.mxu0 0.0
  %748 = vmatmul.mubr.f32.gmra.mxu0 %v547
  %v749 = vpop.f32.mrf.mxu0
  %v750 = vadd.f32 %v429, %v749
  %v751 = vpop.f32.mrf.mxu0
  %v752 = vadd.f32 %v431, %v751
  %753 = vmatprep.mubr.f32.mxu0 0.0
  %754 = vmatmul.mubr.f32.gmra.mxu0 %v549
  %v755 = vpop.f32.mrf.mxu0
  %v756 = vadd.f32 %v435, %v755
  %v757 = vpop.f32.mrf.mxu0
  %v758 = vadd.f32 %v437, %v757
  %759 = vmatprep.mubr.f32.mxu0 0.0
  %760 = vmatmul.mubr.f32.gmra.mxu0 %v551
  %v761 = vpop.f32.mrf.mxu0
  %v762 = vadd.f32 %v441, %v761
  %v763 = vpop.f32.mrf.mxu0
  %v764 = vadd.f32 %v443, %v763
  %765 = vmatprep.mubr.f32.mxu0 0.0
  %766 = vmatmul.mubr.f32.gmra.mxu0 %v553
  %v767 = vpop.f32.mrf.mxu0
  %v768 = vadd.f32 %v447, %v767
  %v769 = vpop.f32.mrf.mxu0
  %v770 = vadd.f32 %v449, %v769
  %771 = vmatprep.mubr.f32.mxu0 0.0
  %772 = vmatmul.mubr.f32.gmra.mxu0 %v555
  %v773 = vpop.f32.mrf.mxu0
  %v774 = vadd.f32 %v453, %v773
  %v775 = vpop.f32.mrf.mxu0
  %v776 = vadd.f32 %v455, %v775
  %777 = vmatprep.mubr.f32.mxu0 0.0
  %778 = vmatmul.mubr.f32.gmra.mxu0 %v557
  %v779 = vpop.f32.mrf.mxu0
  %v780 = vadd.f32 %v459, %v779
  %v781 = vpop.f32.mrf.mxu0
  %v782 = vadd.f32 %v461, %v781
  %783 = vmatprep.mubr.f32.mxu0 0.0
  %784 = vmatmul.mubr.f32.gmra.mxu0 %v559
  %v785 = vpop.f32.mrf.mxu0
  %v786 = vadd.f32 %v465, %v785
  %v787 = vpop.f32.mrf.mxu0
  %v788 = vadd.f32 %v467, %v787
  %789 = vmatprep.mubr.f32.mxu0 0.0
  %790 = vmatmul.mubr.f32.gmra.mxu0 %v561
  %v791 = vpop.f32.mrf.mxu0
  %v792 = vadd.f32 %v471, %v791
  %v793 = vpop.f32.mrf.mxu0
  %v794 = vadd.f32 %v473, %v793
  %795 = vmatprep.mubr.f32.mxu0 0.0
  %796 = vmatmul.mubr.f32.gmra.mxu0 %v563
  %v797 = vpop.f32.mrf.mxu0
  %v798 = vadd.f32 %v477, %v797
  %v799 = vpop.f32.mrf.mxu0
  %v800 = vadd.f32 %v479, %v799
  %801 = vmatprep.mubr.f32.mxu0 0.0
  %802 = vmatmul.mubr.f32.gmra.mxu0 %v565
  %v803 = vpop.f32.mrf.mxu0
  %v804 = vadd.f32 %v483, %v803
  %v805 = vpop.f32.mrf.mxu0
  %v806 = vadd.f32 %v485, %v805
  %807 = vmatprep.mubr.f32.mxu0 0.0
  %808 = vmatmul.mubr.f32.gmra.mxu0 %v567
  %v809 = vpop.f32.mrf.mxu0
  %v810 = vadd.f32 %v489, %v809
  %v811 = vpop.f32.mrf.mxu0
  %v812 = vadd.f32 %v491, %v811
  %813 = vmatprep.mubr.f32.mxu0 0.0
  %814 = vmatmul.mubr.f32.gmra.mxu0 %v569
  %v815 = vpop.f32.mrf.mxu0
  %v816 = vadd.f32 %v495, %v815
  %v817 = vpop.f32.mrf.mxu0
  %v818 = vadd.f32 %v497, %v817
  %819 = vmatprep.mubr.f32.mxu0 0.0
  %820 = vmatmul.mubr.f32.gmra.mxu0 %v571
  %v821 = vpop.f32.mrf.mxu0
  %v822 = vadd.f32 %v501, %v821
  %v823 = vpop.f32.mrf.mxu0
  %v824 = vadd.f32 %v503, %v823
  %825 = vmatprep.mubr.f32.mxu0 0.0
  %826 = vmatmul.mubr.f32.gmra.mxu0 %v573
  %v827 = vpop.f32.mrf.mxu0
  %v828 = vadd.f32 %v507, %v827
  %v829 = vpop.f32.mrf.mxu0
  %v830 = vadd.f32 %v509, %v829
  %831 = vdwg.mxu0
  %s832 = scalar_lea.vmem %s1, 128
  %v833 = vld [vmem:[%s832] sm:$0xff]
  %v834 = vld [vmem:[%s832 + $0x8] sm:$0xff]
  %v835 = vld [vmem:[%s832 + $0x10] sm:$0xff]
  %v836 = vld [vmem:[%s832 + $0x18] sm:$0xff]
  %v837 = vld [vmem:[%s832 + $0x20] sm:$0xff]
  %v838 = vld [vmem:[%s832 + $0x28] sm:$0xff]
  %v839 = vld [vmem:[%s832 + $0x30] sm:$0xff]
  %v840 = vld [vmem:[%s832 + $0x38] sm:$0xff]
  %vm841 = vcmask 1045504
  %v842 = vrot.slane %v44, 2
  %v843 = vrot.slane %v45, 2
  %v844 = vsel %vm841, %v842, %v843
  %v845 = vrot.slane %v46, 2
  %v846 = vsel %vm841, %v843, %v845
  %v847 = vrot.slane %v47, 2
  %v848 = vsel %vm841, %v845, %v847
  %v849 = vrot.slane %v48, 2
  %v850 = vsel %vm841, %v847, %v849
  %v851 = vrot.slane %v49, 2
  %v852 = vsel %vm841, %v849, %v851
  %v853 = vrot.slane %v50, 2
  %v854 = vsel %vm841, %v851, %v853
  %v855 = vrot.slane %v51, 2
  %v856 = vsel %vm841, %v853, %v855
  %v857 = vrot.slane %v52, 2
  %v858 = vsel %vm841, %v855, %v857
  %v859 = vrot.slane %v53, 2
  %v860 = vsel %vm841, %v857, %v859
  %v861 = vrot.slane %v54, 2
  %v862 = vsel %vm841, %v859, %v861
  %v863 = vrot.slane %v55, 2
  %v864 = vsel %vm841, %v861, %v863
  %v865 = vrot.slane %v56, 2
  %v866 = vsel %vm841, %v863, %v865
  %v867 = vrot.slane %v57, 2
  %v868 = vsel %vm841, %v865, %v867
  %v869 = vrot.slane %v58, 2
  %v870 = vsel %vm841, %v867, %v869
  %v871 = vrot.slane %v59, 2
  %v872 = vsel %vm841, %v869, %v871
  %v873 = vrot.slane %v60, 2
  %v874 = vsel %vm841, %v871, %v873
  %v875 = vrot.slane %v61, 2
  %v876 = vsel %vm841, %v873, %v875
  %v877 = vrot.slane %v62, 2
  %v878 = vsel %vm841, %v875, %v877
  %v879 = vrot.slane %v63, 2
  %v880 = vsel %vm841, %v877, %v879
  %v881 = vrot.slane %v64, 2
  %v882 = vsel %vm841, %v879, %v881
  %v883 = vrot.slane %v65, 2
  %v884 = vsel %vm841, %v881, %v883
  %v885 = vrot.slane %v66, 2
  %v886 = vsel %vm841, %v883, %v885
  %v887 = vrot.slane %v67, 2
  %v888 = vsel %vm841, %v885, %v887
  %v889 = vrot.slane %v68, 2
  %v890 = vsel %vm841, %v887, %v889
  %v891 = vrot.slane %v69, 2
  %v892 = vsel %vm841, %v889, %v891
  %v893 = vrot.slane %v70, 2
  %v894 = vsel %vm841, %v891, %v893
  %v895 = vrot.slane %v71, 2
  %v896 = vsel %vm841, %v893, %v895
  %v897 = vrot.slane %v72, 2
  %v898 = vsel %vm841, %v895, %v897
  %v899 = vrot.slane %v73, 2
  %v900 = vsel %vm841, %v897, %v899
  %v901 = vrot.slane %v74, 2
  %v902 = vsel %vm841, %v899, %v901
  %v903 = vrot.slane %v75, 2
  %v904 = vsel %vm841, %v901, %v903
  %v905 = vsel %vm189, %v844, 0
  %v907 = vsel %vm189, %v846, 0
  %v909 = vsel %vm189, %v848, 0
  %v911 = vsel %vm189, %v850, 0
  %v913 = vsel %vm189, %v852, 0
  %v915 = vsel %vm189, %v854, 0
  %v917 = vsel %vm189, %v856, 0
  %v919 = vsel %vm189, %v858, 0
  %v921 = vsel %vm189, %v860, 0
  %v923 = vsel %vm189, %v862, 0
  %v925 = vsel %vm189, %v864, 0
  %v927 = vsel %vm189, %v866, 0
  %v929 = vsel %vm189, %v868, 0
  %v931 = vsel %vm189, %v870, 0
  %v933 = vsel %vm189, %v872, 0
  %v935 = vsel %vm189, %v874, 0
  %v937 = vsel %vm189, %v876, 0
  %v939 = vsel %vm189, %v878, 0
  %v941 = vsel %vm189, %v880, 0
  %v943 = vsel %vm189, %v882, 0
  %v945 = vsel %vm189, %v884, 0
  %v947 = vsel %vm189, %v886, 0
  %v949 = vsel %vm189, %v888, 0
  %v951 = vsel %vm189, %v890, 0
  %v953 = vsel %vm189, %v892, 0
  %v955 = vsel %vm189, %v894, 0
  %v957 = vsel %vm189, %v896, 0
  %v959 = vsel %vm189, %v898, 0
  %v961 = vsel %vm189, %v900, 0
  %v963 = vsel %vm189, %v902, 0
  %v965 = vsel %vm189, %v904, 0
  %v967 = vsel %vm189, %v903, 0
  %969 = vmatprep.subr.mxu0 0.0
  %970 = vmatpush1.msra.mxu0 0.0
  %971 = vmatprep.subr.mxu0 0.0
  %972 = vmatpush1.msra.mxu0 0.0
  %973 = vmatprep.subr.mxu0 0.0
  %974 = vmatpush1.msra.mxu0 0.0
  %975 = vmatprep.subr.mxu0 0.0
  %976 = vmatpush1.msra.mxu0 0.0
  %977 = vmatprep.subr.mxu0 0.0
  %978 = vmatpush1.msra.mxu0 0.0
  %979 = vmatprep.subr.mxu0 0.0
  %980 = vmatpush1.msra.mxu0 0.0
  %981 = vmatprep.subr.mxu0 0.0
  %982 = vmatpush1.msra.mxu0 0.0
  %983 = vmatprep.subr.mxu0 0.0
  %984 = vmatpush1.msra.mxu0 0.0
  %985 = vmatprep.subr.mxu0 0.0
  %986 = vmatpush1.msra.mxu0 0.0
  %987 = vmatprep.subr.mxu0 0.0
  %988 = vmatpush1.msra.mxu0 0.0
  %989 = vmatprep.subr.mxu0 0.0
  %990 = vmatpush1.msra.mxu0 0.0
  %991 = vmatprep.subr.mxu0 0.0
  %992 = vmatpush1.msra.mxu0 0.0
  %993 = vmatprep.subr.mxu0 %v840
  %994 = vmatpush1.msra.mxu0 %v839
  %995 = vmatprep.subr.mxu0 %v838
  %996 = vmatpush1.msra.mxu0 %v837
  %997 = vmatprep.subr.mxu0 %v836
  %998 = vmatpush1.msra.mxu0 %v835
  %999 = vmatprep.subr.mxu0 %v834
  %1000 = vmatpush1.msra.mxu0 %v833
  %1001 = vmatprep.subr.mxu0 0.0
  %1002 = vmatpush2.msra.mxu0 0.0
  %1003 = vmatprep.subr.mxu0 0.0
  %1004 = vmatpush2.msra.mxu0 0.0
  %1005 = vmatprep.subr.mxu0 0.0
  %1006 = vmatpush2.msra.mxu0 0.0
  %1007 = vmatprep.subr.mxu0 0.0
  %1008 = vmatpush2.msra.mxu0 0.0
  %1009 = vmatprep.subr.mxu0 0.0
  %1010 = vmatpush2.msra.mxu0 0.0
  %1011 = vmatprep.subr.mxu0 0.0
  %1012 = vmatpush2.msra.mxu0 0.0
  %1013 = vmatprep.subr.mxu0 0.0
  %1014 = vmatpush2.msra.mxu0 0.0
  %1015 = vmatprep.subr.mxu0 0.0
  %1016 = vmatpush2.msra.mxu0 0.0
  %1017 = vmatprep.subr.mxu0 0.0
  %1018 = vmatpush2.msra.mxu0 0.0
  %1019 = vmatprep.subr.mxu0 0.0
  %1020 = vmatpush2.msra.mxu0 0.0
  %1021 = vmatprep.subr.mxu0 0.0
  %1022 = vmatpush2.msra.mxu0 0.0
  %1023 = vmatprep.subr.mxu0 0.0
  %1024 = vmatpush2.msra.mxu0 0.0
  %1025 = vmatprep.subr.mxu0 0.0
  %1026 = vmatpush2.msra.mxu0 0.0
  %1027 = vmatprep.subr.mxu0 0.0
  %1028 = vmatpush2.msra.mxu0 0.0
  %1029 = vmatprep.subr.mxu0 0.0
  %1030 = vmatpush2.msra.mxu0 0.0
  %1031 = vmatprep.subr.mxu0 0.0
  %1032 = vmatpush2.msra.mxu0 0.0
  %1033 = vmatprep.mubr.f32.mxu0 0.0
  %1034 = vmatmul.mubr.f32.gmra.mxu0 %v905
  %v1035 = vpop.f32.mrf.mxu0
  %v1036 = vadd.f32 0.0, %v1035
  %v1037 = vpop.f32.mrf.mxu0
  %v1038 = vadd.f32 0.0, %v1037
  %1039 = vmatprep.mubr.f32.mxu0 0.0
  %1040 = vmatmul.mubr.f32.gmra.mxu0 %v907
  %v1041 = vpop.f32.mrf.mxu0
  %v1042 = vadd.f32 0.0, %v1041
  %v1043 = vpop.f32.mrf.mxu0
  %v1044 = vadd.f32 0.0, %v1043
  %1045 = vmatprep.mubr.f32.mxu0 0.0
  %1046 = vmatmul.mubr.f32.gmra.mxu0 %v909
  %v1047 = vpop.f32.mrf.mxu0
  %v1048 = vadd.f32 0.0, %v1047
  %v1049 = vpop.f32.mrf.mxu0
  %v1050 = vadd.f32 0.0, %v1049
  %1051 = vmatprep.mubr.f32.mxu0 0.0
  %1052 = vmatmul.mubr.f32.gmra.mxu0 %v911
  %v1053 = vpop.f32.mrf.mxu0
  %v1054 = vadd.f32 0.0, %v1053
  %v1055 = vpop.f32.mrf.mxu0
  %v1056 = vadd.f32 0.0, %v1055
  %1057 = vmatprep.mubr.f32.mxu0 0.0
  %1058 = vmatmul.mubr.f32.gmra.mxu0 %v913
  %v1059 = vpop.f32.mrf.mxu0
  %v1060 = vadd.f32 0.0, %v1059
  %v1061 = vpop.f32.mrf.mxu0
  %v1062 = vadd.f32 0.0, %v1061
  %1063 = vmatprep.mubr.f32.mxu0 0.0
  %1064 = vmatmul.mubr.f32.gmra.mxu0 %v915
  %v1065 = vpop.f32.mrf.mxu0
  %v1066 = vadd.f32 0.0, %v1065
  %v1067 = vpop.f32.mrf.mxu0
  %v1068 = vadd.f32 0.0, %v1067
  %1069 = vmatprep.mubr.f32.mxu0 0.0
  %1070 = vmatmul.mubr.f32.gmra.mxu0 %v917
  %v1071 = vpop.f32.mrf.mxu0
  %v1072 = vadd.f32 0.0, %v1071
  %v1073 = vpop.f32.mrf.mxu0
  %v1074 = vadd.f32 0.0, %v1073
  %1075 = vmatprep.mubr.f32.mxu0 0.0
  %1076 = vmatmul.mubr.f32.gmra.mxu0 %v919
  %v1077 = vpop.f32.mrf.mxu0
  %v1078 = vadd.f32 0.0, %v1077
  %v1079 = vpop.f32.mrf.mxu0
  %v1080 = vadd.f32 0.0, %v1079
  %1081 = vmatprep.mubr.f32.mxu0 0.0
  %1082 = vmatmul.mubr.f32.gmra.mxu0 %v921
  %v1083 = vpop.f32.mrf.mxu0
  %v1084 = vadd.f32 0.0, %v1083
  %v1085 = vpop.f32.mrf.mxu0
  %v1086 = vadd.f32 0.0, %v1085
  %1087 = vmatprep.mubr.f32.mxu0 0.0
  %1088 = vmatmul.mubr.f32.gmra.mxu0 %v923
  %v1089 = vpop.f32.mrf.mxu0
  %v1090 = vadd.f32 0.0, %v1089
  %v1091 = vpop.f32.mrf.mxu0
  %v1092 = vadd.f32 0.0, %v1091
  %1093 = vmatprep.mubr.f32.mxu0 0.0
  %1094 = vmatmul.mubr.f32.gmra.mxu0 %v925
  %v1095 = vpop.f32.mrf.mxu0
  %v1096 = vadd.f32 0.0, %v1095
  %v1097 = vpop.f32.mrf.mxu0
  %v1098 = vadd.f32 0.0, %v1097
  %1099 = vmatprep.mubr.f32.mxu0 0.0
  %1100 = vmatmul.mubr.f32.gmra.mxu0 %v927
  %v1101 = vpop.f32.mrf.mxu0
  %v1102 = vadd.f32 0.0, %v1101
  %v1103 = vpop.f32.mrf.mxu0
  %v1104 = vadd.f32 0.0, %v1103
  %1105 = vmatprep.mubr.f32.mxu0 0.0
  %1106 = vmatmul.mubr.f32.gmra.mxu0 %v929
  %v1107 = vpop.f32.mrf.mxu0
  %v1108 = vadd.f32 0.0, %v1107
  %v1109 = vpop.f32.mrf.mxu0
  %v1110 = vadd.f32 0.0, %v1109
  %1111 = vmatprep.mubr.f32.mxu0 0.0
  %1112 = vmatmul.mubr.f32.gmra.mxu0 %v931
  %v1113 = vpop.f32.mrf.mxu0
  %v1114 = vadd.f32 0.0, %v1113
  %v1115 = vpop.f32.mrf.mxu0
  %v1116 = vadd.f32 0.0, %v1115
  %1117 = vmatprep.mubr.f32.mxu0 0.0
  %1118 = vmatmul.mubr.f32.gmra.mxu0 %v933
  %v1119 = vpop.f32.mrf.mxu0
  %v1120 = vadd.f32 0.0, %v1119
  %v1121 = vpop.f32.mrf.mxu0
  %v1122 = vadd.f32 0.0, %v1121
  %1123 = vmatprep.mubr.f32.mxu0 0.0
  %1124 = vmatmul.mubr.f32.gmra.mxu0 %v935
  %v1125 = vpop.f32.mrf.mxu0
  %v1126 = vadd.f32 0.0, %v1125
  %v1127 = vpop.f32.mrf.mxu0
  %v1128 = vadd.f32 0.0, %v1127
  %1129 = vmatprep.mubr.f32.mxu0 0.0
  %1130 = vmatmul.mubr.f32.gmra.mxu0 %v937
  %v1131 = vpop.f32.mrf.mxu0
  %v1132 = vadd.f32 0.0, %v1131
  %v1133 = vpop.f32.mrf.mxu0
  %v1134 = vadd.f32 0.0, %v1133
  %1135 = vmatprep.mubr.f32.mxu0 0.0
  %1136 = vmatmul.mubr.f32.gmra.mxu0 %v939
  %v1137 = vpop.f32.mrf.mxu0
  %v1138 = vadd.f32 0.0, %v1137
  %v1139 = vpop.f32.mrf.mxu0
  %v1140 = vadd.f32 0.0, %v1139
  %1141 = vmatprep.mubr.f32.mxu0 0.0
  %1142 = vmatmul.mubr.f32.gmra.mxu0 %v941
  %v1143 = vpop.f32.mrf.mxu0
  %v1144 = vadd.f32 0.0, %v1143
  %v1145 = vpop.f32.mrf.mxu0
  %v1146 = vadd.f32 0.0, %v1145
  %1147 = vmatprep.mubr.f32.mxu0 0.0
  %1148 = vmatmul.mubr.f32.gmra.mxu0 %v943
  %v1149 = vpop.f32.mrf.mxu0
  %v1150 = vadd.f32 0.0, %v1149
  %v1151 = vpop.f32.mrf.mxu0
  %v1152 = vadd.f32 0.0, %v1151
  %1153 = vmatprep.mubr.f32.mxu0 0.0
  %1154 = vmatmul.mubr.f32.gmra.mxu0 %v945
  %v1155 = vpop.f32.mrf.mxu0
  %v1156 = vadd.f32 0.0, %v1155
  %v1157 = vpop.f32.mrf.mxu0
  %v1158 = vadd.f32 0.0, %v1157
  %1159 = vmatprep.mubr.f32.mxu0 0.0
  %1160 = vmatmul.mubr.f32.gmra.mxu0 %v947
  %v1161 = vpop.f32.mrf.mxu0
  %v1162 = vadd.f32 0.0, %v1161
  %v1163 = vpop.f32.mrf.mxu0
  %v1164 = vadd.f32 0.0, %v1163
  %1165 = vmatprep.mubr.f32.mxu0 0.0
  %1166 = vmatmul.mubr.f32.gmra.mxu0 %v949
  %v1167 = vpop.f32.mrf.mxu0
  %v1168 = vadd.f32 0.0, %v1167
  %v1169 = vpop.f32.mrf.mxu0
  %v1170 = vadd.f32 0.0, %v1169
  %1171 = vmatprep.mubr.f32.mxu0 0.0
  %1172 = vmatmul.mubr.f32.gmra.mxu0 %v951
  %v1173 = vpop.f32.mrf.mxu0
  %v1174 = vadd.f32 0.0, %v1173
  %v1175 = vpop.f32.mrf.mxu0
  %v1176 = vadd.f32 0.0, %v1175
  %1177 = vmatprep.mubr.f32.mxu0 0.0
  %1178 = vmatmul.mubr.f32.gmra.mxu0 %v953
  %v1179 = vpop.f32.mrf.mxu0
  %v1180 = vadd.f32 0.0, %v1179
  %v1181 = vpop.f32.mrf.mxu0
  %v1182 = vadd.f32 0.0, %v1181
  %1183 = vmatprep.mubr.f32.mxu0 0.0
  %1184 = vmatmul.mubr.f32.gmra.mxu0 %v955
  %v1185 = vpop.f32.mrf.mxu0
  %v1186 = vadd.f32 0.0, %v1185
  %v1187 = vpop.f32.mrf.mxu0
  %v1188 = vadd.f32 0.0, %v1187
  %1189 = vmatprep.mubr.f32.mxu0 0.0
  %1190 = vmatmul.mubr.f32.gmra.mxu0 %v957
  %v1191 = vpop.f32.mrf.mxu0
  %v1192 = vadd.f32 0.0, %v1191
  %v1193 = vpop.f32.mrf.mxu0
  %v1194 = vadd.f32 0.0, %v1193
  %1195 = vmatprep.mubr.f32.mxu0 0.0
  %1196 = vmatmul.mubr.f32.gmra.mxu0 %v959
  %v1197 = vpop.f32.mrf.mxu0
  %v1198 = vadd.f32 0.0, %v1197
  %v1199 = vpop.f32.mrf.mxu0
  %v1200 = vadd.f32 0.0, %v1199
  %1201 = vmatprep.mubr.f32.mxu0 0.0
  %1202 = vmatmul.mubr.f32.gmra.mxu0 %v961
  %v1203 = vpop.f32.mrf.mxu0
  %v1204 = vadd.f32 0.0, %v1203
  %v1205 = vpop.f32.mrf.mxu0
  %v1206 = vadd.f32 0.0, %v1205
  %1207 = vmatprep.mubr.f32.mxu0 0.0
  %1208 = vmatmul.mubr.f32.gmra.mxu0 %v963
  %v1209 = vpop.f32.mrf.mxu0
  %v1210 = vadd.f32 0.0, %v1209
  %v1211 = vpop.f32.mrf.mxu0
  %v1212 = vadd.f32 0.0, %v1211
  %1213 = vmatprep.mubr.f32.mxu0 0.0
  %1214 = vmatmul.mubr.f32.gmra.mxu0 %v965
  %v1215 = vpop.f32.mrf.mxu0
  %v1216 = vadd.f32 0.0, %v1215
  %v1217 = vpop.f32.mrf.mxu0
  %v1218 = vadd.f32 0.0, %v1217
  %1219 = vmatprep.mubr.f32.mxu0 0.0
  %1220 = vmatmul.mubr.f32.gmra.mxu0 %v967
  %v1221 = vpop.f32.mrf.mxu0
  %v1222 = vadd.f32 0.0, %v1221
  %v1223 = vpop.f32.mrf.mxu0
  %v1224 = vadd.f32 0.0, %v1223
  %1225 = vdwg.mxu0
  %v1226 = vadd.f32 %v642, %v1036
  %v1227 = vadd.f32 %v644, %v1038
  %v1228 = vadd.f32 %v648, %v1042
  %v1229 = vadd.f32 %v650, %v1044
  %v1230 = vadd.f32 %v654, %v1048
  %v1231 = vadd.f32 %v656, %v1050
  %v1232 = vadd.f32 %v660, %v1054
  %v1233 = vadd.f32 %v662, %v1056
  %v1234 = vadd.f32 %v666, %v1060
  %v1235 = vadd.f32 %v668, %v1062
  %v1236 = vadd.f32 %v672, %v1066
  %v1237 = vadd.f32 %v674, %v1068
  %v1238 = vadd.f32 %v678, %v1072
  %v1239 = vadd.f32 %v680, %v1074
  %v1240 = vadd.f32 %v684, %v1078
  %v1241 = vadd.f32 %v686, %v1080
  %v1242 = vadd.f32 %v690, %v1084
  %v1243 = vadd.f32 %v692, %v1086
  %v1244 = vadd.f32 %v696, %v1090
  %v1245 = vadd.f32 %v698, %v1092
  %v1246 = vadd.f32 %v702, %v1096
  %v1247 = vadd.f32 %v704, %v1098
  %v1248 = vadd.f32 %v708, %v1102
  %v1249 = vadd.f32 %v710, %v1104
  %v1250 = vadd.f32 %v714, %v1108
  %v1251 = vadd.f32 %v716, %v1110
  %v1252 = vadd.f32 %v720, %v1114
  %v1253 = vadd.f32 %v722, %v1116
  %v1254 = vadd.f32 %v726, %v1120
  %v1255 = vadd.f32 %v728, %v1122
  %v1256 = vadd.f32 %v732, %v1126
  %v1257 = vadd.f32 %v734, %v1128
  %v1258 = vadd.f32 %v738, %v1132
  %v1259 = vadd.f32 %v740, %v1134
  %v1260 = vadd.f32 %v744, %v1138
  %v1261 = vadd.f32 %v746, %v1140
  %v1262 = vadd.f32 %v750, %v1144
  %v1263 = vadd.f32 %v752, %v1146
  %v1264 = vadd.f32 %v756, %v1150
  %v1265 = vadd.f32 %v758, %v1152
  %v1266 = vadd.f32 %v762, %v1156
  %v1267 = vadd.f32 %v764, %v1158
  %v1268 = vadd.f32 %v768, %v1162
  %v1269 = vadd.f32 %v770, %v1164
  %v1270 = vadd.f32 %v774, %v1168
  %v1271 = vadd.f32 %v776, %v1170
  %v1272 = vadd.f32 %v780, %v1174
  %v1273 = vadd.f32 %v782, %v1176
  %v1274 = vadd.f32 %v786, %v1180
  %v1275 = vadd.f32 %v788, %v1182
  %v1276 = vadd.f32 %v792, %v1186
  %v1277 = vadd.f32 %v794, %v1188
  %v1278 = vadd.f32 %v798, %v1192
  %v1279 = vadd.f32 %v800, %v1194
  %v1280 = vadd.f32 %v804, %v1198
  %v1281 = vadd.f32 %v806, %v1200
  %v1282 = vadd.f32 %v810, %v1204
  %v1283 = vadd.f32 %v812, %v1206
  %v1284 = vadd.f32 %v816, %v1210
  %v1285 = vadd.f32 %v818, %v1212
  %v1286 = vadd.f32 %v822, %v1216
  %v1287 = vadd.f32 %v824, %v1218
  %v1288 = vadd.f32 %v828, %v1222
  %v1289 = vadd.f32 %v830, %v1224
  %s1290 = scalar_lea.vmem %s1, 192
  %v1291 = vld [vmem:[%s1290] sm:$0xff]
  %v1292 = vld [vmem:[%s1290 + $0x8] sm:$0xff]
  %v1293 = vld [vmem:[%s1290 + $0x10] sm:$0xff]
  %v1294 = vld [vmem:[%s1290 + $0x18] sm:$0xff]
  %v1295 = vld [vmem:[%s1290 + $0x20] sm:$0xff]
  %v1296 = vld [vmem:[%s1290 + $0x28] sm:$0xff]
  %v1297 = vld [vmem:[%s1290 + $0x30] sm:$0xff]
  %v1298 = vld [vmem:[%s1290 + $0x38] sm:$0xff]
  %vm1299 = vcmask 1044480
  %v1300 = vrot.slane %v44, 3
  %v1301 = vrot.slane %v45, 3
  %v1302 = vsel %vm1299, %v1300, %v1301
  %v1303 = vrot.slane %v46, 3
  %v1304 = vsel %vm1299, %v1301, %v1303
  %v1305 = vrot.slane %v47, 3
  %v1306 = vsel %vm1299, %v1303, %v1305
  %v1307 = vrot.slane %v48, 3
  %v1308 = vsel %vm1299, %v1305, %v1307
  %v1309 = vrot.slane %v49, 3
  %v1310 = vsel %vm1299, %v1307, %v1309
  %v1311 = vrot.slane %v50, 3
  %v1312 = vsel %vm1299, %v1309, %v1311
  %v1313 = vrot.slane %v51, 3
  %v1314 = vsel %vm1299, %v1311, %v1313
  %v1315 = vrot.slane %v52, 3
  %v1316 = vsel %vm1299, %v1313, %v1315
  %v1317 = vrot.slane %v53, 3
  %v1318 = vsel %vm1299, %v1315, %v1317
  %v1319 = vrot.slane %v54, 3
  %v1320 = vsel %vm1299, %v1317, %v1319
  %v1321 = vrot.slane %v55, 3
  %v1322 = vsel %vm1299, %v1319, %v1321
  %v1323 = vrot.slane %v56, 3
  %v1324 = vsel %vm1299, %v1321, %v1323
  %v1325 = vrot.slane %v57, 3
  %v1326 = vsel %vm1299, %v1323, %v1325
  %v1327 = vrot.slane %v58, 3
  %v1328 = vsel %vm1299, %v1325, %v1327
  %v1329 = vrot.slane %v59, 3
  %v1330 = vsel %vm1299, %v1327, %v1329
  %v1331 = vrot.slane %v60, 3
  %v1332 = vsel %vm1299, %v1329, %v1331
  %v1333 = vrot.slane %v61, 3
  %v1334 = vsel %vm1299, %v1331, %v1333
  %v1335 = vrot.slane %v62, 3
  %v1336 = vsel %vm1299, %v1333, %v1335
  %v1337 = vrot.slane %v63, 3
  %v1338 = vsel %vm1299, %v1335, %v1337
  %v1339 = vrot.slane %v64, 3
  %v1340 = vsel %vm1299, %v1337, %v1339
  %v1341 = vrot.slane %v65, 3
  %v1342 = vsel %vm1299, %v1339, %v1341
  %v1343 = vrot.slane %v66, 3
  %v1344 = vsel %vm1299, %v1341, %v1343
  %v1345 = vrot.slane %v67, 3
  %v1346 = vsel %vm1299, %v1343, %v1345
  %v1347 = vrot.slane %v68, 3
  %v1348 = vsel %vm1299, %v1345, %v1347
  %v1349 = vrot.slane %v69, 3
  %v1350 = vsel %vm1299, %v1347, %v1349
  %v1351 = vrot.slane %v70, 3
  %v1352 = vsel %vm1299, %v1349, %v1351
  %v1353 = vrot.slane %v71, 3
  %v1354 = vsel %vm1299, %v1351, %v1353
  %v1355 = vrot.slane %v72, 3
  %v1356 = vsel %vm1299, %v1353, %v1355
  %v1357 = vrot.slane %v73, 3
  %v1358 = vsel %vm1299, %v1355, %v1357
  %v1359 = vrot.slane %v74, 3
  %v1360 = vsel %vm1299, %v1357, %v1359
  %v1361 = vrot.slane %v75, 3
  %v1362 = vsel %vm1299, %v1359, %v1361
  %v1363 = vsel %vm189, %v1302, 0
  %v1365 = vsel %vm189, %v1304, 0
  %v1367 = vsel %vm189, %v1306, 0
  %v1369 = vsel %vm189, %v1308, 0
  %v1371 = vsel %vm189, %v1310, 0
  %v1373 = vsel %vm189, %v1312, 0
  %v1375 = vsel %vm189, %v1314, 0
  %v1377 = vsel %vm189, %v1316, 0
  %v1379 = vsel %vm189, %v1318, 0
  %v1381 = vsel %vm189, %v1320, 0
  %v1383 = vsel %vm189, %v1322, 0
  %v1385 = vsel %vm189, %v1324, 0
  %v1387 = vsel %vm189, %v1326, 0
  %v1389 = vsel %vm189, %v1328, 0
  %v1391 = vsel %vm189, %v1330, 0
  %v1393 = vsel %vm189, %v1332, 0
  %v1395 = vsel %vm189, %v1334, 0
  %v1397 = vsel %vm189, %v1336, 0
  %v1399 = vsel %vm189, %v1338, 0
  %v1401 = vsel %vm189, %v1340, 0
  %v1403 = vsel %vm189, %v1342, 0
  %v1405 = vsel %vm189, %v1344, 0
  %v1407 = vsel %vm189, %v1346, 0
  %v1409 = vsel %vm189, %v1348, 0
  %v1411 = vsel %vm189, %v1350, 0
  %v1413 = vsel %vm189, %v1352, 0
  %v1415 = vsel %vm189, %v1354, 0
  %v1417 = vsel %vm189, %v1356, 0
  %v1419 = vsel %vm189, %v1358, 0
  %v1421 = vsel %vm189, %v1360, 0
  %v1423 = vsel %vm189, %v1362, 0
  %v1425 = vsel %vm189, %v1361, 0
  %1427 = vmatprep.subr.mxu0 0.0
  %1428 = vmatpush1.msra.mxu0 0.0
  %1429 = vmatprep.subr.mxu0 0.0
  %1430 = vmatpush1.msra.mxu0 0.0
  %1431 = vmatprep.subr.mxu0 0.0
  %1432 = vmatpush1.msra.mxu0 0.0
  %1433 = vmatprep.subr.mxu0 0.0
  %1434 = vmatpush1.msra.mxu0 0.0
  %1435 = vmatprep.subr.mxu0 0.0
  %1436 = vmatpush1.msra.mxu0 0.0
  %1437 = vmatprep.subr.mxu0 0.0
  %1438 = vmatpush1.msra.mxu0 0.0
  %1439 = vmatprep.subr.mxu0 0.0
  %1440 = vmatpush1.msra.mxu0 0.0
  %1441 = vmatprep.subr.mxu0 0.0
  %1442 = vmatpush1.msra.mxu0 0.0
  %1443 = vmatprep.subr.mxu0 0.0
  %1444 = vmatpush1.msra.mxu0 0.0
  %1445 = vmatprep.subr.mxu0 0.0
  %1446 = vmatpush1.msra.mxu0 0.0
  %1447 = vmatprep.subr.mxu0 0.0
  %1448 = vmatpush1.msra.mxu0 0.0
  %1449 = vmatprep.subr.mxu0 0.0
  %1450 = vmatpush1.msra.mxu0 0.0
  %1451 = vmatprep.subr.mxu0 %v1298
  %1452 = vmatpush1.msra.mxu0 %v1297
  %1453 = vmatprep.subr.mxu0 %v1296
  %1454 = vmatpush1.msra.mxu0 %v1295
  %1455 = vmatprep.subr.mxu0 %v1294
  %1456 = vmatpush1.msra.mxu0 %v1293
  %1457 = vmatprep.subr.mxu0 %v1292
  %1458 = vmatpush1.msra.mxu0 %v1291
  %1459 = vmatprep.subr.mxu0 0.0
  %1460 = vmatpush2.msra.mxu0 0.0
  %1461 = vmatprep.subr.mxu0 0.0
  %1462 = vmatpush2.msra.mxu0 0.0
  %1463 = vmatprep.subr.mxu0 0.0
  %1464 = vmatpush2.msra.mxu0 0.0
  %1465 = vmatprep.subr.mxu0 0.0
  %1466 = vmatpush2.msra.mxu0 0.0
  %1467 = vmatprep.subr.mxu0 0.0
  %1468 = vmatpush2.msra.mxu0 0.0
  %1469 = vmatprep.subr.mxu0 0.0
  %1470 = vmatpush2.msra.mxu0 0.0
  %1471 = vmatprep.subr.mxu0 0.0
  %1472 = vmatpush2.msra.mxu0 0.0
  %1473 = vmatprep.subr.mxu0 0.0
  %1474 = vmatpush2.msra.mxu0 0.0
  %1475 = vmatprep.subr.mxu0 0.0
  %1476 = vmatpush2.msra.mxu0 0.0
  %1477 = vmatprep.subr.mxu0 0.0
  %1478 = vmatpush2.msra.mxu0 0.0
  %1479 = vmatprep.subr.mxu0 0.0
  %1480 = vmatpush2.msra.mxu0 0.0
  %1481 = vmatprep.subr.mxu0 0.0
  %1482 = vmatpush2.msra.mxu0 0.0
  %1483 = vmatprep.subr.mxu0 0.0
  %1484 = vmatpush2.msra.mxu0 0.0
  %1485 = vmatprep.subr.mxu0 0.0
  %1486 = vmatpush2.msra.mxu0 0.0
  %1487 = vmatprep.subr.mxu0 0.0
  %1488 = vmatpush2.msra.mxu0 0.0
  %1489 = vmatprep.subr.mxu0 0.0
  %1490 = vmatpush2.msra.mxu0 0.0
  %1491 = vmatprep.mubr.f32.mxu0 0.0
  %1492 = vmatmul.mubr.f32.gmra.mxu0 %v1363
  %v1493 = vpop.f32.mrf.mxu0
  %v1494 = vadd.f32 0.0, %v1493
  %v1495 = vpop.f32.mrf.mxu0
  %v1496 = vadd.f32 0.0, %v1495
  %1497 = vmatprep.mubr.f32.mxu0 0.0
  %1498 = vmatmul.mubr.f32.gmra.mxu0 %v1365
  %v1499 = vpop.f32.mrf.mxu0
  %v1500 = vadd.f32 0.0, %v1499
  %v1501 = vpop.f32.mrf.mxu0
  %v1502 = vadd.f32 0.0, %v1501
  %1503 = vmatprep.mubr.f32.mxu0 0.0
  %1504 = vmatmul.mubr.f32.gmra.mxu0 %v1367
  %v1505 = vpop.f32.mrf.mxu0
  %v1506 = vadd.f32 0.0, %v1505
  %v1507 = vpop.f32.mrf.mxu0
  %v1508 = vadd.f32 0.0, %v1507
  %1509 = vmatprep.mubr.f32.mxu0 0.0
  %1510 = vmatmul.mubr.f32.gmra.mxu0 %v1369
  %v1511 = vpop.f32.mrf.mxu0
  %v1512 = vadd.f32 0.0, %v1511
  %v1513 = vpop.f32.mrf.mxu0
  %v1514 = vadd.f32 0.0, %v1513
  %1515 = vmatprep.mubr.f32.mxu0 0.0
  %1516 = vmatmul.mubr.f32.gmra.mxu0 %v1371
  %v1517 = vpop.f32.mrf.mxu0
  %v1518 = vadd.f32 0.0, %v1517
  %v1519 = vpop.f32.mrf.mxu0
  %v1520 = vadd.f32 0.0, %v1519
  %1521 = vmatprep.mubr.f32.mxu0 0.0
  %1522 = vmatmul.mubr.f32.gmra.mxu0 %v1373
  %v1523 = vpop.f32.mrf.mxu0
  %v1524 = vadd.f32 0.0, %v1523
  %v1525 = vpop.f32.mrf.mxu0
  %v1526 = vadd.f32 0.0, %v1525
  %1527 = vmatprep.mubr.f32.mxu0 0.0
  %1528 = vmatmul.mubr.f32.gmra.mxu0 %v1375
  %v1529 = vpop.f32.mrf.mxu0
  %v1530 = vadd.f32 0.0, %v1529
  %v1531 = vpop.f32.mrf.mxu0
  %v1532 = vadd.f32 0.0, %v1531
  %1533 = vmatprep.mubr.f32.mxu0 0.0
  %1534 = vmatmul.mubr.f32.gmra.mxu0 %v1377
  %v1535 = vpop.f32.mrf.mxu0
  %v1536 = vadd.f32 0.0, %v1535
  %v1537 = vpop.f32.mrf.mxu0
  %v1538 = vadd.f32 0.0, %v1537
  %1539 = vmatprep.mubr.f32.mxu0 0.0
  %1540 = vmatmul.mubr.f32.gmra.mxu0 %v1379
  %v1541 = vpop.f32.mrf.mxu0
  %v1542 = vadd.f32 0.0, %v1541
  %v1543 = vpop.f32.mrf.mxu0
  %v1544 = vadd.f32 0.0, %v1543
  %1545 = vmatprep.mubr.f32.mxu0 0.0
  %1546 = vmatmul.mubr.f32.gmra.mxu0 %v1381
  %v1547 = vpop.f32.mrf.mxu0
  %v1548 = vadd.f32 0.0, %v1547
  %v1549 = vpop.f32.mrf.mxu0
  %v1550 = vadd.f32 0.0, %v1549
  %1551 = vmatprep.mubr.f32.mxu0 0.0
  %1552 = vmatmul.mubr.f32.gmra.mxu0 %v1383
  %v1553 = vpop.f32.mrf.mxu0
  %v1554 = vadd.f32 0.0, %v1553
  %v1555 = vpop.f32.mrf.mxu0
  %v1556 = vadd.f32 0.0, %v1555
  %1557 = vmatprep.mubr.f32.mxu0 0.0
  %1558 = vmatmul.mubr.f32.gmra.mxu0 %v1385
  %v1559 = vpop.f32.mrf.mxu0
  %v1560 = vadd.f32 0.0, %v1559
  %v1561 = vpop.f32.mrf.mxu0
  %v1562 = vadd.f32 0.0, %v1561
  %1563 = vmatprep.mubr.f32.mxu0 0.0
  %1564 = vmatmul.mubr.f32.gmra.mxu0 %v1387
  %v1565 = vpop.f32.mrf.mxu0
  %v1566 = vadd.f32 0.0, %v1565
  %v1567 = vpop.f32.mrf.mxu0
  %v1568 = vadd.f32 0.0, %v1567
  %1569 = vmatprep.mubr.f32.mxu0 0.0
  %1570 = vmatmul.mubr.f32.gmra.mxu0 %v1389
  %v1571 = vpop.f32.mrf.mxu0
  %v1572 = vadd.f32 0.0, %v1571
  %v1573 = vpop.f32.mrf.mxu0
  %v1574 = vadd.f32 0.0, %v1573
  %1575 = vmatprep.mubr.f32.mxu0 0.0
  %1576 = vmatmul.mubr.f32.gmra.mxu0 %v1391
  %v1577 = vpop.f32.mrf.mxu0
  %v1578 = vadd.f32 0.0, %v1577
  %v1579 = vpop.f32.mrf.mxu0
  %v1580 = vadd.f32 0.0, %v1579
  %1581 = vmatprep.mubr.f32.mxu0 0.0
  %1582 = vmatmul.mubr.f32.gmra.mxu0 %v1393
  %v1583 = vpop.f32.mrf.mxu0
  %v1584 = vadd.f32 0.0, %v1583
  %v1585 = vpop.f32.mrf.mxu0
  %v1586 = vadd.f32 0.0, %v1585
  %1587 = vmatprep.mubr.f32.mxu0 0.0
  %1588 = vmatmul.mubr.f32.gmra.mxu0 %v1395
  %v1589 = vpop.f32.mrf.mxu0
  %v1590 = vadd.f32 0.0, %v1589
  %v1591 = vpop.f32.mrf.mxu0
  %v1592 = vadd.f32 0.0, %v1591
  %1593 = vmatprep.mubr.f32.mxu0 0.0
  %1594 = vmatmul.mubr.f32.gmra.mxu0 %v1397
  %v1595 = vpop.f32.mrf.mxu0
  %v1596 = vadd.f32 0.0, %v1595
  %v1597 = vpop.f32.mrf.mxu0
  %v1598 = vadd.f32 0.0, %v1597
  %1599 = vmatprep.mubr.f32.mxu0 0.0
  %1600 = vmatmul.mubr.f32.gmra.mxu0 %v1399
  %v1601 = vpop.f32.mrf.mxu0
  %v1602 = vadd.f32 0.0, %v1601
  %v1603 = vpop.f32.mrf.mxu0
  %v1604 = vadd.f32 0.0, %v1603
  %1605 = vmatprep.mubr.f32.mxu0 0.0
  %1606 = vmatmul.mubr.f32.gmra.mxu0 %v1401
  %v1607 = vpop.f32.mrf.mxu0
  %v1608 = vadd.f32 0.0, %v1607
  %v1609 = vpop.f32.mrf.mxu0
  %v1610 = vadd.f32 0.0, %v1609
  %1611 = vmatprep.mubr.f32.mxu0 0.0
  %1612 = vmatmul.mubr.f32.gmra.mxu0 %v1403
  %v1613 = vpop.f32.mrf.mxu0
  %v1614 = vadd.f32 0.0, %v1613
  %v1615 = vpop.f32.mrf.mxu0
  %v1616 = vadd.f32 0.0, %v1615
  %1617 = vmatprep.mubr.f32.mxu0 0.0
  %1618 = vmatmul.mubr.f32.gmra.mxu0 %v1405
  %v1619 = vpop.f32.mrf.mxu0
  %v1620 = vadd.f32 0.0, %v1619
  %v1621 = vpop.f32.mrf.mxu0
  %v1622 = vadd.f32 0.0, %v1621
  %1623 = vmatprep.mubr.f32.mxu0 0.0
  %1624 = vmatmul.mubr.f32.gmra.mxu0 %v1407
  %v1625 = vpop.f32.mrf.mxu0
  %v1626 = vadd.f32 0.0, %v1625
  %v1627 = vpop.f32.mrf.mxu0
  %v1628 = vadd.f32 0.0, %v1627
  %1629 = vmatprep.mubr.f32.mxu0 0.0
  %1630 = vmatmul.mubr.f32.gmra.mxu0 %v1409
  %v1631 = vpop.f32.mrf.mxu0
  %v1632 = vadd.f32 0.0, %v1631
  %v1633 = vpop.f32.mrf.mxu0
  %v1634 = vadd.f32 0.0, %v1633
  %1635 = vmatprep.mubr.f32.mxu0 0.0
  %1636 = vmatmul.mubr.f32.gmra.mxu0 %v1411
  %v1637 = vpop.f32.mrf.mxu0
  %v1638 = vadd.f32 0.0, %v1637
  %v1639 = vpop.f32.mrf.mxu0
  %v1640 = vadd.f32 0.0, %v1639
  %1641 = vmatprep.mubr.f32.mxu0 0.0
  %1642 = vmatmul.mubr.f32.gmra.mxu0 %v1413
  %v1643 = vpop.f32.mrf.mxu0
  %v1644 = vadd.f32 0.0, %v1643
  %v1645 = vpop.f32.mrf.mxu0
  %v1646 = vadd.f32 0.0, %v1645
  %1647 = vmatprep.mubr.f32.mxu0 0.0
  %1648 = vmatmul.mubr.f32.gmra.mxu0 %v1415
  %v1649 = vpop.f32.mrf.mxu0
  %v1650 = vadd.f32 0.0, %v1649
  %v1651 = vpop.f32.mrf.mxu0
  %v1652 = vadd.f32 0.0, %v1651
  %1653 = vmatprep.mubr.f32.mxu0 0.0
  %1654 = vmatmul.mubr.f32.gmra.mxu0 %v1417
  %v1655 = vpop.f32.mrf.mxu0
  %v1656 = vadd.f32 0.0, %v1655
  %v1657 = vpop.f32.mrf.mxu0
  %v1658 = vadd.f32 0.0, %v1657
  %1659 = vmatprep.mubr.f32.mxu0 0.0
  %1660 = vmatmul.mubr.f32.gmra.mxu0 %v1419
  %v1661 = vpop.f32.mrf.mxu0
  %v1662 = vadd.f32 0.0, %v1661
  %v1663 = vpop.f32.mrf.mxu0
  %v1664 = vadd.f32 0.0, %v1663
  %1665 = vmatprep.mubr.f32.mxu0 0.0
  %1666 = vmatmul.mubr.f32.gmra.mxu0 %v1421
  %v1667 = vpop.f32.mrf.mxu0
  %v1668 = vadd.f32 0.0, %v1667
  %v1669 = vpop.f32.mrf.mxu0
  %v1670 = vadd.f32 0.0, %v1669
  %1671 = vmatprep.mubr.f32.mxu0 0.0
  %1672 = vmatmul.mubr.f32.gmra.mxu0 %v1423
  %v1673 = vpop.f32.mrf.mxu0
  %v1674 = vadd.f32 0.0, %v1673
  %v1675 = vpop.f32.mrf.mxu0
  %v1676 = vadd.f32 0.0, %v1675
  %1677 = vmatprep.mubr.f32.mxu0 0.0
  %1678 = vmatmul.mubr.f32.gmra.mxu0 %v1425
  %v1679 = vpop.f32.mrf.mxu0
  %v1680 = vadd.f32 0.0, %v1679
  %v1681 = vpop.f32.mrf.mxu0
  %v1682 = vadd.f32 0.0, %v1681
  %1683 = vdwg.mxu0
  %v1684 = vadd.f32 %v1226, %v1494
  %v1685 = vadd.f32 %v1227, %v1496
  %v1686 = vadd.f32 %v1228, %v1500
  %v1687 = vadd.f32 %v1229, %v1502
  %v1688 = vadd.f32 %v1230, %v1506
  %v1689 = vadd.f32 %v1231, %v1508
  %v1690 = vadd.f32 %v1232, %v1512
  %v1691 = vadd.f32 %v1233, %v1514
  %v1692 = vadd.f32 %v1234, %v1518
  %v1693 = vadd.f32 %v1235, %v1520
  %v1694 = vadd.f32 %v1236, %v1524
  %v1695 = vadd.f32 %v1237, %v1526
  %v1696 = vadd.f32 %v1238, %v1530
  %v1697 = vadd.f32 %v1239, %v1532
  %v1698 = vadd.f32 %v1240, %v1536
  %v1699 = vadd.f32 %v1241, %v1538
  %v1700 = vadd.f32 %v1242, %v1542
  %v1701 = vadd.f32 %v1243, %v1544
  %v1702 = vadd.f32 %v1244, %v1548
  %v1703 = vadd.f32 %v1245, %v1550
  %v1704 = vadd.f32 %v1246, %v1554
  %v1705 = vadd.f32 %v1247, %v1556
  %v1706 = vadd.f32 %v1248, %v1560
  %v1707 = vadd.f32 %v1249, %v1562
  %v1708 = vadd.f32 %v1250, %v1566
  %v1709 = vadd.f32 %v1251, %v1568
  %v1710 = vadd.f32 %v1252, %v1572
  %v1711 = vadd.f32 %v1253, %v1574
  %v1712 = vadd.f32 %v1254, %v1578
  %v1713 = vadd.f32 %v1255, %v1580
  %v1714 = vadd.f32 %v1256, %v1584
  %v1715 = vadd.f32 %v1257, %v1586
  %v1716 = vadd.f32 %v1258, %v1590
  %v1717 = vadd.f32 %v1259, %v1592
  %v1718 = vadd.f32 %v1260, %v1596
  %v1719 = vadd.f32 %v1261, %v1598
  %v1720 = vadd.f32 %v1262, %v1602
  %v1721 = vadd.f32 %v1263, %v1604
  %v1722 = vadd.f32 %v1264, %v1608
  %v1723 = vadd.f32 %v1265, %v1610
  %v1724 = vadd.f32 %v1266, %v1614
  %v1725 = vadd.f32 %v1267, %v1616
  %v1726 = vadd.f32 %v1268, %v1620
  %v1727 = vadd.f32 %v1269, %v1622
  %v1728 = vadd.f32 %v1270, %v1626
  %v1729 = vadd.f32 %v1271, %v1628
  %v1730 = vadd.f32 %v1272, %v1632
  %v1731 = vadd.f32 %v1273, %v1634
  %v1732 = vadd.f32 %v1274, %v1638
  %v1733 = vadd.f32 %v1275, %v1640
  %v1734 = vadd.f32 %v1276, %v1644
  %v1735 = vadd.f32 %v1277, %v1646
  %v1736 = vadd.f32 %v1278, %v1650
  %v1737 = vadd.f32 %v1279, %v1652
  %v1738 = vadd.f32 %v1280, %v1656
  %v1739 = vadd.f32 %v1281, %v1658
  %v1740 = vadd.f32 %v1282, %v1662
  %v1741 = vadd.f32 %v1283, %v1664
  %v1742 = vadd.f32 %v1284, %v1668
  %v1743 = vadd.f32 %v1285, %v1670
  %v1744 = vadd.f32 %v1286, %v1674
  %v1745 = vadd.f32 %v1287, %v1676
  %v1746 = vadd.f32 %v1288, %v1680
  %v1747 = vadd.f32 %v1289, %v1682
  %s1748 = scalar_lea.vmem %s1, 256
  %v1749 = vld [vmem:[%s1748] sm:$0xff]
  %v1750 = vld [vmem:[%s1748 + $0x8] sm:$0xff]
  %v1751 = vld [vmem:[%s1748 + $0x10] sm:$0xff]
  %v1752 = vld [vmem:[%s1748 + $0x18] sm:$0xff]
  %v1753 = vld [vmem:[%s1748 + $0x20] sm:$0xff]
  %v1754 = vld [vmem:[%s1748 + $0x28] sm:$0xff]
  %v1755 = vld [vmem:[%s1748 + $0x30] sm:$0xff]
  %v1756 = vld [vmem:[%s1748 + $0x38] sm:$0xff]
  %vm1757 = vcmask 1043456
  %v1758 = vrot.slane %v44, 4
  %v1759 = vrot.slane %v45, 4
  %v1760 = vsel %vm1757, %v1758, %v1759
  %v1761 = vrot.slane %v46, 4
  %v1762 = vsel %vm1757, %v1759, %v1761
  %v1763 = vrot.slane %v47, 4
  %v1764 = vsel %vm1757, %v1761, %v1763
  %v1765 = vrot.slane %v48, 4
  %v1766 = vsel %vm1757, %v1763, %v1765
  %v1767 = vrot.slane %v49, 4
  %v1768 = vsel %vm1757, %v1765, %v1767
  %v1769 = vrot.slane %v50, 4
  %v1770 = vsel %vm1757, %v1767, %v1769
  %v1771 = vrot.slane %v51, 4
  %v1772 = vsel %vm1757, %v1769, %v1771
  %v1773 = vrot.slane %v52, 4
  %v1774 = vsel %vm1757, %v1771, %v1773
  %v1775 = vrot.slane %v53, 4
  %v1776 = vsel %vm1757, %v1773, %v1775
  %v1777 = vrot.slane %v54, 4
  %v1778 = vsel %vm1757, %v1775, %v1777
  %v1779 = vrot.slane %v55, 4
  %v1780 = vsel %vm1757, %v1777, %v1779
  %v1781 = vrot.slane %v56, 4
  %v1782 = vsel %vm1757, %v1779, %v1781
  %v1783 = vrot.slane %v57, 4
  %v1784 = vsel %vm1757, %v1781, %v1783
  %v1785 = vrot.slane %v58, 4
  %v1786 = vsel %vm1757, %v1783, %v1785
  %v1787 = vrot.slane %v59, 4
  %v1788 = vsel %vm1757, %v1785, %v1787
  %v1789 = vrot.slane %v60, 4
  %v1790 = vsel %vm1757, %v1787, %v1789
  %v1791 = vrot.slane %v61, 4
  %v1792 = vsel %vm1757, %v1789, %v1791
  %v1793 = vrot.slane %v62, 4
  %v1794 = vsel %vm1757, %v1791, %v1793
  %v1795 = vrot.slane %v63, 4
  %v1796 = vsel %vm1757, %v1793, %v1795
  %v1797 = vrot.slane %v64, 4
  %v1798 = vsel %vm1757, %v1795, %v1797
  %v1799 = vrot.slane %v65, 4
  %v1800 = vsel %vm1757, %v1797, %v1799
  %v1801 = vrot.slane %v66, 4
  %v1802 = vsel %vm1757, %v1799, %v1801
  %v1803 = vrot.slane %v67, 4
  %v1804 = vsel %vm1757, %v1801, %v1803
  %v1805 = vrot.slane %v68, 4
  %v1806 = vsel %vm1757, %v1803, %v1805
  %v1807 = vrot.slane %v69, 4
  %v1808 = vsel %vm1757, %v1805, %v1807
  %v1809 = vrot.slane %v70, 4
  %v1810 = vsel %vm1757, %v1807, %v1809
  %v1811 = vrot.slane %v71, 4
  %v1812 = vsel %vm1757, %v1809, %v1811
  %v1813 = vrot.slane %v72, 4
  %v1814 = vsel %vm1757, %v1811, %v1813
  %v1815 = vrot.slane %v73, 4
  %v1816 = vsel %vm1757, %v1813, %v1815
  %v1817 = vrot.slane %v74, 4
  %v1818 = vsel %vm1757, %v1815, %v1817
  %v1819 = vrot.slane %v75, 4
  %v1820 = vsel %vm1757, %v1817, %v1819
  %v1821 = vsel %vm189, %v1760, 0
  %v1823 = vsel %vm189, %v1762, 0
  %v1825 = vsel %vm189, %v1764, 0
  %v1827 = vsel %vm189, %v1766, 0
  %v1829 = vsel %vm189, %v1768, 0
  %v1831 = vsel %vm189, %v1770, 0
  %v1833 = vsel %vm189, %v1772, 0
  %v1835 = vsel %vm189, %v1774, 0
  %v1837 = vsel %vm189, %v1776, 0
  %v1839 = vsel %vm189, %v1778, 0
  %v1841 = vsel %vm189, %v1780, 0
  %v1843 = vsel %vm189, %v1782, 0
  %v1845 = vsel %vm189, %v1784, 0
  %v1847 = vsel %vm189, %v1786, 0
  %v1849 = vsel %vm189, %v1788, 0
  %v1851 = vsel %vm189, %v1790, 0
  %v1853 = vsel %vm189, %v1792, 0
  %v1855 = vsel %vm189, %v1794, 0
  %v1857 = vsel %vm189, %v1796, 0
  %v1859 = vsel %vm189, %v1798, 0
  %v1861 = vsel %vm189, %v1800, 0
  %v1863 = vsel %vm189, %v1802, 0
  %v1865 = vsel %vm189, %v1804, 0
  %v1867 = vsel %vm189, %v1806, 0
  %v1869 = vsel %vm189, %v1808, 0
  %v1871 = vsel %vm189, %v1810, 0
  %v1873 = vsel %vm189, %v1812, 0
  %v1875 = vsel %vm189, %v1814, 0
  %v1877 = vsel %vm189, %v1816, 0
  %v1879 = vsel %vm189, %v1818, 0
  %v1881 = vsel %vm189, %v1820, 0
  %v1883 = vsel %vm189, %v1819, 0
  %1885 = vmatprep.subr.mxu0 0.0
  %1886 = vmatpush1.msra.mxu0 0.0
  %1887 = vmatprep.subr.mxu0 0.0
  %1888 = vmatpush1.msra.mxu0 0.0
  %1889 = vmatprep.subr.mxu0 0.0
  %1890 = vmatpush1.msra.mxu0 0.0
  %1891 = vmatprep.subr.mxu0 0.0
  %1892 = vmatpush1.msra.mxu0 0.0
  %1893 = vmatprep.subr.mxu0 0.0
  %1894 = vmatpush1.msra.mxu0 0.0
  %1895 = vmatprep.subr.mxu0 0.0
  %1896 = vmatpush1.msra.mxu0 0.0
  %1897 = vmatprep.subr.mxu0 0.0
  %1898 = vmatpush1.msra.mxu0 0.0
  %1899 = vmatprep.subr.mxu0 0.0
  %1900 = vmatpush1.msra.mxu0 0.0
  %1901 = vmatprep.subr.mxu0 0.0
  %1902 = vmatpush1.msra.mxu0 0.0
  %1903 = vmatprep.subr.mxu0 0.0
  %1904 = vmatpush1.msra.mxu0 0.0
  %1905 = vmatprep.subr.mxu0 0.0
  %1906 = vmatpush1.msra.mxu0 0.0
  %1907 = vmatprep.subr.mxu0 0.0
  %1908 = vmatpush1.msra.mxu0 0.0
  %1909 = vmatprep.subr.mxu0 %v1756
  %1910 = vmatpush1.msra.mxu0 %v1755
  %1911 = vmatprep.subr.mxu0 %v1754
  %1912 = vmatpush1.msra.mxu0 %v1753
  %1913 = vmatprep.subr.mxu0 %v1752
  %1914 = vmatpush1.msra.mxu0 %v1751
  %1915 = vmatprep.subr.mxu0 %v1750
  %1916 = vmatpush1.msra.mxu0 %v1749
  %1917 = vmatprep.subr.mxu0 0.0
  %1918 = vmatpush2.msra.mxu0 0.0
  %1919 = vmatprep.subr.mxu0 0.0
  %1920 = vmatpush2.msra.mxu0 0.0
  %1921 = vmatprep.subr.mxu0 0.0
  %1922 = vmatpush2.msra.mxu0 0.0
  %1923 = vmatprep.subr.mxu0 0.0
  %1924 = vmatpush2.msra.mxu0 0.0
  %1925 = vmatprep.subr.mxu0 0.0
  %1926 = vmatpush2.msra.mxu0 0.0
  %1927 = vmatprep.subr.mxu0 0.0
  %1928 = vmatpush2.msra.mxu0 0.0
  %1929 = vmatprep.subr.mxu0 0.0
  %1930 = vmatpush2.msra.mxu0 0.0
  %1931 = vmatprep.subr.mxu0 0.0
  %1932 = vmatpush2.msra.mxu0 0.0
  %1933 = vmatprep.subr.mxu0 0.0
  %1934 = vmatpush2.msra.mxu0 0.0
  %1935 = vmatprep.subr.mxu0 0.0
  %1936 = vmatpush2.msra.mxu0 0.0
  %1937 = vmatprep.subr.mxu0 0.0
  %1938 = vmatpush2.msra.mxu0 0.0
  %1939 = vmatprep.subr.mxu0 0.0
  %1940 = vmatpush2.msra.mxu0 0.0
  %1941 = vmatprep.subr.mxu0 0.0
  %1942 = vmatpush2.msra.mxu0 0.0
  %1943 = vmatprep.subr.mxu0 0.0
  %1944 = vmatpush2.msra.mxu0 0.0
  %1945 = vmatprep.subr.mxu0 0.0
  %1946 = vmatpush2.msra.mxu0 0.0
  %1947 = vmatprep.subr.mxu0 0.0
  %1948 = vmatpush2.msra.mxu0 0.0
  %1949 = vmatprep.mubr.f32.mxu0 0.0
  %1950 = vmatmul.mubr.f32.gmra.mxu0 %v1821
  %v1951 = vpop.f32.mrf.mxu0
  %v1952 = vadd.f32 0.0, %v1951
  %v1953 = vpop.f32.mrf.mxu0
  %v1954 = vadd.f32 0.0, %v1953
  %1955 = vmatprep.mubr.f32.mxu0 0.0
  %1956 = vmatmul.mubr.f32.gmra.mxu0 %v1823
  %v1957 = vpop.f32.mrf.mxu0
  %v1958 = vadd.f32 0.0, %v1957
  %v1959 = vpop.f32.mrf.mxu0
  %v1960 = vadd.f32 0.0, %v1959
  %1961 = vmatprep.mubr.f32.mxu0 0.0
  %1962 = vmatmul.mubr.f32.gmra.mxu0 %v1825
  %v1963 = vpop.f32.mrf.mxu0
  %v1964 = vadd.f32 0.0, %v1963
  %v1965 = vpop.f32.mrf.mxu0
  %v1966 = vadd.f32 0.0, %v1965
  %1967 = vmatprep.mubr.f32.mxu0 0.0
  %1968 = vmatmul.mubr.f32.gmra.mxu0 %v1827
  %v1969 = vpop.f32.mrf.mxu0
  %v1970 = vadd.f32 0.0, %v1969
  %v1971 = vpop.f32.mrf.mxu0
  %v1972 = vadd.f32 0.0, %v1971
  %1973 = vmatprep.mubr.f32.mxu0 0.0
  %1974 = vmatmul.mubr.f32.gmra.mxu0 %v1829
  %v1975 = vpop.f32.mrf.mxu0
  %v1976 = vadd.f32 0.0, %v1975
  %v1977 = vpop.f32.mrf.mxu0
  %v1978 = vadd.f32 0.0, %v1977
  %1979 = vmatprep.mubr.f32.mxu0 0.0
  %1980 = vmatmul.mubr.f32.gmra.mxu0 %v1831
  %v1981 = vpop.f32.mrf.mxu0
  %v1982 = vadd.f32 0.0, %v1981
  %v1983 = vpop.f32.mrf.mxu0
  %v1984 = vadd.f32 0.0, %v1983
  %1985 = vmatprep.mubr.f32.mxu0 0.0
  %1986 = vmatmul.mubr.f32.gmra.mxu0 %v1833
  %v1987 = vpop.f32.mrf.mxu0
  %v1988 = vadd.f32 0.0, %v1987
  %v1989 = vpop.f32.mrf.mxu0
  %v1990 = vadd.f32 0.0, %v1989
  %1991 = vmatprep.mubr.f32.mxu0 0.0
  %1992 = vmatmul.mubr.f32.gmra.mxu0 %v1835
  %v1993 = vpop.f32.mrf.mxu0
  %v1994 = vadd.f32 0.0, %v1993
  %v1995 = vpop.f32.mrf.mxu0
  %v1996 = vadd.f32 0.0, %v1995
  %1997 = vmatprep.mubr.f32.mxu0 0.0
  %1998 = vmatmul.mubr.f32.gmra.mxu0 %v1837
  %v1999 = vpop.f32.mrf.mxu0
  %v2000 = vadd.f32 0.0, %v1999
  %v2001 = vpop.f32.mrf.mxu0
  %v2002 = vadd.f32 0.0, %v2001
  %2003 = vmatprep.mubr.f32.mxu0 0.0
  %2004 = vmatmul.mubr.f32.gmra.mxu0 %v1839
  %v2005 = vpop.f32.mrf.mxu0
  %v2006 = vadd.f32 0.0, %v2005
  %v2007 = vpop.f32.mrf.mxu0
  %v2008 = vadd.f32 0.0, %v2007
  %2009 = vmatprep.mubr.f32.mxu0 0.0
  %2010 = vmatmul.mubr.f32.gmra.mxu0 %v1841
  %v2011 = vpop.f32.mrf.mxu0
  %v2012 = vadd.f32 0.0, %v2011
  %v2013 = vpop.f32.mrf.mxu0
  %v2014 = vadd.f32 0.0, %v2013
  %2015 = vmatprep.mubr.f32.mxu0 0.0
  %2016 = vmatmul.mubr.f32.gmra.mxu0 %v1843
  %v2017 = vpop.f32.mrf.mxu0
  %v2018 = vadd.f32 0.0, %v2017
  %v2019 = vpop.f32.mrf.mxu0
  %v2020 = vadd.f32 0.0, %v2019
  %2021 = vmatprep.mubr.f32.mxu0 0.0
  %2022 = vmatmul.mubr.f32.gmra.mxu0 %v1845
  %v2023 = vpop.f32.mrf.mxu0
  %v2024 = vadd.f32 0.0, %v2023
  %v2025 = vpop.f32.mrf.mxu0
  %v2026 = vadd.f32 0.0, %v2025
  %2027 = vmatprep.mubr.f32.mxu0 0.0
  %2028 = vmatmul.mubr.f32.gmra.mxu0 %v1847
  %v2029 = vpop.f32.mrf.mxu0
  %v2030 = vadd.f32 0.0, %v2029
  %v2031 = vpop.f32.mrf.mxu0
  %v2032 = vadd.f32 0.0, %v2031
  %2033 = vmatprep.mubr.f32.mxu0 0.0
  %2034 = vmatmul.mubr.f32.gmra.mxu0 %v1849
  %v2035 = vpop.f32.mrf.mxu0
  %v2036 = vadd.f32 0.0, %v2035
  %v2037 = vpop.f32.mrf.mxu0
  %v2038 = vadd.f32 0.0, %v2037
  %2039 = vmatprep.mubr.f32.mxu0 0.0
  %2040 = vmatmul.mubr.f32.gmra.mxu0 %v1851
  %v2041 = vpop.f32.mrf.mxu0
  %v2042 = vadd.f32 0.0, %v2041
  %v2043 = vpop.f32.mrf.mxu0
  %v2044 = vadd.f32 0.0, %v2043
  %2045 = vmatprep.mubr.f32.mxu0 0.0
  %2046 = vmatmul.mubr.f32.gmra.mxu0 %v1853
  %v2047 = vpop.f32.mrf.mxu0
  %v2048 = vadd.f32 0.0, %v2047
  %v2049 = vpop.f32.mrf.mxu0
  %v2050 = vadd.f32 0.0, %v2049
  %2051 = vmatprep.mubr.f32.mxu0 0.0
  %2052 = vmatmul.mubr.f32.gmra.mxu0 %v1855
  %v2053 = vpop.f32.mrf.mxu0
  %v2054 = vadd.f32 0.0, %v2053
  %v2055 = vpop.f32.mrf.mxu0
  %v2056 = vadd.f32 0.0, %v2055
  %2057 = vmatprep.mubr.f32.mxu0 0.0
  %2058 = vmatmul.mubr.f32.gmra.mxu0 %v1857
  %v2059 = vpop.f32.mrf.mxu0
  %v2060 = vadd.f32 0.0, %v2059
  %v2061 = vpop.f32.mrf.mxu0
  %v2062 = vadd.f32 0.0, %v2061
  %2063 = vmatprep.mubr.f32.mxu0 0.0
  %2064 = vmatmul.mubr.f32.gmra.mxu0 %v1859
  %v2065 = vpop.f32.mrf.mxu0
  %v2066 = vadd.f32 0.0, %v2065
  %v2067 = vpop.f32.mrf.mxu0
  %v2068 = vadd.f32 0.0, %v2067
  %2069 = vmatprep.mubr.f32.mxu0 0.0
  %2070 = vmatmul.mubr.f32.gmra.mxu0 %v1861
  %v2071 = vpop.f32.mrf.mxu0
  %v2072 = vadd.f32 0.0, %v2071
  %v2073 = vpop.f32.mrf.mxu0
  %v2074 = vadd.f32 0.0, %v2073
  %2075 = vmatprep.mubr.f32.mxu0 0.0
  %2076 = vmatmul.mubr.f32.gmra.mxu0 %v1863
  %v2077 = vpop.f32.mrf.mxu0
  %v2078 = vadd.f32 0.0, %v2077
  %v2079 = vpop.f32.mrf.mxu0
  %v2080 = vadd.f32 0.0, %v2079
  %2081 = vmatprep.mubr.f32.mxu0 0.0
  %2082 = vmatmul.mubr.f32.gmra.mxu0 %v1865
  %v2083 = vpop.f32.mrf.mxu0
  %v2084 = vadd.f32 0.0, %v2083
  %v2085 = vpop.f32.mrf.mxu0
  %v2086 = vadd.f32 0.0, %v2085
  %2087 = vmatprep.mubr.f32.mxu0 0.0
  %2088 = vmatmul.mubr.f32.gmra.mxu0 %v1867
  %v2089 = vpop.f32.mrf.mxu0
  %v2090 = vadd.f32 0.0, %v2089
  %v2091 = vpop.f32.mrf.mxu0
  %v2092 = vadd.f32 0.0, %v2091
  %2093 = vmatprep.mubr.f32.mxu0 0.0
  %2094 = vmatmul.mubr.f32.gmra.mxu0 %v1869
  %v2095 = vpop.f32.mrf.mxu0
  %v2096 = vadd.f32 0.0, %v2095
  %v2097 = vpop.f32.mrf.mxu0
  %v2098 = vadd.f32 0.0, %v2097
  %2099 = vmatprep.mubr.f32.mxu0 0.0
  %2100 = vmatmul.mubr.f32.gmra.mxu0 %v1871
  %v2101 = vpop.f32.mrf.mxu0
  %v2102 = vadd.f32 0.0, %v2101
  %v2103 = vpop.f32.mrf.mxu0
  %v2104 = vadd.f32 0.0, %v2103
  %2105 = vmatprep.mubr.f32.mxu0 0.0
  %2106 = vmatmul.mubr.f32.gmra.mxu0 %v1873
  %v2107 = vpop.f32.mrf.mxu0
  %v2108 = vadd.f32 0.0, %v2107
  %v2109 = vpop.f32.mrf.mxu0
  %v2110 = vadd.f32 0.0, %v2109
  %2111 = vmatprep.mubr.f32.mxu0 0.0
  %2112 = vmatmul.mubr.f32.gmra.mxu0 %v1875
  %v2113 = vpop.f32.mrf.mxu0
  %v2114 = vadd.f32 0.0, %v2113
  %v2115 = vpop.f32.mrf.mxu0
  %v2116 = vadd.f32 0.0, %v2115
  %2117 = vmatprep.mubr.f32.mxu0 0.0
  %2118 = vmatmul.mubr.f32.gmra.mxu0 %v1877
  %v2119 = vpop.f32.mrf.mxu0
  %v2120 = vadd.f32 0.0, %v2119
  %v2121 = vpop.f32.mrf.mxu0
  %v2122 = vadd.f32 0.0, %v2121
  %2123 = vmatprep.mubr.f32.mxu0 0.0
  %2124 = vmatmul.mubr.f32.gmra.mxu0 %v1879
  %v2125 = vpop.f32.mrf.mxu0
  %v2126 = vadd.f32 0.0, %v2125
  %v2127 = vpop.f32.mrf.mxu0
  %v2128 = vadd.f32 0.0, %v2127
  %2129 = vmatprep.mubr.f32.mxu0 0.0
  %2130 = vmatmul.mubr.f32.gmra.mxu0 %v1881
  %v2131 = vpop.f32.mrf.mxu0
  %v2132 = vadd.f32 0.0, %v2131
  %v2133 = vpop.f32.mrf.mxu0
  %v2134 = vadd.f32 0.0, %v2133
  %2135 = vmatprep.mubr.f32.mxu0 0.0
  %2136 = vmatmul.mubr.f32.gmra.mxu0 %v1883
  %v2137 = vpop.f32.mrf.mxu0
  %v2138 = vadd.f32 0.0, %v2137
  %v2139 = vpop.f32.mrf.mxu0
  %v2140 = vadd.f32 0.0, %v2139
  %2141 = vdwg.mxu0
  %v2142 = vadd.f32 %v1684, %v1952
  %v2143 = vadd.f32 %v1685, %v1954
  %v2144 = vadd.f32 %v1686, %v1958
  %v2145 = vadd.f32 %v1687, %v1960
  %v2146 = vadd.f32 %v1688, %v1964
  %v2147 = vadd.f32 %v1689, %v1966
  %v2148 = vadd.f32 %v1690, %v1970
  %v2149 = vadd.f32 %v1691, %v1972
  %v2150 = vadd.f32 %v1692, %v1976
  %v2151 = vadd.f32 %v1693, %v1978
  %v2152 = vadd.f32 %v1694, %v1982
  %v2153 = vadd.f32 %v1695, %v1984
  %v2154 = vadd.f32 %v1696, %v1988
  %v2155 = vadd.f32 %v1697, %v1990
  %v2156 = vadd.f32 %v1698, %v1994
  %v2157 = vadd.f32 %v1699, %v1996
  %v2158 = vadd.f32 %v1700, %v2000
  %v2159 = vadd.f32 %v1701, %v2002
  %v2160 = vadd.f32 %v1702, %v2006
  %v2161 = vadd.f32 %v1703, %v2008
  %v2162 = vadd.f32 %v1704, %v2012
  %v2163 = vadd.f32 %v1705, %v2014
  %v2164 = vadd.f32 %v1706, %v2018
  %v2165 = vadd.f32 %v1707, %v2020
  %v2166 = vadd.f32 %v1708, %v2024
  %v2167 = vadd.f32 %v1709, %v2026
  %v2168 = vadd.f32 %v1710, %v2030
  %v2169 = vadd.f32 %v1711, %v2032
  %v2170 = vadd.f32 %v1712, %v2036
  %v2171 = vadd.f32 %v1713, %v2038
  %v2172 = vadd.f32 %v1714, %v2042
  %v2173 = vadd.f32 %v1715, %v2044
  %v2174 = vadd.f32 %v1716, %v2048
  %v2175 = vadd.f32 %v1717, %v2050
  %v2176 = vadd.f32 %v1718, %v2054
  %v2177 = vadd.f32 %v1719, %v2056
  %v2178 = vadd.f32 %v1720, %v2060
  %v2179 = vadd.f32 %v1721, %v2062
  %v2180 = vadd.f32 %v1722, %v2066
  %v2181 = vadd.f32 %v1723, %v2068
  %v2182 = vadd.f32 %v1724, %v2072
  %v2183 = vadd.f32 %v1725, %v2074
  %v2184 = vadd.f32 %v1726, %v2078
  %v2185 = vadd.f32 %v1727, %v2080
  %v2186 = vadd.f32 %v1728, %v2084
  %v2187 = vadd.f32 %v1729, %v2086
  %v2188 = vadd.f32 %v1730, %v2090
  %v2189 = vadd.f32 %v1731, %v2092
  %v2190 = vadd.f32 %v1732, %v2096
  %v2191 = vadd.f32 %v1733, %v2098
  %v2192 = vadd.f32 %v1734, %v2102
  %v2193 = vadd.f32 %v1735, %v2104
  %v2194 = vadd.f32 %v1736, %v2108
  %v2195 = vadd.f32 %v1737, %v2110
  %v2196 = vadd.f32 %v1738, %v2114
  %v2197 = vadd.f32 %v1739, %v2116
  %v2198 = vadd.f32 %v1740, %v2120
  %v2199 = vadd.f32 %v1741, %v2122
  %v2200 = vadd.f32 %v1742, %v2126
  %v2201 = vadd.f32 %v1743, %v2128
  %v2202 = vadd.f32 %v1744, %v2132
  %v2203 = vadd.f32 %v1745, %v2134
  %v2204 = vadd.f32 %v1746, %v2138
  %v2205 = vadd.f32 %v1747, %v2140
  %v2206 = vld [vmem:[%s2] sm:$0x3]
  %v2208 = vlaneseq
  %v2209 = vshrl.u32 %v2208, 7
  %v2210 = vsub.s32 0, %v2209
  %v2211 = vrot.slane %v2206, %v2210
  %v2212 = vlaneseq
  %v2213 = vshrl.u32 %v2212, 7
  %v2214 = vsub.s32 1, %v2213
  %v2215 = vrot.slane %v2206, %v2214
  %v2218 = vadd.f32 %v2142, %v2211
  %v2219 = vadd.f32 %v2143, %v2215
  %v2220 = vadd.f32 %v2144, %v2211
  %v2221 = vadd.f32 %v2145, %v2215
  %v2222 = vadd.f32 %v2146, %v2211
  %v2223 = vadd.f32 %v2147, %v2215
  %v2224 = vadd.f32 %v2148, %v2211
  %v2225 = vadd.f32 %v2149, %v2215
  %v2226 = vadd.f32 %v2150, %v2211
  %v2227 = vadd.f32 %v2151, %v2215
  %v2228 = vadd.f32 %v2152, %v2211
  %v2229 = vadd.f32 %v2153, %v2215
  %v2230 = vadd.f32 %v2154, %v2211
  %v2231 = vadd.f32 %v2155, %v2215
  %v2232 = vadd.f32 %v2156, %v2211
  %v2233 = vadd.f32 %v2157, %v2215
  %v2234 = vadd.f32 %v2158, %v2211
  %v2235 = vadd.f32 %v2159, %v2215
  %v2236 = vadd.f32 %v2160, %v2211
  %v2237 = vadd.f32 %v2161, %v2215
  %v2238 = vadd.f32 %v2162, %v2211
  %v2239 = vadd.f32 %v2163, %v2215
  %v2240 = vadd.f32 %v2164, %v2211
  %v2241 = vadd.f32 %v2165, %v2215
  %v2242 = vadd.f32 %v2166, %v2211
  %v2243 = vadd.f32 %v2167, %v2215
  %v2244 = vadd.f32 %v2168, %v2211
  %v2245 = vadd.f32 %v2169, %v2215
  %v2246 = vadd.f32 %v2170, %v2211
  %v2247 = vadd.f32 %v2171, %v2215
  %v2248 = vadd.f32 %v2172, %v2211
  %v2249 = vadd.f32 %v2173, %v2215
  %v2250 = vadd.f32 %v2174, %v2211
  %v2251 = vadd.f32 %v2175, %v2215
  %v2252 = vadd.f32 %v2176, %v2211
  %v2253 = vadd.f32 %v2177, %v2215
  %v2254 = vadd.f32 %v2178, %v2211
  %v2255 = vadd.f32 %v2179, %v2215
  %v2256 = vadd.f32 %v2180, %v2211
  %v2257 = vadd.f32 %v2181, %v2215
  %v2258 = vadd.f32 %v2182, %v2211
  %v2259 = vadd.f32 %v2183, %v2215
  %v2260 = vadd.f32 %v2184, %v2211
  %v2261 = vadd.f32 %v2185, %v2215
  %v2262 = vadd.f32 %v2186, %v2211
  %v2263 = vadd.f32 %v2187, %v2215
  %v2264 = vadd.f32 %v2188, %v2211
  %v2265 = vadd.f32 %v2189, %v2215
  %v2266 = vadd.f32 %v2190, %v2211
  %v2267 = vadd.f32 %v2191, %v2215
  %v2268 = vadd.f32 %v2192, %v2211
  %v2269 = vadd.f32 %v2193, %v2215
  %v2270 = vadd.f32 %v2194, %v2211
  %v2271 = vadd.f32 %v2195, %v2215
  %v2272 = vadd.f32 %v2196, %v2211
  %v2273 = vadd.f32 %v2197, %v2215
  %v2274 = vadd.f32 %v2198, %v2211
  %v2275 = vadd.f32 %v2199, %v2215
  %v2276 = vadd.f32 %v2200, %v2211
  %v2277 = vadd.f32 %v2201, %v2215
  %v2278 = vadd.f32 %v2202, %v2211
  %v2279 = vadd.f32 %v2203, %v2215
  %v2280 = vadd.f32 %v2204, %v2211
  %v2281 = vadd.f32 %v2205, %v2215
  %v2282 = vtanh.pop %v2218
  %v2283 = vtanh.pop %v2219
  %v2284 = vtanh.pop %v2220
  %v2285 = vtanh.pop %v2221
  %v2286 = vtanh.pop %v2222
  %v2287 = vtanh.pop %v2223
  %v2288 = vtanh.pop %v2224
  %v2289 = vtanh.pop %v2225
  %v2290 = vtanh.pop %v2226
  %v2291 = vtanh.pop %v2227
  %v2292 = vtanh.pop %v2228
  %v2293 = vtanh.pop %v2229
  %v2294 = vtanh.pop %v2230
  %v2295 = vtanh.pop %v2231
  %v2296 = vtanh.pop %v2232
  %v2297 = vtanh.pop %v2233
  %v2298 = vtanh.pop %v2234
  %v2299 = vtanh.pop %v2235
  %v2300 = vtanh.pop %v2236
  %v2301 = vtanh.pop %v2237
  %v2302 = vtanh.pop %v2238
  %v2303 = vtanh.pop %v2239
  %v2304 = vtanh.pop %v2240
  %v2305 = vtanh.pop %v2241
  %v2306 = vtanh.pop %v2242
  %v2307 = vtanh.pop %v2243
  %v2308 = vtanh.pop %v2244
  %v2309 = vtanh.pop %v2245
  %v2310 = vtanh.pop %v2246
  %v2311 = vtanh.pop %v2247
  %v2312 = vtanh.pop %v2248
  %v2313 = vtanh.pop %v2249
  %v2314 = vtanh.pop %v2250
  %v2315 = vtanh.pop %v2251
  %v2316 = vtanh.pop %v2252
  %v2317 = vtanh.pop %v2253
  %v2318 = vtanh.pop %v2254
  %v2319 = vtanh.pop %v2255
  %v2320 = vtanh.pop %v2256
  %v2321 = vtanh.pop %v2257
  %v2322 = vtanh.pop %v2258
  %v2323 = vtanh.pop %v2259
  %v2324 = vtanh.pop %v2260
  %v2325 = vtanh.pop %v2261
  %v2326 = vtanh.pop %v2262
  %v2327 = vtanh.pop %v2263
  %v2328 = vtanh.pop %v2264
  %v2329 = vtanh.pop %v2265
  %v2330 = vtanh.pop %v2266
  %v2331 = vtanh.pop %v2267
  %v2332 = vtanh.pop %v2268
  %v2333 = vtanh.pop %v2269
  %v2334 = vtanh.pop %v2270
  %v2335 = vtanh.pop %v2271
  %v2336 = vtanh.pop %v2272
  %v2337 = vtanh.pop %v2273
  %v2338 = vtanh.pop %v2274
  %v2339 = vtanh.pop %v2275
  %v2340 = vtanh.pop %v2276
  %v2341 = vtanh.pop %v2277
  %v2342 = vtanh.pop %v2278
  %v2343 = vtanh.pop %v2279
  %v2344 = vtanh.pop %v2280
  %v2345 = vtanh.pop %v2281
  %v2346 = vld [vmem:[%s3] sm:$0xff]
  %v2347 = vld [vmem:[%s3 + $0x8] sm:$0xff]
  %v2348 = vld [vmem:[%s3 + $0x10] sm:$0xff]
  %v2349 = vld [vmem:[%s3 + $0x18] sm:$0xff]
  %v2350 = vld [vmem:[%s3 + $0x20] sm:$0xff]
  %v2351 = vld [vmem:[%s3 + $0x28] sm:$0xff]
  %v2352 = vld [vmem:[%s3 + $0x30] sm:$0xff]
  %v2353 = vld [vmem:[%s3 + $0x38] sm:$0xff]
  %v2354 = vld [vmem:[%s3 + $0x40] sm:$0xff]
  %v2355 = vld [vmem:[%s3 + $0x48] sm:$0xff]
  %v2356 = vld [vmem:[%s3 + $0x50] sm:$0xff]
  %v2357 = vld [vmem:[%s3 + $0x58] sm:$0xff]
  %v2358 = vld [vmem:[%s3 + $0x60] sm:$0xff]
  %v2359 = vld [vmem:[%s3 + $0x68] sm:$0xff]
  %v2360 = vld [vmem:[%s3 + $0x70] sm:$0xff]
  %v2361 = vld [vmem:[%s3 + $0x78] sm:$0xff]
  %v2362 = vld [vmem:[%s3 + $0x80] sm:$0xff]
  %v2363 = vld [vmem:[%s3 + $0x88] sm:$0xff]
  %v2364 = vld [vmem:[%s3 + $0x90] sm:$0xff]
  %v2365 = vld [vmem:[%s3 + $0x98] sm:$0xff]
  %v2366 = vld [vmem:[%s3 + $0xa0] sm:$0xff]
  %vm2367 = vcmask 326656
  %v2369 = vsel %vm2367, %v2283, 0
  %v2372 = vsel %vm2367, %v2285, 0
  %v2375 = vsel %vm2367, %v2287, 0
  %v2378 = vsel %vm2367, %v2289, 0
  %v2381 = vsel %vm2367, %v2291, 0
  %v2384 = vsel %vm2367, %v2293, 0
  %v2387 = vsel %vm2367, %v2295, 0
  %v2390 = vsel %vm2367, %v2297, 0
  %v2393 = vsel %vm2367, %v2299, 0
  %v2396 = vsel %vm2367, %v2301, 0
  %v2399 = vsel %vm2367, %v2303, 0
  %v2402 = vsel %vm2367, %v2305, 0
  %v2405 = vsel %vm2367, %v2307, 0
  %v2408 = vsel %vm2367, %v2309, 0
  %v2411 = vsel %vm2367, %v2311, 0
  %v2414 = vsel %vm2367, %v2313, 0
  %v2417 = vsel %vm2367, %v2315, 0
  %v2420 = vsel %vm2367, %v2317, 0
  %v2423 = vsel %vm2367, %v2319, 0
  %v2426 = vsel %vm2367, %v2321, 0
  %v2429 = vsel %vm2367, %v2323, 0
  %v2432 = vsel %vm2367, %v2325, 0
  %v2435 = vsel %vm2367, %v2327, 0
  %v2438 = vsel %vm2367, %v2329, 0
  %v2441 = vsel %vm2367, %v2331, 0
  %v2444 = vsel %vm2367, %v2333, 0
  %v2447 = vsel %vm2367, %v2335, 0
  %v2450 = vsel %vm2367, %v2337, 0
  %v2453 = vsel %vm2367, %v2339, 0
  %v2456 = vsel %vm2367, %v2341, 0
  %v2459 = vsel %vm2367, %v2343, 0
  %v2462 = vsel %vm2367, %v2345, 0
  %2464 = vmatprep.subr.mxu0 0.0
  %2465 = vmatpush1.msra.mxu0 %v2361
  %2466 = vmatprep.subr.mxu0 0.0
  %2467 = vmatpush1.msra.mxu0 %v2360
  %2468 = vmatprep.subr.mxu0 0.0
  %2469 = vmatpush1.msra.mxu0 %v2359
  %2470 = vmatprep.subr.mxu0 0.0
  %2471 = vmatpush1.msra.mxu0 %v2358
  %2472 = vmatprep.subr.mxu0 0.0
  %2473 = vmatpush1.msra.mxu0 %v2357
  %2474 = vmatprep.subr.mxu0 0.0
  %2475 = vmatpush1.msra.mxu0 %v2356
  %2476 = vmatprep.subr.mxu0 0.0
  %2477 = vmatpush1.msra.mxu0 %v2355
  %2478 = vmatprep.subr.mxu0 0.0
  %2479 = vmatpush1.msra.mxu0 %v2354
  %2480 = vmatprep.subr.mxu0 0.0
  %2481 = vmatpush1.msra.mxu0 %v2353
  %2482 = vmatprep.subr.mxu0 0.0
  %2483 = vmatpush1.msra.mxu0 %v2352
  %2484 = vmatprep.subr.mxu0 0.0
  %2485 = vmatpush1.msra.mxu0 %v2351
  %2486 = vmatprep.subr.mxu0 0.0
  %2487 = vmatpush1.msra.mxu0 %v2350
  %2488 = vmatprep.subr.mxu0 0.0
  %2489 = vmatpush1.msra.mxu0 %v2349
  %2490 = vmatprep.subr.mxu0 0.0
  %2491 = vmatpush1.msra.mxu0 %v2348
  %2492 = vmatprep.subr.mxu0 0.0
  %2493 = vmatpush1.msra.mxu0 %v2347
  %2494 = vmatprep.subr.mxu0 0.0
  %2495 = vmatpush1.msra.mxu0 %v2346
  %2496 = vmatprep.subr.mxu0 0.0
  %2497 = vmatpush2.msra.mxu0 0.0
  %2498 = vmatprep.subr.mxu0 0.0
  %2499 = vmatpush2.msra.mxu0 0.0
  %2500 = vmatprep.subr.mxu0 0.0
  %2501 = vmatpush2.msra.mxu0 0.0
  %2502 = vmatprep.subr.mxu0 0.0
  %2503 = vmatpush2.msra.mxu0 0.0
  %2504 = vmatprep.subr.mxu0 0.0
  %2505 = vmatpush2.msra.mxu0 0.0
  %2506 = vmatprep.subr.mxu0 0.0
  %2507 = vmatpush2.msra.mxu0 0.0
  %2508 = vmatprep.subr.mxu0 0.0
  %2509 = vmatpush2.msra.mxu0 0.0
  %2510 = vmatprep.subr.mxu0 0.0
  %2511 = vmatpush2.msra.mxu0 0.0
  %2512 = vmatprep.subr.mxu0 0.0
  %2513 = vmatpush2.msra.mxu0 0.0
  %2514 = vmatprep.subr.mxu0 0.0
  %2515 = vmatpush2.msra.mxu0 0.0
  %2516 = vmatprep.subr.mxu0 0.0
  %2517 = vmatpush2.msra.mxu0 0.0
  %2518 = vmatprep.subr.mxu0 0.0
  %2519 = vmatpush2.msra.mxu0 %v2366
  %2520 = vmatprep.subr.mxu0 0.0
  %2521 = vmatpush2.msra.mxu0 %v2365
  %2522 = vmatprep.subr.mxu0 0.0
  %2523 = vmatpush2.msra.mxu0 %v2364
  %2524 = vmatprep.subr.mxu0 0.0
  %2525 = vmatpush2.msra.mxu0 %v2363
  %2526 = vmatprep.subr.mxu0 0.0
  %2527 = vmatpush2.msra.mxu0 %v2362
  %2528 = vmatprep.mubr.f32.mxu0 %v2369
  %2529 = vmatmul.mubr.f32.gmra.mxu0 %v2282
  %v2530 = vpop.f32.mrf.mxu0
  %v2531 = vadd.f32 0.0, %v2530
  %v2532 = vpop.f32.mrf.mxu0
  %2533 = vmatprep.mubr.f32.mxu0 %v2372
  %2534 = vmatmul.mubr.f32.gmra.mxu0 %v2284
  %v2535 = vpop.f32.mrf.mxu0
  %v2536 = vadd.f32 0.0, %v2535
  %v2537 = vpop.f32.mrf.mxu0
  %2538 = vmatprep.mubr.f32.mxu0 %v2375
  %2539 = vmatmul.mubr.f32.gmra.mxu0 %v2286
  %v2540 = vpop.f32.mrf.mxu0
  %v2541 = vadd.f32 0.0, %v2540
  %v2542 = vpop.f32.mrf.mxu0
  %2543 = vmatprep.mubr.f32.mxu0 %v2378
  %2544 = vmatmul.mubr.f32.gmra.mxu0 %v2288
  %v2545 = vpop.f32.mrf.mxu0
  %v2546 = vadd.f32 0.0, %v2545
  %v2547 = vpop.f32.mrf.mxu0
  %2548 = vmatprep.mubr.f32.mxu0 %v2381
  %2549 = vmatmul.mubr.f32.gmra.mxu0 %v2290
  %v2550 = vpop.f32.mrf.mxu0
  %v2551 = vadd.f32 0.0, %v2550
  %v2552 = vpop.f32.mrf.mxu0
  %2553 = vmatprep.mubr.f32.mxu0 %v2384
  %2554 = vmatmul.mubr.f32.gmra.mxu0 %v2292
  %v2555 = vpop.f32.mrf.mxu0
  %v2556 = vadd.f32 0.0, %v2555
  %v2557 = vpop.f32.mrf.mxu0
  %2558 = vmatprep.mubr.f32.mxu0 %v2387
  %2559 = vmatmul.mubr.f32.gmra.mxu0 %v2294
  %v2560 = vpop.f32.mrf.mxu0
  %v2561 = vadd.f32 0.0, %v2560
  %v2562 = vpop.f32.mrf.mxu0
  %2563 = vmatprep.mubr.f32.mxu0 %v2390
  %2564 = vmatmul.mubr.f32.gmra.mxu0 %v2296
  %v2565 = vpop.f32.mrf.mxu0
  %v2566 = vadd.f32 0.0, %v2565
  %v2567 = vpop.f32.mrf.mxu0
  %2568 = vmatprep.mubr.f32.mxu0 %v2393
  %2569 = vmatmul.mubr.f32.gmra.mxu0 %v2298
  %v2570 = vpop.f32.mrf.mxu0
  %v2571 = vadd.f32 0.0, %v2570
  %v2572 = vpop.f32.mrf.mxu0
  %2573 = vmatprep.mubr.f32.mxu0 %v2396
  %2574 = vmatmul.mubr.f32.gmra.mxu0 %v2300
  %v2575 = vpop.f32.mrf.mxu0
  %v2576 = vadd.f32 0.0, %v2575
  %v2577 = vpop.f32.mrf.mxu0
  %2578 = vmatprep.mubr.f32.mxu0 %v2399
  %2579 = vmatmul.mubr.f32.gmra.mxu0 %v2302
  %v2580 = vpop.f32.mrf.mxu0
  %v2581 = vadd.f32 0.0, %v2580
  %v2582 = vpop.f32.mrf.mxu0
  %2583 = vmatprep.mubr.f32.mxu0 %v2402
  %2584 = vmatmul.mubr.f32.gmra.mxu0 %v2304
  %v2585 = vpop.f32.mrf.mxu0
  %v2586 = vadd.f32 0.0, %v2585
  %v2587 = vpop.f32.mrf.mxu0
  %2588 = vmatprep.mubr.f32.mxu0 %v2405
  %2589 = vmatmul.mubr.f32.gmra.mxu0 %v2306
  %v2590 = vpop.f32.mrf.mxu0
  %v2591 = vadd.f32 0.0, %v2590
  %v2592 = vpop.f32.mrf.mxu0
  %2593 = vmatprep.mubr.f32.mxu0 %v2408
  %2594 = vmatmul.mubr.f32.gmra.mxu0 %v2308
  %v2595 = vpop.f32.mrf.mxu0
  %v2596 = vadd.f32 0.0, %v2595
  %v2597 = vpop.f32.mrf.mxu0
  %2598 = vmatprep.mubr.f32.mxu0 %v2411
  %2599 = vmatmul.mubr.f32.gmra.mxu0 %v2310
  %v2600 = vpop.f32.mrf.mxu0
  %v2601 = vadd.f32 0.0, %v2600
  %v2602 = vpop.f32.mrf.mxu0
  %2603 = vmatprep.mubr.f32.mxu0 %v2414
  %2604 = vmatmul.mubr.f32.gmra.mxu0 %v2312
  %v2605 = vpop.f32.mrf.mxu0
  %v2606 = vadd.f32 0.0, %v2605
  %v2607 = vpop.f32.mrf.mxu0
  %2608 = vmatprep.mubr.f32.mxu0 %v2417
  %2609 = vmatmul.mubr.f32.gmra.mxu0 %v2314
  %v2610 = vpop.f32.mrf.mxu0
  %v2611 = vadd.f32 0.0, %v2610
  %v2612 = vpop.f32.mrf.mxu0
  %2613 = vmatprep.mubr.f32.mxu0 %v2420
  %2614 = vmatmul.mubr.f32.gmra.mxu0 %v2316
  %v2615 = vpop.f32.mrf.mxu0
  %v2616 = vadd.f32 0.0, %v2615
  %v2617 = vpop.f32.mrf.mxu0
  %2618 = vmatprep.mubr.f32.mxu0 %v2423
  %2619 = vmatmul.mubr.f32.gmra.mxu0 %v2318
  %v2620 = vpop.f32.mrf.mxu0
  %v2621 = vadd.f32 0.0, %v2620
  %v2622 = vpop.f32.mrf.mxu0
  %2623 = vmatprep.mubr.f32.mxu0 %v2426
  %2624 = vmatmul.mubr.f32.gmra.mxu0 %v2320
  %v2625 = vpop.f32.mrf.mxu0
  %v2626 = vadd.f32 0.0, %v2625
  %v2627 = vpop.f32.mrf.mxu0
  %2628 = vmatprep.mubr.f32.mxu0 %v2429
  %2629 = vmatmul.mubr.f32.gmra.mxu0 %v2322
  %v2630 = vpop.f32.mrf.mxu0
  %v2631 = vadd.f32 0.0, %v2630
  %v2632 = vpop.f32.mrf.mxu0
  %2633 = vmatprep.mubr.f32.mxu0 %v2432
  %2634 = vmatmul.mubr.f32.gmra.mxu0 %v2324
  %v2635 = vpop.f32.mrf.mxu0
  %v2636 = vadd.f32 0.0, %v2635
  %v2637 = vpop.f32.mrf.mxu0
  %2638 = vmatprep.mubr.f32.mxu0 %v2435
  %2639 = vmatmul.mubr.f32.gmra.mxu0 %v2326
  %v2640 = vpop.f32.mrf.mxu0
  %v2641 = vadd.f32 0.0, %v2640
  %v2642 = vpop.f32.mrf.mxu0
  %2643 = vmatprep.mubr.f32.mxu0 %v2438
  %2644 = vmatmul.mubr.f32.gmra.mxu0 %v2328
  %v2645 = vpop.f32.mrf.mxu0
  %v2646 = vadd.f32 0.0, %v2645
  %v2647 = vpop.f32.mrf.mxu0
  %2648 = vmatprep.mubr.f32.mxu0 %v2441
  %2649 = vmatmul.mubr.f32.gmra.mxu0 %v2330
  %v2650 = vpop.f32.mrf.mxu0
  %v2651 = vadd.f32 0.0, %v2650
  %v2652 = vpop.f32.mrf.mxu0
  %2653 = vmatprep.mubr.f32.mxu0 %v2444
  %2654 = vmatmul.mubr.f32.gmra.mxu0 %v2332
  %v2655 = vpop.f32.mrf.mxu0
  %v2656 = vadd.f32 0.0, %v2655
  %v2657 = vpop.f32.mrf.mxu0
  %2658 = vmatprep.mubr.f32.mxu0 %v2447
  %2659 = vmatmul.mubr.f32.gmra.mxu0 %v2334
  %v2660 = vpop.f32.mrf.mxu0
  %v2661 = vadd.f32 0.0, %v2660
  %v2662 = vpop.f32.mrf.mxu0
  %2663 = vmatprep.mubr.f32.mxu0 %v2450
  %2664 = vmatmul.mubr.f32.gmra.mxu0 %v2336
  %v2665 = vpop.f32.mrf.mxu0
  %v2666 = vadd.f32 0.0, %v2665
  %v2667 = vpop.f32.mrf.mxu0
  %2668 = vmatprep.mubr.f32.mxu0 %v2453
  %2669 = vmatmul.mubr.f32.gmra.mxu0 %v2338
  %v2670 = vpop.f32.mrf.mxu0
  %v2671 = vadd.f32 0.0, %v2670
  %v2672 = vpop.f32.mrf.mxu0
  %2673 = vmatprep.mubr.f32.mxu0 %v2456
  %2674 = vmatmul.mubr.f32.gmra.mxu0 %v2340
  %v2675 = vpop.f32.mrf.mxu0
  %v2676 = vadd.f32 0.0, %v2675
  %v2677 = vpop.f32.mrf.mxu0
  %2678 = vmatprep.mubr.f32.mxu0 %v2459
  %2679 = vmatmul.mubr.f32.gmra.mxu0 %v2342
  %v2680 = vpop.f32.mrf.mxu0
  %v2681 = vadd.f32 0.0, %v2680
  %v2682 = vpop.f32.mrf.mxu0
  %2683 = vmatprep.mubr.f32.mxu0 %v2462
  %2684 = vmatmul.mubr.f32.gmra.mxu0 %v2344
  %v2685 = vpop.f32.mrf.mxu0
  %v2686 = vadd.f32 0.0, %v2685
  %v2687 = vpop.f32.mrf.mxu0
  %2688 = vdwg.mxu0
  %v2721 = vrot.slane %v2531, 1
  %v2722 = vrot.slane %v2536, 1
  %v2723 = vsel %vm125, %v2721, %v2722
  %v2724 = vrot.slane %v2541, 1
  %v2725 = vsel %vm125, %v2722, %v2724
  %v2726 = vrot.slane %v2546, 1
  %v2727 = vsel %vm125, %v2724, %v2726
  %v2728 = vrot.slane %v2551, 1
  %v2729 = vsel %vm125, %v2726, %v2728
  %v2730 = vrot.slane %v2556, 1
  %v2731 = vsel %vm125, %v2728, %v2730
  %v2732 = vrot.slane %v2561, 1
  %v2733 = vsel %vm125, %v2730, %v2732
  %v2734 = vrot.slane %v2566, 1
  %v2735 = vsel %vm125, %v2732, %v2734
  %v2736 = vrot.slane %v2571, 1
  %v2737 = vsel %vm125, %v2734, %v2736
  %v2738 = vrot.slane %v2576, 1
  %v2739 = vsel %vm125, %v2736, %v2738
  %v2740 = vrot.slane %v2581, 1
  %v2741 = vsel %vm125, %v2738, %v2740
  %v2742 = vrot.slane %v2586, 1
  %v2743 = vsel %vm125, %v2740, %v2742
  %v2744 = vrot.slane %v2591, 1
  %v2745 = vsel %vm125, %v2742, %v2744
  %v2746 = vrot.slane %v2596, 1
  %v2747 = vsel %vm125, %v2744, %v2746
  %v2748 = vrot.slane %v2601, 1
  %v2749 = vsel %vm125, %v2746, %v2748
  %v2750 = vrot.slane %v2606, 1
  %v2751 = vsel %vm125, %v2748, %v2750
  %v2752 = vrot.slane %v2611, 1
  %v2753 = vsel %vm125, %v2750, %v2752
  %v2754 = vrot.slane %v2616, 1
  %v2755 = vsel %vm125, %v2752, %v2754
  %v2756 = vrot.slane %v2621, 1
  %v2757 = vsel %vm125, %v2754, %v2756
  %v2758 = vrot.slane %v2626, 1
  %v2759 = vsel %vm125, %v2756, %v2758
  %v2760 = vrot.slane %v2631, 1
  %v2761 = vsel %vm125, %v2758, %v2760
  %v2762 = vrot.slane %v2636, 1
  %v2763 = vsel %vm125, %v2760, %v2762
  %v2764 = vrot.slane %v2641, 1
  %v2765 = vsel %vm125, %v2762, %v2764
  %v2766 = vrot.slane %v2646, 1
  %v2767 = vsel %vm125, %v2764, %v2766
  %v2768 = vrot.slane %v2651, 1
  %v2769 = vsel %vm125, %v2766, %v2768
  %v2770 = vrot.slane %v2656, 1
  %v2771 = vsel %vm125, %v2768, %v2770
  %v2772 = vrot.slane %v2661, 1
  %v2773 = vsel %vm125, %v2770, %v2772
  %v2774 = vrot.slane %v2666, 1
  %v2775 = vsel %vm125, %v2772, %v2774
  %v2776 = vrot.slane %v2671, 1
  %v2777 = vsel %vm125, %v2774, %v2776
  %v2778 = vrot.slane %v2676, 1
  %v2779 = vsel %vm125, %v2776, %v2778
  %v2780 = vrot.slane %v2681, 1
  %v2781 = vsel %vm125, %v2778, %v2780
  %v2782 = vrot.slane %v2686, 1
  %v2783 = vsel %vm125, %v2780, %v2782
  %v2816 = vadd.f32 %v2531, %v2723
  %v2817 = vadd.f32 %v2536, %v2725
  %v2818 = vadd.f32 %v2541, %v2727
  %v2819 = vadd.f32 %v2546, %v2729
  %v2820 = vadd.f32 %v2551, %v2731
  %v2821 = vadd.f32 %v2556, %v2733
  %v2822 = vadd.f32 %v2561, %v2735
  %v2823 = vadd.f32 %v2566, %v2737
  %v2824 = vadd.f32 %v2571, %v2739
  %v2825 = vadd.f32 %v2576, %v2741
  %v2826 = vadd.f32 %v2581, %v2743
  %v2827 = vadd.f32 %v2586, %v2745
  %v2828 = vadd.f32 %v2591, %v2747
  %v2829 = vadd.f32 %v2596, %v2749
  %v2830 = vadd.f32 %v2601, %v2751
  %v2831 = vadd.f32 %v2606, %v2753
  %v2832 = vadd.f32 %v2611, %v2755
  %v2833 = vadd.f32 %v2616, %v2757
  %v2834 = vadd.f32 %v2621, %v2759
  %v2835 = vadd.f32 %v2626, %v2761
  %v2836 = vadd.f32 %v2631, %v2763
  %v2837 = vadd.f32 %v2636, %v2765
  %v2838 = vadd.f32 %v2641, %v2767
  %v2839 = vadd.f32 %v2646, %v2769
  %v2840 = vadd.f32 %v2651, %v2771
  %v2841 = vadd.f32 %v2656, %v2773
  %v2842 = vadd.f32 %v2661, %v2775
  %v2843 = vadd.f32 %v2666, %v2777
  %v2844 = vadd.f32 %v2671, %v2779
  %v2845 = vadd.f32 %v2676, %v2781
  %v2846 = vadd.f32 %v2681, %v2783
  %v2847 = vadd.f32 %v2686, %v2782
  %v2848 = vmul.f32 %v2816, 0.5
  %v2849 = vmul.f32 %v2817, 0.5
  %v2850 = vmul.f32 %v2818, 0.5
  %v2851 = vmul.f32 %v2819, 0.5
  %v2852 = vmul.f32 %v2820, 0.5
  %v2853 = vmul.f32 %v2821, 0.5
  %v2854 = vmul.f32 %v2822, 0.5
  %v2855 = vmul.f32 %v2823, 0.5
  %v2856 = vmul.f32 %v2824, 0.5
  %v2857 = vmul.f32 %v2825, 0.5
  %v2858 = vmul.f32 %v2826, 0.5
  %v2859 = vmul.f32 %v2827, 0.5
  %v2860 = vmul.f32 %v2828, 0.5
  %v2861 = vmul.f32 %v2829, 0.5
  %v2862 = vmul.f32 %v2830, 0.5
  %v2863 = vmul.f32 %v2831, 0.5
  %v2864 = vmul.f32 %v2832, 0.5
  %v2865 = vmul.f32 %v2833, 0.5
  %v2866 = vmul.f32 %v2834, 0.5
  %v2867 = vmul.f32 %v2835, 0.5
  %v2868 = vmul.f32 %v2836, 0.5
  %v2869 = vmul.f32 %v2837, 0.5
  %v2870 = vmul.f32 %v2838, 0.5
  %v2871 = vmul.f32 %v2839, 0.5
  %v2872 = vmul.f32 %v2840, 0.5
  %v2873 = vmul.f32 %v2841, 0.5
  %v2874 = vmul.f32 %v2842, 0.5
  %v2875 = vmul.f32 %v2843, 0.5
  %v2876 = vmul.f32 %v2844, 0.5
  %v2877 = vmul.f32 %v2845, 0.5
  %v2878 = vmul.f32 %v2846, 0.5
  %v2879 = vmul.f32 %v2847, 0.5
  %v2880 = vld [vmem:[%s4] sm:$0xff]
  %v2881 = vld [vmem:[%s4 + $0x8] sm:$0xff]
  %v2882 = vld [vmem:[%s4 + $0x10] sm:$0xff]
  %v2883 = vld [vmem:[%s4 + $0x18] sm:$0xff]
  %v2884 = vld [vmem:[%s4 + $0x20] sm:$0xff]
  %v2885 = vld [vmem:[%s4 + $0x28] sm:$0xff]
  %v2886 = vld [vmem:[%s4 + $0x30] sm:$0xff]
  %v2887 = vld [vmem:[%s4 + $0x38] sm:$0xff]
  %v2888 = vld [vmem:[%s4 + $0x40] sm:$0xff]
  %v2889 = vld [vmem:[%s4 + $0x48] sm:$0xff]
  %v2890 = vld [vmem:[%s4 + $0x50] sm:$0xff]
  %v2891 = vld [vmem:[%s4 + $0x58] sm:$0xff]
  %v2892 = vld [vmem:[%s4 + $0x60] sm:$0xff]
  %v2893 = vld [vmem:[%s4 + $0x68] sm:$0xff]
  %v2894 = vld [vmem:[%s4 + $0x70] sm:$0xff]
  %v2895 = vld [vmem:[%s4 + $0x78] sm:$0xff]
  %v2896 = vld [vmem:[%s4 + $0x80] sm:$0xff]
  %v2897 = vld [vmem:[%s4 + $0x88] sm:$0xff]
  %v2898 = vld [vmem:[%s4 + $0x90] sm:$0xff]
  %v2899 = vld [vmem:[%s4 + $0x98] sm:$0xff]
  %v2900 = vld [vmem:[%s4 + $0xa0] sm:$0xf]
  %v2901 = vld [vmem:[%s4 + $0xa8] sm:$0xf]
  %s2902 = scalar_lea.vmem %s4, 176
  %v2903 = vld [vmem:[%s2902] sm:$0xff]
  %v2904 = vld [vmem:[%s2902 + $0x8] sm:$0xff]
  %v2905 = vld [vmem:[%s2902 + $0x10] sm:$0xff]
  %v2906 = vld [vmem:[%s2902 + $0x18] sm:$0xff]
  %v2907 = vld [vmem:[%s2902 + $0x20] sm:$0xff]
  %v2908 = vld [vmem:[%s2902 + $0x28] sm:$0xff]
  %v2909 = vld [vmem:[%s2902 + $0x30] sm:$0xff]
  %v2910 = vld [vmem:[%s2902 + $0x38] sm:$0xff]
  %v2911 = vld [vmem:[%s2902 + $0x40] sm:$0xff]
  %v2912 = vld [vmem:[%s2902 + $0x48] sm:$0xff]
  %v2913 = vld [vmem:[%s2902 + $0x50] sm:$0xff]
  %v2914 = vld [vmem:[%s2902 + $0x58] sm:$0xff]
  %v2915 = vld [vmem:[%s2902 + $0x60] sm:$0xff]
  %v2916 = vld [vmem:[%s2902 + $0x68] sm:$0xff]
  %v2917 = vld [vmem:[%s2902 + $0x70] sm:$0xff]
  %v2918 = vld [vmem:[%s2902 + $0x78] sm:$0xff]
  %v2919 = vld [vmem:[%s2902 + $0x80] sm:$0xff]
  %v2920 = vld [vmem:[%s2902 + $0x88] sm:$0xff]
  %v2921 = vld [vmem:[%s2902 + $0x90] sm:$0xff]
  %v2922 = vld [vmem:[%s2902 + $0x98] sm:$0xff]
  %v2923 = vld [vmem:[%s2902 + $0xa0] sm:$0xf]
  %v2924 = vld [vmem:[%s2902 + $0xa8] sm:$0xf]
  %v2956 = vrot.slane %v2848, 2
  %v2957 = vrot.slane %v2849, 2
  %v2958 = vsel %vm841, %v2956, %v2957
  %v2959 = vrot.slane %v2850, 2
  %v2960 = vsel %vm841, %v2957, %v2959
  %v2961 = vrot.slane %v2851, 2
  %v2962 = vsel %vm841, %v2959, %v2961
  %v2963 = vrot.slane %v2852, 2
  %v2964 = vsel %vm841, %v2961, %v2963
  %v2965 = vrot.slane %v2853, 2
  %v2966 = vsel %vm841, %v2963, %v2965
  %v2967 = vrot.slane %v2854, 2
  %v2968 = vsel %vm841, %v2965, %v2967
  %v2969 = vrot.slane %v2855, 2
  %v2970 = vsel %vm841, %v2967, %v2969
  %v2971 = vrot.slane %v2856, 2
  %v2972 = vsel %vm841, %v2969, %v2971
  %v2973 = vrot.slane %v2857, 2
  %v2974 = vsel %vm841, %v2971, %v2973
  %v2975 = vrot.slane %v2858, 2
  %v2976 = vsel %vm841, %v2973, %v2975
  %v2977 = vrot.slane %v2859, 2
  %v2978 = vsel %vm841, %v2975, %v2977
  %v2979 = vrot.slane %v2860, 2
  %v2980 = vsel %vm841, %v2977, %v2979
  %v2981 = vrot.slane %v2861, 2
  %v2982 = vsel %vm841, %v2979, %v2981
  %v2983 = vrot.slane %v2862, 2
  %v2984 = vsel %vm841, %v2981, %v2983
  %v2985 = vrot.slane %v2863, 2
  %v2986 = vsel %vm841, %v2983, %v2985
  %v2987 = vrot.slane %v2864, 2
  %v2988 = vsel %vm841, %v2985, %v2987
  %v2989 = vrot.slane %v2865, 2
  %v2990 = vsel %vm841, %v2987, %v2989
  %v2991 = vrot.slane %v2866, 2
  %v2992 = vsel %vm841, %v2989, %v2991
  %v2993 = vrot.slane %v2867, 2
  %v2994 = vsel %vm841, %v2991, %v2993
  %v2995 = vrot.slane %v2868, 2
  %v2996 = vsel %vm841, %v2993, %v2995
  %v2997 = vrot.slane %v2869, 2
  %v2998 = vsel %vm841, %v2995, %v2997
  %v2999 = vrot.slane %v2870, 2
  %v3000 = vsel %vm841, %v2997, %v2999
  %v3001 = vrot.slane %v2871, 2
  %v3002 = vsel %vm841, %v2999, %v3001
  %v3003 = vrot.slane %v2872, 2
  %v3004 = vsel %vm841, %v3001, %v3003
  %v3005 = vrot.slane %v2873, 2
  %v3006 = vsel %vm841, %v3003, %v3005
  %v3007 = vrot.slane %v2874, 2
  %v3008 = vsel %vm841, %v3005, %v3007
  %v3009 = vrot.slane %v2875, 2
  %v3010 = vsel %vm841, %v3007, %v3009
  %v3011 = vrot.slane %v2876, 2
  %v3012 = vsel %vm841, %v3009, %v3011
  %v3013 = vrot.slane %v2877, 2
  %v3014 = vsel %vm841, %v3011, %v3013
  %v3015 = vrot.slane %v2878, 2
  %v3016 = vsel %vm841, %v3013, %v3015
  %vm3017 = vcmask 687104
  %v3018 = vsel %vm3017, %v2958, 0
  %v3020 = vsel %vm3017, %v2960, 0
  %v3022 = vsel %vm3017, %v2962, 0
  %v3024 = vsel %vm3017, %v2964, 0
  %v3026 = vsel %vm3017, %v2966, 0
  %v3028 = vsel %vm3017, %v2968, 0
  %v3030 = vsel %vm3017, %v2970, 0
  %v3032 = vsel %vm3017, %v2972, 0
  %v3034 = vsel %vm3017, %v2974, 0
  %v3036 = vsel %vm3017, %v2976, 0
  %v3038 = vsel %vm3017, %v2978, 0
  %v3040 = vsel %vm3017, %v2980, 0
  %v3042 = vsel %vm3017, %v2982, 0
  %v3044 = vsel %vm3017, %v2984, 0
  %v3046 = vsel %vm3017, %v2986, 0
  %v3048 = vsel %vm3017, %v2988, 0
  %v3050 = vsel %vm3017, %v2990, 0
  %v3052 = vsel %vm3017, %v2992, 0
  %v3054 = vsel %vm3017, %v2994, 0
  %v3056 = vsel %vm3017, %v2996, 0
  %v3058 = vsel %vm3017, %v2998, 0
  %v3060 = vsel %vm3017, %v3000, 0
  %v3062 = vsel %vm3017, %v3002, 0
  %v3064 = vsel %vm3017, %v3004, 0
  %v3066 = vsel %vm3017, %v3006, 0
  %v3068 = vsel %vm3017, %v3008, 0
  %v3070 = vsel %vm3017, %v3010, 0
  %v3072 = vsel %vm3017, %v3012, 0
  %v3074 = vsel %vm3017, %v3014, 0
  %v3076 = vsel %vm3017, %v3016, 0
  %v3078 = vsel %vm3017, %v3015, 0
  %v3081 = vsel %vm1757, %v2923, 0
  %v3084 = vsel %vm1757, %v2924, 0
  %3086 = vmatprep.subr.mxu0 0.0
  %3087 = vmatpush1.msra.mxu0 0.0
  %3088 = vmatprep.subr.mxu0 0.0
  %3089 = vmatpush1.msra.mxu0 0.0
  %3090 = vmatprep.subr.mxu0 0.0
  %3091 = vmatpush1.msra.mxu0 0.0
  %3092 = vmatprep.subr.mxu0 0.0
  %3093 = vmatpush1.msra.mxu0 0.0
  %3094 = vmatprep.subr.mxu0 0.0
  %3095 = vmatpush1.msra.mxu0 0.0
  %3096 = vmatprep.subr.mxu0 %v3084
  %3097 = vmatpush1.msra.mxu0 %v3081
  %3098 = vmatprep.subr.mxu0 %v2922
  %3099 = vmatpush1.msra.mxu0 %v2921
  %3100 = vmatprep.subr.mxu0 %v2920
  %3101 = vmatpush1.msra.mxu0 %v2919
  %3102 = vmatprep.subr.mxu0 %v2918
  %3103 = vmatpush1.msra.mxu0 %v2917
  %3104 = vmatprep.subr.mxu0 %v2916
  %3105 = vmatpush1.msra.mxu0 %v2915
  %3106 = vmatprep.subr.mxu0 %v2914
  %3107 = vmatpush1.msra.mxu0 %v2913
  %3108 = vmatprep.subr.mxu0 %v2912
  %3109 = vmatpush1.msra.mxu0 %v2911
  %3110 = vmatprep.subr.mxu0 %v2910
  %3111 = vmatpush1.msra.mxu0 %v2909
  %3112 = vmatprep.subr.mxu0 %v2908
  %3113 = vmatpush1.msra.mxu0 %v2907
  %3114 = vmatprep.subr.mxu0 %v2906
  %3115 = vmatpush1.msra.mxu0 %v2905
  %3116 = vmatprep.subr.mxu0 %v2904
  %3117 = vmatpush1.msra.mxu0 %v2903
  %3118 = vmatprep.subr.mxu0 0.0
  %3119 = vmatpush2.msra.mxu0 0.0
  %3120 = vmatprep.subr.mxu0 0.0
  %3121 = vmatpush2.msra.mxu0 0.0
  %3122 = vmatprep.subr.mxu0 0.0
  %3123 = vmatpush2.msra.mxu0 0.0
  %3124 = vmatprep.subr.mxu0 0.0
  %3125 = vmatpush2.msra.mxu0 0.0
  %3126 = vmatprep.subr.mxu0 0.0
  %3127 = vmatpush2.msra.mxu0 0.0
  %3128 = vmatprep.subr.mxu0 0.0
  %3129 = vmatpush2.msra.mxu0 0.0
  %3130 = vmatprep.subr.mxu0 0.0
  %3131 = vmatpush2.msra.mxu0 0.0
  %3132 = vmatprep.subr.mxu0 0.0
  %3133 = vmatpush2.msra.mxu0 0.0
  %3134 = vmatprep.subr.mxu0 0.0
  %3135 = vmatpush2.msra.mxu0 0.0
  %3136 = vmatprep.subr.mxu0 0.0
  %3137 = vmatpush2.msra.mxu0 0.0
  %3138 = vmatprep.subr.mxu0 0.0
  %3139 = vmatpush2.msra.mxu0 0.0
  %3140 = vmatprep.subr.mxu0 0.0
  %3141 = vmatpush2.msra.mxu0 0.0
  %3142 = vmatprep.subr.mxu0 0.0
  %3143 = vmatpush2.msra.mxu0 0.0
  %3144 = vmatprep.subr.mxu0 0.0
  %3145 = vmatpush2.msra.mxu0 0.0
  %3146 = vmatprep.subr.mxu0 0.0
  %3147 = vmatpush2.msra.mxu0 0.0
  %3148 = vmatprep.subr.mxu0 0.0
  %3149 = vmatpush2.msra.mxu0 0.0
  %3150 = vmatprep.mubr.f32.mxu0 0.0
  %3151 = vmatmul.mubr.f32.gmra.mxu0 %v3018
  %v3152 = vpop.f32.mrf.mxu0
  %v3153 = vadd.f32 0.0, %v3152
  %v3154 = vpop.f32.mrf.mxu0
  %v3155 = vadd.f32 0.0, %v3154
  %3156 = vmatprep.mubr.f32.mxu0 0.0
  %3157 = vmatmul.mubr.f32.gmra.mxu0 %v3020
  %v3158 = vpop.f32.mrf.mxu0
  %v3159 = vadd.f32 0.0, %v3158
  %v3160 = vpop.f32.mrf.mxu0
  %v3161 = vadd.f32 0.0, %v3160
  %3162 = vmatprep.mubr.f32.mxu0 0.0
  %3163 = vmatmul.mubr.f32.gmra.mxu0 %v3022
  %v3164 = vpop.f32.mrf.mxu0
  %v3165 = vadd.f32 0.0, %v3164
  %v3166 = vpop.f32.mrf.mxu0
  %v3167 = vadd.f32 0.0, %v3166
  %3168 = vmatprep.mubr.f32.mxu0 0.0
  %3169 = vmatmul.mubr.f32.gmra.mxu0 %v3024
  %v3170 = vpop.f32.mrf.mxu0
  %v3171 = vadd.f32 0.0, %v3170
  %v3172 = vpop.f32.mrf.mxu0
  %v3173 = vadd.f32 0.0, %v3172
  %3174 = vmatprep.mubr.f32.mxu0 0.0
  %3175 = vmatmul.mubr.f32.gmra.mxu0 %v3026
  %v3176 = vpop.f32.mrf.mxu0
  %v3177 = vadd.f32 0.0, %v3176
  %v3178 = vpop.f32.mrf.mxu0
  %v3179 = vadd.f32 0.0, %v3178
  %3180 = vmatprep.mubr.f32.mxu0 0.0
  %3181 = vmatmul.mubr.f32.gmra.mxu0 %v3028
  %v3182 = vpop.f32.mrf.mxu0
  %v3183 = vadd.f32 0.0, %v3182
  %v3184 = vpop.f32.mrf.mxu0
  %v3185 = vadd.f32 0.0, %v3184
  %3186 = vmatprep.mubr.f32.mxu0 0.0
  %3187 = vmatmul.mubr.f32.gmra.mxu0 %v3030
  %v3188 = vpop.f32.mrf.mxu0
  %v3189 = vadd.f32 0.0, %v3188
  %v3190 = vpop.f32.mrf.mxu0
  %v3191 = vadd.f32 0.0, %v3190
  %3192 = vmatprep.mubr.f32.mxu0 0.0
  %3193 = vmatmul.mubr.f32.gmra.mxu0 %v3032
  %v3194 = vpop.f32.mrf.mxu0
  %v3195 = vadd.f32 0.0, %v3194
  %v3196 = vpop.f32.mrf.mxu0
  %v3197 = vadd.f32 0.0, %v3196
  %3198 = vmatprep.mubr.f32.mxu0 0.0
  %3199 = vmatmul.mubr.f32.gmra.mxu0 %v3034
  %v3200 = vpop.f32.mrf.mxu0
  %v3201 = vadd.f32 0.0, %v3200
  %v3202 = vpop.f32.mrf.mxu0
  %v3203 = vadd.f32 0.0, %v3202
  %3204 = vmatprep.mubr.f32.mxu0 0.0
  %3205 = vmatmul.mubr.f32.gmra.mxu0 %v3036
  %v3206 = vpop.f32.mrf.mxu0
  %v3207 = vadd.f32 0.0, %v3206
  %v3208 = vpop.f32.mrf.mxu0
  %v3209 = vadd.f32 0.0, %v3208
  %3210 = vmatprep.mubr.f32.mxu0 0.0
  %3211 = vmatmul.mubr.f32.gmra.mxu0 %v3038
  %v3212 = vpop.f32.mrf.mxu0
  %v3213 = vadd.f32 0.0, %v3212
  %v3214 = vpop.f32.mrf.mxu0
  %v3215 = vadd.f32 0.0, %v3214
  %3216 = vmatprep.mubr.f32.mxu0 0.0
  %3217 = vmatmul.mubr.f32.gmra.mxu0 %v3040
  %v3218 = vpop.f32.mrf.mxu0
  %v3219 = vadd.f32 0.0, %v3218
  %v3220 = vpop.f32.mrf.mxu0
  %v3221 = vadd.f32 0.0, %v3220
  %3222 = vmatprep.mubr.f32.mxu0 0.0
  %3223 = vmatmul.mubr.f32.gmra.mxu0 %v3042
  %v3224 = vpop.f32.mrf.mxu0
  %v3225 = vadd.f32 0.0, %v3224
  %v3226 = vpop.f32.mrf.mxu0
  %v3227 = vadd.f32 0.0, %v3226
  %3228 = vmatprep.mubr.f32.mxu0 0.0
  %3229 = vmatmul.mubr.f32.gmra.mxu0 %v3044
  %v3230 = vpop.f32.mrf.mxu0
  %v3231 = vadd.f32 0.0, %v3230
  %v3232 = vpop.f32.mrf.mxu0
  %v3233 = vadd.f32 0.0, %v3232
  %3234 = vmatprep.mubr.f32.mxu0 0.0
  %3235 = vmatmul.mubr.f32.gmra.mxu0 %v3046
  %v3236 = vpop.f32.mrf.mxu0
  %v3237 = vadd.f32 0.0, %v3236
  %v3238 = vpop.f32.mrf.mxu0
  %v3239 = vadd.f32 0.0, %v3238
  %3240 = vmatprep.mubr.f32.mxu0 0.0
  %3241 = vmatmul.mubr.f32.gmra.mxu0 %v3048
  %v3242 = vpop.f32.mrf.mxu0
  %v3243 = vadd.f32 0.0, %v3242
  %v3244 = vpop.f32.mrf.mxu0
  %v3245 = vadd.f32 0.0, %v3244
  %3246 = vmatprep.mubr.f32.mxu0 0.0
  %3247 = vmatmul.mubr.f32.gmra.mxu0 %v3050
  %v3248 = vpop.f32.mrf.mxu0
  %v3249 = vadd.f32 0.0, %v3248
  %v3250 = vpop.f32.mrf.mxu0
  %v3251 = vadd.f32 0.0, %v3250
  %3252 = vmatprep.mubr.f32.mxu0 0.0
  %3253 = vmatmul.mubr.f32.gmra.mxu0 %v3052
  %v3254 = vpop.f32.mrf.mxu0
  %v3255 = vadd.f32 0.0, %v3254
  %v3256 = vpop.f32.mrf.mxu0
  %v3257 = vadd.f32 0.0, %v3256
  %3258 = vmatprep.mubr.f32.mxu0 0.0
  %3259 = vmatmul.mubr.f32.gmra.mxu0 %v3054
  %v3260 = vpop.f32.mrf.mxu0
  %v3261 = vadd.f32 0.0, %v3260
  %v3262 = vpop.f32.mrf.mxu0
  %v3263 = vadd.f32 0.0, %v3262
  %3264 = vmatprep.mubr.f32.mxu0 0.0
  %3265 = vmatmul.mubr.f32.gmra.mxu0 %v3056
  %v3266 = vpop.f32.mrf.mxu0
  %v3267 = vadd.f32 0.0, %v3266
  %v3268 = vpop.f32.mrf.mxu0
  %v3269 = vadd.f32 0.0, %v3268
  %3270 = vmatprep.mubr.f32.mxu0 0.0
  %3271 = vmatmul.mubr.f32.gmra.mxu0 %v3058
  %v3272 = vpop.f32.mrf.mxu0
  %v3273 = vadd.f32 0.0, %v3272
  %v3274 = vpop.f32.mrf.mxu0
  %v3275 = vadd.f32 0.0, %v3274
  %3276 = vmatprep.mubr.f32.mxu0 0.0
  %3277 = vmatmul.mubr.f32.gmra.mxu0 %v3060
  %v3278 = vpop.f32.mrf.mxu0
  %v3279 = vadd.f32 0.0, %v3278
  %v3280 = vpop.f32.mrf.mxu0
  %v3281 = vadd.f32 0.0, %v3280
  %3282 = vmatprep.mubr.f32.mxu0 0.0
  %3283 = vmatmul.mubr.f32.gmra.mxu0 %v3062
  %v3284 = vpop.f32.mrf.mxu0
  %v3285 = vadd.f32 0.0, %v3284
  %v3286 = vpop.f32.mrf.mxu0
  %v3287 = vadd.f32 0.0, %v3286
  %3288 = vmatprep.mubr.f32.mxu0 0.0
  %3289 = vmatmul.mubr.f32.gmra.mxu0 %v3064
  %v3290 = vpop.f32.mrf.mxu0
  %v3291 = vadd.f32 0.0, %v3290
  %v3292 = vpop.f32.mrf.mxu0
  %v3293 = vadd.f32 0.0, %v3292
  %3294 = vmatprep.mubr.f32.mxu0 0.0
  %3295 = vmatmul.mubr.f32.gmra.mxu0 %v3066
  %v3296 = vpop.f32.mrf.mxu0
  %v3297 = vadd.f32 0.0, %v3296
  %v3298 = vpop.f32.mrf.mxu0
  %v3299 = vadd.f32 0.0, %v3298
  %3300 = vmatprep.mubr.f32.mxu0 0.0
  %3301 = vmatmul.mubr.f32.gmra.mxu0 %v3068
  %v3302 = vpop.f32.mrf.mxu0
  %v3303 = vadd.f32 0.0, %v3302
  %v3304 = vpop.f32.mrf.mxu0
  %v3305 = vadd.f32 0.0, %v3304
  %3306 = vmatprep.mubr.f32.mxu0 0.0
  %3307 = vmatmul.mubr.f32.gmra.mxu0 %v3070
  %v3308 = vpop.f32.mrf.mxu0
  %v3309 = vadd.f32 0.0, %v3308
  %v3310 = vpop.f32.mrf.mxu0
  %v3311 = vadd.f32 0.0, %v3310
  %3312 = vmatprep.mubr.f32.mxu0 0.0
  %3313 = vmatmul.mubr.f32.gmra.mxu0 %v3072
  %v3314 = vpop.f32.mrf.mxu0
  %v3315 = vadd.f32 0.0, %v3314
  %v3316 = vpop.f32.mrf.mxu0
  %v3317 = vadd.f32 0.0, %v3316
  %3318 = vmatprep.mubr.f32.mxu0 0.0
  %3319 = vmatmul.mubr.f32.gmra.mxu0 %v3074
  %v3320 = vpop.f32.mrf.mxu0
  %v3321 = vadd.f32 0.0, %v3320
  %v3322 = vpop.f32.mrf.mxu0
  %v3323 = vadd.f32 0.0, %v3322
  %3324 = vmatprep.mubr.f32.mxu0 0.0
  %3325 = vmatmul.mubr.f32.gmra.mxu0 %v3076
  %v3326 = vpop.f32.mrf.mxu0
  %v3327 = vadd.f32 0.0, %v3326
  %v3328 = vpop.f32.mrf.mxu0
  %v3329 = vadd.f32 0.0, %v3328
  %3330 = vmatprep.mubr.f32.mxu0 0.0
  %3331 = vmatmul.mubr.f32.gmra.mxu0 %v3078
  %v3332 = vpop.f32.mrf.mxu0
  %v3333 = vadd.f32 0.0, %v3332
  %v3334 = vpop.f32.mrf.mxu0
  %v3335 = vadd.f32 0.0, %v3334
  %3336 = vdwg.mxu0
  %v3337 = vsel %vm3017, %v2848, 0
  %v3339 = vsel %vm3017, %v2849, 0
  %v3341 = vsel %vm3017, %v2850, 0
  %v3343 = vsel %vm3017, %v2851, 0
  %v3345 = vsel %vm3017, %v2852, 0
  %v3347 = vsel %vm3017, %v2853, 0
  %v3349 = vsel %vm3017, %v2854, 0
  %v3351 = vsel %vm3017, %v2855, 0
  %v3353 = vsel %vm3017, %v2856, 0
  %v3355 = vsel %vm3017, %v2857, 0
  %v3357 = vsel %vm3017, %v2858, 0
  %v3359 = vsel %vm3017, %v2859, 0
  %v3361 = vsel %vm3017, %v2860, 0
  %v3363 = vsel %vm3017, %v2861, 0
  %v3365 = vsel %vm3017, %v2862, 0
  %v3367 = vsel %vm3017, %v2863, 0
  %v3369 = vsel %vm3017, %v2864, 0
  %v3371 = vsel %vm3017, %v2865, 0
  %v3373 = vsel %vm3017, %v2866, 0
  %v3375 = vsel %vm3017, %v2867, 0
  %v3377 = vsel %vm3017, %v2868, 0
  %v3379 = vsel %vm3017, %v2869, 0
  %v3381 = vsel %vm3017, %v2870, 0
  %v3383 = vsel %vm3017, %v2871, 0
  %v3385 = vsel %vm3017, %v2872, 0
  %v3387 = vsel %vm3017, %v2873, 0
  %v3389 = vsel %vm3017, %v2874, 0
  %v3391 = vsel %vm3017, %v2875, 0
  %v3393 = vsel %vm3017, %v2876, 0
  %v3395 = vsel %vm3017, %v2877, 0
  %v3397 = vsel %vm3017, %v2878, 0
  %v3400 = vsel %vm1757, %v2900, 0
  %v3403 = vsel %vm1757, %v2901, 0
  %3405 = vmatprep.subr.mxu0 0.0
  %3406 = vmatpush1.msra.mxu0 0.0
  %3407 = vmatprep.subr.mxu0 0.0
  %3408 = vmatpush1.msra.mxu0 0.0
  %3409 = vmatprep.subr.mxu0 0.0
  %3410 = vmatpush1.msra.mxu0 0.0
  %3411 = vmatprep.subr.mxu0 0.0
  %3412 = vmatpush1.msra.mxu0 0.0
  %3413 = vmatprep.subr.mxu0 0.0
  %3414 = vmatpush1.msra.mxu0 0.0
  %3415 = vmatprep.subr.mxu0 %v3403
  %3416 = vmatpush1.msra.mxu0 %v3400
  %3417 = vmatprep.subr.mxu0 %v2899
  %3418 = vmatpush1.msra.mxu0 %v2898
  %3419 = vmatprep.subr.mxu0 %v2897
  %3420 = vmatpush1.msra.mxu0 %v2896
  %3421 = vmatprep.subr.mxu0 %v2895
  %3422 = vmatpush1.msra.mxu0 %v2894
  %3423 = vmatprep.subr.mxu0 %v2893
  %3424 = vmatpush1.msra.mxu0 %v2892
  %3425 = vmatprep.subr.mxu0 %v2891
  %3426 = vmatpush1.msra.mxu0 %v2890
  %3427 = vmatprep.subr.mxu0 %v2889
  %3428 = vmatpush1.msra.mxu0 %v2888
  %3429 = vmatprep.subr.mxu0 %v2887
  %3430 = vmatpush1.msra.mxu0 %v2886
  %3431 = vmatprep.subr.mxu0 %v2885
  %3432 = vmatpush1.msra.mxu0 %v2884
  %3433 = vmatprep.subr.mxu0 %v2883
  %3434 = vmatpush1.msra.mxu0 %v2882
  %3435 = vmatprep.subr.mxu0 %v2881
  %3436 = vmatpush1.msra.mxu0 %v2880
  %3437 = vmatprep.subr.mxu0 0.0
  %3438 = vmatpush2.msra.mxu0 0.0
  %3439 = vmatprep.subr.mxu0 0.0
  %3440 = vmatpush2.msra.mxu0 0.0
  %3441 = vmatprep.subr.mxu0 0.0
  %3442 = vmatpush2.msra.mxu0 0.0
  %3443 = vmatprep.subr.mxu0 0.0
  %3444 = vmatpush2.msra.mxu0 0.0
  %3445 = vmatprep.subr.mxu0 0.0
  %3446 = vmatpush2.msra.mxu0 0.0
  %3447 = vmatprep.subr.mxu0 0.0
  %3448 = vmatpush2.msra.mxu0 0.0
  %3449 = vmatprep.subr.mxu0 0.0
  %3450 = vmatpush2.msra.mxu0 0.0
  %3451 = vmatprep.subr.mxu0 0.0
  %3452 = vmatpush2.msra.mxu0 0.0
  %3453 = vmatprep.subr.mxu0 0.0
  %3454 = vmatpush2.msra.mxu0 0.0
  %3455 = vmatprep.subr.mxu0 0.0
  %3456 = vmatpush2.msra.mxu0 0.0
  %3457 = vmatprep.subr.mxu0 0.0
  %3458 = vmatpush2.msra.mxu0 0.0
  %3459 = vmatprep.subr.mxu0 0.0
  %3460 = vmatpush2.msra.mxu0 0.0
  %3461 = vmatprep.subr.mxu0 0.0
  %3462 = vmatpush2.msra.mxu0 0.0
  %3463 = vmatprep.subr.mxu0 0.0
  %3464 = vmatpush2.msra.mxu0 0.0
  %3465 = vmatprep.subr.mxu0 0.0
  %3466 = vmatpush2.msra.mxu0 0.0
  %3467 = vmatprep.subr.mxu0 0.0
  %3468 = vmatpush2.msra.mxu0 0.0
  %3469 = vmatprep.mubr.f32.mxu0 0.0
  %3470 = vmatmul.mubr.f32.gmra.mxu0 %v3337
  %v3471 = vpop.f32.mrf.mxu0
  %v3472 = vadd.f32 %v3153, %v3471
  %v3473 = vpop.f32.mrf.mxu0
  %v3474 = vadd.f32 %v3155, %v3473
  %3475 = vmatprep.mubr.f32.mxu0 0.0
  %3476 = vmatmul.mubr.f32.gmra.mxu0 %v3339
  %v3477 = vpop.f32.mrf.mxu0
  %v3478 = vadd.f32 %v3159, %v3477
  %v3479 = vpop.f32.mrf.mxu0
  %v3480 = vadd.f32 %v3161, %v3479
  %3481 = vmatprep.mubr.f32.mxu0 0.0
  %3482 = vmatmul.mubr.f32.gmra.mxu0 %v3341
  %v3483 = vpop.f32.mrf.mxu0
  %v3484 = vadd.f32 %v3165, %v3483
  %v3485 = vpop.f32.mrf.mxu0
  %v3486 = vadd.f32 %v3167, %v3485
  %3487 = vmatprep.mubr.f32.mxu0 0.0
  %3488 = vmatmul.mubr.f32.gmra.mxu0 %v3343
  %v3489 = vpop.f32.mrf.mxu0
  %v3490 = vadd.f32 %v3171, %v3489
  %v3491 = vpop.f32.mrf.mxu0
  %v3492 = vadd.f32 %v3173, %v3491
  %3493 = vmatprep.mubr.f32.mxu0 0.0
  %3494 = vmatmul.mubr.f32.gmra.mxu0 %v3345
  %v3495 = vpop.f32.mrf.mxu0
  %v3496 = vadd.f32 %v3177, %v3495
  %v3497 = vpop.f32.mrf.mxu0
  %v3498 = vadd.f32 %v3179, %v3497
  %3499 = vmatprep.mubr.f32.mxu0 0.0
  %3500 = vmatmul.mubr.f32.gmra.mxu0 %v3347
  %v3501 = vpop.f32.mrf.mxu0
  %v3502 = vadd.f32 %v3183, %v3501
  %v3503 = vpop.f32.mrf.mxu0
  %v3504 = vadd.f32 %v3185, %v3503
  %3505 = vmatprep.mubr.f32.mxu0 0.0
  %3506 = vmatmul.mubr.f32.gmra.mxu0 %v3349
  %v3507 = vpop.f32.mrf.mxu0
  %v3508 = vadd.f32 %v3189, %v3507
  %v3509 = vpop.f32.mrf.mxu0
  %v3510 = vadd.f32 %v3191, %v3509
  %3511 = vmatprep.mubr.f32.mxu0 0.0
  %3512 = vmatmul.mubr.f32.gmra.mxu0 %v3351
  %v3513 = vpop.f32.mrf.mxu0
  %v3514 = vadd.f32 %v3195, %v3513
  %v3515 = vpop.f32.mrf.mxu0
  %v3516 = vadd.f32 %v3197, %v3515
  %3517 = vmatprep.mubr.f32.mxu0 0.0
  %3518 = vmatmul.mubr.f32.gmra.mxu0 %v3353
  %v3519 = vpop.f32.mrf.mxu0
  %v3520 = vadd.f32 %v3201, %v3519
  %v3521 = vpop.f32.mrf.mxu0
  %v3522 = vadd.f32 %v3203, %v3521
  %3523 = vmatprep.mubr.f32.mxu0 0.0
  %3524 = vmatmul.mubr.f32.gmra.mxu0 %v3355
  %v3525 = vpop.f32.mrf.mxu0
  %v3526 = vadd.f32 %v3207, %v3525
  %v3527 = vpop.f32.mrf.mxu0
  %v3528 = vadd.f32 %v3209, %v3527
  %3529 = vmatprep.mubr.f32.mxu0 0.0
  %3530 = vmatmul.mubr.f32.gmra.mxu0 %v3357
  %v3531 = vpop.f32.mrf.mxu0
  %v3532 = vadd.f32 %v3213, %v3531
  %v3533 = vpop.f32.mrf.mxu0
  %v3534 = vadd.f32 %v3215, %v3533
  %3535 = vmatprep.mubr.f32.mxu0 0.0
  %3536 = vmatmul.mubr.f32.gmra.mxu0 %v3359
  %v3537 = vpop.f32.mrf.mxu0
  %v3538 = vadd.f32 %v3219, %v3537
  %v3539 = vpop.f32.mrf.mxu0
  %v3540 = vadd.f32 %v3221, %v3539
  %3541 = vmatprep.mubr.f32.mxu0 0.0
  %3542 = vmatmul.mubr.f32.gmra.mxu0 %v3361
  %v3543 = vpop.f32.mrf.mxu0
  %v3544 = vadd.f32 %v3225, %v3543
  %v3545 = vpop.f32.mrf.mxu0
  %v3546 = vadd.f32 %v3227, %v3545
  %3547 = vmatprep.mubr.f32.mxu0 0.0
  %3548 = vmatmul.mubr.f32.gmra.mxu0 %v3363
  %v3549 = vpop.f32.mrf.mxu0
  %v3550 = vadd.f32 %v3231, %v3549
  %v3551 = vpop.f32.mrf.mxu0
  %v3552 = vadd.f32 %v3233, %v3551
  %3553 = vmatprep.mubr.f32.mxu0 0.0
  %3554 = vmatmul.mubr.f32.gmra.mxu0 %v3365
  %v3555 = vpop.f32.mrf.mxu0
  %v3556 = vadd.f32 %v3237, %v3555
  %v3557 = vpop.f32.mrf.mxu0
  %v3558 = vadd.f32 %v3239, %v3557
  %3559 = vmatprep.mubr.f32.mxu0 0.0
  %3560 = vmatmul.mubr.f32.gmra.mxu0 %v3367
  %v3561 = vpop.f32.mrf.mxu0
  %v3562 = vadd.f32 %v3243, %v3561
  %v3563 = vpop.f32.mrf.mxu0
  %v3564 = vadd.f32 %v3245, %v3563
  %3565 = vmatprep.mubr.f32.mxu0 0.0
  %3566 = vmatmul.mubr.f32.gmra.mxu0 %v3369
  %v3567 = vpop.f32.mrf.mxu0
  %v3568 = vadd.f32 %v3249, %v3567
  %v3569 = vpop.f32.mrf.mxu0
  %v3570 = vadd.f32 %v3251, %v3569
  %3571 = vmatprep.mubr.f32.mxu0 0.0
  %3572 = vmatmul.mubr.f32.gmra.mxu0 %v3371
  %v3573 = vpop.f32.mrf.mxu0
  %v3574 = vadd.f32 %v3255, %v3573
  %v3575 = vpop.f32.mrf.mxu0
  %v3576 = vadd.f32 %v3257, %v3575
  %3577 = vmatprep.mubr.f32.mxu0 0.0
  %3578 = vmatmul.mubr.f32.gmra.mxu0 %v3373
  %v3579 = vpop.f32.mrf.mxu0
  %v3580 = vadd.f32 %v3261, %v3579
  %v3581 = vpop.f32.mrf.mxu0
  %v3582 = vadd.f32 %v3263, %v3581
  %3583 = vmatprep.mubr.f32.mxu0 0.0
  %3584 = vmatmul.mubr.f32.gmra.mxu0 %v3375
  %v3585 = vpop.f32.mrf.mxu0
  %v3586 = vadd.f32 %v3267, %v3585
  %v3587 = vpop.f32.mrf.mxu0
  %v3588 = vadd.f32 %v3269, %v3587
  %3589 = vmatprep.mubr.f32.mxu0 0.0
  %3590 = vmatmul.mubr.f32.gmra.mxu0 %v3377
  %v3591 = vpop.f32.mrf.mxu0
  %v3592 = vadd.f32 %v3273, %v3591
  %v3593 = vpop.f32.mrf.mxu0
  %v3594 = vadd.f32 %v3275, %v3593
  %3595 = vmatprep.mubr.f32.mxu0 0.0
  %3596 = vmatmul.mubr.f32.gmra.mxu0 %v3379
  %v3597 = vpop.f32.mrf.mxu0
  %v3598 = vadd.f32 %v3279, %v3597
  %v3599 = vpop.f32.mrf.mxu0
  %v3600 = vadd.f32 %v3281, %v3599
  %3601 = vmatprep.mubr.f32.mxu0 0.0
  %3602 = vmatmul.mubr.f32.gmra.mxu0 %v3381
  %v3603 = vpop.f32.mrf.mxu0
  %v3604 = vadd.f32 %v3285, %v3603
  %v3605 = vpop.f32.mrf.mxu0
  %v3606 = vadd.f32 %v3287, %v3605
  %3607 = vmatprep.mubr.f32.mxu0 0.0
  %3608 = vmatmul.mubr.f32.gmra.mxu0 %v3383
  %v3609 = vpop.f32.mrf.mxu0
  %v3610 = vadd.f32 %v3291, %v3609
  %v3611 = vpop.f32.mrf.mxu0
  %v3612 = vadd.f32 %v3293, %v3611
  %3613 = vmatprep.mubr.f32.mxu0 0.0
  %3614 = vmatmul.mubr.f32.gmra.mxu0 %v3385
  %v3615 = vpop.f32.mrf.mxu0
  %v3616 = vadd.f32 %v3297, %v3615
  %v3617 = vpop.f32.mrf.mxu0
  %v3618 = vadd.f32 %v3299, %v3617
  %3619 = vmatprep.mubr.f32.mxu0 0.0
  %3620 = vmatmul.mubr.f32.gmra.mxu0 %v3387
  %v3621 = vpop.f32.mrf.mxu0
  %v3622 = vadd.f32 %v3303, %v3621
  %v3623 = vpop.f32.mrf.mxu0
  %v3624 = vadd.f32 %v3305, %v3623
  %3625 = vmatprep.mubr.f32.mxu0 0.0
  %3626 = vmatmul.mubr.f32.gmra.mxu0 %v3389
  %v3627 = vpop.f32.mrf.mxu0
  %v3628 = vadd.f32 %v3309, %v3627
  %v3629 = vpop.f32.mrf.mxu0
  %v3630 = vadd.f32 %v3311, %v3629
  %3631 = vmatprep.mubr.f32.mxu0 0.0
  %3632 = vmatmul.mubr.f32.gmra.mxu0 %v3391
  %v3633 = vpop.f32.mrf.mxu0
  %v3634 = vadd.f32 %v3315, %v3633
  %v3635 = vpop.f32.mrf.mxu0
  %v3636 = vadd.f32 %v3317, %v3635
  %3637 = vmatprep.mubr.f32.mxu0 0.0
  %3638 = vmatmul.mubr.f32.gmra.mxu0 %v3393
  %v3639 = vpop.f32.mrf.mxu0
  %v3640 = vadd.f32 %v3321, %v3639
  %v3641 = vpop.f32.mrf.mxu0
  %v3642 = vadd.f32 %v3323, %v3641
  %3643 = vmatprep.mubr.f32.mxu0 0.0
  %3644 = vmatmul.mubr.f32.gmra.mxu0 %v3395
  %v3645 = vpop.f32.mrf.mxu0
  %v3646 = vadd.f32 %v3327, %v3645
  %v3647 = vpop.f32.mrf.mxu0
  %v3648 = vadd.f32 %v3329, %v3647
  %3649 = vmatprep.mubr.f32.mxu0 0.0
  %3650 = vmatmul.mubr.f32.gmra.mxu0 %v3397
  %v3651 = vpop.f32.mrf.mxu0
  %v3652 = vadd.f32 %v3333, %v3651
  %v3653 = vpop.f32.mrf.mxu0
  %v3654 = vadd.f32 %v3335, %v3653
  %3655 = vdwg.mxu0
  %s3656 = scalar_lea.vmem %s4, 352
  %v3657 = vld [vmem:[%s3656] sm:$0xff]
  %v3658 = vld [vmem:[%s3656 + $0x8] sm:$0xff]
  %v3659 = vld [vmem:[%s3656 + $0x10] sm:$0xff]
  %v3660 = vld [vmem:[%s3656 + $0x18] sm:$0xff]
  %v3661 = vld [vmem:[%s3656 + $0x20] sm:$0xff]
  %v3662 = vld [vmem:[%s3656 + $0x28] sm:$0xff]
  %v3663 = vld [vmem:[%s3656 + $0x30] sm:$0xff]
  %v3664 = vld [vmem:[%s3656 + $0x38] sm:$0xff]
  %v3665 = vld [vmem:[%s3656 + $0x40] sm:$0xff]
  %v3666 = vld [vmem:[%s3656 + $0x48] sm:$0xff]
  %v3667 = vld [vmem:[%s3656 + $0x50] sm:$0xff]
  %v3668 = vld [vmem:[%s3656 + $0x58] sm:$0xff]
  %v3669 = vld [vmem:[%s3656 + $0x60] sm:$0xff]
  %v3670 = vld [vmem:[%s3656 + $0x68] sm:$0xff]
  %v3671 = vld [vmem:[%s3656 + $0x70] sm:$0xff]
  %v3672 = vld [vmem:[%s3656 + $0x78] sm:$0xff]
  %v3673 = vld [vmem:[%s3656 + $0x80] sm:$0xff]
  %v3674 = vld [vmem:[%s3656 + $0x88] sm:$0xff]
  %v3675 = vld [vmem:[%s3656 + $0x90] sm:$0xff]
  %v3676 = vld [vmem:[%s3656 + $0x98] sm:$0xff]
  %v3677 = vld [vmem:[%s3656 + $0xa0] sm:$0xf]
  %v3678 = vld [vmem:[%s3656 + $0xa8] sm:$0xf]
  %v3679 = vrot.slane %v2848, 4
  %v3680 = vrot.slane %v2849, 4
  %v3681 = vsel %vm1757, %v3679, %v3680
  %v3682 = vrot.slane %v2850, 4
  %v3683 = vsel %vm1757, %v3680, %v3682
  %v3684 = vrot.slane %v2851, 4
  %v3685 = vsel %vm1757, %v3682, %v3684
  %v3686 = vrot.slane %v2852, 4
  %v3687 = vsel %vm1757, %v3684, %v3686
  %v3688 = vrot.slane %v2853, 4
  %v3689 = vsel %vm1757, %v3686, %v3688
  %v3690 = vrot.slane %v2854, 4
  %v3691 = vsel %vm1757, %v3688, %v3690
  %v3692 = vrot.slane %v2855, 4
  %v3693 = vsel %vm1757, %v3690, %v3692
  %v3694 = vrot.slane %v2856, 4
  %v3695 = vsel %vm1757, %v3692, %v3694
  %v3696 = vrot.slane %v2857, 4
  %v3697 = vsel %vm1757, %v3694, %v3696
  %v3698 = vrot.slane %v2858, 4
  %v3699 = vsel %vm1757, %v3696, %v3698
  %v3700 = vrot.slane %v2859, 4
  %v3701 = vsel %vm1757, %v3698, %v3700
  %v3702 = vrot.slane %v2860, 4
  %v3703 = vsel %vm1757, %v3700, %v3702
  %v3704 = vrot.slane %v2861, 4
  %v3705 = vsel %vm1757, %v3702, %v3704
  %v3706 = vrot.slane %v2862, 4
  %v3707 = vsel %vm1757, %v3704, %v3706
  %v3708 = vrot.slane %v2863, 4
  %v3709 = vsel %vm1757, %v3706, %v3708
  %v3710 = vrot.slane %v2864, 4
  %v3711 = vsel %vm1757, %v3708, %v3710
  %v3712 = vrot.slane %v2865, 4
  %v3713 = vsel %vm1757, %v3710, %v3712
  %v3714 = vrot.slane %v2866, 4
  %v3715 = vsel %vm1757, %v3712, %v3714
  %v3716 = vrot.slane %v2867, 4
  %v3717 = vsel %vm1757, %v3714, %v3716
  %v3718 = vrot.slane %v2868, 4
  %v3719 = vsel %vm1757, %v3716, %v3718
  %v3720 = vrot.slane %v2869, 4
  %v3721 = vsel %vm1757, %v3718, %v3720
  %v3722 = vrot.slane %v2870, 4
  %v3723 = vsel %vm1757, %v3720, %v3722
  %v3724 = vrot.slane %v2871, 4
  %v3725 = vsel %vm1757, %v3722, %v3724
  %v3726 = vrot.slane %v2872, 4
  %v3727 = vsel %vm1757, %v3724, %v3726
  %v3728 = vrot.slane %v2873, 4
  %v3729 = vsel %vm1757, %v3726, %v3728
  %v3730 = vrot.slane %v2874, 4
  %v3731 = vsel %vm1757, %v3728, %v3730
  %v3732 = vrot.slane %v2875, 4
  %v3733 = vsel %vm1757, %v3730, %v3732
  %v3734 = vrot.slane %v2876, 4
  %v3735 = vsel %vm1757, %v3732, %v3734
  %v3736 = vrot.slane %v2877, 4
  %v3737 = vsel %vm1757, %v3734, %v3736
  %v3738 = vrot.slane %v2878, 4
  %v3739 = vsel %vm1757, %v3736, %v3738
  %v3740 = vsel %vm3017, %v3681, 0
  %v3742 = vsel %vm3017, %v3683, 0
  %v3744 = vsel %vm3017, %v3685, 0
  %v3746 = vsel %vm3017, %v3687, 0
  %v3748 = vsel %vm3017, %v3689, 0
  %v3750 = vsel %vm3017, %v3691, 0
  %v3752 = vsel %vm3017, %v3693, 0
  %v3754 = vsel %vm3017, %v3695, 0
  %v3756 = vsel %vm3017, %v3697, 0
  %v3758 = vsel %vm3017, %v3699, 0
  %v3760 = vsel %vm3017, %v3701, 0
  %v3762 = vsel %vm3017, %v3703, 0
  %v3764 = vsel %vm3017, %v3705, 0
  %v3766 = vsel %vm3017, %v3707, 0
  %v3768 = vsel %vm3017, %v3709, 0
  %v3770 = vsel %vm3017, %v3711, 0
  %v3772 = vsel %vm3017, %v3713, 0
  %v3774 = vsel %vm3017, %v3715, 0
  %v3776 = vsel %vm3017, %v3717, 0
  %v3778 = vsel %vm3017, %v3719, 0
  %v3780 = vsel %vm3017, %v3721, 0
  %v3782 = vsel %vm3017, %v3723, 0
  %v3784 = vsel %vm3017, %v3725, 0
  %v3786 = vsel %vm3017, %v3727, 0
  %v3788 = vsel %vm3017, %v3729, 0
  %v3790 = vsel %vm3017, %v3731, 0
  %v3792 = vsel %vm3017, %v3733, 0
  %v3794 = vsel %vm3017, %v3735, 0
  %v3796 = vsel %vm3017, %v3737, 0
  %v3798 = vsel %vm3017, %v3739, 0
  %v3800 = vsel %vm3017, %v3738, 0
  %v3803 = vsel %vm1757, %v3677, 0
  %v3806 = vsel %vm1757, %v3678, 0
  %3808 = vmatprep.subr.mxu0 0.0
  %3809 = vmatpush1.msra.mxu0 0.0
  %3810 = vmatprep.subr.mxu0 0.0
  %3811 = vmatpush1.msra.mxu0 0.0
  %3812 = vmatprep.subr.mxu0 0.0
  %3813 = vmatpush1.msra.mxu0 0.0
  %3814 = vmatprep.subr.mxu0 0.0
  %3815 = vmatpush1.msra.mxu0 0.0
  %3816 = vmatprep.subr.mxu0 0.0
  %3817 = vmatpush1.msra.mxu0 0.0
  %3818 = vmatprep.subr.mxu0 %v3806
  %3819 = vmatpush1.msra.mxu0 %v3803
  %3820 = vmatprep.subr.mxu0 %v3676
  %3821 = vmatpush1.msra.mxu0 %v3675
  %3822 = vmatprep.subr.mxu0 %v3674
  %3823 = vmatpush1.msra.mxu0 %v3673
  %3824 = vmatprep.subr.mxu0 %v3672
  %3825 = vmatpush1.msra.mxu0 %v3671
  %3826 = vmatprep.subr.mxu0 %v3670
  %3827 = vmatpush1.msra.mxu0 %v3669
  %3828 = vmatprep.subr.mxu0 %v3668
  %3829 = vmatpush1.msra.mxu0 %v3667
  %3830 = vmatprep.subr.mxu0 %v3666
  %3831 = vmatpush1.msra.mxu0 %v3665
  %3832 = vmatprep.subr.mxu0 %v3664
  %3833 = vmatpush1.msra.mxu0 %v3663
  %3834 = vmatprep.subr.mxu0 %v3662
  %3835 = vmatpush1.msra.mxu0 %v3661
  %3836 = vmatprep.subr.mxu0 %v3660
  %3837 = vmatpush1.msra.mxu0 %v3659
  %3838 = vmatprep.subr.mxu0 %v3658
  %3839 = vmatpush1.msra.mxu0 %v3657
  %3840 = vmatprep.subr.mxu0 0.0
  %3841 = vmatpush2.msra.mxu0 0.0
  %3842 = vmatprep.subr.mxu0 0.0
  %3843 = vmatpush2.msra.mxu0 0.0
  %3844 = vmatprep.subr.mxu0 0.0
  %3845 = vmatpush2.msra.mxu0 0.0
  %3846 = vmatprep.subr.mxu0 0.0
  %3847 = vmatpush2.msra.mxu0 0.0
  %3848 = vmatprep.subr.mxu0 0.0
  %3849 = vmatpush2.msra.mxu0 0.0
  %3850 = vmatprep.subr.mxu0 0.0
  %3851 = vmatpush2.msra.mxu0 0.0
  %3852 = vmatprep.subr.mxu0 0.0
  %3853 = vmatpush2.msra.mxu0 0.0
  %3854 = vmatprep.subr.mxu0 0.0
  %3855 = vmatpush2.msra.mxu0 0.0
  %3856 = vmatprep.subr.mxu0 0.0
  %3857 = vmatpush2.msra.mxu0 0.0
  %3858 = vmatprep.subr.mxu0 0.0
  %3859 = vmatpush2.msra.mxu0 0.0
  %3860 = vmatprep.subr.mxu0 0.0
  %3861 = vmatpush2.msra.mxu0 0.0
  %3862 = vmatprep.subr.mxu0 0.0
  %3863 = vmatpush2.msra.mxu0 0.0
  %3864 = vmatprep.subr.mxu0 0.0
  %3865 = vmatpush2.msra.mxu0 0.0
  %3866 = vmatprep.subr.mxu0 0.0
  %3867 = vmatpush2.msra.mxu0 0.0
  %3868 = vmatprep.subr.mxu0 0.0
  %3869 = vmatpush2.msra.mxu0 0.0
  %3870 = vmatprep.subr.mxu0 0.0
  %3871 = vmatpush2.msra.mxu0 0.0
  %3872 = vmatprep.mubr.f32.mxu0 0.0
  %3873 = vmatmul.mubr.f32.gmra.mxu0 %v3740
  %v3874 = vpop.f32.mrf.mxu0
  %v3875 = vadd.f32 0.0, %v3874
  %v3876 = vpop.f32.mrf.mxu0
  %v3877 = vadd.f32 0.0, %v3876
  %3878 = vmatprep.mubr.f32.mxu0 0.0
  %3879 = vmatmul.mubr.f32.gmra.mxu0 %v3742
  %v3880 = vpop.f32.mrf.mxu0
  %v3881 = vadd.f32 0.0, %v3880
  %v3882 = vpop.f32.mrf.mxu0
  %v3883 = vadd.f32 0.0, %v3882
  %3884 = vmatprep.mubr.f32.mxu0 0.0
  %3885 = vmatmul.mubr.f32.gmra.mxu0 %v3744
  %v3886 = vpop.f32.mrf.mxu0
  %v3887 = vadd.f32 0.0, %v3886
  %v3888 = vpop.f32.mrf.mxu0
  %v3889 = vadd.f32 0.0, %v3888
  %3890 = vmatprep.mubr.f32.mxu0 0.0
  %3891 = vmatmul.mubr.f32.gmra.mxu0 %v3746
  %v3892 = vpop.f32.mrf.mxu0
  %v3893 = vadd.f32 0.0, %v3892
  %v3894 = vpop.f32.mrf.mxu0
  %v3895 = vadd.f32 0.0, %v3894
  %3896 = vmatprep.mubr.f32.mxu0 0.0
  %3897 = vmatmul.mubr.f32.gmra.mxu0 %v3748
  %v3898 = vpop.f32.mrf.mxu0
  %v3899 = vadd.f32 0.0, %v3898
  %v3900 = vpop.f32.mrf.mxu0
  %v3901 = vadd.f32 0.0, %v3900
  %3902 = vmatprep.mubr.f32.mxu0 0.0
  %3903 = vmatmul.mubr.f32.gmra.mxu0 %v3750
  %v3904 = vpop.f32.mrf.mxu0
  %v3905 = vadd.f32 0.0, %v3904
  %v3906 = vpop.f32.mrf.mxu0
  %v3907 = vadd.f32 0.0, %v3906
  %3908 = vmatprep.mubr.f32.mxu0 0.0
  %3909 = vmatmul.mubr.f32.gmra.mxu0 %v3752
  %v3910 = vpop.f32.mrf.mxu0
  %v3911 = vadd.f32 0.0, %v3910
  %v3912 = vpop.f32.mrf.mxu0
  %v3913 = vadd.f32 0.0, %v3912
  %3914 = vmatprep.mubr.f32.mxu0 0.0
  %3915 = vmatmul.mubr.f32.gmra.mxu0 %v3754
  %v3916 = vpop.f32.mrf.mxu0
  %v3917 = vadd.f32 0.0, %v3916
  %v3918 = vpop.f32.mrf.mxu0
  %v3919 = vadd.f32 0.0, %v3918
  %3920 = vmatprep.mubr.f32.mxu0 0.0
  %3921 = vmatmul.mubr.f32.gmra.mxu0 %v3756
  %v3922 = vpop.f32.mrf.mxu0
  %v3923 = vadd.f32 0.0, %v3922
  %v3924 = vpop.f32.mrf.mxu0
  %v3925 = vadd.f32 0.0, %v3924
  %3926 = vmatprep.mubr.f32.mxu0 0.0
  %3927 = vmatmul.mubr.f32.gmra.mxu0 %v3758
  %v3928 = vpop.f32.mrf.mxu0
  %v3929 = vadd.f32 0.0, %v3928
  %v3930 = vpop.f32.mrf.mxu0
  %v3931 = vadd.f32 0.0, %v3930
  %3932 = vmatprep.mubr.f32.mxu0 0.0
  %3933 = vmatmul.mubr.f32.gmra.mxu0 %v3760
  %v3934 = vpop.f32.mrf.mxu0
  %v3935 = vadd.f32 0.0, %v3934
  %v3936 = vpop.f32.mrf.mxu0
  %v3937 = vadd.f32 0.0, %v3936
  %3938 = vmatprep.mubr.f32.mxu0 0.0
  %3939 = vmatmul.mubr.f32.gmra.mxu0 %v3762
  %v3940 = vpop.f32.mrf.mxu0
  %v3941 = vadd.f32 0.0, %v3940
  %v3942 = vpop.f32.mrf.mxu0
  %v3943 = vadd.f32 0.0, %v3942
  %3944 = vmatprep.mubr.f32.mxu0 0.0
  %3945 = vmatmul.mubr.f32.gmra.mxu0 %v3764
  %v3946 = vpop.f32.mrf.mxu0
  %v3947 = vadd.f32 0.0, %v3946
  %v3948 = vpop.f32.mrf.mxu0
  %v3949 = vadd.f32 0.0, %v3948
  %3950 = vmatprep.mubr.f32.mxu0 0.0
  %3951 = vmatmul.mubr.f32.gmra.mxu0 %v3766
  %v3952 = vpop.f32.mrf.mxu0
  %v3953 = vadd.f32 0.0, %v3952
  %v3954 = vpop.f32.mrf.mxu0
  %v3955 = vadd.f32 0.0, %v3954
  %3956 = vmatprep.mubr.f32.mxu0 0.0
  %3957 = vmatmul.mubr.f32.gmra.mxu0 %v3768
  %v3958 = vpop.f32.mrf.mxu0
  %v3959 = vadd.f32 0.0, %v3958
  %v3960 = vpop.f32.mrf.mxu0
  %v3961 = vadd.f32 0.0, %v3960
  %3962 = vmatprep.mubr.f32.mxu0 0.0
  %3963 = vmatmul.mubr.f32.gmra.mxu0 %v3770
  %v3964 = vpop.f32.mrf.mxu0
  %v3965 = vadd.f32 0.0, %v3964
  %v3966 = vpop.f32.mrf.mxu0
  %v3967 = vadd.f32 0.0, %v3966
  %3968 = vmatprep.mubr.f32.mxu0 0.0
  %3969 = vmatmul.mubr.f32.gmra.mxu0 %v3772
  %v3970 = vpop.f32.mrf.mxu0
  %v3971 = vadd.f32 0.0, %v3970
  %v3972 = vpop.f32.mrf.mxu0
  %v3973 = vadd.f32 0.0, %v3972
  %3974 = vmatprep.mubr.f32.mxu0 0.0
  %3975 = vmatmul.mubr.f32.gmra.mxu0 %v3774
  %v3976 = vpop.f32.mrf.mxu0
  %v3977 = vadd.f32 0.0, %v3976
  %v3978 = vpop.f32.mrf.mxu0
  %v3979 = vadd.f32 0.0, %v3978
  %3980 = vmatprep.mubr.f32.mxu0 0.0
  %3981 = vmatmul.mubr.f32.gmra.mxu0 %v3776
  %v3982 = vpop.f32.mrf.mxu0
  %v3983 = vadd.f32 0.0, %v3982
  %v3984 = vpop.f32.mrf.mxu0
  %v3985 = vadd.f32 0.0, %v3984
  %3986 = vmatprep.mubr.f32.mxu0 0.0
  %3987 = vmatmul.mubr.f32.gmra.mxu0 %v3778
  %v3988 = vpop.f32.mrf.mxu0
  %v3989 = vadd.f32 0.0, %v3988
  %v3990 = vpop.f32.mrf.mxu0
  %v3991 = vadd.f32 0.0, %v3990
  %3992 = vmatprep.mubr.f32.mxu0 0.0
  %3993 = vmatmul.mubr.f32.gmra.mxu0 %v3780
  %v3994 = vpop.f32.mrf.mxu0
  %v3995 = vadd.f32 0.0, %v3994
  %v3996 = vpop.f32.mrf.mxu0
  %v3997 = vadd.f32 0.0, %v3996
  %3998 = vmatprep.mubr.f32.mxu0 0.0
  %3999 = vmatmul.mubr.f32.gmra.mxu0 %v3782
  %v4000 = vpop.f32.mrf.mxu0
  %v4001 = vadd.f32 0.0, %v4000
  %v4002 = vpop.f32.mrf.mxu0
  %v4003 = vadd.f32 0.0, %v4002
  %4004 = vmatprep.mubr.f32.mxu0 0.0
  %4005 = vmatmul.mubr.f32.gmra.mxu0 %v3784
  %v4006 = vpop.f32.mrf.mxu0
  %v4007 = vadd.f32 0.0, %v4006
  %v4008 = vpop.f32.mrf.mxu0
  %v4009 = vadd.f32 0.0, %v4008
  %4010 = vmatprep.mubr.f32.mxu0 0.0
  %4011 = vmatmul.mubr.f32.gmra.mxu0 %v3786
  %v4012 = vpop.f32.mrf.mxu0
  %v4013 = vadd.f32 0.0, %v4012
  %v4014 = vpop.f32.mrf.mxu0
  %v4015 = vadd.f32 0.0, %v4014
  %4016 = vmatprep.mubr.f32.mxu0 0.0
  %4017 = vmatmul.mubr.f32.gmra.mxu0 %v3788
  %v4018 = vpop.f32.mrf.mxu0
  %v4019 = vadd.f32 0.0, %v4018
  %v4020 = vpop.f32.mrf.mxu0
  %v4021 = vadd.f32 0.0, %v4020
  %4022 = vmatprep.mubr.f32.mxu0 0.0
  %4023 = vmatmul.mubr.f32.gmra.mxu0 %v3790
  %v4024 = vpop.f32.mrf.mxu0
  %v4025 = vadd.f32 0.0, %v4024
  %v4026 = vpop.f32.mrf.mxu0
  %v4027 = vadd.f32 0.0, %v4026
  %4028 = vmatprep.mubr.f32.mxu0 0.0
  %4029 = vmatmul.mubr.f32.gmra.mxu0 %v3792
  %v4030 = vpop.f32.mrf.mxu0
  %v4031 = vadd.f32 0.0, %v4030
  %v4032 = vpop.f32.mrf.mxu0
  %v4033 = vadd.f32 0.0, %v4032
  %4034 = vmatprep.mubr.f32.mxu0 0.0
  %4035 = vmatmul.mubr.f32.gmra.mxu0 %v3794
  %v4036 = vpop.f32.mrf.mxu0
  %v4037 = vadd.f32 0.0, %v4036
  %v4038 = vpop.f32.mrf.mxu0
  %v4039 = vadd.f32 0.0, %v4038
  %4040 = vmatprep.mubr.f32.mxu0 0.0
  %4041 = vmatmul.mubr.f32.gmra.mxu0 %v3796
  %v4042 = vpop.f32.mrf.mxu0
  %v4043 = vadd.f32 0.0, %v4042
  %v4044 = vpop.f32.mrf.mxu0
  %v4045 = vadd.f32 0.0, %v4044
  %4046 = vmatprep.mubr.f32.mxu0 0.0
  %4047 = vmatmul.mubr.f32.gmra.mxu0 %v3798
  %v4048 = vpop.f32.mrf.mxu0
  %v4049 = vadd.f32 0.0, %v4048
  %v4050 = vpop.f32.mrf.mxu0
  %v4051 = vadd.f32 0.0, %v4050
  %4052 = vmatprep.mubr.f32.mxu0 0.0
  %4053 = vmatmul.mubr.f32.gmra.mxu0 %v3800
  %v4054 = vpop.f32.mrf.mxu0
  %v4055 = vadd.f32 0.0, %v4054
  %v4056 = vpop.f32.mrf.mxu0
  %v4057 = vadd.f32 0.0, %v4056
  %4058 = vdwg.mxu0
  %v4059 = vadd.f32 %v3472, %v3875
  %v4060 = vadd.f32 %v3474, %v3877
  %v4061 = vadd.f32 %v3478, %v3881
  %v4062 = vadd.f32 %v3480, %v3883
  %v4063 = vadd.f32 %v3484, %v3887
  %v4064 = vadd.f32 %v3486, %v3889
  %v4065 = vadd.f32 %v3490, %v3893
  %v4066 = vadd.f32 %v3492, %v3895
  %v4067 = vadd.f32 %v3496, %v3899
  %v4068 = vadd.f32 %v3498, %v3901
  %v4069 = vadd.f32 %v3502, %v3905
  %v4070 = vadd.f32 %v3504, %v3907
  %v4071 = vadd.f32 %v3508, %v3911
  %v4072 = vadd.f32 %v3510, %v3913
  %v4073 = vadd.f32 %v3514, %v3917
  %v4074 = vadd.f32 %v3516, %v3919
  %v4075 = vadd.f32 %v3520, %v3923
  %v4076 = vadd.f32 %v3522, %v3925
  %v4077 = vadd.f32 %v3526, %v3929
  %v4078 = vadd.f32 %v3528, %v3931
  %v4079 = vadd.f32 %v3532, %v3935
  %v4080 = vadd.f32 %v3534, %v3937
  %v4081 = vadd.f32 %v3538, %v3941
  %v4082 = vadd.f32 %v3540, %v3943
  %v4083 = vadd.f32 %v3544, %v3947
  %v4084 = vadd.f32 %v3546, %v3949
  %v4085 = vadd.f32 %v3550, %v3953
  %v4086 = vadd.f32 %v3552, %v3955
  %v4087 = vadd.f32 %v3556, %v3959
  %v4088 = vadd.f32 %v3558, %v3961
  %v4089 = vadd.f32 %v3562, %v3965
  %v4090 = vadd.f32 %v3564, %v3967
  %v4091 = vadd.f32 %v3568, %v3971
  %v4092 = vadd.f32 %v3570, %v3973
  %v4093 = vadd.f32 %v3574, %v3977
  %v4094 = vadd.f32 %v3576, %v3979
  %v4095 = vadd.f32 %v3580, %v3983
  %v4096 = vadd.f32 %v3582, %v3985
  %v4097 = vadd.f32 %v3586, %v3989
  %v4098 = vadd.f32 %v3588, %v3991
  %v4099 = vadd.f32 %v3592, %v3995
  %v4100 = vadd.f32 %v3594, %v3997
  %v4101 = vadd.f32 %v3598, %v4001
  %v4102 = vadd.f32 %v3600, %v4003
  %v4103 = vadd.f32 %v3604, %v4007
  %v4104 = vadd.f32 %v3606, %v4009
  %v4105 = vadd.f32 %v3610, %v4013
  %v4106 = vadd.f32 %v3612, %v4015
  %v4107 = vadd.f32 %v3616, %v4019
  %v4108 = vadd.f32 %v3618, %v4021
  %v4109 = vadd.f32 %v3622, %v4025
  %v4110 = vadd.f32 %v3624, %v4027
  %v4111 = vadd.f32 %v3628, %v4031
  %v4112 = vadd.f32 %v3630, %v4033
  %v4113 = vadd.f32 %v3634, %v4037
  %v4114 = vadd.f32 %v3636, %v4039
  %v4115 = vadd.f32 %v3640, %v4043
  %v4116 = vadd.f32 %v3642, %v4045
  %v4117 = vadd.f32 %v3646, %v4049
  %v4118 = vadd.f32 %v3648, %v4051
  %v4119 = vadd.f32 %v3652, %v4055
  %v4120 = vadd.f32 %v3654, %v4057
  %s4121 = scalar_lea.vmem %s4, 528
  %v4122 = vld [vmem:[%s4121] sm:$0xff]
  %v4123 = vld [vmem:[%s4121 + $0x8] sm:$0xff]
  %v4124 = vld [vmem:[%s4121 + $0x10] sm:$0xff]
  %v4125 = vld [vmem:[%s4121 + $0x18] sm:$0xff]
  %v4126 = vld [vmem:[%s4121 + $0x20] sm:$0xff]
  %v4127 = vld [vmem:[%s4121 + $0x28] sm:$0xff]
  %v4128 = vld [vmem:[%s4121 + $0x30] sm:$0xff]
  %v4129 = vld [vmem:[%s4121 + $0x38] sm:$0xff]
  %v4130 = vld [vmem:[%s4121 + $0x40] sm:$0xff]
  %v4131 = vld [vmem:[%s4121 + $0x48] sm:$0xff]
  %v4132 = vld [vmem:[%s4121 + $0x50] sm:$0xff]
  %v4133 = vld [vmem:[%s4121 + $0x58] sm:$0xff]
  %v4134 = vld [vmem:[%s4121 + $0x60] sm:$0xff]
  %v4135 = vld [vmem:[%s4121 + $0x68] sm:$0xff]
  %v4136 = vld [vmem:[%s4121 + $0x70] sm:$0xff]
  %v4137 = vld [vmem:[%s4121 + $0x78] sm:$0xff]
  %v4138 = vld [vmem:[%s4121 + $0x80] sm:$0xff]
  %v4139 = vld [vmem:[%s4121 + $0x88] sm:$0xff]
  %v4140 = vld [vmem:[%s4121 + $0x90] sm:$0xff]
  %v4141 = vld [vmem:[%s4121 + $0x98] sm:$0xff]
  %v4142 = vld [vmem:[%s4121 + $0xa0] sm:$0xf]
  %v4143 = vld [vmem:[%s4121 + $0xa8] sm:$0xf]
  %vm4145 = vcmask 1041408
  %v4146 = vrot.slane %v2848, 6
  %v4147 = vrot.slane %v2849, 6
  %v4148 = vsel %vm4145, %v4146, %v4147
  %v4149 = vrot.slane %v2850, 6
  %v4150 = vsel %vm4145, %v4147, %v4149
  %v4151 = vrot.slane %v2851, 6
  %v4152 = vsel %vm4145, %v4149, %v4151
  %v4153 = vrot.slane %v2852, 6
  %v4154 = vsel %vm4145, %v4151, %v4153
  %v4155 = vrot.slane %v2853, 6
  %v4156 = vsel %vm4145, %v4153, %v4155
  %v4157 = vrot.slane %v2854, 6
  %v4158 = vsel %vm4145, %v4155, %v4157
  %v4159 = vrot.slane %v2855, 6
  %v4160 = vsel %vm4145, %v4157, %v4159
  %v4161 = vrot.slane %v2856, 6
  %v4162 = vsel %vm4145, %v4159, %v4161
  %v4163 = vrot.slane %v2857, 6
  %v4164 = vsel %vm4145, %v4161, %v4163
  %v4165 = vrot.slane %v2858, 6
  %v4166 = vsel %vm4145, %v4163, %v4165
  %v4167 = vrot.slane %v2859, 6
  %v4168 = vsel %vm4145, %v4165, %v4167
  %v4169 = vrot.slane %v2860, 6
  %v4170 = vsel %vm4145, %v4167, %v4169
  %v4171 = vrot.slane %v2861, 6
  %v4172 = vsel %vm4145, %v4169, %v4171
  %v4173 = vrot.slane %v2862, 6
  %v4174 = vsel %vm4145, %v4171, %v4173
  %v4175 = vrot.slane %v2863, 6
  %v4176 = vsel %vm4145, %v4173, %v4175
  %v4177 = vrot.slane %v2864, 6
  %v4178 = vsel %vm4145, %v4175, %v4177
  %v4179 = vrot.slane %v2865, 6
  %v4180 = vsel %vm4145, %v4177, %v4179
  %v4181 = vrot.slane %v2866, 6
  %v4182 = vsel %vm4145, %v4179, %v4181
  %v4183 = vrot.slane %v2867, 6
  %v4184 = vsel %vm4145, %v4181, %v4183
  %v4185 = vrot.slane %v2868, 6
  %v4186 = vsel %vm4145, %v4183, %v4185
  %v4187 = vrot.slane %v2869, 6
  %v4188 = vsel %vm4145, %v4185, %v4187
  %v4189 = vrot.slane %v2870, 6
  %v4190 = vsel %vm4145, %v4187, %v4189
  %v4191 = vrot.slane %v2871, 6
  %v4192 = vsel %vm4145, %v4189, %v4191
  %v4193 = vrot.slane %v2872, 6
  %v4194 = vsel %vm4145, %v4191, %v4193
  %v4195 = vrot.slane %v2873, 6
  %v4196 = vsel %vm4145, %v4193, %v4195
  %v4197 = vrot.slane %v2874, 6
  %v4198 = vsel %vm4145, %v4195, %v4197
  %v4199 = vrot.slane %v2875, 6
  %v4200 = vsel %vm4145, %v4197, %v4199
  %v4201 = vrot.slane %v2876, 6
  %v4202 = vsel %vm4145, %v4199, %v4201
  %v4203 = vrot.slane %v2877, 6
  %v4204 = vsel %vm4145, %v4201, %v4203
  %v4205 = vrot.slane %v2878, 6
  %v4206 = vsel %vm4145, %v4203, %v4205
  %v4207 = vrot.slane %v2879, 6
  %v4208 = vsel %vm4145, %v4205, %v4207
  %v4209 = vsel %vm3017, %v4148, 0
  %v4211 = vsel %vm3017, %v4150, 0
  %v4213 = vsel %vm3017, %v4152, 0
  %v4215 = vsel %vm3017, %v4154, 0
  %v4217 = vsel %vm3017, %v4156, 0
  %v4219 = vsel %vm3017, %v4158, 0
  %v4221 = vsel %vm3017, %v4160, 0
  %v4223 = vsel %vm3017, %v4162, 0
  %v4225 = vsel %vm3017, %v4164, 0
  %v4227 = vsel %vm3017, %v4166, 0
  %v4229 = vsel %vm3017, %v4168, 0
  %v4231 = vsel %vm3017, %v4170, 0
  %v4233 = vsel %vm3017, %v4172, 0
  %v4235 = vsel %vm3017, %v4174, 0
  %v4237 = vsel %vm3017, %v4176, 0
  %v4239 = vsel %vm3017, %v4178, 0
  %v4241 = vsel %vm3017, %v4180, 0
  %v4243 = vsel %vm3017, %v4182, 0
  %v4245 = vsel %vm3017, %v4184, 0
  %v4247 = vsel %vm3017, %v4186, 0
  %v4249 = vsel %vm3017, %v4188, 0
  %v4251 = vsel %vm3017, %v4190, 0
  %v4253 = vsel %vm3017, %v4192, 0
  %v4255 = vsel %vm3017, %v4194, 0
  %v4257 = vsel %vm3017, %v4196, 0
  %v4259 = vsel %vm3017, %v4198, 0
  %v4261 = vsel %vm3017, %v4200, 0
  %v4263 = vsel %vm3017, %v4202, 0
  %v4265 = vsel %vm3017, %v4204, 0
  %v4267 = vsel %vm3017, %v4206, 0
  %v4269 = vsel %vm3017, %v4208, 0
  %v4272 = vsel %vm1757, %v4142, 0
  %v4275 = vsel %vm1757, %v4143, 0
  %4277 = vmatprep.subr.mxu0 0.0
  %4278 = vmatpush1.msra.mxu0 0.0
  %4279 = vmatprep.subr.mxu0 0.0
  %4280 = vmatpush1.msra.mxu0 0.0
  %4281 = vmatprep.subr.mxu0 0.0
  %4282 = vmatpush1.msra.mxu0 0.0
  %4283 = vmatprep.subr.mxu0 0.0
  %4284 = vmatpush1.msra.mxu0 0.0
  %4285 = vmatprep.subr.mxu0 0.0
  %4286 = vmatpush1.msra.mxu0 0.0
  %4287 = vmatprep.subr.mxu0 %v4275
  %4288 = vmatpush1.msra.mxu0 %v4272
  %4289 = vmatprep.subr.mxu0 %v4141
  %4290 = vmatpush1.msra.mxu0 %v4140
  %4291 = vmatprep.subr.mxu0 %v4139
  %4292 = vmatpush1.msra.mxu0 %v4138
  %4293 = vmatprep.subr.mxu0 %v4137
  %4294 = vmatpush1.msra.mxu0 %v4136
  %4295 = vmatprep.subr.mxu0 %v4135
  %4296 = vmatpush1.msra.mxu0 %v4134
  %4297 = vmatprep.subr.mxu0 %v4133
  %4298 = vmatpush1.msra.mxu0 %v4132
  %4299 = vmatprep.subr.mxu0 %v4131
  %4300 = vmatpush1.msra.mxu0 %v4130
  %4301 = vmatprep.subr.mxu0 %v4129
  %4302 = vmatpush1.msra.mxu0 %v4128
  %4303 = vmatprep.subr.mxu0 %v4127
  %4304 = vmatpush1.msra.mxu0 %v4126
  %4305 = vmatprep.subr.mxu0 %v4125
  %4306 = vmatpush1.msra.mxu0 %v4124
  %4307 = vmatprep.subr.mxu0 %v4123
  %4308 = vmatpush1.msra.mxu0 %v4122
  %4309 = vmatprep.subr.mxu0 0.0
  %4310 = vmatpush2.msra.mxu0 0.0
  %4311 = vmatprep.subr.mxu0 0.0
  %4312 = vmatpush2.msra.mxu0 0.0
  %4313 = vmatprep.subr.mxu0 0.0
  %4314 = vmatpush2.msra.mxu0 0.0
  %4315 = vmatprep.subr.mxu0 0.0
  %4316 = vmatpush2.msra.mxu0 0.0
  %4317 = vmatprep.subr.mxu0 0.0
  %4318 = vmatpush2.msra.mxu0 0.0
  %4319 = vmatprep.subr.mxu0 0.0
  %4320 = vmatpush2.msra.mxu0 0.0
  %4321 = vmatprep.subr.mxu0 0.0
  %4322 = vmatpush2.msra.mxu0 0.0
  %4323 = vmatprep.subr.mxu0 0.0
  %4324 = vmatpush2.msra.mxu0 0.0
  %4325 = vmatprep.subr.mxu0 0.0
  %4326 = vmatpush2.msra.mxu0 0.0
  %4327 = vmatprep.subr.mxu0 0.0
  %4328 = vmatpush2.msra.mxu0 0.0
  %4329 = vmatprep.subr.mxu0 0.0
  %4330 = vmatpush2.msra.mxu0 0.0
  %4331 = vmatprep.subr.mxu0 0.0
  %4332 = vmatpush2.msra.mxu0 0.0
  %4333 = vmatprep.subr.mxu0 0.0
  %4334 = vmatpush2.msra.mxu0 0.0
  %4335 = vmatprep.subr.mxu0 0.0
  %4336 = vmatpush2.msra.mxu0 0.0
  %4337 = vmatprep.subr.mxu0 0.0
  %4338 = vmatpush2.msra.mxu0 0.0
  %4339 = vmatprep.subr.mxu0 0.0
  %4340 = vmatpush2.msra.mxu0 0.0
  %4341 = vmatprep.mubr.f32.mxu0 0.0
  %4342 = vmatmul.mubr.f32.gmra.mxu0 %v4209
  %v4343 = vpop.f32.mrf.mxu0
  %v4344 = vadd.f32 0.0, %v4343
  %v4345 = vpop.f32.mrf.mxu0
  %v4346 = vadd.f32 0.0, %v4345
  %4347 = vmatprep.mubr.f32.mxu0 0.0
  %4348 = vmatmul.mubr.f32.gmra.mxu0 %v4211
  %v4349 = vpop.f32.mrf.mxu0
  %v4350 = vadd.f32 0.0, %v4349
  %v4351 = vpop.f32.mrf.mxu0
  %v4352 = vadd.f32 0.0, %v4351
  %4353 = vmatprep.mubr.f32.mxu0 0.0
  %4354 = vmatmul.mubr.f32.gmra.mxu0 %v4213
  %v4355 = vpop.f32.mrf.mxu0
  %v4356 = vadd.f32 0.0, %v4355
  %v4357 = vpop.f32.mrf.mxu0
  %v4358 = vadd.f32 0.0, %v4357
  %4359 = vmatprep.mubr.f32.mxu0 0.0
  %4360 = vmatmul.mubr.f32.gmra.mxu0 %v4215
  %v4361 = vpop.f32.mrf.mxu0
  %v4362 = vadd.f32 0.0, %v4361
  %v4363 = vpop.f32.mrf.mxu0
  %v4364 = vadd.f32 0.0, %v4363
  %4365 = vmatprep.mubr.f32.mxu0 0.0
  %4366 = vmatmul.mubr.f32.gmra.mxu0 %v4217
  %v4367 = vpop.f32.mrf.mxu0
  %v4368 = vadd.f32 0.0, %v4367
  %v4369 = vpop.f32.mrf.mxu0
  %v4370 = vadd.f32 0.0, %v4369
  %4371 = vmatprep.mubr.f32.mxu0 0.0
  %4372 = vmatmul.mubr.f32.gmra.mxu0 %v4219
  %v4373 = vpop.f32.mrf.mxu0
  %v4374 = vadd.f32 0.0, %v4373
  %v4375 = vpop.f32.mrf.mxu0
  %v4376 = vadd.f32 0.0, %v4375
  %4377 = vmatprep.mubr.f32.mxu0 0.0
  %4378 = vmatmul.mubr.f32.gmra.mxu0 %v4221
  %v4379 = vpop.f32.mrf.mxu0
  %v4380 = vadd.f32 0.0, %v4379
  %v4381 = vpop.f32.mrf.mxu0
  %v4382 = vadd.f32 0.0, %v4381
  %4383 = vmatprep.mubr.f32.mxu0 0.0
  %4384 = vmatmul.mubr.f32.gmra.mxu0 %v4223
  %v4385 = vpop.f32.mrf.mxu0
  %v4386 = vadd.f32 0.0, %v4385
  %v4387 = vpop.f32.mrf.mxu0
  %v4388 = vadd.f32 0.0, %v4387
  %4389 = vmatprep.mubr.f32.mxu0 0.0
  %4390 = vmatmul.mubr.f32.gmra.mxu0 %v4225
  %v4391 = vpop.f32.mrf.mxu0
  %v4392 = vadd.f32 0.0, %v4391
  %v4393 = vpop.f32.mrf.mxu0
  %v4394 = vadd.f32 0.0, %v4393
  %4395 = vmatprep.mubr.f32.mxu0 0.0
  %4396 = vmatmul.mubr.f32.gmra.mxu0 %v4227
  %v4397 = vpop.f32.mrf.mxu0
  %v4398 = vadd.f32 0.0, %v4397
  %v4399 = vpop.f32.mrf.mxu0
  %v4400 = vadd.f32 0.0, %v4399
  %4401 = vmatprep.mubr.f32.mxu0 0.0
  %4402 = vmatmul.mubr.f32.gmra.mxu0 %v4229
  %v4403 = vpop.f32.mrf.mxu0
  %v4404 = vadd.f32 0.0, %v4403
  %v4405 = vpop.f32.mrf.mxu0
  %v4406 = vadd.f32 0.0, %v4405
  %4407 = vmatprep.mubr.f32.mxu0 0.0
  %4408 = vmatmul.mubr.f32.gmra.mxu0 %v4231
  %v4409 = vpop.f32.mrf.mxu0
  %v4410 = vadd.f32 0.0, %v4409
  %v4411 = vpop.f32.mrf.mxu0
  %v4412 = vadd.f32 0.0, %v4411
  %4413 = vmatprep.mubr.f32.mxu0 0.0
  %4414 = vmatmul.mubr.f32.gmra.mxu0 %v4233
  %v4415 = vpop.f32.mrf.mxu0
  %v4416 = vadd.f32 0.0, %v4415
  %v4417 = vpop.f32.mrf.mxu0
  %v4418 = vadd.f32 0.0, %v4417
  %4419 = vmatprep.mubr.f32.mxu0 0.0
  %4420 = vmatmul.mubr.f32.gmra.mxu0 %v4235
  %v4421 = vpop.f32.mrf.mxu0
  %v4422 = vadd.f32 0.0, %v4421
  %v4423 = vpop.f32.mrf.mxu0
  %v4424 = vadd.f32 0.0, %v4423
  %4425 = vmatprep.mubr.f32.mxu0 0.0
  %4426 = vmatmul.mubr.f32.gmra.mxu0 %v4237
  %v4427 = vpop.f32.mrf.mxu0
  %v4428 = vadd.f32 0.0, %v4427
  %v4429 = vpop.f32.mrf.mxu0
  %v4430 = vadd.f32 0.0, %v4429
  %4431 = vmatprep.mubr.f32.mxu0 0.0
  %4432 = vmatmul.mubr.f32.gmra.mxu0 %v4239
  %v4433 = vpop.f32.mrf.mxu0
  %v4434 = vadd.f32 0.0, %v4433
  %v4435 = vpop.f32.mrf.mxu0
  %v4436 = vadd.f32 0.0, %v4435
  %4437 = vmatprep.mubr.f32.mxu0 0.0
  %4438 = vmatmul.mubr.f32.gmra.mxu0 %v4241
  %v4439 = vpop.f32.mrf.mxu0
  %v4440 = vadd.f32 0.0, %v4439
  %v4441 = vpop.f32.mrf.mxu0
  %v4442 = vadd.f32 0.0, %v4441
  %4443 = vmatprep.mubr.f32.mxu0 0.0
  %4444 = vmatmul.mubr.f32.gmra.mxu0 %v4243
  %v4445 = vpop.f32.mrf.mxu0
  %v4446 = vadd.f32 0.0, %v4445
  %v4447 = vpop.f32.mrf.mxu0
  %v4448 = vadd.f32 0.0, %v4447
  %4449 = vmatprep.mubr.f32.mxu0 0.0
  %4450 = vmatmul.mubr.f32.gmra.mxu0 %v4245
  %v4451 = vpop.f32.mrf.mxu0
  %v4452 = vadd.f32 0.0, %v4451
  %v4453 = vpop.f32.mrf.mxu0
  %v4454 = vadd.f32 0.0, %v4453
  %4455 = vmatprep.mubr.f32.mxu0 0.0
  %4456 = vmatmul.mubr.f32.gmra.mxu0 %v4247
  %v4457 = vpop.f32.mrf.mxu0
  %v4458 = vadd.f32 0.0, %v4457
  %v4459 = vpop.f32.mrf.mxu0
  %v4460 = vadd.f32 0.0, %v4459
  %4461 = vmatprep.mubr.f32.mxu0 0.0
  %4462 = vmatmul.mubr.f32.gmra.mxu0 %v4249
  %v4463 = vpop.f32.mrf.mxu0
  %v4464 = vadd.f32 0.0, %v4463
  %v4465 = vpop.f32.mrf.mxu0
  %v4466 = vadd.f32 0.0, %v4465
  %4467 = vmatprep.mubr.f32.mxu0 0.0
  %4468 = vmatmul.mubr.f32.gmra.mxu0 %v4251
  %v4469 = vpop.f32.mrf.mxu0
  %v4470 = vadd.f32 0.0, %v4469
  %v4471 = vpop.f32.mrf.mxu0
  %v4472 = vadd.f32 0.0, %v4471
  %4473 = vmatprep.mubr.f32.mxu0 0.0
  %4474 = vmatmul.mubr.f32.gmra.mxu0 %v4253
  %v4475 = vpop.f32.mrf.mxu0
  %v4476 = vadd.f32 0.0, %v4475
  %v4477 = vpop.f32.mrf.mxu0
  %v4478 = vadd.f32 0.0, %v4477
  %4479 = vmatprep.mubr.f32.mxu0 0.0
  %4480 = vmatmul.mubr.f32.gmra.mxu0 %v4255
  %v4481 = vpop.f32.mrf.mxu0
  %v4482 = vadd.f32 0.0, %v4481
  %v4483 = vpop.f32.mrf.mxu0
  %v4484 = vadd.f32 0.0, %v4483
  %4485 = vmatprep.mubr.f32.mxu0 0.0
  %4486 = vmatmul.mubr.f32.gmra.mxu0 %v4257
  %v4487 = vpop.f32.mrf.mxu0
  %v4488 = vadd.f32 0.0, %v4487
  %v4489 = vpop.f32.mrf.mxu0
  %v4490 = vadd.f32 0.0, %v4489
  %4491 = vmatprep.mubr.f32.mxu0 0.0
  %4492 = vmatmul.mubr.f32.gmra.mxu0 %v4259
  %v4493 = vpop.f32.mrf.mxu0
  %v4494 = vadd.f32 0.0, %v4493
  %v4495 = vpop.f32.mrf.mxu0
  %v4496 = vadd.f32 0.0, %v4495
  %4497 = vmatprep.mubr.f32.mxu0 0.0
  %4498 = vmatmul.mubr.f32.gmra.mxu0 %v4261
  %v4499 = vpop.f32.mrf.mxu0
  %v4500 = vadd.f32 0.0, %v4499
  %v4501 = vpop.f32.mrf.mxu0
  %v4502 = vadd.f32 0.0, %v4501
  %4503 = vmatprep.mubr.f32.mxu0 0.0
  %4504 = vmatmul.mubr.f32.gmra.mxu0 %v4263
  %v4505 = vpop.f32.mrf.mxu0
  %v4506 = vadd.f32 0.0, %v4505
  %v4507 = vpop.f32.mrf.mxu0
  %v4508 = vadd.f32 0.0, %v4507
  %4509 = vmatprep.mubr.f32.mxu0 0.0
  %4510 = vmatmul.mubr.f32.gmra.mxu0 %v4265
  %v4511 = vpop.f32.mrf.mxu0
  %v4512 = vadd.f32 0.0, %v4511
  %v4513 = vpop.f32.mrf.mxu0
  %v4514 = vadd.f32 0.0, %v4513
  %4515 = vmatprep.mubr.f32.mxu0 0.0
  %4516 = vmatmul.mubr.f32.gmra.mxu0 %v4267
  %v4517 = vpop.f32.mrf.mxu0
  %v4518 = vadd.f32 0.0, %v4517
  %v4519 = vpop.f32.mrf.mxu0
  %v4520 = vadd.f32 0.0, %v4519
  %4521 = vmatprep.mubr.f32.mxu0 0.0
  %4522 = vmatmul.mubr.f32.gmra.mxu0 %v4269
  %v4523 = vpop.f32.mrf.mxu0
  %v4524 = vadd.f32 0.0, %v4523
  %v4525 = vpop.f32.mrf.mxu0
  %v4526 = vadd.f32 0.0, %v4525
  %4527 = vdwg.mxu0
  %v4528 = vadd.f32 %v4059, %v4344
  %v4529 = vadd.f32 %v4060, %v4346
  %v4530 = vadd.f32 %v4061, %v4350
  %v4531 = vadd.f32 %v4062, %v4352
  %v4532 = vadd.f32 %v4063, %v4356
  %v4533 = vadd.f32 %v4064, %v4358
  %v4534 = vadd.f32 %v4065, %v4362
  %v4535 = vadd.f32 %v4066, %v4364
  %v4536 = vadd.f32 %v4067, %v4368
  %v4537 = vadd.f32 %v4068, %v4370
  %v4538 = vadd.f32 %v4069, %v4374
  %v4539 = vadd.f32 %v4070, %v4376
  %v4540 = vadd.f32 %v4071, %v4380
  %v4541 = vadd.f32 %v4072, %v4382
  %v4542 = vadd.f32 %v4073, %v4386
  %v4543 = vadd.f32 %v4074, %v4388
  %v4544 = vadd.f32 %v4075, %v4392
  %v4545 = vadd.f32 %v4076, %v4394
  %v4546 = vadd.f32 %v4077, %v4398
  %v4547 = vadd.f32 %v4078, %v4400
  %v4548 = vadd.f32 %v4079, %v4404
  %v4549 = vadd.f32 %v4080, %v4406
  %v4550 = vadd.f32 %v4081, %v4410
  %v4551 = vadd.f32 %v4082, %v4412
  %v4552 = vadd.f32 %v4083, %v4416
  %v4553 = vadd.f32 %v4084, %v4418
  %v4554 = vadd.f32 %v4085, %v4422
  %v4555 = vadd.f32 %v4086, %v4424
  %v4556 = vadd.f32 %v4087, %v4428
  %v4557 = vadd.f32 %v4088, %v4430
  %v4558 = vadd.f32 %v4089, %v4434
  %v4559 = vadd.f32 %v4090, %v4436
  %v4560 = vadd.f32 %v4091, %v4440
  %v4561 = vadd.f32 %v4092, %v4442
  %v4562 = vadd.f32 %v4093, %v4446
  %v4563 = vadd.f32 %v4094, %v4448
  %v4564 = vadd.f32 %v4095, %v4452
  %v4565 = vadd.f32 %v4096, %v4454
  %v4566 = vadd.f32 %v4097, %v4458
  %v4567 = vadd.f32 %v4098, %v4460
  %v4568 = vadd.f32 %v4099, %v4464
  %v4569 = vadd.f32 %v4100, %v4466
  %v4570 = vadd.f32 %v4101, %v4470
  %v4571 = vadd.f32 %v4102, %v4472
  %v4572 = vadd.f32 %v4103, %v4476
  %v4573 = vadd.f32 %v4104, %v4478
  %v4574 = vadd.f32 %v4105, %v4482
  %v4575 = vadd.f32 %v4106, %v4484
  %v4576 = vadd.f32 %v4107, %v4488
  %v4577 = vadd.f32 %v4108, %v4490
  %v4578 = vadd.f32 %v4109, %v4494
  %v4579 = vadd.f32 %v4110, %v4496
  %v4580 = vadd.f32 %v4111, %v4500
  %v4581 = vadd.f32 %v4112, %v4502
  %v4582 = vadd.f32 %v4113, %v4506
  %v4583 = vadd.f32 %v4114, %v4508
  %v4584 = vadd.f32 %v4115, %v4512
  %v4585 = vadd.f32 %v4116, %v4514
  %v4586 = vadd.f32 %v4117, %v4518
  %v4587 = vadd.f32 %v4118, %v4520
  %v4588 = vadd.f32 %v4119, %v4524
  %v4589 = vadd.f32 %v4120, %v4526
  %s4590 = scalar_lea.vmem %s4, 704
  %v4591 = vld [vmem:[%s4590] sm:$0xff]
  %v4592 = vld [vmem:[%s4590 + $0x8] sm:$0xff]
  %v4593 = vld [vmem:[%s4590 + $0x10] sm:$0xff]
  %v4594 = vld [vmem:[%s4590 + $0x18] sm:$0xff]
  %v4595 = vld [vmem:[%s4590 + $0x20] sm:$0xff]
  %v4596 = vld [vmem:[%s4590 + $0x28] sm:$0xff]
  %v4597 = vld [vmem:[%s4590 + $0x30] sm:$0xff]
  %v4598 = vld [vmem:[%s4590 + $0x38] sm:$0xff]
  %v4599 = vld [vmem:[%s4590 + $0x40] sm:$0xff]
  %v4600 = vld [vmem:[%s4590 + $0x48] sm:$0xff]
  %v4601 = vld [vmem:[%s4590 + $0x50] sm:$0xff]
  %v4602 = vld [vmem:[%s4590 + $0x58] sm:$0xff]
  %v4603 = vld [vmem:[%s4590 + $0x60] sm:$0xff]
  %v4604 = vld [vmem:[%s4590 + $0x68] sm:$0xff]
  %v4605 = vld [vmem:[%s4590 + $0x70] sm:$0xff]
  %v4606 = vld [vmem:[%s4590 + $0x78] sm:$0xff]
  %v4607 = vld [vmem:[%s4590 + $0x80] sm:$0xff]
  %v4608 = vld [vmem:[%s4590 + $0x88] sm:$0xff]
  %v4609 = vld [vmem:[%s4590 + $0x90] sm:$0xff]
  %v4610 = vld [vmem:[%s4590 + $0x98] sm:$0xff]
  %v4611 = vld [vmem:[%s4590 + $0xa0] sm:$0xf]
  %v4612 = vld [vmem:[%s4590 + $0xa8] sm:$0xf]
  %v4613 = vsel %vm3017, %v2879, 0
  %v4616 = vsel %vm1757, %v4611, 0
  %v4619 = vsel %vm1757, %v4612, 0
  %4621 = vmatprep.subr.mxu0 0.0
  %4622 = vmatpush1.msra.mxu0 0.0
  %4623 = vmatprep.subr.mxu0 0.0
  %4624 = vmatpush1.msra.mxu0 0.0
  %4625 = vmatprep.subr.mxu0 0.0
  %4626 = vmatpush1.msra.mxu0 0.0
  %4627 = vmatprep.subr.mxu0 0.0
  %4628 = vmatpush1.msra.mxu0 0.0
  %4629 = vmatprep.subr.mxu0 0.0
  %4630 = vmatpush1.msra.mxu0 0.0
  %4631 = vmatprep.subr.mxu0 %v4619
  %4632 = vmatpush1.msra.mxu0 %v4616
  %4633 = vmatprep.subr.mxu0 %v4610
  %4634 = vmatpush1.msra.mxu0 %v4609
  %4635 = vmatprep.subr.mxu0 %v4608
  %4636 = vmatpush1.msra.mxu0 %v4607
  %4637 = vmatprep.subr.mxu0 %v4606
  %4638 = vmatpush1.msra.mxu0 %v4605
  %4639 = vmatprep.subr.mxu0 %v4604
  %4640 = vmatpush1.msra.mxu0 %v4603
  %4641 = vmatprep.subr.mxu0 %v4602
  %4642 = vmatpush1.msra.mxu0 %v4601
  %4643 = vmatprep.subr.mxu0 %v4600
  %4644 = vmatpush1.msra.mxu0 %v4599
  %4645 = vmatprep.subr.mxu0 %v4598
  %4646 = vmatpush1.msra.mxu0 %v4597
  %4647 = vmatprep.subr.mxu0 %v4596
  %4648 = vmatpush1.msra.mxu0 %v4595
  %4649 = vmatprep.subr.mxu0 %v4594
  %4650 = vmatpush1.msra.mxu0 %v4593
  %4651 = vmatprep.subr.mxu0 %v4592
  %4652 = vmatpush1.msra.mxu0 %v4591
  %4653 = vmatprep.subr.mxu0 0.0
  %4654 = vmatpush2.msra.mxu0 0.0
  %4655 = vmatprep.subr.mxu0 0.0
  %4656 = vmatpush2.msra.mxu0 0.0
  %4657 = vmatprep.subr.mxu0 0.0
  %4658 = vmatpush2.msra.mxu0 0.0
  %4659 = vmatprep.subr.mxu0 0.0
  %4660 = vmatpush2.msra.mxu0 0.0
  %4661 = vmatprep.subr.mxu0 0.0
  %4662 = vmatpush2.msra.mxu0 0.0
  %4663 = vmatprep.subr.mxu0 0.0
  %4664 = vmatpush2.msra.mxu0 0.0
  %4665 = vmatprep.subr.mxu0 0.0
  %4666 = vmatpush2.msra.mxu0 0.0
  %4667 = vmatprep.subr.mxu0 0.0
  %4668 = vmatpush2.msra.mxu0 0.0
  %4669 = vmatprep.subr.mxu0 0.0
  %4670 = vmatpush2.msra.mxu0 0.0
  %4671 = vmatprep.subr.mxu0 0.0
  %4672 = vmatpush2.msra.mxu0 0.0
  %4673 = vmatprep.subr.mxu0 0.0
  %4674 = vmatpush2.msra.mxu0 0.0
  %4675 = vmatprep.subr.mxu0 0.0
  %4676 = vmatpush2.msra.mxu0 0.0
  %4677 = vmatprep.subr.mxu0 0.0
  %4678 = vmatpush2.msra.mxu0 0.0
  %4679 = vmatprep.subr.mxu0 0.0
  %4680 = vmatpush2.msra.mxu0 0.0
  %4681 = vmatprep.subr.mxu0 0.0
  %4682 = vmatpush2.msra.mxu0 0.0
  %4683 = vmatprep.subr.mxu0 0.0
  %4684 = vmatpush2.msra.mxu0 0.0
  %4685 = vmatprep.mubr.f32.mxu0 0.0
  %4686 = vmatmul.mubr.f32.gmra.mxu0 %v3339
  %v4687 = vpop.f32.mrf.mxu0
  %v4688 = vadd.f32 0.0, %v4687
  %v4689 = vpop.f32.mrf.mxu0
  %v4690 = vadd.f32 0.0, %v4689
  %4691 = vmatprep.mubr.f32.mxu0 0.0
  %4692 = vmatmul.mubr.f32.gmra.mxu0 %v3341
  %v4693 = vpop.f32.mrf.mxu0
  %v4694 = vadd.f32 0.0, %v4693
  %v4695 = vpop.f32.mrf.mxu0
  %v4696 = vadd.f32 0.0, %v4695
  %4697 = vmatprep.mubr.f32.mxu0 0.0
  %4698 = vmatmul.mubr.f32.gmra.mxu0 %v3343
  %v4699 = vpop.f32.mrf.mxu0
  %v4700 = vadd.f32 0.0, %v4699
  %v4701 = vpop.f32.mrf.mxu0
  %v4702 = vadd.f32 0.0, %v4701
  %4703 = vmatprep.mubr.f32.mxu0 0.0
  %4704 = vmatmul.mubr.f32.gmra.mxu0 %v3345
  %v4705 = vpop.f32.mrf.mxu0
  %v4706 = vadd.f32 0.0, %v4705
  %v4707 = vpop.f32.mrf.mxu0
  %v4708 = vadd.f32 0.0, %v4707
  %4709 = vmatprep.mubr.f32.mxu0 0.0
  %4710 = vmatmul.mubr.f32.gmra.mxu0 %v3347
  %v4711 = vpop.f32.mrf.mxu0
  %v4712 = vadd.f32 0.0, %v4711
  %v4713 = vpop.f32.mrf.mxu0
  %v4714 = vadd.f32 0.0, %v4713
  %4715 = vmatprep.mubr.f32.mxu0 0.0
  %4716 = vmatmul.mubr.f32.gmra.mxu0 %v3349
  %v4717 = vpop.f32.mrf.mxu0
  %v4718 = vadd.f32 0.0, %v4717
  %v4719 = vpop.f32.mrf.mxu0
  %v4720 = vadd.f32 0.0, %v4719
  %4721 = vmatprep.mubr.f32.mxu0 0.0
  %4722 = vmatmul.mubr.f32.gmra.mxu0 %v3351
  %v4723 = vpop.f32.mrf.mxu0
  %v4724 = vadd.f32 0.0, %v4723
  %v4725 = vpop.f32.mrf.mxu0
  %v4726 = vadd.f32 0.0, %v4725
  %4727 = vmatprep.mubr.f32.mxu0 0.0
  %4728 = vmatmul.mubr.f32.gmra.mxu0 %v3353
  %v4729 = vpop.f32.mrf.mxu0
  %v4730 = vadd.f32 0.0, %v4729
  %v4731 = vpop.f32.mrf.mxu0
  %v4732 = vadd.f32 0.0, %v4731
  %4733 = vmatprep.mubr.f32.mxu0 0.0
  %4734 = vmatmul.mubr.f32.gmra.mxu0 %v3355
  %v4735 = vpop.f32.mrf.mxu0
  %v4736 = vadd.f32 0.0, %v4735
  %v4737 = vpop.f32.mrf.mxu0
  %v4738 = vadd.f32 0.0, %v4737
  %4739 = vmatprep.mubr.f32.mxu0 0.0
  %4740 = vmatmul.mubr.f32.gmra.mxu0 %v3357
  %v4741 = vpop.f32.mrf.mxu0
  %v4742 = vadd.f32 0.0, %v4741
  %v4743 = vpop.f32.mrf.mxu0
  %v4744 = vadd.f32 0.0, %v4743
  %4745 = vmatprep.mubr.f32.mxu0 0.0
  %4746 = vmatmul.mubr.f32.gmra.mxu0 %v3359
  %v4747 = vpop.f32.mrf.mxu0
  %v4748 = vadd.f32 0.0, %v4747
  %v4749 = vpop.f32.mrf.mxu0
  %v4750 = vadd.f32 0.0, %v4749
  %4751 = vmatprep.mubr.f32.mxu0 0.0
  %4752 = vmatmul.mubr.f32.gmra.mxu0 %v3361
  %v4753 = vpop.f32.mrf.mxu0
  %v4754 = vadd.f32 0.0, %v4753
  %v4755 = vpop.f32.mrf.mxu0
  %v4756 = vadd.f32 0.0, %v4755
  %4757 = vmatprep.mubr.f32.mxu0 0.0
  %4758 = vmatmul.mubr.f32.gmra.mxu0 %v3363
  %v4759 = vpop.f32.mrf.mxu0
  %v4760 = vadd.f32 0.0, %v4759
  %v4761 = vpop.f32.mrf.mxu0
  %v4762 = vadd.f32 0.0, %v4761
  %4763 = vmatprep.mubr.f32.mxu0 0.0
  %4764 = vmatmul.mubr.f32.gmra.mxu0 %v3365
  %v4765 = vpop.f32.mrf.mxu0
  %v4766 = vadd.f32 0.0, %v4765
  %v4767 = vpop.f32.mrf.mxu0
  %v4768 = vadd.f32 0.0, %v4767
  %4769 = vmatprep.mubr.f32.mxu0 0.0
  %4770 = vmatmul.mubr.f32.gmra.mxu0 %v3367
  %v4771 = vpop.f32.mrf.mxu0
  %v4772 = vadd.f32 0.0, %v4771
  %v4773 = vpop.f32.mrf.mxu0
  %v4774 = vadd.f32 0.0, %v4773
  %4775 = vmatprep.mubr.f32.mxu0 0.0
  %4776 = vmatmul.mubr.f32.gmra.mxu0 %v3369
  %v4777 = vpop.f32.mrf.mxu0
  %v4778 = vadd.f32 0.0, %v4777
  %v4779 = vpop.f32.mrf.mxu0
  %v4780 = vadd.f32 0.0, %v4779
  %4781 = vmatprep.mubr.f32.mxu0 0.0
  %4782 = vmatmul.mubr.f32.gmra.mxu0 %v3371
  %v4783 = vpop.f32.mrf.mxu0
  %v4784 = vadd.f32 0.0, %v4783
  %v4785 = vpop.f32.mrf.mxu0
  %v4786 = vadd.f32 0.0, %v4785
  %4787 = vmatprep.mubr.f32.mxu0 0.0
  %4788 = vmatmul.mubr.f32.gmra.mxu0 %v3373
  %v4789 = vpop.f32.mrf.mxu0
  %v4790 = vadd.f32 0.0, %v4789
  %v4791 = vpop.f32.mrf.mxu0
  %v4792 = vadd.f32 0.0, %v4791
  %4793 = vmatprep.mubr.f32.mxu0 0.0
  %4794 = vmatmul.mubr.f32.gmra.mxu0 %v3375
  %v4795 = vpop.f32.mrf.mxu0
  %v4796 = vadd.f32 0.0, %v4795
  %v4797 = vpop.f32.mrf.mxu0
  %v4798 = vadd.f32 0.0, %v4797
  %4799 = vmatprep.mubr.f32.mxu0 0.0
  %4800 = vmatmul.mubr.f32.gmra.mxu0 %v3377
  %v4801 = vpop.f32.mrf.mxu0
  %v4802 = vadd.f32 0.0, %v4801
  %v4803 = vpop.f32.mrf.mxu0
  %v4804 = vadd.f32 0.0, %v4803
  %4805 = vmatprep.mubr.f32.mxu0 0.0
  %4806 = vmatmul.mubr.f32.gmra.mxu0 %v3379
  %v4807 = vpop.f32.mrf.mxu0
  %v4808 = vadd.f32 0.0, %v4807
  %v4809 = vpop.f32.mrf.mxu0
  %v4810 = vadd.f32 0.0, %v4809
  %4811 = vmatprep.mubr.f32.mxu0 0.0
  %4812 = vmatmul.mubr.f32.gmra.mxu0 %v3381
  %v4813 = vpop.f32.mrf.mxu0
  %v4814 = vadd.f32 0.0, %v4813
  %v4815 = vpop.f32.mrf.mxu0
  %v4816 = vadd.f32 0.0, %v4815
  %4817 = vmatprep.mubr.f32.mxu0 0.0
  %4818 = vmatmul.mubr.f32.gmra.mxu0 %v3383
  %v4819 = vpop.f32.mrf.mxu0
  %v4820 = vadd.f32 0.0, %v4819
  %v4821 = vpop.f32.mrf.mxu0
  %v4822 = vadd.f32 0.0, %v4821
  %4823 = vmatprep.mubr.f32.mxu0 0.0
  %4824 = vmatmul.mubr.f32.gmra.mxu0 %v3385
  %v4825 = vpop.f32.mrf.mxu0
  %v4826 = vadd.f32 0.0, %v4825
  %v4827 = vpop.f32.mrf.mxu0
  %v4828 = vadd.f32 0.0, %v4827
  %4829 = vmatprep.mubr.f32.mxu0 0.0
  %4830 = vmatmul.mubr.f32.gmra.mxu0 %v3387
  %v4831 = vpop.f32.mrf.mxu0
  %v4832 = vadd.f32 0.0, %v4831
  %v4833 = vpop.f32.mrf.mxu0
  %v4834 = vadd.f32 0.0, %v4833
  %4835 = vmatprep.mubr.f32.mxu0 0.0
  %4836 = vmatmul.mubr.f32.gmra.mxu0 %v3389
  %v4837 = vpop.f32.mrf.mxu0
  %v4838 = vadd.f32 0.0, %v4837
  %v4839 = vpop.f32.mrf.mxu0
  %v4840 = vadd.f32 0.0, %v4839
  %4841 = vmatprep.mubr.f32.mxu0 0.0
  %4842 = vmatmul.mubr.f32.gmra.mxu0 %v3391
  %v4843 = vpop.f32.mrf.mxu0
  %v4844 = vadd.f32 0.0, %v4843
  %v4845 = vpop.f32.mrf.mxu0
  %v4846 = vadd.f32 0.0, %v4845
  %4847 = vmatprep.mubr.f32.mxu0 0.0
  %4848 = vmatmul.mubr.f32.gmra.mxu0 %v3393
  %v4849 = vpop.f32.mrf.mxu0
  %v4850 = vadd.f32 0.0, %v4849
  %v4851 = vpop.f32.mrf.mxu0
  %v4852 = vadd.f32 0.0, %v4851
  %4853 = vmatprep.mubr.f32.mxu0 0.0
  %4854 = vmatmul.mubr.f32.gmra.mxu0 %v3395
  %v4855 = vpop.f32.mrf.mxu0
  %v4856 = vadd.f32 0.0, %v4855
  %v4857 = vpop.f32.mrf.mxu0
  %v4858 = vadd.f32 0.0, %v4857
  %4859 = vmatprep.mubr.f32.mxu0 0.0
  %4860 = vmatmul.mubr.f32.gmra.mxu0 %v3397
  %v4861 = vpop.f32.mrf.mxu0
  %v4862 = vadd.f32 0.0, %v4861
  %v4863 = vpop.f32.mrf.mxu0
  %v4864 = vadd.f32 0.0, %v4863
  %4865 = vmatprep.mubr.f32.mxu0 0.0
  %4866 = vmatmul.mubr.f32.gmra.mxu0 %v4613
  %v4867 = vpop.f32.mrf.mxu0
  %v4868 = vadd.f32 0.0, %v4867
  %v4869 = vpop.f32.mrf.mxu0
  %v4870 = vadd.f32 0.0, %v4869
  %4871 = vdwg.mxu0
  %v4872 = vadd.f32 %v4528, %v4688
  %v4873 = vadd.f32 %v4529, %v4690
  %v4874 = vadd.f32 %v4530, %v4694
  %v4875 = vadd.f32 %v4531, %v4696
  %v4876 = vadd.f32 %v4532, %v4700
  %v4877 = vadd.f32 %v4533, %v4702
  %v4878 = vadd.f32 %v4534, %v4706
  %v4879 = vadd.f32 %v4535, %v4708
  %v4880 = vadd.f32 %v4536, %v4712
  %v4881 = vadd.f32 %v4537, %v4714
  %v4882 = vadd.f32 %v4538, %v4718
  %v4883 = vadd.f32 %v4539, %v4720
  %v4884 = vadd.f32 %v4540, %v4724
  %v4885 = vadd.f32 %v4541, %v4726
  %v4886 = vadd.f32 %v4542, %v4730
  %v4887 = vadd.f32 %v4543, %v4732
  %v4888 = vadd.f32 %v4544, %v4736
  %v4889 = vadd.f32 %v4545, %v4738
  %v4890 = vadd.f32 %v4546, %v4742
  %v4891 = vadd.f32 %v4547, %v4744
  %v4892 = vadd.f32 %v4548, %v4748
  %v4893 = vadd.f32 %v4549, %v4750
  %v4894 = vadd.f32 %v4550, %v4754
  %v4895 = vadd.f32 %v4551, %v4756
  %v4896 = vadd.f32 %v4552, %v4760
  %v4897 = vadd.f32 %v4553, %v4762
  %v4898 = vadd.f32 %v4554, %v4766
  %v4899 = vadd.f32 %v4555, %v4768
  %v4900 = vadd.f32 %v4556, %v4772
  %v4901 = vadd.f32 %v4557, %v4774
  %v4902 = vadd.f32 %v4558, %v4778
  %v4903 = vadd.f32 %v4559, %v4780
  %v4904 = vadd.f32 %v4560, %v4784
  %v4905 = vadd.f32 %v4561, %v4786
  %v4906 = vadd.f32 %v4562, %v4790
  %v4907 = vadd.f32 %v4563, %v4792
  %v4908 = vadd.f32 %v4564, %v4796
  %v4909 = vadd.f32 %v4565, %v4798
  %v4910 = vadd.f32 %v4566, %v4802
  %v4911 = vadd.f32 %v4567, %v4804
  %v4912 = vadd.f32 %v4568, %v4808
  %v4913 = vadd.f32 %v4569, %v4810
  %v4914 = vadd.f32 %v4570, %v4814
  %v4915 = vadd.f32 %v4571, %v4816
  %v4916 = vadd.f32 %v4572, %v4820
  %v4917 = vadd.f32 %v4573, %v4822
  %v4918 = vadd.f32 %v4574, %v4826
  %v4919 = vadd.f32 %v4575, %v4828
  %v4920 = vadd.f32 %v4576, %v4832
  %v4921 = vadd.f32 %v4577, %v4834
  %v4922 = vadd.f32 %v4578, %v4838
  %v4923 = vadd.f32 %v4579, %v4840
  %v4924 = vadd.f32 %v4580, %v4844
  %v4925 = vadd.f32 %v4581, %v4846
  %v4926 = vadd.f32 %v4582, %v4850
  %v4927 = vadd.f32 %v4583, %v4852
  %v4928 = vadd.f32 %v4584, %v4856
  %v4929 = vadd.f32 %v4585, %v4858
  %v4930 = vadd.f32 %v4586, %v4862
  %v4931 = vadd.f32 %v4587, %v4864
  %v4932 = vadd.f32 %v4588, %v4868
  %v4933 = vadd.f32 %v4589, %v4870
  %v4934 = vld [vmem:[%s5] sm:$0x3]
  %v4936 = vlaneseq
  %v4937 = vshrl.u32 %v4936, 7
  %v4938 = vsub.s32 0, %v4937
  %v4939 = vrot.slane %v4934, %v4938
  %v4940 = vlaneseq
  %v4941 = vshrl.u32 %v4940, 7
  %v4942 = vsub.s32 1, %v4941
  %v4943 = vrot.slane %v4934, %v4942
  %v4946 = vadd.f32 %v4872, %v4939
  %v4947 = vadd.f32 %v4873, %v4943
  %v4948 = vadd.f32 %v4874, %v4939
  %v4949 = vadd.f32 %v4875, %v4943
  %v4950 = vadd.f32 %v4876, %v4939
  %v4951 = vadd.f32 %v4877, %v4943
  %v4952 = vadd.f32 %v4878, %v4939
  %v4953 = vadd.f32 %v4879, %v4943
  %v4954 = vadd.f32 %v4880, %v4939
  %v4955 = vadd.f32 %v4881, %v4943
  %v4956 = vadd.f32 %v4882, %v4939
  %v4957 = vadd.f32 %v4883, %v4943
  %v4958 = vadd.f32 %v4884, %v4939
  %v4959 = vadd.f32 %v4885, %v4943
  %v4960 = vadd.f32 %v4886, %v4939
  %v4961 = vadd.f32 %v4887, %v4943
  %v4962 = vadd.f32 %v4888, %v4939
  %v4963 = vadd.f32 %v4889, %v4943
  %v4964 = vadd.f32 %v4890, %v4939
  %v4965 = vadd.f32 %v4891, %v4943
  %v4966 = vadd.f32 %v4892, %v4939
  %v4967 = vadd.f32 %v4893, %v4943
  %v4968 = vadd.f32 %v4894, %v4939
  %v4969 = vadd.f32 %v4895, %v4943
  %v4970 = vadd.f32 %v4896, %v4939
  %v4971 = vadd.f32 %v4897, %v4943
  %v4972 = vadd.f32 %v4898, %v4939
  %v4973 = vadd.f32 %v4899, %v4943
  %v4974 = vadd.f32 %v4900, %v4939
  %v4975 = vadd.f32 %v4901, %v4943
  %v4976 = vadd.f32 %v4902, %v4939
  %v4977 = vadd.f32 %v4903, %v4943
  %v4978 = vadd.f32 %v4904, %v4939
  %v4979 = vadd.f32 %v4905, %v4943
  %v4980 = vadd.f32 %v4906, %v4939
  %v4981 = vadd.f32 %v4907, %v4943
  %v4982 = vadd.f32 %v4908, %v4939
  %v4983 = vadd.f32 %v4909, %v4943
  %v4984 = vadd.f32 %v4910, %v4939
  %v4985 = vadd.f32 %v4911, %v4943
  %v4986 = vadd.f32 %v4912, %v4939
  %v4987 = vadd.f32 %v4913, %v4943
  %v4988 = vadd.f32 %v4914, %v4939
  %v4989 = vadd.f32 %v4915, %v4943
  %v4990 = vadd.f32 %v4916, %v4939
  %v4991 = vadd.f32 %v4917, %v4943
  %v4992 = vadd.f32 %v4918, %v4939
  %v4993 = vadd.f32 %v4919, %v4943
  %v4994 = vadd.f32 %v4920, %v4939
  %v4995 = vadd.f32 %v4921, %v4943
  %v4996 = vadd.f32 %v4922, %v4939
  %v4997 = vadd.f32 %v4923, %v4943
  %v4998 = vadd.f32 %v4924, %v4939
  %v4999 = vadd.f32 %v4925, %v4943
  %v5000 = vadd.f32 %v4926, %v4939
  %v5001 = vadd.f32 %v4927, %v4943
  %v5002 = vadd.f32 %v4928, %v4939
  %v5003 = vadd.f32 %v4929, %v4943
  %v5004 = vadd.f32 %v4930, %v4939
  %v5005 = vadd.f32 %v4931, %v4943
  %v5006 = vadd.f32 %v4932, %v4939
  %v5007 = vadd.f32 %v4933, %v4943
  %v5008 = vtanh.pop %v4946
  %v5009 = vtanh.pop %v4947
  %v5010 = vtanh.pop %v4948
  %v5011 = vtanh.pop %v4949
  %v5012 = vtanh.pop %v4950
  %v5013 = vtanh.pop %v4951
  %v5014 = vtanh.pop %v4952
  %v5015 = vtanh.pop %v4953
  %v5016 = vtanh.pop %v4954
  %v5017 = vtanh.pop %v4955
  %v5018 = vtanh.pop %v4956
  %v5019 = vtanh.pop %v4957
  %v5020 = vtanh.pop %v4958
  %v5021 = vtanh.pop %v4959
  %v5022 = vtanh.pop %v4960
  %v5023 = vtanh.pop %v4961
  %v5024 = vtanh.pop %v4962
  %v5025 = vtanh.pop %v4963
  %v5026 = vtanh.pop %v4964
  %v5027 = vtanh.pop %v4965
  %v5028 = vtanh.pop %v4966
  %v5029 = vtanh.pop %v4967
  %v5030 = vtanh.pop %v4968
  %v5031 = vtanh.pop %v4969
  %v5032 = vtanh.pop %v4970
  %v5033 = vtanh.pop %v4971
  %v5034 = vtanh.pop %v4972
  %v5035 = vtanh.pop %v4973
  %v5036 = vtanh.pop %v4974
  %v5037 = vtanh.pop %v4975
  %v5038 = vtanh.pop %v4976
  %v5039 = vtanh.pop %v4977
  %v5040 = vtanh.pop %v4978
  %v5041 = vtanh.pop %v4979
  %v5042 = vtanh.pop %v4980
  %v5043 = vtanh.pop %v4981
  %v5044 = vtanh.pop %v4982
  %v5045 = vtanh.pop %v4983
  %v5046 = vtanh.pop %v4984
  %v5047 = vtanh.pop %v4985
  %v5048 = vtanh.pop %v4986
  %v5049 = vtanh.pop %v4987
  %v5050 = vtanh.pop %v4988
  %v5051 = vtanh.pop %v4989
  %v5052 = vtanh.pop %v4990
  %v5053 = vtanh.pop %v4991
  %v5054 = vtanh.pop %v4992
  %v5055 = vtanh.pop %v4993
  %v5056 = vtanh.pop %v4994
  %v5057 = vtanh.pop %v4995
  %v5058 = vtanh.pop %v4996
  %v5059 = vtanh.pop %v4997
  %v5060 = vtanh.pop %v4998
  %v5061 = vtanh.pop %v4999
  %v5062 = vtanh.pop %v5000
  %v5063 = vtanh.pop %v5001
  %v5064 = vtanh.pop %v5002
  %v5065 = vtanh.pop %v5003
  %v5066 = vtanh.pop %v5004
  %v5067 = vtanh.pop %v5005
  %v5068 = vtanh.pop %v5006
  %v5069 = vtanh.pop %v5007
  %v5070 = vld [vmem:[%s6] sm:$0xff]
  %v5071 = vld [vmem:[%s6 + $0x8] sm:$0xff]
  %v5072 = vld [vmem:[%s6 + $0x10] sm:$0xff]
  %v5073 = vld [vmem:[%s6 + $0x18] sm:$0xff]
  %v5074 = vld [vmem:[%s6 + $0x20] sm:$0xff]
  %v5075 = vld [vmem:[%s6 + $0x28] sm:$0xff]
  %v5076 = vld [vmem:[%s6 + $0x30] sm:$0xff]
  %v5077 = vld [vmem:[%s6 + $0x38] sm:$0xff]
  %v5078 = vld [vmem:[%s6 + $0x40] sm:$0xff]
  %v5079 = vld [vmem:[%s6 + $0x48] sm:$0xff]
  %v5080 = vld [vmem:[%s6 + $0x50] sm:$0xff]
  %v5081 = vld [vmem:[%s6 + $0x58] sm:$0xff]
  %v5082 = vld [vmem:[%s6 + $0x60] sm:$0xff]
  %v5083 = vld [vmem:[%s6 + $0x68] sm:$0xff]
  %v5084 = vld [vmem:[%s6 + $0x70] sm:$0xff]
  %v5085 = vld [vmem:[%s6 + $0x78] sm:$0xff]
  %v5086 = vld [vmem:[%s6 + $0x80] sm:$0xff]
  %v5087 = vld [vmem:[%s6 + $0x88] sm:$0xff]
  %v5088 = vld [vmem:[%s6 + $0x90] sm:$0xff]
  %v5089 = vld [vmem:[%s6 + $0x98] sm:$0xff]
  %v5091 = vsel %vm189, %v5009, 0
  %v5094 = vsel %vm189, %v5011, 0
  %v5097 = vsel %vm189, %v5013, 0
  %v5100 = vsel %vm189, %v5015, 0
  %v5103 = vsel %vm189, %v5017, 0
  %v5106 = vsel %vm189, %v5019, 0
  %v5109 = vsel %vm189, %v5021, 0
  %v5112 = vsel %vm189, %v5023, 0
  %v5115 = vsel %vm189, %v5025, 0
  %v5118 = vsel %vm189, %v5027, 0
  %v5121 = vsel %vm189, %v5029, 0
  %v5124 = vsel %vm189, %v5031, 0
  %v5127 = vsel %vm189, %v5033, 0
  %v5130 = vsel %vm189, %v5035, 0
  %v5133 = vsel %vm189, %v5037, 0
  %v5136 = vsel %vm189, %v5039, 0
  %v5139 = vsel %vm189, %v5041, 0
  %v5142 = vsel %vm189, %v5043, 0
  %v5145 = vsel %vm189, %v5045, 0
  %v5148 = vsel %vm189, %v5047, 0
  %v5151 = vsel %vm189, %v5049, 0
  %v5154 = vsel %vm189, %v5051, 0
  %v5157 = vsel %vm189, %v5053, 0
  %v5160 = vsel %vm189, %v5055, 0
  %v5163 = vsel %vm189, %v5057, 0
  %v5166 = vsel %vm189, %v5059, 0
  %v5169 = vsel %vm189, %v5061, 0
  %v5172 = vsel %vm189, %v5063, 0
  %v5175 = vsel %vm189, %v5065, 0
  %v5178 = vsel %vm189, %v5067, 0
  %v5181 = vsel %vm189, %v5069, 0
  %5183 = vmatprep.subr.mxu0 0.0
  %5184 = vmatpush1.msra.mxu0 %v5085
  %5185 = vmatprep.subr.mxu0 0.0
  %5186 = vmatpush1.msra.mxu0 %v5084
  %5187 = vmatprep.subr.mxu0 0.0
  %5188 = vmatpush1.msra.mxu0 %v5083
  %5189 = vmatprep.subr.mxu0 0.0
  %5190 = vmatpush1.msra.mxu0 %v5082
  %5191 = vmatprep.subr.mxu0 0.0
  %5192 = vmatpush1.msra.mxu0 %v5081
  %5193 = vmatprep.subr.mxu0 0.0
  %5194 = vmatpush1.msra.mxu0 %v5080
  %5195 = vmatprep.subr.mxu0 0.0
  %5196 = vmatpush1.msra.mxu0 %v5079
  %5197 = vmatprep.subr.mxu0 0.0
  %5198 = vmatpush1.msra.mxu0 %v5078
  %5199 = vmatprep.subr.mxu0 0.0
  %5200 = vmatpush1.msra.mxu0 %v5077
  %5201 = vmatprep.subr.mxu0 0.0
  %5202 = vmatpush1.msra.mxu0 %v5076
  %5203 = vmatprep.subr.mxu0 0.0
  %5204 = vmatpush1.msra.mxu0 %v5075
  %5205 = vmatprep.subr.mxu0 0.0
  %5206 = vmatpush1.msra.mxu0 %v5074
  %5207 = vmatprep.subr.mxu0 0.0
  %5208 = vmatpush1.msra.mxu0 %v5073
  %5209 = vmatprep.subr.mxu0 0.0
  %5210 = vmatpush1.msra.mxu0 %v5072
  %5211 = vmatprep.subr.mxu0 0.0
  %5212 = vmatpush1.msra.mxu0 %v5071
  %5213 = vmatprep.subr.mxu0 0.0
  %5214 = vmatpush1.msra.mxu0 %v5070
  %5215 = vmatprep.subr.mxu0 0.0
  %5216 = vmatpush2.msra.mxu0 0.0
  %5217 = vmatprep.subr.mxu0 0.0
  %5218 = vmatpush2.msra.mxu0 0.0
  %5219 = vmatprep.subr.mxu0 0.0
  %5220 = vmatpush2.msra.mxu0 0.0
  %5221 = vmatprep.subr.mxu0 0.0
  %5222 = vmatpush2.msra.mxu0 0.0
  %5223 = vmatprep.subr.mxu0 0.0
  %5224 = vmatpush2.msra.mxu0 0.0
  %5225 = vmatprep.subr.mxu0 0.0
  %5226 = vmatpush2.msra.mxu0 0.0
  %5227 = vmatprep.subr.mxu0 0.0
  %5228 = vmatpush2.msra.mxu0 0.0
  %5229 = vmatprep.subr.mxu0 0.0
  %5230 = vmatpush2.msra.mxu0 0.0
  %5231 = vmatprep.subr.mxu0 0.0
  %5232 = vmatpush2.msra.mxu0 0.0
  %5233 = vmatprep.subr.mxu0 0.0
  %5234 = vmatpush2.msra.mxu0 0.0
  %5235 = vmatprep.subr.mxu0 0.0
  %5236 = vmatpush2.msra.mxu0 0.0
  %5237 = vmatprep.subr.mxu0 0.0
  %5238 = vmatpush2.msra.mxu0 0.0
  %5239 = vmatprep.subr.mxu0 0.0
  %5240 = vmatpush2.msra.mxu0 %v5089
  %5241 = vmatprep.subr.mxu0 0.0
  %5242 = vmatpush2.msra.mxu0 %v5088
  %5243 = vmatprep.subr.mxu0 0.0
  %5244 = vmatpush2.msra.mxu0 %v5087
  %5245 = vmatprep.subr.mxu0 0.0
  %5246 = vmatpush2.msra.mxu0 %v5086
  %5247 = vmatprep.mubr.f32.mxu0 %v5091
  %5248 = vmatmul.mubr.f32.gmra.mxu0 %v5008
  %v5249 = vpop.f32.mrf.mxu0
  %v5250 = vadd.f32 0.0, %v5249
  %v5251 = vpop.f32.mrf.mxu0
  %5252 = vmatprep.mubr.f32.mxu0 %v5094
  %5253 = vmatmul.mubr.f32.gmra.mxu0 %v5010
  %v5254 = vpop.f32.mrf.mxu0
  %v5255 = vadd.f32 0.0, %v5254
  %v5256 = vpop.f32.mrf.mxu0
  %5257 = vmatprep.mubr.f32.mxu0 %v5097
  %5258 = vmatmul.mubr.f32.gmra.mxu0 %v5012
  %v5259 = vpop.f32.mrf.mxu0
  %v5260 = vadd.f32 0.0, %v5259
  %v5261 = vpop.f32.mrf.mxu0
  %5262 = vmatprep.mubr.f32.mxu0 %v5100
  %5263 = vmatmul.mubr.f32.gmra.mxu0 %v5014
  %v5264 = vpop.f32.mrf.mxu0
  %v5265 = vadd.f32 0.0, %v5264
  %v5266 = vpop.f32.mrf.mxu0
  %5267 = vmatprep.mubr.f32.mxu0 %v5103
  %5268 = vmatmul.mubr.f32.gmra.mxu0 %v5016
  %v5269 = vpop.f32.mrf.mxu0
  %v5270 = vadd.f32 0.0, %v5269
  %v5271 = vpop.f32.mrf.mxu0
  %5272 = vmatprep.mubr.f32.mxu0 %v5106
  %5273 = vmatmul.mubr.f32.gmra.mxu0 %v5018
  %v5274 = vpop.f32.mrf.mxu0
  %v5275 = vadd.f32 0.0, %v5274
  %v5276 = vpop.f32.mrf.mxu0
  %5277 = vmatprep.mubr.f32.mxu0 %v5109
  %5278 = vmatmul.mubr.f32.gmra.mxu0 %v5020
  %v5279 = vpop.f32.mrf.mxu0
  %v5280 = vadd.f32 0.0, %v5279
  %v5281 = vpop.f32.mrf.mxu0
  %5282 = vmatprep.mubr.f32.mxu0 %v5112
  %5283 = vmatmul.mubr.f32.gmra.mxu0 %v5022
  %v5284 = vpop.f32.mrf.mxu0
  %v5285 = vadd.f32 0.0, %v5284
  %v5286 = vpop.f32.mrf.mxu0
  %5287 = vmatprep.mubr.f32.mxu0 %v5115
  %5288 = vmatmul.mubr.f32.gmra.mxu0 %v5024
  %v5289 = vpop.f32.mrf.mxu0
  %v5290 = vadd.f32 0.0, %v5289
  %v5291 = vpop.f32.mrf.mxu0
  %5292 = vmatprep.mubr.f32.mxu0 %v5118
  %5293 = vmatmul.mubr.f32.gmra.mxu0 %v5026
  %v5294 = vpop.f32.mrf.mxu0
  %v5295 = vadd.f32 0.0, %v5294
  %v5296 = vpop.f32.mrf.mxu0
  %5297 = vmatprep.mubr.f32.mxu0 %v5121
  %5298 = vmatmul.mubr.f32.gmra.mxu0 %v5028
  %v5299 = vpop.f32.mrf.mxu0
  %v5300 = vadd.f32 0.0, %v5299
  %v5301 = vpop.f32.mrf.mxu0
  %5302 = vmatprep.mubr.f32.mxu0 %v5124
  %5303 = vmatmul.mubr.f32.gmra.mxu0 %v5030
  %v5304 = vpop.f32.mrf.mxu0
  %v5305 = vadd.f32 0.0, %v5304
  %v5306 = vpop.f32.mrf.mxu0
  %5307 = vmatprep.mubr.f32.mxu0 %v5127
  %5308 = vmatmul.mubr.f32.gmra.mxu0 %v5032
  %v5309 = vpop.f32.mrf.mxu0
  %v5310 = vadd.f32 0.0, %v5309
  %v5311 = vpop.f32.mrf.mxu0
  %5312 = vmatprep.mubr.f32.mxu0 %v5130
  %5313 = vmatmul.mubr.f32.gmra.mxu0 %v5034
  %v5314 = vpop.f32.mrf.mxu0
  %v5315 = vadd.f32 0.0, %v5314
  %v5316 = vpop.f32.mrf.mxu0
  %5317 = vmatprep.mubr.f32.mxu0 %v5133
  %5318 = vmatmul.mubr.f32.gmra.mxu0 %v5036
  %v5319 = vpop.f32.mrf.mxu0
  %v5320 = vadd.f32 0.0, %v5319
  %v5321 = vpop.f32.mrf.mxu0
  %5322 = vmatprep.mubr.f32.mxu0 %v5136
  %5323 = vmatmul.mubr.f32.gmra.mxu0 %v5038
  %v5324 = vpop.f32.mrf.mxu0
  %v5325 = vadd.f32 0.0, %v5324
  %v5326 = vpop.f32.mrf.mxu0
  %5327 = vmatprep.mubr.f32.mxu0 %v5139
  %5328 = vmatmul.mubr.f32.gmra.mxu0 %v5040
  %v5329 = vpop.f32.mrf.mxu0
  %v5330 = vadd.f32 0.0, %v5329
  %v5331 = vpop.f32.mrf.mxu0
  %5332 = vmatprep.mubr.f32.mxu0 %v5142
  %5333 = vmatmul.mubr.f32.gmra.mxu0 %v5042
  %v5334 = vpop.f32.mrf.mxu0
  %v5335 = vadd.f32 0.0, %v5334
  %v5336 = vpop.f32.mrf.mxu0
  %5337 = vmatprep.mubr.f32.mxu0 %v5145
  %5338 = vmatmul.mubr.f32.gmra.mxu0 %v5044
  %v5339 = vpop.f32.mrf.mxu0
  %v5340 = vadd.f32 0.0, %v5339
  %v5341 = vpop.f32.mrf.mxu0
  %5342 = vmatprep.mubr.f32.mxu0 %v5148
  %5343 = vmatmul.mubr.f32.gmra.mxu0 %v5046
  %v5344 = vpop.f32.mrf.mxu0
  %v5345 = vadd.f32 0.0, %v5344
  %v5346 = vpop.f32.mrf.mxu0
  %5347 = vmatprep.mubr.f32.mxu0 %v5151
  %5348 = vmatmul.mubr.f32.gmra.mxu0 %v5048
  %v5349 = vpop.f32.mrf.mxu0
  %v5350 = vadd.f32 0.0, %v5349
  %v5351 = vpop.f32.mrf.mxu0
  %5352 = vmatprep.mubr.f32.mxu0 %v5154
  %5353 = vmatmul.mubr.f32.gmra.mxu0 %v5050
  %v5354 = vpop.f32.mrf.mxu0
  %v5355 = vadd.f32 0.0, %v5354
  %v5356 = vpop.f32.mrf.mxu0
  %5357 = vmatprep.mubr.f32.mxu0 %v5157
  %5358 = vmatmul.mubr.f32.gmra.mxu0 %v5052
  %v5359 = vpop.f32.mrf.mxu0
  %v5360 = vadd.f32 0.0, %v5359
  %v5361 = vpop.f32.mrf.mxu0
  %5362 = vmatprep.mubr.f32.mxu0 %v5160
  %5363 = vmatmul.mubr.f32.gmra.mxu0 %v5054
  %v5364 = vpop.f32.mrf.mxu0
  %v5365 = vadd.f32 0.0, %v5364
  %v5366 = vpop.f32.mrf.mxu0
  %5367 = vmatprep.mubr.f32.mxu0 %v5163
  %5368 = vmatmul.mubr.f32.gmra.mxu0 %v5056
  %v5369 = vpop.f32.mrf.mxu0
  %v5370 = vadd.f32 0.0, %v5369
  %v5371 = vpop.f32.mrf.mxu0
  %5372 = vmatprep.mubr.f32.mxu0 %v5166
  %5373 = vmatmul.mubr.f32.gmra.mxu0 %v5058
  %v5374 = vpop.f32.mrf.mxu0
  %v5375 = vadd.f32 0.0, %v5374
  %v5376 = vpop.f32.mrf.mxu0
  %5377 = vmatprep.mubr.f32.mxu0 %v5169
  %5378 = vmatmul.mubr.f32.gmra.mxu0 %v5060
  %v5379 = vpop.f32.mrf.mxu0
  %v5380 = vadd.f32 0.0, %v5379
  %v5381 = vpop.f32.mrf.mxu0
  %5382 = vmatprep.mubr.f32.mxu0 %v5172
  %5383 = vmatmul.mubr.f32.gmra.mxu0 %v5062
  %v5384 = vpop.f32.mrf.mxu0
  %v5385 = vadd.f32 0.0, %v5384
  %v5386 = vpop.f32.mrf.mxu0
  %5387 = vmatprep.mubr.f32.mxu0 %v5175
  %5388 = vmatmul.mubr.f32.gmra.mxu0 %v5064
  %v5389 = vpop.f32.mrf.mxu0
  %v5390 = vadd.f32 0.0, %v5389
  %v5391 = vpop.f32.mrf.mxu0
  %5392 = vmatprep.mubr.f32.mxu0 %v5178
  %5393 = vmatmul.mubr.f32.gmra.mxu0 %v5066
  %v5394 = vpop.f32.mrf.mxu0
  %v5395 = vadd.f32 0.0, %v5394
  %v5396 = vpop.f32.mrf.mxu0
  %5397 = vmatprep.mubr.f32.mxu0 %v5181
  %5398 = vmatmul.mubr.f32.gmra.mxu0 %v5068
  %v5399 = vpop.f32.mrf.mxu0
  %v5400 = vadd.f32 0.0, %v5399
  %v5401 = vpop.f32.mrf.mxu0
  %5402 = vdwg.mxu0
  %v5434 = vrot.slane %v5250, 2
  %v5435 = vrot.slane %v5255, 2
  %v5436 = vsel %vm841, %v5434, %v5435
  %v5437 = vrot.slane %v5260, 2
  %v5438 = vsel %vm841, %v5435, %v5437
  %v5439 = vrot.slane %v5265, 2
  %v5440 = vsel %vm841, %v5437, %v5439
  %v5441 = vrot.slane %v5270, 2
  %v5442 = vsel %vm841, %v5439, %v5441
  %v5443 = vrot.slane %v5275, 2
  %v5444 = vsel %vm841, %v5441, %v5443
  %v5445 = vrot.slane %v5280, 2
  %v5446 = vsel %vm841, %v5443, %v5445
  %v5447 = vrot.slane %v5285, 2
  %v5448 = vsel %vm841, %v5445, %v5447
  %v5449 = vrot.slane %v5290, 2
  %v5450 = vsel %vm841, %v5447, %v5449
  %v5451 = vrot.slane %v5295, 2
  %v5452 = vsel %vm841, %v5449, %v5451
  %v5453 = vrot.slane %v5300, 2
  %v5454 = vsel %vm841, %v5451, %v5453
  %v5455 = vrot.slane %v5305, 2
  %v5456 = vsel %vm841, %v5453, %v5455
  %v5457 = vrot.slane %v5310, 2
  %v5458 = vsel %vm841, %v5455, %v5457
  %v5459 = vrot.slane %v5315, 2
  %v5460 = vsel %vm841, %v5457, %v5459
  %v5461 = vrot.slane %v5320, 2
  %v5462 = vsel %vm841, %v5459, %v5461
  %v5463 = vrot.slane %v5325, 2
  %v5464 = vsel %vm841, %v5461, %v5463
  %v5465 = vrot.slane %v5330, 2
  %v5466 = vsel %vm841, %v5463, %v5465
  %v5467 = vrot.slane %v5335, 2
  %v5468 = vsel %vm841, %v5465, %v5467
  %v5469 = vrot.slane %v5340, 2
  %v5470 = vsel %vm841, %v5467, %v5469
  %v5471 = vrot.slane %v5345, 2
  %v5472 = vsel %vm841, %v5469, %v5471
  %v5473 = vrot.slane %v5350, 2
  %v5474 = vsel %vm841, %v5471, %v5473
  %v5475 = vrot.slane %v5355, 2
  %v5476 = vsel %vm841, %v5473, %v5475
  %v5477 = vrot.slane %v5360, 2
  %v5478 = vsel %vm841, %v5475, %v5477
  %v5479 = vrot.slane %v5365, 2
  %v5480 = vsel %vm841, %v5477, %v5479
  %v5481 = vrot.slane %v5370, 2
  %v5482 = vsel %vm841, %v5479, %v5481
  %v5483 = vrot.slane %v5375, 2
  %v5484 = vsel %vm841, %v5481, %v5483
  %v5485 = vrot.slane %v5380, 2
  %v5486 = vsel %vm841, %v5483, %v5485
  %v5487 = vrot.slane %v5385, 2
  %v5488 = vsel %vm841, %v5485, %v5487
  %v5489 = vrot.slane %v5390, 2
  %v5490 = vsel %vm841, %v5487, %v5489
  %v5491 = vrot.slane %v5395, 2
  %v5492 = vsel %vm841, %v5489, %v5491
  %v5493 = vrot.slane %v5400, 2
  %v5494 = vsel %vm841, %v5491, %v5493
  %v5526 = vadd.f32 %v5250, %v5436
  %v5527 = vadd.f32 %v5255, %v5438
  %v5528 = vadd.f32 %v5260, %v5440
  %v5529 = vadd.f32 %v5265, %v5442
  %v5530 = vadd.f32 %v5270, %v5444
  %v5531 = vadd.f32 %v5275, %v5446
  %v5532 = vadd.f32 %v5280, %v5448
  %v5533 = vadd.f32 %v5285, %v5450
  %v5534 = vadd.f32 %v5290, %v5452
  %v5535 = vadd.f32 %v5295, %v5454
  %v5536 = vadd.f32 %v5300, %v5456
  %v5537 = vadd.f32 %v5305, %v5458
  %v5538 = vadd.f32 %v5310, %v5460
  %v5539 = vadd.f32 %v5315, %v5462
  %v5540 = vadd.f32 %v5320, %v5464
  %v5541 = vadd.f32 %v5325, %v5466
  %v5542 = vadd.f32 %v5330, %v5468
  %v5543 = vadd.f32 %v5335, %v5470
  %v5544 = vadd.f32 %v5340, %v5472
  %v5545 = vadd.f32 %v5345, %v5474
  %v5546 = vadd.f32 %v5350, %v5476
  %v5547 = vadd.f32 %v5355, %v5478
  %v5548 = vadd.f32 %v5360, %v5480
  %v5549 = vadd.f32 %v5365, %v5482
  %v5550 = vadd.f32 %v5370, %v5484
  %v5551 = vadd.f32 %v5375, %v5486
  %v5552 = vadd.f32 %v5380, %v5488
  %v5553 = vadd.f32 %v5385, %v5490
  %v5554 = vadd.f32 %v5390, %v5492
  %v5555 = vadd.f32 %v5395, %v5494
  %v5556 = vadd.f32 %v5400, %v5493
  %v5557 = vmul.f32 %v5526, 0.5
  %v5558 = vmul.f32 %v5527, 0.5
  %v5559 = vmul.f32 %v5528, 0.5
  %v5560 = vmul.f32 %v5529, 0.5
  %v5561 = vmul.f32 %v5530, 0.5
  %v5562 = vmul.f32 %v5531, 0.5
  %v5563 = vmul.f32 %v5532, 0.5
  %v5564 = vmul.f32 %v5533, 0.5
  %v5565 = vmul.f32 %v5534, 0.5
  %v5566 = vmul.f32 %v5535, 0.5
  %v5567 = vmul.f32 %v5536, 0.5
  %v5568 = vmul.f32 %v5537, 0.5
  %v5569 = vmul.f32 %v5538, 0.5
  %v5570 = vmul.f32 %v5539, 0.5
  %v5571 = vmul.f32 %v5540, 0.5
  %v5572 = vmul.f32 %v5541, 0.5
  %v5573 = vmul.f32 %v5542, 0.5
  %v5574 = vmul.f32 %v5543, 0.5
  %v5575 = vmul.f32 %v5544, 0.5
  %v5576 = vmul.f32 %v5545, 0.5
  %v5577 = vmul.f32 %v5546, 0.5
  %v5578 = vmul.f32 %v5547, 0.5
  %v5579 = vmul.f32 %v5548, 0.5
  %v5580 = vmul.f32 %v5549, 0.5
  %v5581 = vmul.f32 %v5550, 0.5
  %v5582 = vmul.f32 %v5551, 0.5
  %v5583 = vmul.f32 %v5552, 0.5
  %v5584 = vmul.f32 %v5553, 0.5
  %v5585 = vmul.f32 %v5554, 0.5
  %v5586 = vmul.f32 %v5555, 0.5
  %v5587 = vmul.f32 %v5556, 0.5
  %v5588 = vld [vmem:[%s7] sm:$0xff]
  %v5589 = vld [vmem:[%s7 + $0x8] sm:$0xff]
  %v5590 = vld [vmem:[%s7 + $0x10] sm:$0xff]
  %v5591 = vld [vmem:[%s7 + $0x18] sm:$0xff]
  %v5592 = vld [vmem:[%s7 + $0x20] sm:$0xff]
  %v5593 = vld [vmem:[%s7 + $0x28] sm:$0xff]
  %v5594 = vld [vmem:[%s7 + $0x30] sm:$0xff]
  %v5595 = vld [vmem:[%s7 + $0x38] sm:$0xff]
  %v5596 = vld [vmem:[%s7 + $0x40] sm:$0xff]
  %v5597 = vld [vmem:[%s7 + $0x48] sm:$0xff]
  %s5598 = scalar_lea.vmem %s7, 80
  %v5599 = vld [vmem:[%s5598] sm:$0xff]
  %v5600 = vld [vmem:[%s5598 + $0x8] sm:$0xff]
  %v5601 = vld [vmem:[%s5598 + $0x10] sm:$0xff]
  %v5602 = vld [vmem:[%s5598 + $0x18] sm:$0xff]
  %v5603 = vld [vmem:[%s5598 + $0x20] sm:$0xff]
  %v5604 = vld [vmem:[%s5598 + $0x28] sm:$0xff]
  %v5605 = vld [vmem:[%s5598 + $0x30] sm:$0xff]
  %v5606 = vld [vmem:[%s5598 + $0x38] sm:$0xff]
  %v5607 = vld [vmem:[%s5598 + $0x40] sm:$0xff]
  %v5608 = vld [vmem:[%s5598 + $0x48] sm:$0xff]
  %v5638 = vrot.slane %v5557, 4
  %v5639 = vrot.slane %v5558, 4
  %v5640 = vsel %vm1757, %v5638, %v5639
  %v5641 = vrot.slane %v5559, 4
  %v5642 = vsel %vm1757, %v5639, %v5641
  %v5643 = vrot.slane %v5560, 4
  %v5644 = vsel %vm1757, %v5641, %v5643
  %v5645 = vrot.slane %v5561, 4
  %v5646 = vsel %vm1757, %v5643, %v5645
  %v5647 = vrot.slane %v5562, 4
  %v5648 = vsel %vm1757, %v5645, %v5647
  %v5649 = vrot.slane %v5563, 4
  %v5650 = vsel %vm1757, %v5647, %v5649
  %v5651 = vrot.slane %v5564, 4
  %v5652 = vsel %vm1757, %v5649, %v5651
  %v5653 = vrot.slane %v5565, 4
  %v5654 = vsel %vm1757, %v5651, %v5653
  %v5655 = vrot.slane %v5566, 4
  %v5656 = vsel %vm1757, %v5653, %v5655
  %v5657 = vrot.slane %v5567, 4
  %v5658 = vsel %vm1757, %v5655, %v5657
  %v5659 = vrot.slane %v5568, 4
  %v5660 = vsel %vm1757, %v5657, %v5659
  %v5661 = vrot.slane %v5569, 4
  %v5662 = vsel %vm1757, %v5659, %v5661
  %v5663 = vrot.slane %v5570, 4
  %v5664 = vsel %vm1757, %v5661, %v5663
  %v5665 = vrot.slane %v5571, 4
  %v5666 = vsel %vm1757, %v5663, %v5665
  %v5667 = vrot.slane %v5572, 4
  %v5668 = vsel %vm1757, %v5665, %v5667
  %v5669 = vrot.slane %v5573, 4
  %v5670 = vsel %vm1757, %v5667, %v5669
  %v5671 = vrot.slane %v5574, 4
  %v5672 = vsel %vm1757, %v5669, %v5671
  %v5673 = vrot.slane %v5575, 4
  %v5674 = vsel %vm1757, %v5671, %v5673
  %v5675 = vrot.slane %v5576, 4
  %v5676 = vsel %vm1757, %v5673, %v5675
  %v5677 = vrot.slane %v5577, 4
  %v5678 = vsel %vm1757, %v5675, %v5677
  %v5679 = vrot.slane %v5578, 4
  %v5680 = vsel %vm1757, %v5677, %v5679
  %v5681 = vrot.slane %v5579, 4
  %v5682 = vsel %vm1757, %v5679, %v5681
  %v5683 = vrot.slane %v5580, 4
  %v5684 = vsel %vm1757, %v5681, %v5683
  %v5685 = vrot.slane %v5581, 4
  %v5686 = vsel %vm1757, %v5683, %v5685
  %v5687 = vrot.slane %v5582, 4
  %v5688 = vsel %vm1757, %v5685, %v5687
  %v5689 = vrot.slane %v5583, 4
  %v5690 = vsel %vm1757, %v5687, %v5689
  %v5691 = vrot.slane %v5584, 4
  %v5692 = vsel %vm1757, %v5689, %v5691
  %v5693 = vrot.slane %v5585, 4
  %v5694 = vsel %vm1757, %v5691, %v5693
  %vm5695 = vcmask 654336
  %v5696 = vsel %vm5695, %v5640, 0
  %v5698 = vsel %vm5695, %v5642, 0
  %v5700 = vsel %vm5695, %v5644, 0
  %v5702 = vsel %vm5695, %v5646, 0
  %v5704 = vsel %vm5695, %v5648, 0
  %v5706 = vsel %vm5695, %v5650, 0
  %v5708 = vsel %vm5695, %v5652, 0
  %v5710 = vsel %vm5695, %v5654, 0
  %v5712 = vsel %vm5695, %v5656, 0
  %v5714 = vsel %vm5695, %v5658, 0
  %v5716 = vsel %vm5695, %v5660, 0
  %v5718 = vsel %vm5695, %v5662, 0
  %v5720 = vsel %vm5695, %v5664, 0
  %v5722 = vsel %vm5695, %v5666, 0
  %v5724 = vsel %vm5695, %v5668, 0
  %v5726 = vsel %vm5695, %v5670, 0
  %v5728 = vsel %vm5695, %v5672, 0
  %v5730 = vsel %vm5695, %v5674, 0
  %v5732 = vsel %vm5695, %v5676, 0
  %v5734 = vsel %vm5695, %v5678, 0
  %v5736 = vsel %vm5695, %v5680, 0
  %v5738 = vsel %vm5695, %v5682, 0
  %v5740 = vsel %vm5695, %v5684, 0
  %v5742 = vsel %vm5695, %v5686, 0
  %v5744 = vsel %vm5695, %v5688, 0
  %v5746 = vsel %vm5695, %v5690, 0
  %v5748 = vsel %vm5695, %v5692, 0
  %v5750 = vsel %vm5695, %v5694, 0
  %v5752 = vsel %vm5695, %v5693, 0
  %5754 = vmatprep.subr.mxu0 0.0
  %5755 = vmatpush1.msra.mxu0 0.0
  %5756 = vmatprep.subr.mxu0 0.0
  %5757 = vmatpush1.msra.mxu0 0.0
  %5758 = vmatprep.subr.mxu0 0.0
  %5759 = vmatpush1.msra.mxu0 0.0
  %5760 = vmatprep.subr.mxu0 0.0
  %5761 = vmatpush1.msra.mxu0 0.0
  %5762 = vmatprep.subr.mxu0 0.0
  %5763 = vmatpush1.msra.mxu0 0.0
  %5764 = vmatprep.subr.mxu0 0.0
  %5765 = vmatpush1.msra.mxu0 0.0
  %5766 = vmatprep.subr.mxu0 0.0
  %5767 = vmatpush1.msra.mxu0 %v5608
  %5768 = vmatprep.subr.mxu0 0.0
  %5769 = vmatpush1.msra.mxu0 %v5607
  %5770 = vmatprep.subr.mxu0 0.0
  %5771 = vmatpush1.msra.mxu0 %v5606
  %5772 = vmatprep.subr.mxu0 0.0
  %5773 = vmatpush1.msra.mxu0 %v5605
  %5774 = vmatprep.subr.mxu0 0.0
  %5775 = vmatpush1.msra.mxu0 %v5604
  %5776 = vmatprep.subr.mxu0 0.0
  %5777 = vmatpush1.msra.mxu0 %v5603
  %5778 = vmatprep.subr.mxu0 0.0
  %5779 = vmatpush1.msra.mxu0 %v5602
  %5780 = vmatprep.subr.mxu0 0.0
  %5781 = vmatpush1.msra.mxu0 %v5601
  %5782 = vmatprep.subr.mxu0 0.0
  %5783 = vmatpush1.msra.mxu0 %v5600
  %5784 = vmatprep.subr.mxu0 0.0
  %5785 = vmatpush1.msra.mxu0 %v5599
  %5786 = vmatprep.subr.mxu0 0.0
  %5787 = vmatpush2.msra.mxu0 0.0
  %5788 = vmatprep.subr.mxu0 0.0
  %5789 = vmatpush2.msra.mxu0 0.0
  %5790 = vmatprep.subr.mxu0 0.0
  %5791 = vmatpush2.msra.mxu0 0.0
  %5792 = vmatprep.subr.mxu0 0.0
  %5793 = vmatpush2.msra.mxu0 0.0
  %5794 = vmatprep.subr.mxu0 0.0
  %5795 = vmatpush2.msra.mxu0 0.0
  %5796 = vmatprep.subr.mxu0 0.0
  %5797 = vmatpush2.msra.mxu0 0.0
  %5798 = vmatprep.subr.mxu0 0.0
  %5799 = vmatpush2.msra.mxu0 0.0
  %5800 = vmatprep.subr.mxu0 0.0
  %5801 = vmatpush2.msra.mxu0 0.0
  %5802 = vmatprep.subr.mxu0 0.0
  %5803 = vmatpush2.msra.mxu0 0.0
  %5804 = vmatprep.subr.mxu0 0.0
  %5805 = vmatpush2.msra.mxu0 0.0
  %5806 = vmatprep.subr.mxu0 0.0
  %5807 = vmatpush2.msra.mxu0 0.0
  %5808 = vmatprep.subr.mxu0 0.0
  %5809 = vmatpush2.msra.mxu0 0.0
  %5810 = vmatprep.subr.mxu0 0.0
  %5811 = vmatpush2.msra.mxu0 0.0
  %5812 = vmatprep.subr.mxu0 0.0
  %5813 = vmatpush2.msra.mxu0 0.0
  %5814 = vmatprep.subr.mxu0 0.0
  %5815 = vmatpush2.msra.mxu0 0.0
  %5816 = vmatprep.subr.mxu0 0.0
  %5817 = vmatpush2.msra.mxu0 0.0
  %5818 = vmatprep.mubr.f32.mxu0 0.0
  %5819 = vmatmul.mubr.f32.gmra.mxu0 %v5696
  %v5820 = vpop.f32.mrf.mxu0
  %v5821 = vadd.f32 0.0, %v5820
  %v5822 = vpop.f32.mrf.mxu0
  %5823 = vmatprep.mubr.f32.mxu0 0.0
  %5824 = vmatmul.mubr.f32.gmra.mxu0 %v5698
  %v5825 = vpop.f32.mrf.mxu0
  %v5826 = vadd.f32 0.0, %v5825
  %v5827 = vpop.f32.mrf.mxu0
  %5828 = vmatprep.mubr.f32.mxu0 0.0
  %5829 = vmatmul.mubr.f32.gmra.mxu0 %v5700
  %v5830 = vpop.f32.mrf.mxu0
  %v5831 = vadd.f32 0.0, %v5830
  %v5832 = vpop.f32.mrf.mxu0
  %5833 = vmatprep.mubr.f32.mxu0 0.0
  %5834 = vmatmul.mubr.f32.gmra.mxu0 %v5702
  %v5835 = vpop.f32.mrf.mxu0
  %v5836 = vadd.f32 0.0, %v5835
  %v5837 = vpop.f32.mrf.mxu0
  %5838 = vmatprep.mubr.f32.mxu0 0.0
  %5839 = vmatmul.mubr.f32.gmra.mxu0 %v5704
  %v5840 = vpop.f32.mrf.mxu0
  %v5841 = vadd.f32 0.0, %v5840
  %v5842 = vpop.f32.mrf.mxu0
  %5843 = vmatprep.mubr.f32.mxu0 0.0
  %5844 = vmatmul.mubr.f32.gmra.mxu0 %v5706
  %v5845 = vpop.f32.mrf.mxu0
  %v5846 = vadd.f32 0.0, %v5845
  %v5847 = vpop.f32.mrf.mxu0
  %5848 = vmatprep.mubr.f32.mxu0 0.0
  %5849 = vmatmul.mubr.f32.gmra.mxu0 %v5708
  %v5850 = vpop.f32.mrf.mxu0
  %v5851 = vadd.f32 0.0, %v5850
  %v5852 = vpop.f32.mrf.mxu0
  %5853 = vmatprep.mubr.f32.mxu0 0.0
  %5854 = vmatmul.mubr.f32.gmra.mxu0 %v5710
  %v5855 = vpop.f32.mrf.mxu0
  %v5856 = vadd.f32 0.0, %v5855
  %v5857 = vpop.f32.mrf.mxu0
  %5858 = vmatprep.mubr.f32.mxu0 0.0
  %5859 = vmatmul.mubr.f32.gmra.mxu0 %v5712
  %v5860 = vpop.f32.mrf.mxu0
  %v5861 = vadd.f32 0.0, %v5860
  %v5862 = vpop.f32.mrf.mxu0
  %5863 = vmatprep.mubr.f32.mxu0 0.0
  %5864 = vmatmul.mubr.f32.gmra.mxu0 %v5714
  %v5865 = vpop.f32.mrf.mxu0
  %v5866 = vadd.f32 0.0, %v5865
  %v5867 = vpop.f32.mrf.mxu0
  %5868 = vmatprep.mubr.f32.mxu0 0.0
  %5869 = vmatmul.mubr.f32.gmra.mxu0 %v5716
  %v5870 = vpop.f32.mrf.mxu0
  %v5871 = vadd.f32 0.0, %v5870
  %v5872 = vpop.f32.mrf.mxu0
  %5873 = vmatprep.mubr.f32.mxu0 0.0
  %5874 = vmatmul.mubr.f32.gmra.mxu0 %v5718
  %v5875 = vpop.f32.mrf.mxu0
  %v5876 = vadd.f32 0.0, %v5875
  %v5877 = vpop.f32.mrf.mxu0
  %5878 = vmatprep.mubr.f32.mxu0 0.0
  %5879 = vmatmul.mubr.f32.gmra.mxu0 %v5720
  %v5880 = vpop.f32.mrf.mxu0
  %v5881 = vadd.f32 0.0, %v5880
  %v5882 = vpop.f32.mrf.mxu0
  %5883 = vmatprep.mubr.f32.mxu0 0.0
  %5884 = vmatmul.mubr.f32.gmra.mxu0 %v5722
  %v5885 = vpop.f32.mrf.mxu0
  %v5886 = vadd.f32 0.0, %v5885
  %v5887 = vpop.f32.mrf.mxu0
  %5888 = vmatprep.mubr.f32.mxu0 0.0
  %5889 = vmatmul.mubr.f32.gmra.mxu0 %v5724
  %v5890 = vpop.f32.mrf.mxu0
  %v5891 = vadd.f32 0.0, %v5890
  %v5892 = vpop.f32.mrf.mxu0
  %5893 = vmatprep.mubr.f32.mxu0 0.0
  %5894 = vmatmul.mubr.f32.gmra.mxu0 %v5726
  %v5895 = vpop.f32.mrf.mxu0
  %v5896 = vadd.f32 0.0, %v5895
  %v5897 = vpop.f32.mrf.mxu0
  %5898 = vmatprep.mubr.f32.mxu0 0.0
  %5899 = vmatmul.mubr.f32.gmra.mxu0 %v5728
  %v5900 = vpop.f32.mrf.mxu0
  %v5901 = vadd.f32 0.0, %v5900
  %v5902 = vpop.f32.mrf.mxu0
  %5903 = vmatprep.mubr.f32.mxu0 0.0
  %5904 = vmatmul.mubr.f32.gmra.mxu0 %v5730
  %v5905 = vpop.f32.mrf.mxu0
  %v5906 = vadd.f32 0.0, %v5905
  %v5907 = vpop.f32.mrf.mxu0
  %5908 = vmatprep.mubr.f32.mxu0 0.0
  %5909 = vmatmul.mubr.f32.gmra.mxu0 %v5732
  %v5910 = vpop.f32.mrf.mxu0
  %v5911 = vadd.f32 0.0, %v5910
  %v5912 = vpop.f32.mrf.mxu0
  %5913 = vmatprep.mubr.f32.mxu0 0.0
  %5914 = vmatmul.mubr.f32.gmra.mxu0 %v5734
  %v5915 = vpop.f32.mrf.mxu0
  %v5916 = vadd.f32 0.0, %v5915
  %v5917 = vpop.f32.mrf.mxu0
  %5918 = vmatprep.mubr.f32.mxu0 0.0
  %5919 = vmatmul.mubr.f32.gmra.mxu0 %v5736
  %v5920 = vpop.f32.mrf.mxu0
  %v5921 = vadd.f32 0.0, %v5920
  %v5922 = vpop.f32.mrf.mxu0
  %5923 = vmatprep.mubr.f32.mxu0 0.0
  %5924 = vmatmul.mubr.f32.gmra.mxu0 %v5738
  %v5925 = vpop.f32.mrf.mxu0
  %v5926 = vadd.f32 0.0, %v5925
  %v5927 = vpop.f32.mrf.mxu0
  %5928 = vmatprep.mubr.f32.mxu0 0.0
  %5929 = vmatmul.mubr.f32.gmra.mxu0 %v5740
  %v5930 = vpop.f32.mrf.mxu0
  %v5931 = vadd.f32 0.0, %v5930
  %v5932 = vpop.f32.mrf.mxu0
  %5933 = vmatprep.mubr.f32.mxu0 0.0
  %5934 = vmatmul.mubr.f32.gmra.mxu0 %v5742
  %v5935 = vpop.f32.mrf.mxu0
  %v5936 = vadd.f32 0.0, %v5935
  %v5937 = vpop.f32.mrf.mxu0
  %5938 = vmatprep.mubr.f32.mxu0 0.0
  %5939 = vmatmul.mubr.f32.gmra.mxu0 %v5744
  %v5940 = vpop.f32.mrf.mxu0
  %v5941 = vadd.f32 0.0, %v5940
  %v5942 = vpop.f32.mrf.mxu0
  %5943 = vmatprep.mubr.f32.mxu0 0.0
  %5944 = vmatmul.mubr.f32.gmra.mxu0 %v5746
  %v5945 = vpop.f32.mrf.mxu0
  %v5946 = vadd.f32 0.0, %v5945
  %v5947 = vpop.f32.mrf.mxu0
  %5948 = vmatprep.mubr.f32.mxu0 0.0
  %5949 = vmatmul.mubr.f32.gmra.mxu0 %v5748
  %v5950 = vpop.f32.mrf.mxu0
  %v5951 = vadd.f32 0.0, %v5950
  %v5952 = vpop.f32.mrf.mxu0
  %5953 = vmatprep.mubr.f32.mxu0 0.0
  %5954 = vmatmul.mubr.f32.gmra.mxu0 %v5750
  %v5955 = vpop.f32.mrf.mxu0
  %v5956 = vadd.f32 0.0, %v5955
  %v5957 = vpop.f32.mrf.mxu0
  %5958 = vmatprep.mubr.f32.mxu0 0.0
  %5959 = vmatmul.mubr.f32.gmra.mxu0 %v5752
  %v5960 = vpop.f32.mrf.mxu0
  %v5961 = vadd.f32 0.0, %v5960
  %v5962 = vpop.f32.mrf.mxu0
  %5963 = vdwg.mxu0
  %v5964 = vsel %vm5695, %v5557, 0
  %v5966 = vsel %vm5695, %v5558, 0
  %v5968 = vsel %vm5695, %v5559, 0
  %v5970 = vsel %vm5695, %v5560, 0
  %v5972 = vsel %vm5695, %v5561, 0
  %v5974 = vsel %vm5695, %v5562, 0
  %v5976 = vsel %vm5695, %v5563, 0
  %v5978 = vsel %vm5695, %v5564, 0
  %v5980 = vsel %vm5695, %v5565, 0
  %v5982 = vsel %vm5695, %v5566, 0
  %v5984 = vsel %vm5695, %v5567, 0
  %v5986 = vsel %vm5695, %v5568, 0
  %v5988 = vsel %vm5695, %v5569, 0
  %v5990 = vsel %vm5695, %v5570, 0
  %v5992 = vsel %vm5695, %v5571, 0
  %v5994 = vsel %vm5695, %v5572, 0
  %v5996 = vsel %vm5695, %v5573, 0
  %v5998 = vsel %vm5695, %v5574, 0
  %v6000 = vsel %vm5695, %v5575, 0
  %v6002 = vsel %vm5695, %v5576, 0
  %v6004 = vsel %vm5695, %v5577, 0
  %v6006 = vsel %vm5695, %v5578, 0
  %v6008 = vsel %vm5695, %v5579, 0
  %v6010 = vsel %vm5695, %v5580, 0
  %v6012 = vsel %vm5695, %v5581, 0
  %v6014 = vsel %vm5695, %v5582, 0
  %v6016 = vsel %vm5695, %v5583, 0
  %v6018 = vsel %vm5695, %v5584, 0
  %v6020 = vsel %vm5695, %v5585, 0
  %6022 = vmatprep.subr.mxu0 0.0
  %6023 = vmatpush1.msra.mxu0 0.0
  %6024 = vmatprep.subr.mxu0 0.0
  %6025 = vmatpush1.msra.mxu0 0.0
  %6026 = vmatprep.subr.mxu0 0.0
  %6027 = vmatpush1.msra.mxu0 0.0
  %6028 = vmatprep.subr.mxu0 0.0
  %6029 = vmatpush1.msra.mxu0 0.0
  %6030 = vmatprep.subr.mxu0 0.0
  %6031 = vmatpush1.msra.mxu0 0.0
  %6032 = vmatprep.subr.mxu0 0.0
  %6033 = vmatpush1.msra.mxu0 0.0
  %6034 = vmatprep.subr.mxu0 0.0
  %6035 = vmatpush1.msra.mxu0 %v5597
  %6036 = vmatprep.subr.mxu0 0.0
  %6037 = vmatpush1.msra.mxu0 %v5596
  %6038 = vmatprep.subr.mxu0 0.0
  %6039 = vmatpush1.msra.mxu0 %v5595
  %6040 = vmatprep.subr.mxu0 0.0
  %6041 = vmatpush1.msra.mxu0 %v5594
  %6042 = vmatprep.subr.mxu0 0.0
  %6043 = vmatpush1.msra.mxu0 %v5593
  %6044 = vmatprep.subr.mxu0 0.0
  %6045 = vmatpush1.msra.mxu0 %v5592
  %6046 = vmatprep.subr.mxu0 0.0
  %6047 = vmatpush1.msra.mxu0 %v5591
  %6048 = vmatprep.subr.mxu0 0.0
  %6049 = vmatpush1.msra.mxu0 %v5590
  %6050 = vmatprep.subr.mxu0 0.0
  %6051 = vmatpush1.msra.mxu0 %v5589
  %6052 = vmatprep.subr.mxu0 0.0
  %6053 = vmatpush1.msra.mxu0 %v5588
  %6054 = vmatprep.subr.mxu0 0.0
  %6055 = vmatpush2.msra.mxu0 0.0
  %6056 = vmatprep.subr.mxu0 0.0
  %6057 = vmatpush2.msra.mxu0 0.0
  %6058 = vmatprep.subr.mxu0 0.0
  %6059 = vmatpush2.msra.mxu0 0.0
  %6060 = vmatprep.subr.mxu0 0.0
  %6061 = vmatpush2.msra.mxu0 0.0
  %6062 = vmatprep.subr.mxu0 0.0
  %6063 = vmatpush2.msra.mxu0 0.0
  %6064 = vmatprep.subr.mxu0 0.0
  %6065 = vmatpush2.msra.mxu0 0.0
  %6066 = vmatprep.subr.mxu0 0.0
  %6067 = vmatpush2.msra.mxu0 0.0
  %6068 = vmatprep.subr.mxu0 0.0
  %6069 = vmatpush2.msra.mxu0 0.0
  %6070 = vmatprep.subr.mxu0 0.0
  %6071 = vmatpush2.msra.mxu0 0.0
  %6072 = vmatprep.subr.mxu0 0.0
  %6073 = vmatpush2.msra.mxu0 0.0
  %6074 = vmatprep.subr.mxu0 0.0
  %6075 = vmatpush2.msra.mxu0 0.0
  %6076 = vmatprep.subr.mxu0 0.0
  %6077 = vmatpush2.msra.mxu0 0.0
  %6078 = vmatprep.subr.mxu0 0.0
  %6079 = vmatpush2.msra.mxu0 0.0
  %6080 = vmatprep.subr.mxu0 0.0
  %6081 = vmatpush2.msra.mxu0 0.0
  %6082 = vmatprep.subr.mxu0 0.0
  %6083 = vmatpush2.msra.mxu0 0.0
  %6084 = vmatprep.subr.mxu0 0.0
  %6085 = vmatpush2.msra.mxu0 0.0
  %6086 = vmatprep.mubr.f32.mxu0 0.0
  %6087 = vmatmul.mubr.f32.gmra.mxu0 %v5964
  %v6088 = vpop.f32.mrf.mxu0
  %v6089 = vadd.f32 %v5821, %v6088
  %v6090 = vpop.f32.mrf.mxu0
  %6091 = vmatprep.mubr.f32.mxu0 0.0
  %6092 = vmatmul.mubr.f32.gmra.mxu0 %v5966
  %v6093 = vpop.f32.mrf.mxu0
  %v6094 = vadd.f32 %v5826, %v6093
  %v6095 = vpop.f32.mrf.mxu0
  %6096 = vmatprep.mubr.f32.mxu0 0.0
  %6097 = vmatmul.mubr.f32.gmra.mxu0 %v5968
  %v6098 = vpop.f32.mrf.mxu0
  %v6099 = vadd.f32 %v5831, %v6098
  %v6100 = vpop.f32.mrf.mxu0
  %6101 = vmatprep.mubr.f32.mxu0 0.0
  %6102 = vmatmul.mubr.f32.gmra.mxu0 %v5970
  %v6103 = vpop.f32.mrf.mxu0
  %v6104 = vadd.f32 %v5836, %v6103
  %v6105 = vpop.f32.mrf.mxu0
  %6106 = vmatprep.mubr.f32.mxu0 0.0
  %6107 = vmatmul.mubr.f32.gmra.mxu0 %v5972
  %v6108 = vpop.f32.mrf.mxu0
  %v6109 = vadd.f32 %v5841, %v6108
  %v6110 = vpop.f32.mrf.mxu0
  %6111 = vmatprep.mubr.f32.mxu0 0.0
  %6112 = vmatmul.mubr.f32.gmra.mxu0 %v5974
  %v6113 = vpop.f32.mrf.mxu0
  %v6114 = vadd.f32 %v5846, %v6113
  %v6115 = vpop.f32.mrf.mxu0
  %6116 = vmatprep.mubr.f32.mxu0 0.0
  %6117 = vmatmul.mubr.f32.gmra.mxu0 %v5976
  %v6118 = vpop.f32.mrf.mxu0
  %v6119 = vadd.f32 %v5851, %v6118
  %v6120 = vpop.f32.mrf.mxu0
  %6121 = vmatprep.mubr.f32.mxu0 0.0
  %6122 = vmatmul.mubr.f32.gmra.mxu0 %v5978
  %v6123 = vpop.f32.mrf.mxu0
  %v6124 = vadd.f32 %v5856, %v6123
  %v6125 = vpop.f32.mrf.mxu0
  %6126 = vmatprep.mubr.f32.mxu0 0.0
  %6127 = vmatmul.mubr.f32.gmra.mxu0 %v5980
  %v6128 = vpop.f32.mrf.mxu0
  %v6129 = vadd.f32 %v5861, %v6128
  %v6130 = vpop.f32.mrf.mxu0
  %6131 = vmatprep.mubr.f32.mxu0 0.0
  %6132 = vmatmul.mubr.f32.gmra.mxu0 %v5982
  %v6133 = vpop.f32.mrf.mxu0
  %v6134 = vadd.f32 %v5866, %v6133
  %v6135 = vpop.f32.mrf.mxu0
  %6136 = vmatprep.mubr.f32.mxu0 0.0
  %6137 = vmatmul.mubr.f32.gmra.mxu0 %v5984
  %v6138 = vpop.f32.mrf.mxu0
  %v6139 = vadd.f32 %v5871, %v6138
  %v6140 = vpop.f32.mrf.mxu0
  %6141 = vmatprep.mubr.f32.mxu0 0.0
  %6142 = vmatmul.mubr.f32.gmra.mxu0 %v5986
  %v6143 = vpop.f32.mrf.mxu0
  %v6144 = vadd.f32 %v5876, %v6143
  %v6145 = vpop.f32.mrf.mxu0
  %6146 = vmatprep.mubr.f32.mxu0 0.0
  %6147 = vmatmul.mubr.f32.gmra.mxu0 %v5988
  %v6148 = vpop.f32.mrf.mxu0
  %v6149 = vadd.f32 %v5881, %v6148
  %v6150 = vpop.f32.mrf.mxu0
  %6151 = vmatprep.mubr.f32.mxu0 0.0
  %6152 = vmatmul.mubr.f32.gmra.mxu0 %v5990
  %v6153 = vpop.f32.mrf.mxu0
  %v6154 = vadd.f32 %v5886, %v6153
  %v6155 = vpop.f32.mrf.mxu0
  %6156 = vmatprep.mubr.f32.mxu0 0.0
  %6157 = vmatmul.mubr.f32.gmra.mxu0 %v5992
  %v6158 = vpop.f32.mrf.mxu0
  %v6159 = vadd.f32 %v5891, %v6158
  %v6160 = vpop.f32.mrf.mxu0
  %6161 = vmatprep.mubr.f32.mxu0 0.0
  %6162 = vmatmul.mubr.f32.gmra.mxu0 %v5994
  %v6163 = vpop.f32.mrf.mxu0
  %v6164 = vadd.f32 %v5896, %v6163
  %v6165 = vpop.f32.mrf.mxu0
  %6166 = vmatprep.mubr.f32.mxu0 0.0
  %6167 = vmatmul.mubr.f32.gmra.mxu0 %v5996
  %v6168 = vpop.f32.mrf.mxu0
  %v6169 = vadd.f32 %v5901, %v6168
  %v6170 = vpop.f32.mrf.mxu0
  %6171 = vmatprep.mubr.f32.mxu0 0.0
  %6172 = vmatmul.mubr.f32.gmra.mxu0 %v5998
  %v6173 = vpop.f32.mrf.mxu0
  %v6174 = vadd.f32 %v5906, %v6173
  %v6175 = vpop.f32.mrf.mxu0
  %6176 = vmatprep.mubr.f32.mxu0 0.0
  %6177 = vmatmul.mubr.f32.gmra.mxu0 %v6000
  %v6178 = vpop.f32.mrf.mxu0
  %v6179 = vadd.f32 %v5911, %v6178
  %v6180 = vpop.f32.mrf.mxu0
  %6181 = vmatprep.mubr.f32.mxu0 0.0
  %6182 = vmatmul.mubr.f32.gmra.mxu0 %v6002
  %v6183 = vpop.f32.mrf.mxu0
  %v6184 = vadd.f32 %v5916, %v6183
  %v6185 = vpop.f32.mrf.mxu0
  %6186 = vmatprep.mubr.f32.mxu0 0.0
  %6187 = vmatmul.mubr.f32.gmra.mxu0 %v6004
  %v6188 = vpop.f32.mrf.mxu0
  %v6189 = vadd.f32 %v5921, %v6188
  %v6190 = vpop.f32.mrf.mxu0
  %6191 = vmatprep.mubr.f32.mxu0 0.0
  %6192 = vmatmul.mubr.f32.gmra.mxu0 %v6006
  %v6193 = vpop.f32.mrf.mxu0
  %v6194 = vadd.f32 %v5926, %v6193
  %v6195 = vpop.f32.mrf.mxu0
  %6196 = vmatprep.mubr.f32.mxu0 0.0
  %6197 = vmatmul.mubr.f32.gmra.mxu0 %v6008
  %v6198 = vpop.f32.mrf.mxu0
  %v6199 = vadd.f32 %v5931, %v6198
  %v6200 = vpop.f32.mrf.mxu0
  %6201 = vmatprep.mubr.f32.mxu0 0.0
  %6202 = vmatmul.mubr.f32.gmra.mxu0 %v6010
  %v6203 = vpop.f32.mrf.mxu0
  %v6204 = vadd.f32 %v5936, %v6203
  %v6205 = vpop.f32.mrf.mxu0
  %6206 = vmatprep.mubr.f32.mxu0 0.0
  %6207 = vmatmul.mubr.f32.gmra.mxu0 %v6012
  %v6208 = vpop.f32.mrf.mxu0
  %v6209 = vadd.f32 %v5941, %v6208
  %v6210 = vpop.f32.mrf.mxu0
  %6211 = vmatprep.mubr.f32.mxu0 0.0
  %6212 = vmatmul.mubr.f32.gmra.mxu0 %v6014
  %v6213 = vpop.f32.mrf.mxu0
  %v6214 = vadd.f32 %v5946, %v6213
  %v6215 = vpop.f32.mrf.mxu0
  %6216 = vmatprep.mubr.f32.mxu0 0.0
  %6217 = vmatmul.mubr.f32.gmra.mxu0 %v6016
  %v6218 = vpop.f32.mrf.mxu0
  %v6219 = vadd.f32 %v5951, %v6218
  %v6220 = vpop.f32.mrf.mxu0
  %6221 = vmatprep.mubr.f32.mxu0 0.0
  %6222 = vmatmul.mubr.f32.gmra.mxu0 %v6018
  %v6223 = vpop.f32.mrf.mxu0
  %v6224 = vadd.f32 %v5956, %v6223
  %v6225 = vpop.f32.mrf.mxu0
  %6226 = vmatprep.mubr.f32.mxu0 0.0
  %6227 = vmatmul.mubr.f32.gmra.mxu0 %v6020
  %v6228 = vpop.f32.mrf.mxu0
  %v6229 = vadd.f32 %v5961, %v6228
  %v6230 = vpop.f32.mrf.mxu0
  %6231 = vdwg.mxu0
  %s6232 = scalar_lea.vmem %s7, 160
  %v6233 = vld [vmem:[%s6232] sm:$0xff]
  %v6234 = vld [vmem:[%s6232 + $0x8] sm:$0xff]
  %v6235 = vld [vmem:[%s6232 + $0x10] sm:$0xff]
  %v6236 = vld [vmem:[%s6232 + $0x18] sm:$0xff]
  %v6237 = vld [vmem:[%s6232 + $0x20] sm:$0xff]
  %v6238 = vld [vmem:[%s6232 + $0x28] sm:$0xff]
  %v6239 = vld [vmem:[%s6232 + $0x30] sm:$0xff]
  %v6240 = vld [vmem:[%s6232 + $0x38] sm:$0xff]
  %v6241 = vld [vmem:[%s6232 + $0x40] sm:$0xff]
  %v6242 = vld [vmem:[%s6232 + $0x48] sm:$0xff]
  %v6244 = vsel %vm5695, %v5586, 0
  %6246 = vmatprep.subr.mxu0 0.0
  %6247 = vmatpush1.msra.mxu0 0.0
  %6248 = vmatprep.subr.mxu0 0.0
  %6249 = vmatpush1.msra.mxu0 0.0
  %6250 = vmatprep.subr.mxu0 0.0
  %6251 = vmatpush1.msra.mxu0 0.0
  %6252 = vmatprep.subr.mxu0 0.0
  %6253 = vmatpush1.msra.mxu0 0.0
  %6254 = vmatprep.subr.mxu0 0.0
  %6255 = vmatpush1.msra.mxu0 0.0
  %6256 = vmatprep.subr.mxu0 0.0
  %6257 = vmatpush1.msra.mxu0 0.0
  %6258 = vmatprep.subr.mxu0 0.0
  %6259 = vmatpush1.msra.mxu0 %v6242
  %6260 = vmatprep.subr.mxu0 0.0
  %6261 = vmatpush1.msra.mxu0 %v6241
  %6262 = vmatprep.subr.mxu0 0.0
  %6263 = vmatpush1.msra.mxu0 %v6240
  %6264 = vmatprep.subr.mxu0 0.0
  %6265 = vmatpush1.msra.mxu0 %v6239
  %6266 = vmatprep.subr.mxu0 0.0
  %6267 = vmatpush1.msra.mxu0 %v6238
  %6268 = vmatprep.subr.mxu0 0.0
  %6269 = vmatpush1.msra.mxu0 %v6237
  %6270 = vmatprep.subr.mxu0 0.0
  %6271 = vmatpush1.msra.mxu0 %v6236
  %6272 = vmatprep.subr.mxu0 0.0
  %6273 = vmatpush1.msra.mxu0 %v6235
  %6274 = vmatprep.subr.mxu0 0.0
  %6275 = vmatpush1.msra.mxu0 %v6234
  %6276 = vmatprep.subr.mxu0 0.0
  %6277 = vmatpush1.msra.mxu0 %v6233
  %6278 = vmatprep.subr.mxu0 0.0
  %6279 = vmatpush2.msra.mxu0 0.0
  %6280 = vmatprep.subr.mxu0 0.0
  %6281 = vmatpush2.msra.mxu0 0.0
  %6282 = vmatprep.subr.mxu0 0.0
  %6283 = vmatpush2.msra.mxu0 0.0
  %6284 = vmatprep.subr.mxu0 0.0
  %6285 = vmatpush2.msra.mxu0 0.0
  %6286 = vmatprep.subr.mxu0 0.0
  %6287 = vmatpush2.msra.mxu0 0.0
  %6288 = vmatprep.subr.mxu0 0.0
  %6289 = vmatpush2.msra.mxu0 0.0
  %6290 = vmatprep.subr.mxu0 0.0
  %6291 = vmatpush2.msra.mxu0 0.0
  %6292 = vmatprep.subr.mxu0 0.0
  %6293 = vmatpush2.msra.mxu0 0.0
  %6294 = vmatprep.subr.mxu0 0.0
  %6295 = vmatpush2.msra.mxu0 0.0
  %6296 = vmatprep.subr.mxu0 0.0
  %6297 = vmatpush2.msra.mxu0 0.0
  %6298 = vmatprep.subr.mxu0 0.0
  %6299 = vmatpush2.msra.mxu0 0.0
  %6300 = vmatprep.subr.mxu0 0.0
  %6301 = vmatpush2.msra.mxu0 0.0
  %6302 = vmatprep.subr.mxu0 0.0
  %6303 = vmatpush2.msra.mxu0 0.0
  %6304 = vmatprep.subr.mxu0 0.0
  %6305 = vmatpush2.msra.mxu0 0.0
  %6306 = vmatprep.subr.mxu0 0.0
  %6307 = vmatpush2.msra.mxu0 0.0
  %6308 = vmatprep.subr.mxu0 0.0
  %6309 = vmatpush2.msra.mxu0 0.0
  %6310 = vmatprep.mubr.f32.mxu0 0.0
  %6311 = vmatmul.mubr.f32.gmra.mxu0 %v5966
  %v6312 = vpop.f32.mrf.mxu0
  %v6313 = vadd.f32 0.0, %v6312
  %v6314 = vpop.f32.mrf.mxu0
  %6315 = vmatprep.mubr.f32.mxu0 0.0
  %6316 = vmatmul.mubr.f32.gmra.mxu0 %v5968
  %v6317 = vpop.f32.mrf.mxu0
  %v6318 = vadd.f32 0.0, %v6317
  %v6319 = vpop.f32.mrf.mxu0
  %6320 = vmatprep.mubr.f32.mxu0 0.0
  %6321 = vmatmul.mubr.f32.gmra.mxu0 %v5970
  %v6322 = vpop.f32.mrf.mxu0
  %v6323 = vadd.f32 0.0, %v6322
  %v6324 = vpop.f32.mrf.mxu0
  %6325 = vmatprep.mubr.f32.mxu0 0.0
  %6326 = vmatmul.mubr.f32.gmra.mxu0 %v5972
  %v6327 = vpop.f32.mrf.mxu0
  %v6328 = vadd.f32 0.0, %v6327
  %v6329 = vpop.f32.mrf.mxu0
  %6330 = vmatprep.mubr.f32.mxu0 0.0
  %6331 = vmatmul.mubr.f32.gmra.mxu0 %v5974
  %v6332 = vpop.f32.mrf.mxu0
  %v6333 = vadd.f32 0.0, %v6332
  %v6334 = vpop.f32.mrf.mxu0
  %6335 = vmatprep.mubr.f32.mxu0 0.0
  %6336 = vmatmul.mubr.f32.gmra.mxu0 %v5976
  %v6337 = vpop.f32.mrf.mxu0
  %v6338 = vadd.f32 0.0, %v6337
  %v6339 = vpop.f32.mrf.mxu0
  %6340 = vmatprep.mubr.f32.mxu0 0.0
  %6341 = vmatmul.mubr.f32.gmra.mxu0 %v5978
  %v6342 = vpop.f32.mrf.mxu0
  %v6343 = vadd.f32 0.0, %v6342
  %v6344 = vpop.f32.mrf.mxu0
  %6345 = vmatprep.mubr.f32.mxu0 0.0
  %6346 = vmatmul.mubr.f32.gmra.mxu0 %v5980
  %v6347 = vpop.f32.mrf.mxu0
  %v6348 = vadd.f32 0.0, %v6347
  %v6349 = vpop.f32.mrf.mxu0
  %6350 = vmatprep.mubr.f32.mxu0 0.0
  %6351 = vmatmul.mubr.f32.gmra.mxu0 %v5982
  %v6352 = vpop.f32.mrf.mxu0
  %v6353 = vadd.f32 0.0, %v6352
  %v6354 = vpop.f32.mrf.mxu0
  %6355 = vmatprep.mubr.f32.mxu0 0.0
  %6356 = vmatmul.mubr.f32.gmra.mxu0 %v5984
  %v6357 = vpop.f32.mrf.mxu0
  %v6358 = vadd.f32 0.0, %v6357
  %v6359 = vpop.f32.mrf.mxu0
  %6360 = vmatprep.mubr.f32.mxu0 0.0
  %6361 = vmatmul.mubr.f32.gmra.mxu0 %v5986
  %v6362 = vpop.f32.mrf.mxu0
  %v6363 = vadd.f32 0.0, %v6362
  %v6364 = vpop.f32.mrf.mxu0
  %6365 = vmatprep.mubr.f32.mxu0 0.0
  %6366 = vmatmul.mubr.f32.gmra.mxu0 %v5988
  %v6367 = vpop.f32.mrf.mxu0
  %v6368 = vadd.f32 0.0, %v6367
  %v6369 = vpop.f32.mrf.mxu0
  %6370 = vmatprep.mubr.f32.mxu0 0.0
  %6371 = vmatmul.mubr.f32.gmra.mxu0 %v5990
  %v6372 = vpop.f32.mrf.mxu0
  %v6373 = vadd.f32 0.0, %v6372
  %v6374 = vpop.f32.mrf.mxu0
  %6375 = vmatprep.mubr.f32.mxu0 0.0
  %6376 = vmatmul.mubr.f32.gmra.mxu0 %v5992
  %v6377 = vpop.f32.mrf.mxu0
  %v6378 = vadd.f32 0.0, %v6377
  %v6379 = vpop.f32.mrf.mxu0
  %6380 = vmatprep.mubr.f32.mxu0 0.0
  %6381 = vmatmul.mubr.f32.gmra.mxu0 %v5994
  %v6382 = vpop.f32.mrf.mxu0
  %v6383 = vadd.f32 0.0, %v6382
  %v6384 = vpop.f32.mrf.mxu0
  %6385 = vmatprep.mubr.f32.mxu0 0.0
  %6386 = vmatmul.mubr.f32.gmra.mxu0 %v5996
  %v6387 = vpop.f32.mrf.mxu0
  %v6388 = vadd.f32 0.0, %v6387
  %v6389 = vpop.f32.mrf.mxu0
  %6390 = vmatprep.mubr.f32.mxu0 0.0
  %6391 = vmatmul.mubr.f32.gmra.mxu0 %v5998
  %v6392 = vpop.f32.mrf.mxu0
  %v6393 = vadd.f32 0.0, %v6392
  %v6394 = vpop.f32.mrf.mxu0
  %6395 = vmatprep.mubr.f32.mxu0 0.0
  %6396 = vmatmul.mubr.f32.gmra.mxu0 %v6000
  %v6397 = vpop.f32.mrf.mxu0
  %v6398 = vadd.f32 0.0, %v6397
  %v6399 = vpop.f32.mrf.mxu0
  %6400 = vmatprep.mubr.f32.mxu0 0.0
  %6401 = vmatmul.mubr.f32.gmra.mxu0 %v6002
  %v6402 = vpop.f32.mrf.mxu0
  %v6403 = vadd.f32 0.0, %v6402
  %v6404 = vpop.f32.mrf.mxu0
  %6405 = vmatprep.mubr.f32.mxu0 0.0
  %6406 = vmatmul.mubr.f32.gmra.mxu0 %v6004
  %v6407 = vpop.f32.mrf.mxu0
  %v6408 = vadd.f32 0.0, %v6407
  %v6409 = vpop.f32.mrf.mxu0
  %6410 = vmatprep.mubr.f32.mxu0 0.0
  %6411 = vmatmul.mubr.f32.gmra.mxu0 %v6006
  %v6412 = vpop.f32.mrf.mxu0
  %v6413 = vadd.f32 0.0, %v6412
  %v6414 = vpop.f32.mrf.mxu0
  %6415 = vmatprep.mubr.f32.mxu0 0.0
  %6416 = vmatmul.mubr.f32.gmra.mxu0 %v6008
  %v6417 = vpop.f32.mrf.mxu0
  %v6418 = vadd.f32 0.0, %v6417
  %v6419 = vpop.f32.mrf.mxu0
  %6420 = vmatprep.mubr.f32.mxu0 0.0
  %6421 = vmatmul.mubr.f32.gmra.mxu0 %v6010
  %v6422 = vpop.f32.mrf.mxu0
  %v6423 = vadd.f32 0.0, %v6422
  %v6424 = vpop.f32.mrf.mxu0
  %6425 = vmatprep.mubr.f32.mxu0 0.0
  %6426 = vmatmul.mubr.f32.gmra.mxu0 %v6012
  %v6427 = vpop.f32.mrf.mxu0
  %v6428 = vadd.f32 0.0, %v6427
  %v6429 = vpop.f32.mrf.mxu0
  %6430 = vmatprep.mubr.f32.mxu0 0.0
  %6431 = vmatmul.mubr.f32.gmra.mxu0 %v6014
  %v6432 = vpop.f32.mrf.mxu0
  %v6433 = vadd.f32 0.0, %v6432
  %v6434 = vpop.f32.mrf.mxu0
  %6435 = vmatprep.mubr.f32.mxu0 0.0
  %6436 = vmatmul.mubr.f32.gmra.mxu0 %v6016
  %v6437 = vpop.f32.mrf.mxu0
  %v6438 = vadd.f32 0.0, %v6437
  %v6439 = vpop.f32.mrf.mxu0
  %6440 = vmatprep.mubr.f32.mxu0 0.0
  %6441 = vmatmul.mubr.f32.gmra.mxu0 %v6018
  %v6442 = vpop.f32.mrf.mxu0
  %v6443 = vadd.f32 0.0, %v6442
  %v6444 = vpop.f32.mrf.mxu0
  %6445 = vmatprep.mubr.f32.mxu0 0.0
  %6446 = vmatmul.mubr.f32.gmra.mxu0 %v6020
  %v6447 = vpop.f32.mrf.mxu0
  %v6448 = vadd.f32 0.0, %v6447
  %v6449 = vpop.f32.mrf.mxu0
  %6450 = vmatprep.mubr.f32.mxu0 0.0
  %6451 = vmatmul.mubr.f32.gmra.mxu0 %v6244
  %v6452 = vpop.f32.mrf.mxu0
  %v6453 = vadd.f32 0.0, %v6452
  %v6454 = vpop.f32.mrf.mxu0
  %6455 = vdwg.mxu0
  %v6456 = vadd.f32 %v6089, %v6313
  %v6457 = vadd.f32 %v6094, %v6318
  %v6458 = vadd.f32 %v6099, %v6323
  %v6459 = vadd.f32 %v6104, %v6328
  %v6460 = vadd.f32 %v6109, %v6333
  %v6461 = vadd.f32 %v6114, %v6338
  %v6462 = vadd.f32 %v6119, %v6343
  %v6463 = vadd.f32 %v6124, %v6348
  %v6464 = vadd.f32 %v6129, %v6353
  %v6465 = vadd.f32 %v6134, %v6358
  %v6466 = vadd.f32 %v6139, %v6363
  %v6467 = vadd.f32 %v6144, %v6368
  %v6468 = vadd.f32 %v6149, %v6373
  %v6469 = vadd.f32 %v6154, %v6378
  %v6470 = vadd.f32 %v6159, %v6383
  %v6471 = vadd.f32 %v6164, %v6388
  %v6472 = vadd.f32 %v6169, %v6393
  %v6473 = vadd.f32 %v6174, %v6398
  %v6474 = vadd.f32 %v6179, %v6403
  %v6475 = vadd.f32 %v6184, %v6408
  %v6476 = vadd.f32 %v6189, %v6413
  %v6477 = vadd.f32 %v6194, %v6418
  %v6478 = vadd.f32 %v6199, %v6423
  %v6479 = vadd.f32 %v6204, %v6428
  %v6480 = vadd.f32 %v6209, %v6433
  %v6481 = vadd.f32 %v6214, %v6438
  %v6482 = vadd.f32 %v6219, %v6443
  %v6483 = vadd.f32 %v6224, %v6448
  %v6484 = vadd.f32 %v6229, %v6453
  %s6485 = scalar_lea.vmem %s7, 240
  %v6486 = vld [vmem:[%s6485] sm:$0xff]
  %v6487 = vld [vmem:[%s6485 + $0x8] sm:$0xff]
  %v6488 = vld [vmem:[%s6485 + $0x10] sm:$0xff]
  %v6489 = vld [vmem:[%s6485 + $0x18] sm:$0xff]
  %v6490 = vld [vmem:[%s6485 + $0x20] sm:$0xff]
  %v6491 = vld [vmem:[%s6485 + $0x28] sm:$0xff]
  %v6492 = vld [vmem:[%s6485 + $0x30] sm:$0xff]
  %v6493 = vld [vmem:[%s6485 + $0x38] sm:$0xff]
  %v6494 = vld [vmem:[%s6485 + $0x40] sm:$0xff]
  %v6495 = vld [vmem:[%s6485 + $0x48] sm:$0xff]
  %v6496 = vrot.slane %v5586, 4
  %v6497 = vsel %vm1757, %v5693, %v6496
  %v6498 = vsel %vm5695, %v6497, 0
  %v6500 = vsel %vm5695, %v6496, 0
  %6502 = vmatprep.subr.mxu0 0.0
  %6503 = vmatpush1.msra.mxu0 0.0
  %6504 = vmatprep.subr.mxu0 0.0
  %6505 = vmatpush1.msra.mxu0 0.0
  %6506 = vmatprep.subr.mxu0 0.0
  %6507 = vmatpush1.msra.mxu0 0.0
  %6508 = vmatprep.subr.mxu0 0.0
  %6509 = vmatpush1.msra.mxu0 0.0
  %6510 = vmatprep.subr.mxu0 0.0
  %6511 = vmatpush1.msra.mxu0 0.0
  %6512 = vmatprep.subr.mxu0 0.0
  %6513 = vmatpush1.msra.mxu0 0.0
  %6514 = vmatprep.subr.mxu0 0.0
  %6515 = vmatpush1.msra.mxu0 %v6495
  %6516 = vmatprep.subr.mxu0 0.0
  %6517 = vmatpush1.msra.mxu0 %v6494
  %6518 = vmatprep.subr.mxu0 0.0
  %6519 = vmatpush1.msra.mxu0 %v6493
  %6520 = vmatprep.subr.mxu0 0.0
  %6521 = vmatpush1.msra.mxu0 %v6492
  %6522 = vmatprep.subr.mxu0 0.0
  %6523 = vmatpush1.msra.mxu0 %v6491
  %6524 = vmatprep.subr.mxu0 0.0
  %6525 = vmatpush1.msra.mxu0 %v6490
  %6526 = vmatprep.subr.mxu0 0.0
  %6527 = vmatpush1.msra.mxu0 %v6489
  %6528 = vmatprep.subr.mxu0 0.0
  %6529 = vmatpush1.msra.mxu0 %v6488
  %6530 = vmatprep.subr.mxu0 0.0
  %6531 = vmatpush1.msra.mxu0 %v6487
  %6532 = vmatprep.subr.mxu0 0.0
  %6533 = vmatpush1.msra.mxu0 %v6486
  %6534 = vmatprep.subr.mxu0 0.0
  %6535 = vmatpush2.msra.mxu0 0.0
  %6536 = vmatprep.subr.mxu0 0.0
  %6537 = vmatpush2.msra.mxu0 0.0
  %6538 = vmatprep.subr.mxu0 0.0
  %6539 = vmatpush2.msra.mxu0 0.0
  %6540 = vmatprep.subr.mxu0 0.0
  %6541 = vmatpush2.msra.mxu0 0.0
  %6542 = vmatprep.subr.mxu0 0.0
  %6543 = vmatpush2.msra.mxu0 0.0
  %6544 = vmatprep.subr.mxu0 0.0
  %6545 = vmatpush2.msra.mxu0 0.0
  %6546 = vmatprep.subr.mxu0 0.0
  %6547 = vmatpush2.msra.mxu0 0.0
  %6548 = vmatprep.subr.mxu0 0.0
  %6549 = vmatpush2.msra.mxu0 0.0
  %6550 = vmatprep.subr.mxu0 0.0
  %6551 = vmatpush2.msra.mxu0 0.0
  %6552 = vmatprep.subr.mxu0 0.0
  %6553 = vmatpush2.msra.mxu0 0.0
  %6554 = vmatprep.subr.mxu0 0.0
  %6555 = vmatpush2.msra.mxu0 0.0
  %6556 = vmatprep.subr.mxu0 0.0
  %6557 = vmatpush2.msra.mxu0 0.0
  %6558 = vmatprep.subr.mxu0 0.0
  %6559 = vmatpush2.msra.mxu0 0.0
  %6560 = vmatprep.subr.mxu0 0.0
  %6561 = vmatpush2.msra.mxu0 0.0
  %6562 = vmatprep.subr.mxu0 0.0
  %6563 = vmatpush2.msra.mxu0 0.0
  %6564 = vmatprep.subr.mxu0 0.0
  %6565 = vmatpush2.msra.mxu0 0.0
  %6566 = vmatprep.mubr.f32.mxu0 0.0
  %6567 = vmatmul.mubr.f32.gmra.mxu0 %v5698
  %v6568 = vpop.f32.mrf.mxu0
  %v6569 = vadd.f32 0.0, %v6568
  %v6570 = vpop.f32.mrf.mxu0
  %6571 = vmatprep.mubr.f32.mxu0 0.0
  %6572 = vmatmul.mubr.f32.gmra.mxu0 %v5700
  %v6573 = vpop.f32.mrf.mxu0
  %v6574 = vadd.f32 0.0, %v6573
  %v6575 = vpop.f32.mrf.mxu0
  %6576 = vmatprep.mubr.f32.mxu0 0.0
  %6577 = vmatmul.mubr.f32.gmra.mxu0 %v5702
  %v6578 = vpop.f32.mrf.mxu0
  %v6579 = vadd.f32 0.0, %v6578
  %v6580 = vpop.f32.mrf.mxu0
  %6581 = vmatprep.mubr.f32.mxu0 0.0
  %6582 = vmatmul.mubr.f32.gmra.mxu0 %v5704
  %v6583 = vpop.f32.mrf.mxu0
  %v6584 = vadd.f32 0.0, %v6583
  %v6585 = vpop.f32.mrf.mxu0
  %6586 = vmatprep.mubr.f32.mxu0 0.0
  %6587 = vmatmul.mubr.f32.gmra.mxu0 %v5706
  %v6588 = vpop.f32.mrf.mxu0
  %v6589 = vadd.f32 0.0, %v6588
  %v6590 = vpop.f32.mrf.mxu0
  %6591 = vmatprep.mubr.f32.mxu0 0.0
  %6592 = vmatmul.mubr.f32.gmra.mxu0 %v5708
  %v6593 = vpop.f32.mrf.mxu0
  %v6594 = vadd.f32 0.0, %v6593
  %v6595 = vpop.f32.mrf.mxu0
  %6596 = vmatprep.mubr.f32.mxu0 0.0
  %6597 = vmatmul.mubr.f32.gmra.mxu0 %v5710
  %v6598 = vpop.f32.mrf.mxu0
  %v6599 = vadd.f32 0.0, %v6598
  %v6600 = vpop.f32.mrf.mxu0
  %6601 = vmatprep.mubr.f32.mxu0 0.0
  %6602 = vmatmul.mubr.f32.gmra.mxu0 %v5712
  %v6603 = vpop.f32.mrf.mxu0
  %v6604 = vadd.f32 0.0, %v6603
  %v6605 = vpop.f32.mrf.mxu0
  %6606 = vmatprep.mubr.f32.mxu0 0.0
  %6607 = vmatmul.mubr.f32.gmra.mxu0 %v5714
  %v6608 = vpop.f32.mrf.mxu0
  %v6609 = vadd.f32 0.0, %v6608
  %v6610 = vpop.f32.mrf.mxu0
  %6611 = vmatprep.mubr.f32.mxu0 0.0
  %6612 = vmatmul.mubr.f32.gmra.mxu0 %v5716
  %v6613 = vpop.f32.mrf.mxu0
  %v6614 = vadd.f32 0.0, %v6613
  %v6615 = vpop.f32.mrf.mxu0
  %6616 = vmatprep.mubr.f32.mxu0 0.0
  %6617 = vmatmul.mubr.f32.gmra.mxu0 %v5718
  %v6618 = vpop.f32.mrf.mxu0
  %v6619 = vadd.f32 0.0, %v6618
  %v6620 = vpop.f32.mrf.mxu0
  %6621 = vmatprep.mubr.f32.mxu0 0.0
  %6622 = vmatmul.mubr.f32.gmra.mxu0 %v5720
  %v6623 = vpop.f32.mrf.mxu0
  %v6624 = vadd.f32 0.0, %v6623
  %v6625 = vpop.f32.mrf.mxu0
  %6626 = vmatprep.mubr.f32.mxu0 0.0
  %6627 = vmatmul.mubr.f32.gmra.mxu0 %v5722
  %v6628 = vpop.f32.mrf.mxu0
  %v6629 = vadd.f32 0.0, %v6628
  %v6630 = vpop.f32.mrf.mxu0
  %6631 = vmatprep.mubr.f32.mxu0 0.0
  %6632 = vmatmul.mubr.f32.gmra.mxu0 %v5724
  %v6633 = vpop.f32.mrf.mxu0
  %v6634 = vadd.f32 0.0, %v6633
  %v6635 = vpop.f32.mrf.mxu0
  %6636 = vmatprep.mubr.f32.mxu0 0.0
  %6637 = vmatmul.mubr.f32.gmra.mxu0 %v5726
  %v6638 = vpop.f32.mrf.mxu0
  %v6639 = vadd.f32 0.0, %v6638
  %v6640 = vpop.f32.mrf.mxu0
  %6641 = vmatprep.mubr.f32.mxu0 0.0
  %6642 = vmatmul.mubr.f32.gmra.mxu0 %v5728
  %v6643 = vpop.f32.mrf.mxu0
  %v6644 = vadd.f32 0.0, %v6643
  %v6645 = vpop.f32.mrf.mxu0
  %6646 = vmatprep.mubr.f32.mxu0 0.0
  %6647 = vmatmul.mubr.f32.gmra.mxu0 %v5730
  %v6648 = vpop.f32.mrf.mxu0
  %v6649 = vadd.f32 0.0, %v6648
  %v6650 = vpop.f32.mrf.mxu0
  %6651 = vmatprep.mubr.f32.mxu0 0.0
  %6652 = vmatmul.mubr.f32.gmra.mxu0 %v5732
  %v6653 = vpop.f32.mrf.mxu0
  %v6654 = vadd.f32 0.0, %v6653
  %v6655 = vpop.f32.mrf.mxu0
  %6656 = vmatprep.mubr.f32.mxu0 0.0
  %6657 = vmatmul.mubr.f32.gmra.mxu0 %v5734
  %v6658 = vpop.f32.mrf.mxu0
  %v6659 = vadd.f32 0.0, %v6658
  %v6660 = vpop.f32.mrf.mxu0
  %6661 = vmatprep.mubr.f32.mxu0 0.0
  %6662 = vmatmul.mubr.f32.gmra.mxu0 %v5736
  %v6663 = vpop.f32.mrf.mxu0
  %v6664 = vadd.f32 0.0, %v6663
  %v6665 = vpop.f32.mrf.mxu0
  %6666 = vmatprep.mubr.f32.mxu0 0.0
  %6667 = vmatmul.mubr.f32.gmra.mxu0 %v5738
  %v6668 = vpop.f32.mrf.mxu0
  %v6669 = vadd.f32 0.0, %v6668
  %v6670 = vpop.f32.mrf.mxu0
  %6671 = vmatprep.mubr.f32.mxu0 0.0
  %6672 = vmatmul.mubr.f32.gmra.mxu0 %v5740
  %v6673 = vpop.f32.mrf.mxu0
  %v6674 = vadd.f32 0.0, %v6673
  %v6675 = vpop.f32.mrf.mxu0
  %6676 = vmatprep.mubr.f32.mxu0 0.0
  %6677 = vmatmul.mubr.f32.gmra.mxu0 %v5742
  %v6678 = vpop.f32.mrf.mxu0
  %v6679 = vadd.f32 0.0, %v6678
  %v6680 = vpop.f32.mrf.mxu0
  %6681 = vmatprep.mubr.f32.mxu0 0.0
  %6682 = vmatmul.mubr.f32.gmra.mxu0 %v5744
  %v6683 = vpop.f32.mrf.mxu0
  %v6684 = vadd.f32 0.0, %v6683
  %v6685 = vpop.f32.mrf.mxu0
  %6686 = vmatprep.mubr.f32.mxu0 0.0
  %6687 = vmatmul.mubr.f32.gmra.mxu0 %v5746
  %v6688 = vpop.f32.mrf.mxu0
  %v6689 = vadd.f32 0.0, %v6688
  %v6690 = vpop.f32.mrf.mxu0
  %6691 = vmatprep.mubr.f32.mxu0 0.0
  %6692 = vmatmul.mubr.f32.gmra.mxu0 %v5748
  %v6693 = vpop.f32.mrf.mxu0
  %v6694 = vadd.f32 0.0, %v6693
  %v6695 = vpop.f32.mrf.mxu0
  %6696 = vmatprep.mubr.f32.mxu0 0.0
  %6697 = vmatmul.mubr.f32.gmra.mxu0 %v5750
  %v6698 = vpop.f32.mrf.mxu0
  %v6699 = vadd.f32 0.0, %v6698
  %v6700 = vpop.f32.mrf.mxu0
  %6701 = vmatprep.mubr.f32.mxu0 0.0
  %6702 = vmatmul.mubr.f32.gmra.mxu0 %v6498
  %v6703 = vpop.f32.mrf.mxu0
  %v6704 = vadd.f32 0.0, %v6703
  %v6705 = vpop.f32.mrf.mxu0
  %6706 = vmatprep.mubr.f32.mxu0 0.0
  %6707 = vmatmul.mubr.f32.gmra.mxu0 %v6500
  %v6708 = vpop.f32.mrf.mxu0
  %v6709 = vadd.f32 0.0, %v6708
  %v6710 = vpop.f32.mrf.mxu0
  %6711 = vdwg.mxu0
  %v6712 = vadd.f32 %v6456, %v6569
  %v6713 = vadd.f32 %v6457, %v6574
  %v6714 = vadd.f32 %v6458, %v6579
  %v6715 = vadd.f32 %v6459, %v6584
  %v6716 = vadd.f32 %v6460, %v6589
  %v6717 = vadd.f32 %v6461, %v6594
  %v6718 = vadd.f32 %v6462, %v6599
  %v6719 = vadd.f32 %v6463, %v6604
  %v6720 = vadd.f32 %v6464, %v6609
  %v6721 = vadd.f32 %v6465, %v6614
  %v6722 = vadd.f32 %v6466, %v6619
  %v6723 = vadd.f32 %v6467, %v6624
  %v6724 = vadd.f32 %v6468, %v6629
  %v6725 = vadd.f32 %v6469, %v6634
  %v6726 = vadd.f32 %v6470, %v6639
  %v6727 = vadd.f32 %v6471, %v6644
  %v6728 = vadd.f32 %v6472, %v6649
  %v6729 = vadd.f32 %v6473, %v6654
  %v6730 = vadd.f32 %v6474, %v6659
  %v6731 = vadd.f32 %v6475, %v6664
  %v6732 = vadd.f32 %v6476, %v6669
  %v6733 = vadd.f32 %v6477, %v6674
  %v6734 = vadd.f32 %v6478, %v6679
  %v6735 = vadd.f32 %v6479, %v6684
  %v6736 = vadd.f32 %v6480, %v6689
  %v6737 = vadd.f32 %v6481, %v6694
  %v6738 = vadd.f32 %v6482, %v6699
  %v6739 = vadd.f32 %v6483, %v6704
  %v6740 = vadd.f32 %v6484, %v6709
  %s6741 = scalar_lea.vmem %s7, 320
  %v6742 = vld [vmem:[%s6741] sm:$0xff]
  %v6743 = vld [vmem:[%s6741 + $0x8] sm:$0xff]
  %v6744 = vld [vmem:[%s6741 + $0x10] sm:$0xff]
  %v6745 = vld [vmem:[%s6741 + $0x18] sm:$0xff]
  %v6746 = vld [vmem:[%s6741 + $0x20] sm:$0xff]
  %v6747 = vld [vmem:[%s6741 + $0x28] sm:$0xff]
  %v6748 = vld [vmem:[%s6741 + $0x30] sm:$0xff]
  %v6749 = vld [vmem:[%s6741 + $0x38] sm:$0xff]
  %v6750 = vld [vmem:[%s6741 + $0x40] sm:$0xff]
  %v6751 = vld [vmem:[%s6741 + $0x48] sm:$0xff]
  %v6753 = vsel %vm5695, %v5587, 0
  %6755 = vmatprep.subr.mxu0 0.0
  %6756 = vmatpush1.msra.mxu0 0.0
  %6757 = vmatprep.subr.mxu0 0.0
  %6758 = vmatpush1.msra.mxu0 0.0
  %6759 = vmatprep.subr.mxu0 0.0
  %6760 = vmatpush1.msra.mxu0 0.0
  %6761 = vmatprep.subr.mxu0 0.0
  %6762 = vmatpush1.msra.mxu0 0.0
  %6763 = vmatprep.subr.mxu0 0.0
  %6764 = vmatpush1.msra.mxu0 0.0
  %6765 = vmatprep.subr.mxu0 0.0
  %6766 = vmatpush1.msra.mxu0 0.0
  %6767 = vmatprep.subr.mxu0 0.0
  %6768 = vmatpush1.msra.mxu0 %v6751
  %6769 = vmatprep.subr.mxu0 0.0
  %6770 = vmatpush1.msra.mxu0 %v6750
  %6771 = vmatprep.subr.mxu0 0.0
  %6772 = vmatpush1.msra.mxu0 %v6749
  %6773 = vmatprep.subr.mxu0 0.0
  %6774 = vmatpush1.msra.mxu0 %v6748
  %6775 = vmatprep.subr.mxu0 0.0
  %6776 = vmatpush1.msra.mxu0 %v6747
  %6777 = vmatprep.subr.mxu0 0.0
  %6778 = vmatpush1.msra.mxu0 %v6746
  %6779 = vmatprep.subr.mxu0 0.0
  %6780 = vmatpush1.msra.mxu0 %v6745
  %6781 = vmatprep.subr.mxu0 0.0
  %6782 = vmatpush1.msra.mxu0 %v6744
  %6783 = vmatprep.subr.mxu0 0.0
  %6784 = vmatpush1.msra.mxu0 %v6743
  %6785 = vmatprep.subr.mxu0 0.0
  %6786 = vmatpush1.msra.mxu0 %v6742
  %6787 = vmatprep.subr.mxu0 0.0
  %6788 = vmatpush2.msra.mxu0 0.0
  %6789 = vmatprep.subr.mxu0 0.0
  %6790 = vmatpush2.msra.mxu0 0.0
  %6791 = vmatprep.subr.mxu0 0.0
  %6792 = vmatpush2.msra.mxu0 0.0
  %6793 = vmatprep.subr.mxu0 0.0
  %6794 = vmatpush2.msra.mxu0 0.0
  %6795 = vmatprep.subr.mxu0 0.0
  %6796 = vmatpush2.msra.mxu0 0.0
  %6797 = vmatprep.subr.mxu0 0.0
  %6798 = vmatpush2.msra.mxu0 0.0
  %6799 = vmatprep.subr.mxu0 0.0
  %6800 = vmatpush2.msra.mxu0 0.0
  %6801 = vmatprep.subr.mxu0 0.0
  %6802 = vmatpush2.msra.mxu0 0.0
  %6803 = vmatprep.subr.mxu0 0.0
  %6804 = vmatpush2.msra.mxu0 0.0
  %6805 = vmatprep.subr.mxu0 0.0
  %6806 = vmatpush2.msra.mxu0 0.0
  %6807 = vmatprep.subr.mxu0 0.0
  %6808 = vmatpush2.msra.mxu0 0.0
  %6809 = vmatprep.subr.mxu0 0.0
  %6810 = vmatpush2.msra.mxu0 0.0
  %6811 = vmatprep.subr.mxu0 0.0
  %6812 = vmatpush2.msra.mxu0 0.0
  %6813 = vmatprep.subr.mxu0 0.0
  %6814 = vmatpush2.msra.mxu0 0.0
  %6815 = vmatprep.subr.mxu0 0.0
  %6816 = vmatpush2.msra.mxu0 0.0
  %6817 = vmatprep.subr.mxu0 0.0
  %6818 = vmatpush2.msra.mxu0 0.0
  %6819 = vmatprep.mubr.f32.mxu0 0.0
  %6820 = vmatmul.mubr.f32.gmra.mxu0 %v5968
  %v6821 = vpop.f32.mrf.mxu0
  %v6822 = vadd.f32 0.0, %v6821
  %v6823 = vpop.f32.mrf.mxu0
  %6824 = vmatprep.mubr.f32.mxu0 0.0
  %6825 = vmatmul.mubr.f32.gmra.mxu0 %v5970
  %v6826 = vpop.f32.mrf.mxu0
  %v6827 = vadd.f32 0.0, %v6826
  %v6828 = vpop.f32.mrf.mxu0
  %6829 = vmatprep.mubr.f32.mxu0 0.0
  %6830 = vmatmul.mubr.f32.gmra.mxu0 %v5972
  %v6831 = vpop.f32.mrf.mxu0
  %v6832 = vadd.f32 0.0, %v6831
  %v6833 = vpop.f32.mrf.mxu0
  %6834 = vmatprep.mubr.f32.mxu0 0.0
  %6835 = vmatmul.mubr.f32.gmra.mxu0 %v5974
  %v6836 = vpop.f32.mrf.mxu0
  %v6837 = vadd.f32 0.0, %v6836
  %v6838 = vpop.f32.mrf.mxu0
  %6839 = vmatprep.mubr.f32.mxu0 0.0
  %6840 = vmatmul.mubr.f32.gmra.mxu0 %v5976
  %v6841 = vpop.f32.mrf.mxu0
  %v6842 = vadd.f32 0.0, %v6841
  %v6843 = vpop.f32.mrf.mxu0
  %6844 = vmatprep.mubr.f32.mxu0 0.0
  %6845 = vmatmul.mubr.f32.gmra.mxu0 %v5978
  %v6846 = vpop.f32.mrf.mxu0
  %v6847 = vadd.f32 0.0, %v6846
  %v6848 = vpop.f32.mrf.mxu0
  %6849 = vmatprep.mubr.f32.mxu0 0.0
  %6850 = vmatmul.mubr.f32.gmra.mxu0 %v5980
  %v6851 = vpop.f32.mrf.mxu0
  %v6852 = vadd.f32 0.0, %v6851
  %v6853 = vpop.f32.mrf.mxu0
  %6854 = vmatprep.mubr.f32.mxu0 0.0
  %6855 = vmatmul.mubr.f32.gmra.mxu0 %v5982
  %v6856 = vpop.f32.mrf.mxu0
  %v6857 = vadd.f32 0.0, %v6856
  %v6858 = vpop.f32.mrf.mxu0
  %6859 = vmatprep.mubr.f32.mxu0 0.0
  %6860 = vmatmul.mubr.f32.gmra.mxu0 %v5984
  %v6861 = vpop.f32.mrf.mxu0
  %v6862 = vadd.f32 0.0, %v6861
  %v6863 = vpop.f32.mrf.mxu0
  %6864 = vmatprep.mubr.f32.mxu0 0.0
  %6865 = vmatmul.mubr.f32.gmra.mxu0 %v5986
  %v6866 = vpop.f32.mrf.mxu0
  %v6867 = vadd.f32 0.0, %v6866
  %v6868 = vpop.f32.mrf.mxu0
  %6869 = vmatprep.mubr.f32.mxu0 0.0
  %6870 = vmatmul.mubr.f32.gmra.mxu0 %v5988
  %v6871 = vpop.f32.mrf.mxu0
  %v6872 = vadd.f32 0.0, %v6871
  %v6873 = vpop.f32.mrf.mxu0
  %6874 = vmatprep.mubr.f32.mxu0 0.0
  %6875 = vmatmul.mubr.f32.gmra.mxu0 %v5990
  %v6876 = vpop.f32.mrf.mxu0
  %v6877 = vadd.f32 0.0, %v6876
  %v6878 = vpop.f32.mrf.mxu0
  %6879 = vmatprep.mubr.f32.mxu0 0.0
  %6880 = vmatmul.mubr.f32.gmra.mxu0 %v5992
  %v6881 = vpop.f32.mrf.mxu0
  %v6882 = vadd.f32 0.0, %v6881
  %v6883 = vpop.f32.mrf.mxu0
  %6884 = vmatprep.mubr.f32.mxu0 0.0
  %6885 = vmatmul.mubr.f32.gmra.mxu0 %v5994
  %v6886 = vpop.f32.mrf.mxu0
  %v6887 = vadd.f32 0.0, %v6886
  %v6888 = vpop.f32.mrf.mxu0
  %6889 = vmatprep.mubr.f32.mxu0 0.0
  %6890 = vmatmul.mubr.f32.gmra.mxu0 %v5996
  %v6891 = vpop.f32.mrf.mxu0
  %v6892 = vadd.f32 0.0, %v6891
  %v6893 = vpop.f32.mrf.mxu0
  %6894 = vmatprep.mubr.f32.mxu0 0.0
  %6895 = vmatmul.mubr.f32.gmra.mxu0 %v5998
  %v6896 = vpop.f32.mrf.mxu0
  %v6897 = vadd.f32 0.0, %v6896
  %v6898 = vpop.f32.mrf.mxu0
  %6899 = vmatprep.mubr.f32.mxu0 0.0
  %6900 = vmatmul.mubr.f32.gmra.mxu0 %v6000
  %v6901 = vpop.f32.mrf.mxu0
  %v6902 = vadd.f32 0.0, %v6901
  %v6903 = vpop.f32.mrf.mxu0
  %6904 = vmatprep.mubr.f32.mxu0 0.0
  %6905 = vmatmul.mubr.f32.gmra.mxu0 %v6002
  %v6906 = vpop.f32.mrf.mxu0
  %v6907 = vadd.f32 0.0, %v6906
  %v6908 = vpop.f32.mrf.mxu0
  %6909 = vmatprep.mubr.f32.mxu0 0.0
  %6910 = vmatmul.mubr.f32.gmra.mxu0 %v6004
  %v6911 = vpop.f32.mrf.mxu0
  %v6912 = vadd.f32 0.0, %v6911
  %v6913 = vpop.f32.mrf.mxu0
  %6914 = vmatprep.mubr.f32.mxu0 0.0
  %6915 = vmatmul.mubr.f32.gmra.mxu0 %v6006
  %v6916 = vpop.f32.mrf.mxu0
  %v6917 = vadd.f32 0.0, %v6916
  %v6918 = vpop.f32.mrf.mxu0
  %6919 = vmatprep.mubr.f32.mxu0 0.0
  %6920 = vmatmul.mubr.f32.gmra.mxu0 %v6008
  %v6921 = vpop.f32.mrf.mxu0
  %v6922 = vadd.f32 0.0, %v6921
  %v6923 = vpop.f32.mrf.mxu0
  %6924 = vmatprep.mubr.f32.mxu0 0.0
  %6925 = vmatmul.mubr.f32.gmra.mxu0 %v6010
  %v6926 = vpop.f32.mrf.mxu0
  %v6927 = vadd.f32 0.0, %v6926
  %v6928 = vpop.f32.mrf.mxu0
  %6929 = vmatprep.mubr.f32.mxu0 0.0
  %6930 = vmatmul.mubr.f32.gmra.mxu0 %v6012
  %v6931 = vpop.f32.mrf.mxu0
  %v6932 = vadd.f32 0.0, %v6931
  %v6933 = vpop.f32.mrf.mxu0
  %6934 = vmatprep.mubr.f32.mxu0 0.0
  %6935 = vmatmul.mubr.f32.gmra.mxu0 %v6014
  %v6936 = vpop.f32.mrf.mxu0
  %v6937 = vadd.f32 0.0, %v6936
  %v6938 = vpop.f32.mrf.mxu0
  %6939 = vmatprep.mubr.f32.mxu0 0.0
  %6940 = vmatmul.mubr.f32.gmra.mxu0 %v6016
  %v6941 = vpop.f32.mrf.mxu0
  %v6942 = vadd.f32 0.0, %v6941
  %v6943 = vpop.f32.mrf.mxu0
  %6944 = vmatprep.mubr.f32.mxu0 0.0
  %6945 = vmatmul.mubr.f32.gmra.mxu0 %v6018
  %v6946 = vpop.f32.mrf.mxu0
  %v6947 = vadd.f32 0.0, %v6946
  %v6948 = vpop.f32.mrf.mxu0
  %6949 = vmatprep.mubr.f32.mxu0 0.0
  %6950 = vmatmul.mubr.f32.gmra.mxu0 %v6020
  %v6951 = vpop.f32.mrf.mxu0
  %v6952 = vadd.f32 0.0, %v6951
  %v6953 = vpop.f32.mrf.mxu0
  %6954 = vmatprep.mubr.f32.mxu0 0.0
  %6955 = vmatmul.mubr.f32.gmra.mxu0 %v6244
  %v6956 = vpop.f32.mrf.mxu0
  %v6957 = vadd.f32 0.0, %v6956
  %v6958 = vpop.f32.mrf.mxu0
  %6959 = vmatprep.mubr.f32.mxu0 0.0
  %6960 = vmatmul.mubr.f32.gmra.mxu0 %v6753
  %v6961 = vpop.f32.mrf.mxu0
  %v6962 = vadd.f32 0.0, %v6961
  %v6963 = vpop.f32.mrf.mxu0
  %6964 = vdwg.mxu0
  %v6965 = vadd.f32 %v6712, %v6822
  %v6966 = vadd.f32 %v6713, %v6827
  %v6967 = vadd.f32 %v6714, %v6832
  %v6968 = vadd.f32 %v6715, %v6837
  %v6969 = vadd.f32 %v6716, %v6842
  %v6970 = vadd.f32 %v6717, %v6847
  %v6971 = vadd.f32 %v6718, %v6852
  %v6972 = vadd.f32 %v6719, %v6857
  %v6973 = vadd.f32 %v6720, %v6862
  %v6974 = vadd.f32 %v6721, %v6867
  %v6975 = vadd.f32 %v6722, %v6872
  %v6976 = vadd.f32 %v6723, %v6877
  %v6977 = vadd.f32 %v6724, %v6882
  %v6978 = vadd.f32 %v6725, %v6887
  %v6979 = vadd.f32 %v6726, %v6892
  %v6980 = vadd.f32 %v6727, %v6897
  %v6981 = vadd.f32 %v6728, %v6902
  %v6982 = vadd.f32 %v6729, %v6907
  %v6983 = vadd.f32 %v6730, %v6912
  %v6984 = vadd.f32 %v6731, %v6917
  %v6985 = vadd.f32 %v6732, %v6922
  %v6986 = vadd.f32 %v6733, %v6927
  %v6987 = vadd.f32 %v6734, %v6932
  %v6988 = vadd.f32 %v6735, %v6937
  %v6989 = vadd.f32 %v6736, %v6942
  %v6990 = vadd.f32 %v6737, %v6947
  %v6991 = vadd.f32 %v6738, %v6952
  %v6992 = vadd.f32 %v6739, %v6957
  %v6993 = vadd.f32 %v6740, %v6962
  %v6994 = vld [vmem:[%s8] sm:$0x1]
  %v6996 = vlaneseq
  %v6997 = vshrl.u32 %v6996, 7
  %v6998 = vsub.s32 0, %v6997
  %v6999 = vrot.slane %v6994, %v6998
  %v7001 = vadd.f32 %v6965, %v6999
  %v7002 = vadd.f32 %v6966, %v6999
  %v7003 = vadd.f32 %v6967, %v6999
  %v7004 = vadd.f32 %v6968, %v6999
  %v7005 = vadd.f32 %v6969, %v6999
  %v7006 = vadd.f32 %v6970, %v6999
  %v7007 = vadd.f32 %v6971, %v6999
  %v7008 = vadd.f32 %v6972, %v6999
  %v7009 = vadd.f32 %v6973, %v6999
  %v7010 = vadd.f32 %v6974, %v6999
  %v7011 = vadd.f32 %v6975, %v6999
  %v7012 = vadd.f32 %v6976, %v6999
  %v7013 = vadd.f32 %v6977, %v6999
  %v7014 = vadd.f32 %v6978, %v6999
  %v7015 = vadd.f32 %v6979, %v6999
  %v7016 = vadd.f32 %v6980, %v6999
  %v7017 = vadd.f32 %v6981, %v6999
  %v7018 = vadd.f32 %v6982, %v6999
  %v7019 = vadd.f32 %v6983, %v6999
  %v7020 = vadd.f32 %v6984, %v6999
  %v7021 = vadd.f32 %v6985, %v6999
  %v7022 = vadd.f32 %v6986, %v6999
  %v7023 = vadd.f32 %v6987, %v6999
  %v7024 = vadd.f32 %v6988, %v6999
  %v7025 = vadd.f32 %v6989, %v6999
  %v7026 = vadd.f32 %v6990, %v6999
  %v7027 = vadd.f32 %v6991, %v6999
  %v7028 = vadd.f32 %v6992, %v6999
  %v7029 = vadd.f32 %v6993, %v6999
  %v7030 = vtanh.pop %v7001
  %v7031 = vtanh.pop %v7002
  %v7032 = vtanh.pop %v7003
  %v7033 = vtanh.pop %v7004
  %v7034 = vtanh.pop %v7005
  %v7035 = vtanh.pop %v7006
  %v7036 = vtanh.pop %v7007
  %v7037 = vtanh.pop %v7008
  %v7038 = vtanh.pop %v7009
  %v7039 = vtanh.pop %v7010
  %v7040 = vtanh.pop %v7011
  %v7041 = vtanh.pop %v7012
  %v7042 = vtanh.pop %v7013
  %v7043 = vtanh.pop %v7014
  %v7044 = vtanh.pop %v7015
  %v7045 = vtanh.pop %v7016
  %v7046 = vtanh.pop %v7017
  %v7047 = vtanh.pop %v7018
  %v7048 = vtanh.pop %v7019
  %v7049 = vtanh.pop %v7020
  %v7050 = vtanh.pop %v7021
  %v7051 = vtanh.pop %v7022
  %v7052 = vtanh.pop %v7023
  %v7053 = vtanh.pop %v7024
  %v7054 = vtanh.pop %v7025
  %v7055 = vtanh.pop %v7026
  %v7056 = vtanh.pop %v7027
  %v7057 = vtanh.pop %v7028
  %v7058 = vtanh.pop %v7029
  %v7059 = vld [vmem:[%s9] sm:$0xff]
  %v7060 = vld [vmem:[%s9 + $0x8] sm:$0xff]
  %v7061 = vld [vmem:[%s9 + $0x10] sm:$0xff]
  %v7062 = vld [vmem:[%s9 + $0x18] sm:$0xff]
  %v7063 = vld [vmem:[%s9 + $0x20] sm:$0xff]
  %v7064 = vld [vmem:[%s9 + $0x28] sm:$0xff]
  %v7065 = vld [vmem:[%s9 + $0x30] sm:$0xff]
  %v7066 = vld [vmem:[%s9 + $0x38] sm:$0xff]
  %v7067 = vld [vmem:[%s9 + $0x40] sm:$0xff]
  %v7068 = vld [vmem:[%s9 + $0x48] sm:$0xff]
  %v7069 = vld [vmem:[%s9 + $0x50] sm:$0xff]
  %v7070 = vld [vmem:[%s9 + $0x58] sm:$0xff]
  %v7071 = vld [vmem:[%s9 + $0x60] sm:$0xff]
  %v7072 = vld [vmem:[%s9 + $0x68] sm:$0xff]
  %v7073 = vld [vmem:[%s9 + $0x70] sm:$0xff]
  %v7074 = vld [vmem:[%s10] sm:$0x1]
  %v7076 = vlaneseq
  %v7077 = vshrl.u32 %v7076, 7
  %v7078 = vsub.s32 0, %v7077
  %v7079 = vrot.slane %v7074, %v7078
  %vm7081 = vcmask 982016
  %v7083 = vsel %vm7081, %v7030, 0
  %v7086 = vsel %vm7081, %v7031, 0
  %v7089 = vsel %vm7081, %v7032, 0
  %v7092 = vsel %vm7081, %v7033, 0
  %v7095 = vsel %vm7081, %v7034, 0
  %v7098 = vsel %vm7081, %v7035, 0
  %v7101 = vsel %vm7081, %v7036, 0
  %v7104 = vsel %vm7081, %v7037, 0
  %v7107 = vsel %vm7081, %v7038, 0
  %v7110 = vsel %vm7081, %v7039, 0
  %v7113 = vsel %vm7081, %v7040, 0
  %v7116 = vsel %vm7081, %v7041, 0
  %v7119 = vsel %vm7081, %v7042, 0
  %v7122 = vsel %vm7081, %v7043, 0
  %v7125 = vsel %vm7081, %v7044, 0
  %v7128 = vsel %vm7081, %v7045, 0
  %v7131 = vsel %vm7081, %v7046, 0
  %v7134 = vsel %vm7081, %v7047, 0
  %v7137 = vsel %vm7081, %v7048, 0
  %v7140 = vsel %vm7081, %v7049, 0
  %v7143 = vsel %vm7081, %v7050, 0
  %v7146 = vsel %vm7081, %v7051, 0
  %v7149 = vsel %vm7081, %v7052, 0
  %v7152 = vsel %vm7081, %v7053, 0
  %v7155 = vsel %vm7081, %v7054, 0
  %v7158 = vsel %vm7081, %v7055, 0
  %v7161 = vsel %vm7081, %v7056, 0
  %v7164 = vsel %vm7081, %v7057, 0
  %v7167 = vsel %vm7081, %v7058, 0
  %7169 = vmatprep.subr.mxu0 0.0
  %7170 = vmatpush1.msra.mxu0 0.0
  %7171 = vmatprep.subr.mxu0 0.0
  %7172 = vmatpush1.msra.mxu0 %v7073
  %7173 = vmatprep.subr.mxu0 0.0
  %7174 = vmatpush1.msra.mxu0 %v7072
  %7175 = vmatprep.subr.mxu0 0.0
  %7176 = vmatpush1.msra.mxu0 %v7071
  %7177 = vmatprep.subr.mxu0 0.0
  %7178 = vmatpush1.msra.mxu0 %v7070
  %7179 = vmatprep.subr.mxu0 0.0
  %7180 = vmatpush1.msra.mxu0 %v7069
  %7181 = vmatprep.subr.mxu0 0.0
  %7182 = vmatpush1.msra.mxu0 %v7068
  %7183 = vmatprep.subr.mxu0 0.0
  %7184 = vmatpush1.msra.mxu0 %v7067
  %7185 = vmatprep.subr.mxu0 0.0
  %7186 = vmatpush1.msra.mxu0 %v7066
  %7187 = vmatprep.subr.mxu0 0.0
  %7188 = vmatpush1.msra.mxu0 %v7065
  %7189 = vmatprep.subr.mxu0 0.0
  %7190 = vmatpush1.msra.mxu0 %v7064
  %7191 = vmatprep.subr.mxu0 0.0
  %7192 = vmatpush1.msra.mxu0 %v7063
  %7193 = vmatprep.subr.mxu0 0.0
  %7194 = vmatpush1.msra.mxu0 %v7062
  %7195 = vmatprep.subr.mxu0 0.0
  %7196 = vmatpush1.msra.mxu0 %v7061
  %7197 = vmatprep.subr.mxu0 0.0
  %7198 = vmatpush1.msra.mxu0 %v7060
  %7199 = vmatprep.subr.mxu0 0.0
  %7200 = vmatpush1.msra.mxu0 %v7059
  %7201 = vmatprep.subr.mxu0 0.0
  %7202 = vmatpush2.msra.mxu0 0.0
  %7203 = vmatprep.subr.mxu0 0.0
  %7204 = vmatpush2.msra.mxu0 0.0
  %7205 = vmatprep.subr.mxu0 0.0
  %7206 = vmatpush2.msra.mxu0 0.0
  %7207 = vmatprep.subr.mxu0 0.0
  %7208 = vmatpush2.msra.mxu0 0.0
  %7209 = vmatprep.subr.mxu0 0.0
  %7210 = vmatpush2.msra.mxu0 0.0
  %7211 = vmatprep.subr.mxu0 0.0
  %7212 = vmatpush2.msra.mxu0 0.0
  %7213 = vmatprep.subr.mxu0 0.0
  %7214 = vmatpush2.msra.mxu0 0.0
  %7215 = vmatprep.subr.mxu0 0.0
  %7216 = vmatpush2.msra.mxu0 0.0
  %7217 = vmatprep.subr.mxu0 0.0
  %7218 = vmatpush2.msra.mxu0 0.0
  %7219 = vmatprep.subr.mxu0 0.0
  %7220 = vmatpush2.msra.mxu0 0.0
  %7221 = vmatprep.subr.mxu0 0.0
  %7222 = vmatpush2.msra.mxu0 0.0
  %7223 = vmatprep.subr.mxu0 0.0
  %7224 = vmatpush2.msra.mxu0 0.0
  %7225 = vmatprep.subr.mxu0 0.0
  %7226 = vmatpush2.msra.mxu0 0.0
  %7227 = vmatprep.subr.mxu0 0.0
  %7228 = vmatpush2.msra.mxu0 0.0
  %7229 = vmatprep.subr.mxu0 0.0
  %7230 = vmatpush2.msra.mxu0 0.0
  %7231 = vmatprep.subr.mxu0 0.0
  %7232 = vmatpush2.msra.mxu0 0.0
  %7233 = vmatprep.mubr.f32.mxu0 0.0
  %7234 = vmatmul.mubr.f32.gmra.mxu0 %v7083
  %v7235 = vpop.f32.mrf.mxu0
  %v7236 = vadd.f32 %v7079, %v7235
  %v7237 = vpop.f32.mrf.mxu0
  %7238 = vmatprep.mubr.f32.mxu0 0.0
  %7239 = vmatmul.mubr.f32.gmra.mxu0 %v7086
  %v7240 = vpop.f32.mrf.mxu0
  %v7241 = vadd.f32 %v7079, %v7240
  %v7242 = vpop.f32.mrf.mxu0
  %7243 = vmatprep.mubr.f32.mxu0 0.0
  %7244 = vmatmul.mubr.f32.gmra.mxu0 %v7089
  %v7245 = vpop.f32.mrf.mxu0
  %v7246 = vadd.f32 %v7079, %v7245
  %v7247 = vpop.f32.mrf.mxu0
  %7248 = vmatprep.mubr.f32.mxu0 0.0
  %7249 = vmatmul.mubr.f32.gmra.mxu0 %v7092
  %v7250 = vpop.f32.mrf.mxu0
  %v7251 = vadd.f32 %v7079, %v7250
  %v7252 = vpop.f32.mrf.mxu0
  %7253 = vmatprep.mubr.f32.mxu0 0.0
  %7254 = vmatmul.mubr.f32.gmra.mxu0 %v7095
  %v7255 = vpop.f32.mrf.mxu0
  %v7256 = vadd.f32 %v7079, %v7255
  %v7257 = vpop.f32.mrf.mxu0
  %7258 = vmatprep.mubr.f32.mxu0 0.0
  %7259 = vmatmul.mubr.f32.gmra.mxu0 %v7098
  %v7260 = vpop.f32.mrf.mxu0
  %v7261 = vadd.f32 %v7079, %v7260
  %v7262 = vpop.f32.mrf.mxu0
  %7263 = vmatprep.mubr.f32.mxu0 0.0
  %7264 = vmatmul.mubr.f32.gmra.mxu0 %v7101
  %v7265 = vpop.f32.mrf.mxu0
  %v7266 = vadd.f32 %v7079, %v7265
  %v7267 = vpop.f32.mrf.mxu0
  %7268 = vmatprep.mubr.f32.mxu0 0.0
  %7269 = vmatmul.mubr.f32.gmra.mxu0 %v7104
  %v7270 = vpop.f32.mrf.mxu0
  %v7271 = vadd.f32 %v7079, %v7270
  %v7272 = vpop.f32.mrf.mxu0
  %7273 = vmatprep.mubr.f32.mxu0 0.0
  %7274 = vmatmul.mubr.f32.gmra.mxu0 %v7107
  %v7275 = vpop.f32.mrf.mxu0
  %v7276 = vadd.f32 %v7079, %v7275
  %v7277 = vpop.f32.mrf.mxu0
  %7278 = vmatprep.mubr.f32.mxu0 0.0
  %7279 = vmatmul.mubr.f32.gmra.mxu0 %v7110
  %v7280 = vpop.f32.mrf.mxu0
  %v7281 = vadd.f32 %v7079, %v7280
  %v7282 = vpop.f32.mrf.mxu0
  %7283 = vmatprep.mubr.f32.mxu0 0.0
  %7284 = vmatmul.mubr.f32.gmra.mxu0 %v7113
  %v7285 = vpop.f32.mrf.mxu0
  %v7286 = vadd.f32 %v7079, %v7285
  %v7287 = vpop.f32.mrf.mxu0
  %7288 = vmatprep.mubr.f32.mxu0 0.0
  %7289 = vmatmul.mubr.f32.gmra.mxu0 %v7116
  %v7290 = vpop.f32.mrf.mxu0
  %v7291 = vadd.f32 %v7079, %v7290
  %v7292 = vpop.f32.mrf.mxu0
  %7293 = vmatprep.mubr.f32.mxu0 0.0
  %7294 = vmatmul.mubr.f32.gmra.mxu0 %v7119
  %v7295 = vpop.f32.mrf.mxu0
  %v7296 = vadd.f32 %v7079, %v7295
  %v7297 = vpop.f32.mrf.mxu0
  %7298 = vmatprep.mubr.f32.mxu0 0.0
  %7299 = vmatmul.mubr.f32.gmra.mxu0 %v7122
  %v7300 = vpop.f32.mrf.mxu0
  %v7301 = vadd.f32 %v7079, %v7300
  %v7302 = vpop.f32.mrf.mxu0
  %7303 = vmatprep.mubr.f32.mxu0 0.0
  %7304 = vmatmul.mubr.f32.gmra.mxu0 %v7125
  %v7305 = vpop.f32.mrf.mxu0
  %v7306 = vadd.f32 %v7079, %v7305
  %v7307 = vpop.f32.mrf.mxu0
  %7308 = vmatprep.mubr.f32.mxu0 0.0
  %7309 = vmatmul.mubr.f32.gmra.mxu0 %v7128
  %v7310 = vpop.f32.mrf.mxu0
  %v7311 = vadd.f32 %v7079, %v7310
  %v7312 = vpop.f32.mrf.mxu0
  %7313 = vmatprep.mubr.f32.mxu0 0.0
  %7314 = vmatmul.mubr.f32.gmra.mxu0 %v7131
  %v7315 = vpop.f32.mrf.mxu0
  %v7316 = vadd.f32 %v7079, %v7315
  %v7317 = vpop.f32.mrf.mxu0
  %7318 = vmatprep.mubr.f32.mxu0 0.0
  %7319 = vmatmul.mubr.f32.gmra.mxu0 %v7134
  %v7320 = vpop.f32.mrf.mxu0
  %v7321 = vadd.f32 %v7079, %v7320
  %v7322 = vpop.f32.mrf.mxu0
  %7323 = vmatprep.mubr.f32.mxu0 0.0
  %7324 = vmatmul.mubr.f32.gmra.mxu0 %v7137
  %v7325 = vpop.f32.mrf.mxu0
  %v7326 = vadd.f32 %v7079, %v7325
  %v7327 = vpop.f32.mrf.mxu0
  %7328 = vmatprep.mubr.f32.mxu0 0.0
  %7329 = vmatmul.mubr.f32.gmra.mxu0 %v7140
  %v7330 = vpop.f32.mrf.mxu0
  %v7331 = vadd.f32 %v7079, %v7330
  %v7332 = vpop.f32.mrf.mxu0
  %7333 = vmatprep.mubr.f32.mxu0 0.0
  %7334 = vmatmul.mubr.f32.gmra.mxu0 %v7143
  %v7335 = vpop.f32.mrf.mxu0
  %v7336 = vadd.f32 %v7079, %v7335
  %v7337 = vpop.f32.mrf.mxu0
  %7338 = vmatprep.mubr.f32.mxu0 0.0
  %7339 = vmatmul.mubr.f32.gmra.mxu0 %v7146
  %v7340 = vpop.f32.mrf.mxu0
  %v7341 = vadd.f32 %v7079, %v7340
  %v7342 = vpop.f32.mrf.mxu0
  %7343 = vmatprep.mubr.f32.mxu0 0.0
  %7344 = vmatmul.mubr.f32.gmra.mxu0 %v7149
  %v7345 = vpop.f32.mrf.mxu0
  %v7346 = vadd.f32 %v7079, %v7345
  %v7347 = vpop.f32.mrf.mxu0
  %7348 = vmatprep.mubr.f32.mxu0 0.0
  %7349 = vmatmul.mubr.f32.gmra.mxu0 %v7152
  %v7350 = vpop.f32.mrf.mxu0
  %v7351 = vadd.f32 %v7079, %v7350
  %v7352 = vpop.f32.mrf.mxu0
  %7353 = vmatprep.mubr.f32.mxu0 0.0
  %7354 = vmatmul.mubr.f32.gmra.mxu0 %v7155
  %v7355 = vpop.f32.mrf.mxu0
  %v7356 = vadd.f32 %v7079, %v7355
  %v7357 = vpop.f32.mrf.mxu0
  %7358 = vmatprep.mubr.f32.mxu0 0.0
  %7359 = vmatmul.mubr.f32.gmra.mxu0 %v7158
  %v7360 = vpop.f32.mrf.mxu0
  %v7361 = vadd.f32 %v7079, %v7360
  %v7362 = vpop.f32.mrf.mxu0
  %7363 = vmatprep.mubr.f32.mxu0 0.0
  %7364 = vmatmul.mubr.f32.gmra.mxu0 %v7161
  %v7365 = vpop.f32.mrf.mxu0
  %v7366 = vadd.f32 %v7079, %v7365
  %v7367 = vpop.f32.mrf.mxu0
  %7368 = vmatprep.mubr.f32.mxu0 0.0
  %7369 = vmatmul.mubr.f32.gmra.mxu0 %v7164
  %v7370 = vpop.f32.mrf.mxu0
  %v7371 = vadd.f32 %v7079, %v7370
  %v7372 = vpop.f32.mrf.mxu0
  %7373 = vmatprep.mubr.f32.mxu0 0.0
  %7374 = vmatmul.mubr.f32.gmra.mxu0 %v7167
  %v7375 = vpop.f32.mrf.mxu0
  %v7376 = vadd.f32 %v7079, %v7375
  %v7377 = vpop.f32.mrf.mxu0
  %7378 = vdwg.mxu0
  %v7379 = vtanh.pop %v7236
  %v7380 = vtanh.pop %v7241
  %v7381 = vtanh.pop %v7246
  %v7382 = vtanh.pop %v7251
  %v7383 = vtanh.pop %v7256
  %v7384 = vtanh.pop %v7261
  %v7385 = vtanh.pop %v7266
  %v7386 = vtanh.pop %v7271
  %v7387 = vtanh.pop %v7276
  %v7388 = vtanh.pop %v7281
  %v7389 = vtanh.pop %v7286
  %v7390 = vtanh.pop %v7291
  %v7391 = vtanh.pop %v7296
  %v7392 = vtanh.pop %v7301
  %v7393 = vtanh.pop %v7306
  %v7394 = vtanh.pop %v7311
  %v7395 = vtanh.pop %v7316
  %v7396 = vtanh.pop %v7321
  %v7397 = vtanh.pop %v7326
  %v7398 = vtanh.pop %v7331
  %v7399 = vtanh.pop %v7336
  %v7400 = vtanh.pop %v7341
  %v7401 = vtanh.pop %v7346
  %v7402 = vtanh.pop %v7351
  %v7403 = vtanh.pop %v7356
  %v7404 = vtanh.pop %v7361
  %v7405 = vtanh.pop %v7366
  %v7406 = vtanh.pop %v7371
  %v7407 = vtanh.pop %v7376
  %v7408 = vld [vmem:[%s11] sm:$0xff]
  %v7409 = vld [vmem:[%s11 + $0x8] sm:$0xff]
  %v7410 = vld [vmem:[%s11 + $0x10] sm:$0xff]
  %v7411 = vld [vmem:[%s11 + $0x18] sm:$0xff]
  %v7412 = vld [vmem:[%s11 + $0x20] sm:$0xff]
  %v7413 = vld [vmem:[%s11 + $0x28] sm:$0xff]
  %v7414 = vld [vmem:[%s11 + $0x30] sm:$0xff]
  %v7415 = vld [vmem:[%s11 + $0x38] sm:$0xff]
  %v7416 = vld [vmem:[%s11 + $0x40] sm:$0xff]
  %v7417 = vld [vmem:[%s11 + $0x48] sm:$0xff]
  %v7418 = vld [vmem:[%s11 + $0x50] sm:$0xf]
  %v7419 = vld [vmem:[%s12] sm:$0x1]
  %v7421 = vlaneseq
  %v7422 = vshrl.u32 %v7421, 7
  %v7423 = vsub.s32 0, %v7422
  %v7424 = vrot.slane %v7419, %v7423
  %v7427 = vsel %vm3017, %v7379, 0
  %v7430 = vsel %vm3017, %v7380, 0
  %v7433 = vsel %vm3017, %v7381, 0
  %v7436 = vsel %vm3017, %v7382, 0
  %v7439 = vsel %vm3017, %v7383, 0
  %v7442 = vsel %vm3017, %v7384, 0
  %v7445 = vsel %vm3017, %v7385, 0
  %v7448 = vsel %vm3017, %v7386, 0
  %v7451 = vsel %vm3017, %v7387, 0
  %v7454 = vsel %vm3017, %v7388, 0
  %v7457 = vsel %vm3017, %v7389, 0
  %v7460 = vsel %vm3017, %v7390, 0
  %v7463 = vsel %vm3017, %v7391, 0
  %v7466 = vsel %vm3017, %v7392, 0
  %v7469 = vsel %vm3017, %v7393, 0
  %v7472 = vsel %vm3017, %v7394, 0
  %v7475 = vsel %vm3017, %v7395, 0
  %v7478 = vsel %vm3017, %v7396, 0
  %v7481 = vsel %vm3017, %v7397, 0
  %v7484 = vsel %vm3017, %v7398, 0
  %v7487 = vsel %vm3017, %v7399, 0
  %v7490 = vsel %vm3017, %v7400, 0
  %v7493 = vsel %vm3017, %v7401, 0
  %v7496 = vsel %vm3017, %v7402, 0
  %v7499 = vsel %vm3017, %v7403, 0
  %v7502 = vsel %vm3017, %v7404, 0
  %v7505 = vsel %vm3017, %v7405, 0
  %v7508 = vsel %vm3017, %v7406, 0
  %v7511 = vsel %vm3017, %v7407, 0
  %v7514 = vsel %vm1757, %v7418, 0
  %7516 = vmatprep.subr.mxu0 0.0
  %7517 = vmatpush1.msra.mxu0 0.0
  %7518 = vmatprep.subr.mxu0 0.0
  %7519 = vmatpush1.msra.mxu0 0.0
  %7520 = vmatprep.subr.mxu0 0.0
  %7521 = vmatpush1.msra.mxu0 0.0
  %7522 = vmatprep.subr.mxu0 0.0
  %7523 = vmatpush1.msra.mxu0 0.0
  %7524 = vmatprep.subr.mxu0 0.0
  %7525 = vmatpush1.msra.mxu0 0.0
  %7526 = vmatprep.subr.mxu0 0.0
  %7527 = vmatpush1.msra.mxu0 %v7514
  %7528 = vmatprep.subr.mxu0 0.0
  %7529 = vmatpush1.msra.mxu0 %v7417
  %7530 = vmatprep.subr.mxu0 0.0
  %7531 = vmatpush1.msra.mxu0 %v7416
  %7532 = vmatprep.subr.mxu0 0.0
  %7533 = vmatpush1.msra.mxu0 %v7415
  %7534 = vmatprep.subr.mxu0 0.0
  %7535 = vmatpush1.msra.mxu0 %v7414
  %7536 = vmatprep.subr.mxu0 0.0
  %7537 = vmatpush1.msra.mxu0 %v7413
  %7538 = vmatprep.subr.mxu0 0.0
  %7539 = vmatpush1.msra.mxu0 %v7412
  %7540 = vmatprep.subr.mxu0 0.0
  %7541 = vmatpush1.msra.mxu0 %v7411
  %7542 = vmatprep.subr.mxu0 0.0
  %7543 = vmatpush1.msra.mxu0 %v7410
  %7544 = vmatprep.subr.mxu0 0.0
  %7545 = vmatpush1.msra.mxu0 %v7409
  %7546 = vmatprep.subr.mxu0 0.0
  %7547 = vmatpush1.msra.mxu0 %v7408
  %7548 = vmatprep.subr.mxu0 0.0
  %7549 = vmatpush2.msra.mxu0 0.0
  %7550 = vmatprep.subr.mxu0 0.0
  %7551 = vmatpush2.msra.mxu0 0.0
  %7552 = vmatprep.subr.mxu0 0.0
  %7553 = vmatpush2.msra.mxu0 0.0
  %7554 = vmatprep.subr.mxu0 0.0
  %7555 = vmatpush2.msra.mxu0 0.0
  %7556 = vmatprep.subr.mxu0 0.0
  %7557 = vmatpush2.msra.mxu0 0.0
  %7558 = vmatprep.subr.mxu0 0.0
  %7559 = vmatpush2.msra.mxu0 0.0
  %7560 = vmatprep.subr.mxu0 0.0
  %7561 = vmatpush2.msra.mxu0 0.0
  %7562 = vmatprep.subr.mxu0 0.0
  %7563 = vmatpush2.msra.mxu0 0.0
  %7564 = vmatprep.subr.mxu0 0.0
  %7565 = vmatpush2.msra.mxu0 0.0
  %7566 = vmatprep.subr.mxu0 0.0
  %7567 = vmatpush2.msra.mxu0 0.0
  %7568 = vmatprep.subr.mxu0 0.0
  %7569 = vmatpush2.msra.mxu0 0.0
  %7570 = vmatprep.subr.mxu0 0.0
  %7571 = vmatpush2.msra.mxu0 0.0
  %7572 = vmatprep.subr.mxu0 0.0
  %7573 = vmatpush2.msra.mxu0 0.0
  %7574 = vmatprep.subr.mxu0 0.0
  %7575 = vmatpush2.msra.mxu0 0.0
  %7576 = vmatprep.subr.mxu0 0.0
  %7577 = vmatpush2.msra.mxu0 0.0
  %7578 = vmatprep.subr.mxu0 0.0
  %7579 = vmatpush2.msra.mxu0 0.0
  %7580 = vmatprep.mubr.f32.mxu0 0.0
  %7581 = vmatmul.mubr.f32.gmra.mxu0 %v7427
  %v7582 = vpop.f32.mrf.mxu0
  %v7583 = vadd.f32 %v7424, %v7582
  %v7584 = vpop.f32.mrf.mxu0
  %7585 = vmatprep.mubr.f32.mxu0 0.0
  %7586 = vmatmul.mubr.f32.gmra.mxu0 %v7430
  %v7587 = vpop.f32.mrf.mxu0
  %v7588 = vadd.f32 %v7424, %v7587
  %v7589 = vpop.f32.mrf.mxu0
  %7590 = vmatprep.mubr.f32.mxu0 0.0
  %7591 = vmatmul.mubr.f32.gmra.mxu0 %v7433
  %v7592 = vpop.f32.mrf.mxu0
  %v7593 = vadd.f32 %v7424, %v7592
  %v7594 = vpop.f32.mrf.mxu0
  %7595 = vmatprep.mubr.f32.mxu0 0.0
  %7596 = vmatmul.mubr.f32.gmra.mxu0 %v7436
  %v7597 = vpop.f32.mrf.mxu0
  %v7598 = vadd.f32 %v7424, %v7597
  %v7599 = vpop.f32.mrf.mxu0
  %7600 = vmatprep.mubr.f32.mxu0 0.0
  %7601 = vmatmul.mubr.f32.gmra.mxu0 %v7439
  %v7602 = vpop.f32.mrf.mxu0
  %v7603 = vadd.f32 %v7424, %v7602
  %v7604 = vpop.f32.mrf.mxu0
  %7605 = vmatprep.mubr.f32.mxu0 0.0
  %7606 = vmatmul.mubr.f32.gmra.mxu0 %v7442
  %v7607 = vpop.f32.mrf.mxu0
  %v7608 = vadd.f32 %v7424, %v7607
  %v7609 = vpop.f32.mrf.mxu0
  %7610 = vmatprep.mubr.f32.mxu0 0.0
  %7611 = vmatmul.mubr.f32.gmra.mxu0 %v7445
  %v7612 = vpop.f32.mrf.mxu0
  %v7613 = vadd.f32 %v7424, %v7612
  %v7614 = vpop.f32.mrf.mxu0
  %7615 = vmatprep.mubr.f32.mxu0 0.0
  %7616 = vmatmul.mubr.f32.gmra.mxu0 %v7448
  %v7617 = vpop.f32.mrf.mxu0
  %v7618 = vadd.f32 %v7424, %v7617
  %v7619 = vpop.f32.mrf.mxu0
  %7620 = vmatprep.mubr.f32.mxu0 0.0
  %7621 = vmatmul.mubr.f32.gmra.mxu0 %v7451
  %v7622 = vpop.f32.mrf.mxu0
  %v7623 = vadd.f32 %v7424, %v7622
  %v7624 = vpop.f32.mrf.mxu0
  %7625 = vmatprep.mubr.f32.mxu0 0.0
  %7626 = vmatmul.mubr.f32.gmra.mxu0 %v7454
  %v7627 = vpop.f32.mrf.mxu0
  %v7628 = vadd.f32 %v7424, %v7627
  %v7629 = vpop.f32.mrf.mxu0
  %7630 = vmatprep.mubr.f32.mxu0 0.0
  %7631 = vmatmul.mubr.f32.gmra.mxu0 %v7457
  %v7632 = vpop.f32.mrf.mxu0
  %v7633 = vadd.f32 %v7424, %v7632
  %v7634 = vpop.f32.mrf.mxu0
  %7635 = vmatprep.mubr.f32.mxu0 0.0
  %7636 = vmatmul.mubr.f32.gmra.mxu0 %v7460
  %v7637 = vpop.f32.mrf.mxu0
  %v7638 = vadd.f32 %v7424, %v7637
  %v7639 = vpop.f32.mrf.mxu0
  %7640 = vmatprep.mubr.f32.mxu0 0.0
  %7641 = vmatmul.mubr.f32.gmra.mxu0 %v7463
  %v7642 = vpop.f32.mrf.mxu0
  %v7643 = vadd.f32 %v7424, %v7642
  %v7644 = vpop.f32.mrf.mxu0
  %7645 = vmatprep.mubr.f32.mxu0 0.0
  %7646 = vmatmul.mubr.f32.gmra.mxu0 %v7466
  %v7647 = vpop.f32.mrf.mxu0
  %v7648 = vadd.f32 %v7424, %v7647
  %v7649 = vpop.f32.mrf.mxu0
  %7650 = vmatprep.mubr.f32.mxu0 0.0
  %7651 = vmatmul.mubr.f32.gmra.mxu0 %v7469
  %v7652 = vpop.f32.mrf.mxu0
  %v7653 = vadd.f32 %v7424, %v7652
  %v7654 = vpop.f32.mrf.mxu0
  %7655 = vmatprep.mubr.f32.mxu0 0.0
  %7656 = vmatmul.mubr.f32.gmra.mxu0 %v7472
  %v7657 = vpop.f32.mrf.mxu0
  %v7658 = vadd.f32 %v7424, %v7657
  %v7659 = vpop.f32.mrf.mxu0
  %7660 = vmatprep.mubr.f32.mxu0 0.0
  %7661 = vmatmul.mubr.f32.gmra.mxu0 %v7475
  %v7662 = vpop.f32.mrf.mxu0
  %v7663 = vadd.f32 %v7424, %v7662
  %v7664 = vpop.f32.mrf.mxu0
  %7665 = vmatprep.mubr.f32.mxu0 0.0
  %7666 = vmatmul.mubr.f32.gmra.mxu0 %v7478
  %v7667 = vpop.f32.mrf.mxu0
  %v7668 = vadd.f32 %v7424, %v7667
  %v7669 = vpop.f32.mrf.mxu0
  %7670 = vmatprep.mubr.f32.mxu0 0.0
  %7671 = vmatmul.mubr.f32.gmra.mxu0 %v7481
  %v7672 = vpop.f32.mrf.mxu0
  %v7673 = vadd.f32 %v7424, %v7672
  %v7674 = vpop.f32.mrf.mxu0
  %7675 = vmatprep.mubr.f32.mxu0 0.0
  %7676 = vmatmul.mubr.f32.gmra.mxu0 %v7484
  %v7677 = vpop.f32.mrf.mxu0
  %v7678 = vadd.f32 %v7424, %v7677
  %v7679 = vpop.f32.mrf.mxu0
  %7680 = vmatprep.mubr.f32.mxu0 0.0
  %7681 = vmatmul.mubr.f32.gmra.mxu0 %v7487
  %v7682 = vpop.f32.mrf.mxu0
  %v7683 = vadd.f32 %v7424, %v7682
  %v7684 = vpop.f32.mrf.mxu0
  %7685 = vmatprep.mubr.f32.mxu0 0.0
  %7686 = vmatmul.mubr.f32.gmra.mxu0 %v7490
  %v7687 = vpop.f32.mrf.mxu0
  %v7688 = vadd.f32 %v7424, %v7687
  %v7689 = vpop.f32.mrf.mxu0
  %7690 = vmatprep.mubr.f32.mxu0 0.0
  %7691 = vmatmul.mubr.f32.gmra.mxu0 %v7493
  %v7692 = vpop.f32.mrf.mxu0
  %v7693 = vadd.f32 %v7424, %v7692
  %v7694 = vpop.f32.mrf.mxu0
  %7695 = vmatprep.mubr.f32.mxu0 0.0
  %7696 = vmatmul.mubr.f32.gmra.mxu0 %v7496
  %v7697 = vpop.f32.mrf.mxu0
  %v7698 = vadd.f32 %v7424, %v7697
  %v7699 = vpop.f32.mrf.mxu0
  %7700 = vmatprep.mubr.f32.mxu0 0.0
  %7701 = vmatmul.mubr.f32.gmra.mxu0 %v7499
  %v7702 = vpop.f32.mrf.mxu0
  %v7703 = vadd.f32 %v7424, %v7702
  %v7704 = vpop.f32.mrf.mxu0
  %7705 = vmatprep.mubr.f32.mxu0 0.0
  %7706 = vmatmul.mubr.f32.gmra.mxu0 %v7502
  %v7707 = vpop.f32.mrf.mxu0
  %v7708 = vadd.f32 %v7424, %v7707
  %v7709 = vpop.f32.mrf.mxu0
  %7710 = vmatprep.mubr.f32.mxu0 0.0
  %7711 = vmatmul.mubr.f32.gmra.mxu0 %v7505
  %v7712 = vpop.f32.mrf.mxu0
  %v7713 = vadd.f32 %v7424, %v7712
  %v7714 = vpop.f32.mrf.mxu0
  %7715 = vmatprep.mubr.f32.mxu0 0.0
  %7716 = vmatmul.mubr.f32.gmra.mxu0 %v7508
  %v7717 = vpop.f32.mrf.mxu0
  %v7718 = vadd.f32 %v7424, %v7717
  %v7719 = vpop.f32.mrf.mxu0
  %7720 = vmatprep.mubr.f32.mxu0 0.0
  %7721 = vmatmul.mubr.f32.gmra.mxu0 %v7511
  %v7722 = vpop.f32.mrf.mxu0
  %v7723 = vadd.f32 %v7424, %v7722
  %v7724 = vpop.f32.mrf.mxu0
  %7725 = vdwg.mxu0
  %vm7726 = vcmask 80896
  %7727 = vst.msk [vmem:[%s13] sm:$0xff] %vm7726, %v7583
  %7728 = vst.msk [vmem:[%s13 + $0x8] sm:$0xff] %vm7726, %v7588
  %7729 = vst.msk [vmem:[%s13 + $0x10] sm:$0xff] %vm7726, %v7593
  %7730 = vst.msk [vmem:[%s13 + $0x18] sm:$0xff] %vm7726, %v7598
  %7731 = vst.msk [vmem:[%s13 + $0x20] sm:$0xff] %vm7726, %v7603
  %7732 = vst.msk [vmem:[%s13 + $0x28] sm:$0xff] %vm7726, %v7608
  %7733 = vst.msk [vmem:[%s13 + $0x30] sm:$0xff] %vm7726, %v7613
  %7734 = vst.msk [vmem:[%s13 + $0x38] sm:$0xff] %vm7726, %v7618
  %7735 = vst.msk [vmem:[%s13 + $0x40] sm:$0xff] %vm7726, %v7623
  %7736 = vst.msk [vmem:[%s13 + $0x48] sm:$0xff] %vm7726, %v7628
  %7737 = vst.msk [vmem:[%s13 + $0x50] sm:$0xff] %vm7726, %v7633
  %7738 = vst.msk [vmem:[%s13 + $0x58] sm:$0xff] %vm7726, %v7638
  %7739 = vst.msk [vmem:[%s13 + $0x60] sm:$0xff] %vm7726, %v7643
  %7740 = vst.msk [vmem:[%s13 + $0x68] sm:$0xff] %vm7726, %v7648
  %7741 = vst.msk [vmem:[%s13 + $0x70] sm:$0xff] %vm7726, %v7653
  %7742 = vst.msk [vmem:[%s13 + $0x78] sm:$0xff] %vm7726, %v7658
  %7743 = vst.msk [vmem:[%s13 + $0x80] sm:$0xff] %vm7726, %v7663
  %7744 = vst.msk [vmem:[%s13 + $0x88] sm:$0xff] %vm7726, %v7668
  %7745 = vst.msk [vmem:[%s13 + $0x90] sm:$0xff] %vm7726, %v7673
  %7746 = vst.msk [vmem:[%s13 + $0x98] sm:$0xff] %vm7726, %v7678
  %7747 = vst.msk [vmem:[%s13 + $0xa0] sm:$0xff] %vm7726, %v7683
  %7748 = vst.msk [vmem:[%s13 + $0xa8] sm:$0xff] %vm7726, %v7688
  %7749 = vst.msk [vmem:[%s13 + $0xb0] sm:$0xff] %vm7726, %v7693
  %7750 = vst.msk [vmem:[%s13 + $0xb8] sm:$0xff] %vm7726, %v7698
  %7751 = vst.msk [vmem:[%s13 + $0xc0] sm:$0xff] %vm7726, %v7703
  %7752 = vst.msk [vmem:[%s13 + $0xc8] sm:$0xff] %vm7726, %v7708
  %7753 = vst.msk [vmem:[%s13 + $0xd0] sm:$0xff] %vm7726, %v7713
  %7754 = vst.msk [vmem:[%s13 + $0xd8] sm:$0xff] %vm7726, %v7718
  %vm7755 = vcmask 73728
  %7756 = vst.msk [vmem:[%s13 + $0xe0] sm:$0x1] %vm7755, %v7723
  %7757 = vst.msk [vmem:[%s13 + $0xe1] sm:$0xff] %vm7726, 0.0
  %7758 = vst.msk [vmem:[%s13 + $0xe9] sm:$0xff] %vm7726, 0.0
  %7759 = vst.msk [vmem:[%s13 + $0xf1] sm:$0xff] %vm7726, 0.0
  %vm7760 = vcmask 79872
  %7761 = vst.msk [vmem:[%s13 + $0xf9] sm:$0x7f] %vm7760, 0.0
  // Predicated region
  $region54: #{lenet5_forward.1} parent=0 // pred_check
    _
  $region55: #{lenet5_forward.1} parent=0 // pred_check_branch
    %7763 = sbr.rel (0) target = $region57
  $region56: #{lenet5_forward.1} parent=0 // pred_region
    _
  $region57: #{lenet5_forward.1} parent=0 // pred_fallthru
    _
  // Predicated region
  $region58: #{lenet5_forward.1} parent=0 // pred_check
    _
  $region59: #{lenet5_forward.1} parent=0 // pred_check_branch
    %7765 = sbr.rel (0) target = $region61
  $region60: #{lenet5_forward.1} parent=0 // pred_region
    _
  $region61: #{lenet5_forward.1} parent=0 // pred_fallthru
    _

</llo_original>
